<compile_context>
chip_gen: v7x
topology: tpu7x:2x2x1
jax: 0.10.0
libtpu: 0.0.40
codegen_flags: <defaults>
</compile_context>

<pallas_src>
import functools

import jax
import jax.numpy as jnp
from jax.experimental import pallas as pl
from jax.experimental.pallas import tpu as pltpu


# -----------------------------------------------------------------------------
# Stage 1: one-shot kernel integrating the weight ODE  dw/dt = MLP(w), t in [t0, t1].
# -----------------------------------------------------------------------------
def _ode_integrate_kernel(w0_ref, w1_ref, b1_ref, w2_ref, b2_ref, wt_ref, *,
                          n_steps, t0, t1):
    w1 = w1_ref[...]
    b1 = b1_ref[...]
    w2 = w2_ref[...]
    b2 = b2_ref[...]

    def ode_func(w):  # (1, in_dim) -> (1, in_dim)
        h = jnp.tanh(jnp.dot(w, w1, preferred_element_type=jnp.float32) + b1)
        return jnp.dot(h, w2, preferred_element_type=jnp.float32) + b2

    dt = (t1 - t0) / n_steps
    w = w0_ref[...]
    # Short fixed trip count -> fully unrolled (visible to the LLO scheduler).
    for _ in range(n_steps):
        k1 = ode_func(w)
        k2 = ode_func(w + 0.5 * dt * k1)
        k3 = ode_func(w + 0.5 * dt * k2)
        k4 = ode_func(w + dt * k3)
        w = w + (dt / 6.0) * (k1 + 2.0 * k2 + 2.0 * k3 + k4)
    wt_ref[...] = w


# -----------------------------------------------------------------------------
# Stage 2: lane-dense tiled read-out  softmax(x @ weights + biases)  over the batch.
#   wt_ref: SMEM (d0*d1 + d1,) f32  -- scalar-prefetched flattened integrated weights
#   x_ref : VMEM (d0, tile_n)       -- transposed batch tile (batch along lanes)
#   o_ref : VMEM (d1, tile_n)       -- transposed softmax output tile (lane-dense)
# -----------------------------------------------------------------------------
def _linear_softmax_kernel(wt_ref, x_ref, o_ref, *, d0, d1):
    x = x_ref[...]                       # (d0, tile_n)
    n_w = d0 * d1

    # logits[c] = biases[c] + sum_f weights[f, c] * x[f, :]   (pure VPU scalar-FMAs)
    logits = []
    for c in range(d1):
        acc = x[0:1, :] * wt_ref[c]
        for f in range(1, d0):
            acc = acc + x[f:f + 1, :] * wt_ref[f * d1 + c]
        logits.append(acc + wt_ref[n_w + c])

    # Numerically stable softmax across the d1 class rows (no cross-lane work).
    m = logits[0]
    for r in logits[1:]:
        m = jnp.maximum(m, r)
    exps = [jnp.exp(r - m) for r in logits]
    denom = exps[0]
    for e in exps[1:]:
        denom = denom + e
    inv = 1.0 / denom
    for c in range(d1):
        o_ref[c:c + 1, :] = exps[c] * inv


def softmax_ode_forward(x, w0, W1, b1, W2, b2, layer_dims, *,
                        tile_n=2048, n_steps=16, t0=0.0, t1=1.0):
    N, D0 = x.shape
    assert layer_dims[0] == D0
    D1 = layer_dims[1]
    in_dim = D0 * D1 + D1
    assert w0.shape == (1, in_dim)
    H = W1.shape[1]
    assert W1.shape == (in_dim, H) and W2.shape == (H, in_dim)

    tile_n = min(tile_n, N)
    assert N % tile_n == 0, "keep N a multiple of tile_n for simplicity"

    # --- Stage 1: integrate w(t) exactly once (tiny one-shot kernel). ---
    wt = pl.pallas_call(
        functools.partial(_ode_integrate_kernel,
                          n_steps=n_steps, t0=float(t0), t1=float(t1)),
        out_shape=jax.ShapeDtypeStruct((1, in_dim), jnp.float32),
        in_specs=[pl.BlockSpec(memory_space=pltpu.MemorySpace.VMEM)] * 5,
        out_specs=pl.BlockSpec(memory_space=pltpu.MemorySpace.VMEM),
    )(w0, W1, b1, W2, b2)
    wt_flat = wt.reshape(in_dim)          # scalar-prefetch operand (lives in SMEM)

    # --- Stage 2: batch-tiled linear + softmax, fully parallel grid. ---
    x_t = x.T                             # (D0, N): lane-dense input layout
    kernel = functools.partial(_linear_softmax_kernel, d0=D0, d1=D1)
    out_t = pl.pallas_call(
        kernel,
        out_shape=jax.ShapeDtypeStruct((D1, N), jnp.float32),
        grid_spec=pltpu.PrefetchScalarGridSpec(
            num_scalar_prefetch=1,                                   # wt_flat -> SMEM
            grid=(N // tile_n,),
            in_specs=[pl.BlockSpec((D0, tile_n), lambda i, wt: (0, i))],
            out_specs=pl.BlockSpec((D1, tile_n), lambda i, wt: (0, i)),
        ),
        compiler_params=pltpu.CompilerParams(
            dimension_semantics=("parallel",)),   # tiles independent -> megacore on v7x
    )(wt_flat, x_t)
    return out_t.T                        # (N, D1)


def _reference(x, w0, W1, b1, W2, b2, layer_dims, n_steps=16, t0=0.0, t1=1.0):
    """Pure-JAX reference with the same fixed-step RK4 semantics."""
    D0, D1 = layer_dims

    def f(w):
        return jnp.tanh(w @ W1 + b1) @ W2 + b2

    dt = (t1 - t0) / n_steps
    w = w0
    for _ in range(n_steps):
        k1 = f(w)
        k2 = f(w + 0.5 * dt * k1)
        k3 = f(w + 0.5 * dt * k2)
        k4 = f(w + dt * k3)
        w = w + (dt / 6.0) * (k1 + 2.0 * k2 + 2.0 * k3 + k4)
    wt = w[0]
    weights = wt[:D0 * D1].reshape(D0, D1)
    biases = wt[-D1:]
    y = x @ weights + biases
    return jax.nn.softmax(y, axis=1)


if __name__ == "__main__":
    layer_dims = (8, 4)        # (input features D0, classes D1)
    hid_dim = 32
    N = 4096
    D0, D1 = layer_dims
    in_dim = D0 * D1 + D1      # 36

    key = jax.random.PRNGKey(0)
    kx, kw0, kw1, kb1, kw2, kb2 = jax.random.split(key, 6)

    x = jax.random.normal(kx, (N, D0), dtype=jnp.float32)
    # Deterministic synthetic parameters (module __init__: w0 = randn(1, in_dim); ODEfunc MLP).
    w0 = jax.random.normal(kw0, (1, in_dim), dtype=jnp.float32)
    W1 = jax.random.normal(kw1, (in_dim, hid_dim), dtype=jnp.float32) * 0.3
    b1 = jax.random.normal(kb1, (1, hid_dim), dtype=jnp.float32) * 0.1
    W2 = jax.random.normal(kw2, (hid_dim, in_dim), dtype=jnp.float32) * 0.3
    b2 = jax.random.normal(kb2, (1, in_dim), dtype=jnp.float32) * 0.1

    out = softmax_ode_forward(x, w0, W1, b1, W2, b2, layer_dims)
    out = jax.block_until_ready(out)

    ref = _reference(x, w0, W1, b1, W2, b2, layer_dims)
    assert out.shape == (N, D1)
    assert bool(jnp.allclose(out, ref, atol=1e-4, rtol=1e-4)), \
        "Pallas kernel mismatch vs JAX reference"

    print("KERNEL_OK")
</pallas_src>

<mosaic_0001>
module attributes {stable_mosaic.version = 11 : i64} {
  func.func @_ode_integrate_kernel(%arg0: memref<1x36xf32, #tpu.memory_space<vmem>>, %arg1: memref<36x32xf32, #tpu.memory_space<vmem>>, %arg2: memref<1x32xf32, #tpu.memory_space<vmem>>, %arg3: memref<32x36xf32, #tpu.memory_space<vmem>>, %arg4: memref<1x36xf32, #tpu.memory_space<vmem>>, %arg5: memref<1x36xf32, #tpu.memory_space<vmem>>) attributes {dimension_semantics = [], scalar_prefetch = 0 : i64, scratch_operands = 0 : i64, tpu.core_type = #tpu.core_type<tc>} {
    %c0 = arith.constant 0 : index
    %c0_0 = arith.constant 0 : index
    %0 = vector.load %arg1[%c0, %c0_0] : memref<36x32xf32, #tpu.memory_space<vmem>>, vector<36x32xf32>
    %c0_1 = arith.constant 0 : index
    %c0_2 = arith.constant 0 : index
    %1 = vector.load %arg2[%c0_1, %c0_2] : memref<1x32xf32, #tpu.memory_space<vmem>>, vector<1x32xf32>
    %c0_3 = arith.constant 0 : index
    %c0_4 = arith.constant 0 : index
    %2 = vector.load %arg3[%c0_3, %c0_4] : memref<32x36xf32, #tpu.memory_space<vmem>>, vector<32x36xf32>
    %c0_5 = arith.constant 0 : index
    %c0_6 = arith.constant 0 : index
    %3 = vector.load %arg4[%c0_5, %c0_6] : memref<1x36xf32, #tpu.memory_space<vmem>>, vector<1x36xf32>
    %c0_7 = arith.constant 0 : index
    %c0_8 = arith.constant 0 : index
    %4 = vector.load %arg0[%c0_7, %c0_8] : memref<1x36xf32, #tpu.memory_space<vmem>>, vector<1x36xf32>
    %cst = arith.constant dense<0.000000e+00> : vector<1x32xf32>
    %5 = tpu.matmul %4, %0, %cst {dimension_numbers = #tpu.dot_dimension_numbers<[1], [0], [0], [1], [0, 0, 1, 1], [], []>} : vector<1x36xf32>, vector<36x32xf32>, vector<1x32xf32> -> vector<1x32xf32>
    %6 = arith.addf %5, %1 : vector<1x32xf32>
    %7 = math.tanh %6 : vector<1x32xf32>
    %cst_9 = arith.constant dense<0.000000e+00> : vector<1x36xf32>
    %8 = tpu.matmul %7, %2, %cst_9 {dimension_numbers = #tpu.dot_dimension_numbers<[1], [0], [0], [1], [0, 0, 1, 1], [], []>} : vector<1x32xf32>, vector<32x36xf32>, vector<1x36xf32> -> vector<1x36xf32>
    %9 = arith.addf %8, %3 : vector<1x36xf32>
    %cst_10 = arith.constant 3.125000e-02 : f32
    %10 = vector.broadcast %cst_10 : f32 to vector<1x36xf32>
    %11 = arith.mulf %10, %9 : vector<1x36xf32>
    %12 = arith.addf %4, %11 : vector<1x36xf32>
    %cst_11 = arith.constant dense<0.000000e+00> : vector<1x32xf32>
    %13 = tpu.matmul %12, %0, %cst_11 {dimension_numbers = #tpu.dot_dimension_numbers<[1], [0], [0], [1], [0, 0, 1, 1], [], []>} : vector<1x36xf32>, vector<36x32xf32>, vector<1x32xf32> -> vector<1x32xf32>
    %14 = arith.addf %13, %1 : vector<1x32xf32>
    %15 = math.tanh %14 : vector<1x32xf32>
    %cst_12 = arith.constant dense<0.000000e+00> : vector<1x36xf32>
    %16 = tpu.matmul %15, %2, %cst_12 {dimension_numbers = #tpu.dot_dimension_numbers<[1], [0], [0], [1], [0, 0, 1, 1], [], []>} : vector<1x32xf32>, vector<32x36xf32>, vector<1x36xf32> -> vector<1x36xf32>
    %17 = arith.addf %16, %3 : vector<1x36xf32>
    %cst_13 = arith.constant 3.125000e-02 : f32
    %18 = vector.broadcast %cst_13 : f32 to vector<1x36xf32>
    %19 = arith.mulf %18, %17 : vector<1x36xf32>
    %20 = arith.addf %4, %19 : vector<1x36xf32>
    %cst_14 = arith.constant dense<0.000000e+00> : vector<1x32xf32>
    %21 = tpu.matmul %20, %0, %cst_14 {dimension_numbers = #tpu.dot_dimension_numbers<[1], [0], [0], [1], [0, 0, 1, 1], [], []>} : vector<1x36xf32>, vector<36x32xf32>, vector<1x32xf32> -> vector<1x32xf32>
    %22 = arith.addf %21, %1 : vector<1x32xf32>
    %23 = math.tanh %22 : vector<1x32xf32>
    %cst_15 = arith.constant dense<0.000000e+00> : vector<1x36xf32>
    %24 = tpu.matmul %23, %2, %cst_15 {dimension_numbers = #tpu.dot_dimension_numbers<[1], [0], [0], [1], [0, 0, 1, 1], [], []>} : vector<1x32xf32>, vector<32x36xf32>, vector<1x36xf32> -> vector<1x36xf32>
    %25 = arith.addf %24, %3 : vector<1x36xf32>
    %cst_16 = arith.constant 6.250000e-02 : f32
    %26 = vector.broadcast %cst_16 : f32 to vector<1x36xf32>
    %27 = arith.mulf %26, %25 : vector<1x36xf32>
    %28 = arith.addf %4, %27 : vector<1x36xf32>
    %cst_17 = arith.constant dense<0.000000e+00> : vector<1x32xf32>
    %29 = tpu.matmul %28, %0, %cst_17 {dimension_numbers = #tpu.dot_dimension_numbers<[1], [0], [0], [1], [0, 0, 1, 1], [], []>} : vector<1x36xf32>, vector<36x32xf32>, vector<1x32xf32> -> vector<1x32xf32>
    %30 = arith.addf %29, %1 : vector<1x32xf32>
    %31 = math.tanh %30 : vector<1x32xf32>
    %cst_18 = arith.constant dense<0.000000e+00> : vector<1x36xf32>
    %32 = tpu.matmul %31, %2, %cst_18 {dimension_numbers = #tpu.dot_dimension_numbers<[1], [0], [0], [1], [0, 0, 1, 1], [], []>} : vector<1x32xf32>, vector<32x36xf32>, vector<1x36xf32> -> vector<1x36xf32>
    %33 = arith.addf %32, %3 : vector<1x36xf32>
    %cst_19 = arith.constant 2.000000e+00 : f32
    %34 = vector.broadcast %cst_19 : f32 to vector<1x36xf32>
    %35 = arith.mulf %34, %17 : vector<1x36xf32>
    %36 = arith.addf %9, %35 : vector<1x36xf32>
    %cst_20 = arith.constant 2.000000e+00 : f32
    %37 = vector.broadcast %cst_20 : f32 to vector<1x36xf32>
    %38 = arith.mulf %37, %25 : vector<1x36xf32>
    %39 = arith.addf %36, %38 : vector<1x36xf32>
    %40 = arith.addf %39, %33 : vector<1x36xf32>
    %cst_21 = arith.constant 0.010416667 : f32
    %41 = vector.broadcast %cst_21 : f32 to vector<1x36xf32>
    %42 = arith.mulf %41, %40 : vector<1x36xf32>
    %43 = arith.addf %4, %42 : vector<1x36xf32>
    %cst_22 = arith.constant dense<0.000000e+00> : vector<1x32xf32>
    %44 = tpu.matmul %43, %0, %cst_22 {dimension_numbers = #tpu.dot_dimension_numbers<[1], [0], [0], [1], [0, 0, 1, 1], [], []>} : vector<1x36xf32>, vector<36x32xf32>, vector<1x32xf32> -> vector<1x32xf32>
    %45 = arith.addf %44, %1 : vector<1x32xf32>
    %46 = math.tanh %45 : vector<1x32xf32>
    %cst_23 = arith.constant dense<0.000000e+00> : vector<1x36xf32>
    %47 = tpu.matmul %46, %2, %cst_23 {dimension_numbers = #tpu.dot_dimension_numbers<[1], [0], [0], [1], [0, 0, 1, 1], [], []>} : vector<1x32xf32>, vector<32x36xf32>, vector<1x36xf32> -> vector<1x36xf32>
    %48 = arith.addf %47, %3 : vector<1x36xf32>
    %cst_24 = arith.constant 3.125000e-02 : f32
    %49 = vector.broadcast %cst_24 : f32 to vector<1x36xf32>
    %50 = arith.mulf %49, %48 : vector<1x36xf32>
    %51 = arith.addf %43, %50 : vector<1x36xf32>
    %cst_25 = arith.constant dense<0.000000e+00> : vector<1x32xf32>
    %52 = tpu.matmul %51, %0, %cst_25 {dimension_numbers = #tpu.dot_dimension_numbers<[1], [0], [0], [1], [0, 0, 1, 1], [], []>} : vector<1x36xf32>, vector<36x32xf32>, vector<1x32xf32> -> vector<1x32xf32>
    %53 = arith.addf %52, %1 : vector<1x32xf32>
    %54 = math.tanh %53 : vector<1x32xf32>
    %cst_26 = arith.constant dense<0.000000e+00> : vector<1x36xf32>
    %55 = tpu.matmul %54, %2, %cst_26 {dimension_numbers = #tpu.dot_dimension_numbers<[1], [0], [0], [1], [0, 0, 1, 1], [], []>} : vector<1x32xf32>, vector<32x36xf32>, vector<1x36xf32> -> vector<1x36xf32>
    %56 = arith.addf %55, %3 : vector<1x36xf32>
    %cst_27 = arith.constant 3.125000e-02 : f32
    %57 = vector.broadcast %cst_27 : f32 to vector<1x36xf32>
    %58 = arith.mulf %57, %56 : vector<1x36xf32>
    %59 = arith.addf %43, %58 : vector<1x36xf32>
    %cst_28 = arith.constant dense<0.000000e+00> : vector<1x32xf32>
    %60 = tpu.matmul %59, %0, %cst_28 {dimension_numbers = #tpu.dot_dimension_numbers<[1], [0], [0], [1], [0, 0, 1, 1], [], []>} : vector<1x36xf32>, vector<36x32xf32>, vector<1x32xf32> -> vector<1x32xf32>
    %61 = arith.addf %60, %1 : vector<1x32xf32>
    %62 = math.tanh %61 : vector<1x32xf32>
    %cst_29 = arith.constant dense<0.000000e+00> : vector<1x36xf32>
    %63 = tpu.matmul %62, %2, %cst_29 {dimension_numbers = #tpu.dot_dimension_numbers<[1], [0], [0], [1], [0, 0, 1, 1], [], []>} : vector<1x32xf32>, vector<32x36xf32>, vector<1x36xf32> -> vector<1x36xf32>
    %64 = arith.addf %63, %3 : vector<1x36xf32>
    %cst_30 = arith.constant 6.250000e-02 : f32
    %65 = vector.broadcast %cst_30 : f32 to vector<1x36xf32>
    %66 = arith.mulf %65, %64 : vector<1x36xf32>
    %67 = arith.addf %43, %66 : vector<1x36xf32>
    %cst_31 = arith.constant dense<0.000000e+00> : vector<1x32xf32>
    %68 = tpu.matmul %67, %0, %cst_31 {dimension_numbers = #tpu.dot_dimension_numbers<[1], [0], [0], [1], [0, 0, 1, 1], [], []>} : vector<1x36xf32>, vector<36x32xf32>, vector<1x32xf32> -> vector<1x32xf32>
    %69 = arith.addf %68, %1 : vector<1x32xf32>
    %70 = math.tanh %69 : vector<1x32xf32>
    %cst_32 = arith.constant dense<0.000000e+00> : vector<1x36xf32>
    %71 = tpu.matmul %70, %2, %cst_32 {dimension_numbers = #tpu.dot_dimension_numbers<[1], [0], [0], [1], [0, 0, 1, 1], [], []>} : vector<1x32xf32>, vector<32x36xf32>, vector<1x36xf32> -> vector<1x36xf32>
    %72 = arith.addf %71, %3 : vector<1x36xf32>
    %cst_33 = arith.constant 2.000000e+00 : f32
    %73 = vector.broadcast %cst_33 : f32 to vector<1x36xf32>
    %74 = arith.mulf %73, %56 : vector<1x36xf32>
    %75 = arith.addf %48, %74 : vector<1x36xf32>
    %cst_34 = arith.constant 2.000000e+00 : f32
    %76 = vector.broadcast %cst_34 : f32 to vector<1x36xf32>
    %77 = arith.mulf %76, %64 : vector<1x36xf32>
    %78 = arith.addf %75, %77 : vector<1x36xf32>
    %79 = arith.addf %78, %72 : vector<1x36xf32>
    %cst_35 = arith.constant 0.010416667 : f32
    %80 = vector.broadcast %cst_35 : f32 to vector<1x36xf32>
    %81 = arith.mulf %80, %79 : vector<1x36xf32>
    %82 = arith.addf %43, %81 : vector<1x36xf32>
    %cst_36 = arith.constant dense<0.000000e+00> : vector<1x32xf32>
    %83 = tpu.matmul %82, %0, %cst_36 {dimension_numbers = #tpu.dot_dimension_numbers<[1], [0], [0], [1], [0, 0, 1, 1], [], []>} : vector<1x36xf32>, vector<36x32xf32>, vector<1x32xf32> -> vector<1x32xf32>
    %84 = arith.addf %83, %1 : vector<1x32xf32>
    %85 = math.tanh %84 : vector<1x32xf32>
    %cst_37 = arith.constant dense<0.000000e+00> : vector<1x36xf32>
    %86 = tpu.matmul %85, %2, %cst_37 {dimension_numbers = #tpu.dot_dimension_numbers<[1], [0], [0], [1], [0, 0, 1, 1], [], []>} : vector<1x32xf32>, vector<32x36xf32>, vector<1x36xf32> -> vector<1x36xf32>
    %87 = arith.addf %86, %3 : vector<1x36xf32>
    %cst_38 = arith.constant 3.125000e-02 : f32
    %88 = vector.broadcast %cst_38 : f32 to vector<1x36xf32>
    %89 = arith.mulf %88, %87 : vector<1x36xf32>
    %90 = arith.addf %82, %89 : vector<1x36xf32>
    %cst_39 = arith.constant dense<0.000000e+00> : vector<1x32xf32>
    %91 = tpu.matmul %90, %0, %cst_39 {dimension_numbers = #tpu.dot_dimension_numbers<[1], [0], [0], [1], [0, 0, 1, 1], [], []>} : vector<1x36xf32>, vector<36x32xf32>, vector<1x32xf32> -> vector<1x32xf32>
    %92 = arith.addf %91, %1 : vector<1x32xf32>
    %93 = math.tanh %92 : vector<1x32xf32>
    %cst_40 = arith.constant dense<0.000000e+00> : vector<1x36xf32>
    %94 = tpu.matmul %93, %2, %cst_40 {dimension_numbers = #tpu.dot_dimension_numbers<[1], [0], [0], [1], [0, 0, 1, 1], [], []>} : vector<1x32xf32>, vector<32x36xf32>, vector<1x36xf32> -> vector<1x36xf32>
    %95 = arith.addf %94, %3 : vector<1x36xf32>
    %cst_41 = arith.constant 3.125000e-02 : f32
    %96 = vector.broadcast %cst_41 : f32 to vector<1x36xf32>
    %97 = arith.mulf %96, %95 : vector<1x36xf32>
    %98 = arith.addf %82, %97 : vector<1x36xf32>
    %cst_42 = arith.constant dense<0.000000e+00> : vector<1x32xf32>
    %99 = tpu.matmul %98, %0, %cst_42 {dimension_numbers = #tpu.dot_dimension_numbers<[1], [0], [0], [1], [0, 0, 1, 1], [], []>} : vector<1x36xf32>, vector<36x32xf32>, vector<1x32xf32> -> vector<1x32xf32>
    %100 = arith.addf %99, %1 : vector<1x32xf32>
    %101 = math.tanh %100 : vector<1x32xf32>
    %cst_43 = arith.constant dense<0.000000e+00> : vector<1x36xf32>
    %102 = tpu.matmul %101, %2, %cst_43 {dimension_numbers = #tpu.dot_dimension_numbers<[1], [0], [0], [1], [0, 0, 1, 1], [], []>} : vector<1x32xf32>, vector<32x36xf32>, vector<1x36xf32> -> vector<1x36xf32>
    %103 = arith.addf %102, %3 : vector<1x36xf32>
    %cst_44 = arith.constant 6.250000e-02 : f32
    %104 = vector.broadcast %cst_44 : f32 to vector<1x36xf32>
    %105 = arith.mulf %104, %103 : vector<1x36xf32>
    %106 = arith.addf %82, %105 : vector<1x36xf32>
    %cst_45 = arith.constant dense<0.000000e+00> : vector<1x32xf32>
    %107 = tpu.matmul %106, %0, %cst_45 {dimension_numbers = #tpu.dot_dimension_numbers<[1], [0], [0], [1], [0, 0, 1, 1], [], []>} : vector<1x36xf32>, vector<36x32xf32>, vector<1x32xf32> -> vector<1x32xf32>
    %108 = arith.addf %107, %1 : vector<1x32xf32>
    %109 = math.tanh %108 : vector<1x32xf32>
    %cst_46 = arith.constant dense<0.000000e+00> : vector<1x36xf32>
    %110 = tpu.matmul %109, %2, %cst_46 {dimension_numbers = #tpu.dot_dimension_numbers<[1], [0], [0], [1], [0, 0, 1, 1], [], []>} : vector<1x32xf32>, vector<32x36xf32>, vector<1x36xf32> -> vector<1x36xf32>
    %111 = arith.addf %110, %3 : vector<1x36xf32>
    %cst_47 = arith.constant 2.000000e+00 : f32
    %112 = vector.broadcast %cst_47 : f32 to vector<1x36xf32>
    %113 = arith.mulf %112, %95 : vector<1x36xf32>
    %114 = arith.addf %87, %113 : vector<1x36xf32>
    %cst_48 = arith.constant 2.000000e+00 : f32
    %115 = vector.broadcast %cst_48 : f32 to vector<1x36xf32>
    %116 = arith.mulf %115, %103 : vector<1x36xf32>
    %117 = arith.addf %114, %116 : vector<1x36xf32>
    %118 = arith.addf %117, %111 : vector<1x36xf32>
    %cst_49 = arith.constant 0.010416667 : f32
    %119 = vector.broadcast %cst_49 : f32 to vector<1x36xf32>
    %120 = arith.mulf %119, %118 : vector<1x36xf32>
    %121 = arith.addf %82, %120 : vector<1x36xf32>
    %cst_50 = arith.constant dense<0.000000e+00> : vector<1x32xf32>
    %122 = tpu.matmul %121, %0, %cst_50 {dimension_numbers = #tpu.dot_dimension_numbers<[1], [0], [0], [1], [0, 0, 1, 1], [], []>} : vector<1x36xf32>, vector<36x32xf32>, vector<1x32xf32> -> vector<1x32xf32>
    %123 = arith.addf %122, %1 : vector<1x32xf32>
    %124 = math.tanh %123 : vector<1x32xf32>
    %cst_51 = arith.constant dense<0.000000e+00> : vector<1x36xf32>
    %125 = tpu.matmul %124, %2, %cst_51 {dimension_numbers = #tpu.dot_dimension_numbers<[1], [0], [0], [1], [0, 0, 1, 1], [], []>} : vector<1x32xf32>, vector<32x36xf32>, vector<1x36xf32> -> vector<1x36xf32>
    %126 = arith.addf %125, %3 : vector<1x36xf32>
    %cst_52 = arith.constant 3.125000e-02 : f32
    %127 = vector.broadcast %cst_52 : f32 to vector<1x36xf32>
    %128 = arith.mulf %127, %126 : vector<1x36xf32>
    %129 = arith.addf %121, %128 : vector<1x36xf32>
    %cst_53 = arith.constant dense<0.000000e+00> : vector<1x32xf32>
    %130 = tpu.matmul %129, %0, %cst_53 {dimension_numbers = #tpu.dot_dimension_numbers<[1], [0], [0], [1], [0, 0, 1, 1], [], []>} : vector<1x36xf32>, vector<36x32xf32>, vector<1x32xf32> -> vector<1x32xf32>
    %131 = arith.addf %130, %1 : vector<1x32xf32>
    %132 = math.tanh %131 : vector<1x32xf32>
    %cst_54 = arith.constant dense<0.000000e+00> : vector<1x36xf32>
    %133 = tpu.matmul %132, %2, %cst_54 {dimension_numbers = #tpu.dot_dimension_numbers<[1], [0], [0], [1], [0, 0, 1, 1], [], []>} : vector<1x32xf32>, vector<32x36xf32>, vector<1x36xf32> -> vector<1x36xf32>
    %134 = arith.addf %133, %3 : vector<1x36xf32>
    %cst_55 = arith.constant 3.125000e-02 : f32
    %135 = vector.broadcast %cst_55 : f32 to vector<1x36xf32>
    %136 = arith.mulf %135, %134 : vector<1x36xf32>
    %137 = arith.addf %121, %136 : vector<1x36xf32>
    %cst_56 = arith.constant dense<0.000000e+00> : vector<1x32xf32>
    %138 = tpu.matmul %137, %0, %cst_56 {dimension_numbers = #tpu.dot_dimension_numbers<[1], [0], [0], [1], [0, 0, 1, 1], [], []>} : vector<1x36xf32>, vector<36x32xf32>, vector<1x32xf32> -> vector<1x32xf32>
    %139 = arith.addf %138, %1 : vector<1x32xf32>
    %140 = math.tanh %139 : vector<1x32xf32>
    %cst_57 = arith.constant dense<0.000000e+00> : vector<1x36xf32>
    %141 = tpu.matmul %140, %2, %cst_57 {dimension_numbers = #tpu.dot_dimension_numbers<[1], [0], [0], [1], [0, 0, 1, 1], [], []>} : vector<1x32xf32>, vector<32x36xf32>, vector<1x36xf32> -> vector<1x36xf32>
    %142 = arith.addf %141, %3 : vector<1x36xf32>
    %cst_58 = arith.constant 6.250000e-02 : f32
    %143 = vector.broadcast %cst_58 : f32 to vector<1x36xf32>
    %144 = arith.mulf %143, %142 : vector<1x36xf32>
    %145 = arith.addf %121, %144 : vector<1x36xf32>
    %cst_59 = arith.constant dense<0.000000e+00> : vector<1x32xf32>
    %146 = tpu.matmul %145, %0, %cst_59 {dimension_numbers = #tpu.dot_dimension_numbers<[1], [0], [0], [1], [0, 0, 1, 1], [], []>} : vector<1x36xf32>, vector<36x32xf32>, vector<1x32xf32> -> vector<1x32xf32>
    %147 = arith.addf %146, %1 : vector<1x32xf32>
    %148 = math.tanh %147 : vector<1x32xf32>
    %cst_60 = arith.constant dense<0.000000e+00> : vector<1x36xf32>
    %149 = tpu.matmul %148, %2, %cst_60 {dimension_numbers = #tpu.dot_dimension_numbers<[1], [0], [0], [1], [0, 0, 1, 1], [], []>} : vector<1x32xf32>, vector<32x36xf32>, vector<1x36xf32> -> vector<1x36xf32>
    %150 = arith.addf %149, %3 : vector<1x36xf32>
    %cst_61 = arith.constant 2.000000e+00 : f32
    %151 = vector.broadcast %cst_61 : f32 to vector<1x36xf32>
    %152 = arith.mulf %151, %134 : vector<1x36xf32>
    %153 = arith.addf %126, %152 : vector<1x36xf32>
    %cst_62 = arith.constant 2.000000e+00 : f32
    %154 = vector.broadcast %cst_62 : f32 to vector<1x36xf32>
    %155 = arith.mulf %154, %142 : vector<1x36xf32>
    %156 = arith.addf %153, %155 : vector<1x36xf32>
    %157 = arith.addf %156, %150 : vector<1x36xf32>
    %cst_63 = arith.constant 0.010416667 : f32
    %158 = vector.broadcast %cst_63 : f32 to vector<1x36xf32>
    %159 = arith.mulf %158, %157 : vector<1x36xf32>
    %160 = arith.addf %121, %159 : vector<1x36xf32>
    %cst_64 = arith.constant dense<0.000000e+00> : vector<1x32xf32>
    %161 = tpu.matmul %160, %0, %cst_64 {dimension_numbers = #tpu.dot_dimension_numbers<[1], [0], [0], [1], [0, 0, 1, 1], [], []>} : vector<1x36xf32>, vector<36x32xf32>, vector<1x32xf32> -> vector<1x32xf32>
    %162 = arith.addf %161, %1 : vector<1x32xf32>
    %163 = math.tanh %162 : vector<1x32xf32>
    %cst_65 = arith.constant dense<0.000000e+00> : vector<1x36xf32>
    %164 = tpu.matmul %163, %2, %cst_65 {dimension_numbers = #tpu.dot_dimension_numbers<[1], [0], [0], [1], [0, 0, 1, 1], [], []>} : vector<1x32xf32>, vector<32x36xf32>, vector<1x36xf32> -> vector<1x36xf32>
    %165 = arith.addf %164, %3 : vector<1x36xf32>
    %cst_66 = arith.constant 3.125000e-02 : f32
    %166 = vector.broadcast %cst_66 : f32 to vector<1x36xf32>
    %167 = arith.mulf %166, %165 : vector<1x36xf32>
    %168 = arith.addf %160, %167 : vector<1x36xf32>
    %cst_67 = arith.constant dense<0.000000e+00> : vector<1x32xf32>
    %169 = tpu.matmul %168, %0, %cst_67 {dimension_numbers = #tpu.dot_dimension_numbers<[1], [0], [0], [1], [0, 0, 1, 1], [], []>} : vector<1x36xf32>, vector<36x32xf32>, vector<1x32xf32> -> vector<1x32xf32>
    %170 = arith.addf %169, %1 : vector<1x32xf32>
    %171 = math.tanh %170 : vector<1x32xf32>
    %cst_68 = arith.constant dense<0.000000e+00> : vector<1x36xf32>
    %172 = tpu.matmul %171, %2, %cst_68 {dimension_numbers = #tpu.dot_dimension_numbers<[1], [0], [0], [1], [0, 0, 1, 1], [], []>} : vector<1x32xf32>, vector<32x36xf32>, vector<1x36xf32> -> vector<1x36xf32>
    %173 = arith.addf %172, %3 : vector<1x36xf32>
    %cst_69 = arith.constant 3.125000e-02 : f32
    %174 = vector.broadcast %cst_69 : f32 to vector<1x36xf32>
    %175 = arith.mulf %174, %173 : vector<1x36xf32>
    %176 = arith.addf %160, %175 : vector<1x36xf32>
    %cst_70 = arith.constant dense<0.000000e+00> : vector<1x32xf32>
    %177 = tpu.matmul %176, %0, %cst_70 {dimension_numbers = #tpu.dot_dimension_numbers<[1], [0], [0], [1], [0, 0, 1, 1], [], []>} : vector<1x36xf32>, vector<36x32xf32>, vector<1x32xf32> -> vector<1x32xf32>
    %178 = arith.addf %177, %1 : vector<1x32xf32>
    %179 = math.tanh %178 : vector<1x32xf32>
    %cst_71 = arith.constant dense<0.000000e+00> : vector<1x36xf32>
    %180 = tpu.matmul %179, %2, %cst_71 {dimension_numbers = #tpu.dot_dimension_numbers<[1], [0], [0], [1], [0, 0, 1, 1], [], []>} : vector<1x32xf32>, vector<32x36xf32>, vector<1x36xf32> -> vector<1x36xf32>
    %181 = arith.addf %180, %3 : vector<1x36xf32>
    %cst_72 = arith.constant 6.250000e-02 : f32
    %182 = vector.broadcast %cst_72 : f32 to vector<1x36xf32>
    %183 = arith.mulf %182, %181 : vector<1x36xf32>
    %184 = arith.addf %160, %183 : vector<1x36xf32>
    %cst_73 = arith.constant dense<0.000000e+00> : vector<1x32xf32>
    %185 = tpu.matmul %184, %0, %cst_73 {dimension_numbers = #tpu.dot_dimension_numbers<[1], [0], [0], [1], [0, 0, 1, 1], [], []>} : vector<1x36xf32>, vector<36x32xf32>, vector<1x32xf32> -> vector<1x32xf32>
    %186 = arith.addf %185, %1 : vector<1x32xf32>
    %187 = math.tanh %186 : vector<1x32xf32>
    %cst_74 = arith.constant dense<0.000000e+00> : vector<1x36xf32>
    %188 = tpu.matmul %187, %2, %cst_74 {dimension_numbers = #tpu.dot_dimension_numbers<[1], [0], [0], [1], [0, 0, 1, 1], [], []>} : vector<1x32xf32>, vector<32x36xf32>, vector<1x36xf32> -> vector<1x36xf32>
    %189 = arith.addf %188, %3 : vector<1x36xf32>
    %cst_75 = arith.constant 2.000000e+00 : f32
    %190 = vector.broadcast %cst_75 : f32 to vector<1x36xf32>
    %191 = arith.mulf %190, %173 : vector<1x36xf32>
    %192 = arith.addf %165, %191 : vector<1x36xf32>
    %cst_76 = arith.constant 2.000000e+00 : f32
    %193 = vector.broadcast %cst_76 : f32 to vector<1x36xf32>
    %194 = arith.mulf %193, %181 : vector<1x36xf32>
    %195 = arith.addf %192, %194 : vector<1x36xf32>
    %196 = arith.addf %195, %189 : vector<1x36xf32>
    %cst_77 = arith.constant 0.010416667 : f32
    %197 = vector.broadcast %cst_77 : f32 to vector<1x36xf32>
    %198 = arith.mulf %197, %196 : vector<1x36xf32>
    %199 = arith.addf %160, %198 : vector<1x36xf32>
    %cst_78 = arith.constant dense<0.000000e+00> : vector<1x32xf32>
    %200 = tpu.matmul %199, %0, %cst_78 {dimension_numbers = #tpu.dot_dimension_numbers<[1], [0], [0], [1], [0, 0, 1, 1], [], []>} : vector<1x36xf32>, vector<36x32xf32>, vector<1x32xf32> -> vector<1x32xf32>
    %201 = arith.addf %200, %1 : vector<1x32xf32>
    %202 = math.tanh %201 : vector<1x32xf32>
    %cst_79 = arith.constant dense<0.000000e+00> : vector<1x36xf32>
    %203 = tpu.matmul %202, %2, %cst_79 {dimension_numbers = #tpu.dot_dimension_numbers<[1], [0], [0], [1], [0, 0, 1, 1], [], []>} : vector<1x32xf32>, vector<32x36xf32>, vector<1x36xf32> -> vector<1x36xf32>
    %204 = arith.addf %203, %3 : vector<1x36xf32>
    %cst_80 = arith.constant 3.125000e-02 : f32
    %205 = vector.broadcast %cst_80 : f32 to vector<1x36xf32>
    %206 = arith.mulf %205, %204 : vector<1x36xf32>
    %207 = arith.addf %199, %206 : vector<1x36xf32>
    %cst_81 = arith.constant dense<0.000000e+00> : vector<1x32xf32>
    %208 = tpu.matmul %207, %0, %cst_81 {dimension_numbers = #tpu.dot_dimension_numbers<[1], [0], [0], [1], [0, 0, 1, 1], [], []>} : vector<1x36xf32>, vector<36x32xf32>, vector<1x32xf32> -> vector<1x32xf32>
    %209 = arith.addf %208, %1 : vector<1x32xf32>
    %210 = math.tanh %209 : vector<1x32xf32>
    %cst_82 = arith.constant dense<0.000000e+00> : vector<1x36xf32>
    %211 = tpu.matmul %210, %2, %cst_82 {dimension_numbers = #tpu.dot_dimension_numbers<[1], [0], [0], [1], [0, 0, 1, 1], [], []>} : vector<1x32xf32>, vector<32x36xf32>, vector<1x36xf32> -> vector<1x36xf32>
    %212 = arith.addf %211, %3 : vector<1x36xf32>
    %cst_83 = arith.constant 3.125000e-02 : f32
    %213 = vector.broadcast %cst_83 : f32 to vector<1x36xf32>
    %214 = arith.mulf %213, %212 : vector<1x36xf32>
    %215 = arith.addf %199, %214 : vector<1x36xf32>
    %cst_84 = arith.constant dense<0.000000e+00> : vector<1x32xf32>
    %216 = tpu.matmul %215, %0, %cst_84 {dimension_numbers = #tpu.dot_dimension_numbers<[1], [0], [0], [1], [0, 0, 1, 1], [], []>} : vector<1x36xf32>, vector<36x32xf32>, vector<1x32xf32> -> vector<1x32xf32>
    %217 = arith.addf %216, %1 : vector<1x32xf32>
    %218 = math.tanh %217 : vector<1x32xf32>
    %cst_85 = arith.constant dense<0.000000e+00> : vector<1x36xf32>
    %219 = tpu.matmul %218, %2, %cst_85 {dimension_numbers = #tpu.dot_dimension_numbers<[1], [0], [0], [1], [0, 0, 1, 1], [], []>} : vector<1x32xf32>, vector<32x36xf32>, vector<1x36xf32> -> vector<1x36xf32>
    %220 = arith.addf %219, %3 : vector<1x36xf32>
    %cst_86 = arith.constant 6.250000e-02 : f32
    %221 = vector.broadcast %cst_86 : f32 to vector<1x36xf32>
    %222 = arith.mulf %221, %220 : vector<1x36xf32>
    %223 = arith.addf %199, %222 : vector<1x36xf32>
    %cst_87 = arith.constant dense<0.000000e+00> : vector<1x32xf32>
    %224 = tpu.matmul %223, %0, %cst_87 {dimension_numbers = #tpu.dot_dimension_numbers<[1], [0], [0], [1], [0, 0, 1, 1], [], []>} : vector<1x36xf32>, vector<36x32xf32>, vector<1x32xf32> -> vector<1x32xf32>
    %225 = arith.addf %224, %1 : vector<1x32xf32>
    %226 = math.tanh %225 : vector<1x32xf32>
    %cst_88 = arith.constant dense<0.000000e+00> : vector<1x36xf32>
    %227 = tpu.matmul %226, %2, %cst_88 {dimension_numbers = #tpu.dot_dimension_numbers<[1], [0], [0], [1], [0, 0, 1, 1], [], []>} : vector<1x32xf32>, vector<32x36xf32>, vector<1x36xf32> -> vector<1x36xf32>
    %228 = arith.addf %227, %3 : vector<1x36xf32>
    %cst_89 = arith.constant 2.000000e+00 : f32
    %229 = vector.broadcast %cst_89 : f32 to vector<1x36xf32>
    %230 = arith.mulf %229, %212 : vector<1x36xf32>
    %231 = arith.addf %204, %230 : vector<1x36xf32>
    %cst_90 = arith.constant 2.000000e+00 : f32
    %232 = vector.broadcast %cst_90 : f32 to vector<1x36xf32>
    %233 = arith.mulf %232, %220 : vector<1x36xf32>
    %234 = arith.addf %231, %233 : vector<1x36xf32>
    %235 = arith.addf %234, %228 : vector<1x36xf32>
    %cst_91 = arith.constant 0.010416667 : f32
    %236 = vector.broadcast %cst_91 : f32 to vector<1x36xf32>
    %237 = arith.mulf %236, %235 : vector<1x36xf32>
    %238 = arith.addf %199, %237 : vector<1x36xf32>
    %cst_92 = arith.constant dense<0.000000e+00> : vector<1x32xf32>
    %239 = tpu.matmul %238, %0, %cst_92 {dimension_numbers = #tpu.dot_dimension_numbers<[1], [0], [0], [1], [0, 0, 1, 1], [], []>} : vector<1x36xf32>, vector<36x32xf32>, vector<1x32xf32> -> vector<1x32xf32>
    %240 = arith.addf %239, %1 : vector<1x32xf32>
    %241 = math.tanh %240 : vector<1x32xf32>
    %cst_93 = arith.constant dense<0.000000e+00> : vector<1x36xf32>
    %242 = tpu.matmul %241, %2, %cst_93 {dimension_numbers = #tpu.dot_dimension_numbers<[1], [0], [0], [1], [0, 0, 1, 1], [], []>} : vector<1x32xf32>, vector<32x36xf32>, vector<1x36xf32> -> vector<1x36xf32>
    %243 = arith.addf %242, %3 : vector<1x36xf32>
    %cst_94 = arith.constant 3.125000e-02 : f32
    %244 = vector.broadcast %cst_94 : f32 to vector<1x36xf32>
    %245 = arith.mulf %244, %243 : vector<1x36xf32>
    %246 = arith.addf %238, %245 : vector<1x36xf32>
    %cst_95 = arith.constant dense<0.000000e+00> : vector<1x32xf32>
    %247 = tpu.matmul %246, %0, %cst_95 {dimension_numbers = #tpu.dot_dimension_numbers<[1], [0], [0], [1], [0, 0, 1, 1], [], []>} : vector<1x36xf32>, vector<36x32xf32>, vector<1x32xf32> -> vector<1x32xf32>
    %248 = arith.addf %247, %1 : vector<1x32xf32>
    %249 = math.tanh %248 : vector<1x32xf32>
    %cst_96 = arith.constant dense<0.000000e+00> : vector<1x36xf32>
    %250 = tpu.matmul %249, %2, %cst_96 {dimension_numbers = #tpu.dot_dimension_numbers<[1], [0], [0], [1], [0, 0, 1, 1], [], []>} : vector<1x32xf32>, vector<32x36xf32>, vector<1x36xf32> -> vector<1x36xf32>
    %251 = arith.addf %250, %3 : vector<1x36xf32>
    %cst_97 = arith.constant 3.125000e-02 : f32
    %252 = vector.broadcast %cst_97 : f32 to vector<1x36xf32>
    %253 = arith.mulf %252, %251 : vector<1x36xf32>
    %254 = arith.addf %238, %253 : vector<1x36xf32>
    %cst_98 = arith.constant dense<0.000000e+00> : vector<1x32xf32>
    %255 = tpu.matmul %254, %0, %cst_98 {dimension_numbers = #tpu.dot_dimension_numbers<[1], [0], [0], [1], [0, 0, 1, 1], [], []>} : vector<1x36xf32>, vector<36x32xf32>, vector<1x32xf32> -> vector<1x32xf32>
    %256 = arith.addf %255, %1 : vector<1x32xf32>
    %257 = math.tanh %256 : vector<1x32xf32>
    %cst_99 = arith.constant dense<0.000000e+00> : vector<1x36xf32>
    %258 = tpu.matmul %257, %2, %cst_99 {dimension_numbers = #tpu.dot_dimension_numbers<[1], [0], [0], [1], [0, 0, 1, 1], [], []>} : vector<1x32xf32>, vector<32x36xf32>, vector<1x36xf32> -> vector<1x36xf32>
    %259 = arith.addf %258, %3 : vector<1x36xf32>
    %cst_100 = arith.constant 6.250000e-02 : f32
    %260 = vector.broadcast %cst_100 : f32 to vector<1x36xf32>
    %261 = arith.mulf %260, %259 : vector<1x36xf32>
    %262 = arith.addf %238, %261 : vector<1x36xf32>
    %cst_101 = arith.constant dense<0.000000e+00> : vector<1x32xf32>
    %263 = tpu.matmul %262, %0, %cst_101 {dimension_numbers = #tpu.dot_dimension_numbers<[1], [0], [0], [1], [0, 0, 1, 1], [], []>} : vector<1x36xf32>, vector<36x32xf32>, vector<1x32xf32> -> vector<1x32xf32>
    %264 = arith.addf %263, %1 : vector<1x32xf32>
    %265 = math.tanh %264 : vector<1x32xf32>
    %cst_102 = arith.constant dense<0.000000e+00> : vector<1x36xf32>
    %266 = tpu.matmul %265, %2, %cst_102 {dimension_numbers = #tpu.dot_dimension_numbers<[1], [0], [0], [1], [0, 0, 1, 1], [], []>} : vector<1x32xf32>, vector<32x36xf32>, vector<1x36xf32> -> vector<1x36xf32>
    %267 = arith.addf %266, %3 : vector<1x36xf32>
    %cst_103 = arith.constant 2.000000e+00 : f32
    %268 = vector.broadcast %cst_103 : f32 to vector<1x36xf32>
    %269 = arith.mulf %268, %251 : vector<1x36xf32>
    %270 = arith.addf %243, %269 : vector<1x36xf32>
    %cst_104 = arith.constant 2.000000e+00 : f32
    %271 = vector.broadcast %cst_104 : f32 to vector<1x36xf32>
    %272 = arith.mulf %271, %259 : vector<1x36xf32>
    %273 = arith.addf %270, %272 : vector<1x36xf32>
    %274 = arith.addf %273, %267 : vector<1x36xf32>
    %cst_105 = arith.constant 0.010416667 : f32
    %275 = vector.broadcast %cst_105 : f32 to vector<1x36xf32>
    %276 = arith.mulf %275, %274 : vector<1x36xf32>
    %277 = arith.addf %238, %276 : vector<1x36xf32>
    %cst_106 = arith.constant dense<0.000000e+00> : vector<1x32xf32>
    %278 = tpu.matmul %277, %0, %cst_106 {dimension_numbers = #tpu.dot_dimension_numbers<[1], [0], [0], [1], [0, 0, 1, 1], [], []>} : vector<1x36xf32>, vector<36x32xf32>, vector<1x32xf32> -> vector<1x32xf32>
    %279 = arith.addf %278, %1 : vector<1x32xf32>
    %280 = math.tanh %279 : vector<1x32xf32>
    %cst_107 = arith.constant dense<0.000000e+00> : vector<1x36xf32>
    %281 = tpu.matmul %280, %2, %cst_107 {dimension_numbers = #tpu.dot_dimension_numbers<[1], [0], [0], [1], [0, 0, 1, 1], [], []>} : vector<1x32xf32>, vector<32x36xf32>, vector<1x36xf32> -> vector<1x36xf32>
    %282 = arith.addf %281, %3 : vector<1x36xf32>
    %cst_108 = arith.constant 3.125000e-02 : f32
    %283 = vector.broadcast %cst_108 : f32 to vector<1x36xf32>
    %284 = arith.mulf %283, %282 : vector<1x36xf32>
    %285 = arith.addf %277, %284 : vector<1x36xf32>
    %cst_109 = arith.constant dense<0.000000e+00> : vector<1x32xf32>
    %286 = tpu.matmul %285, %0, %cst_109 {dimension_numbers = #tpu.dot_dimension_numbers<[1], [0], [0], [1], [0, 0, 1, 1], [], []>} : vector<1x36xf32>, vector<36x32xf32>, vector<1x32xf32> -> vector<1x32xf32>
    %287 = arith.addf %286, %1 : vector<1x32xf32>
    %288 = math.tanh %287 : vector<1x32xf32>
    %cst_110 = arith.constant dense<0.000000e+00> : vector<1x36xf32>
    %289 = tpu.matmul %288, %2, %cst_110 {dimension_numbers = #tpu.dot_dimension_numbers<[1], [0], [0], [1], [0, 0, 1, 1], [], []>} : vector<1x32xf32>, vector<32x36xf32>, vector<1x36xf32> -> vector<1x36xf32>
    %290 = arith.addf %289, %3 : vector<1x36xf32>
    %cst_111 = arith.constant 3.125000e-02 : f32
    %291 = vector.broadcast %cst_111 : f32 to vector<1x36xf32>
    %292 = arith.mulf %291, %290 : vector<1x36xf32>
    %293 = arith.addf %277, %292 : vector<1x36xf32>
    %cst_112 = arith.constant dense<0.000000e+00> : vector<1x32xf32>
    %294 = tpu.matmul %293, %0, %cst_112 {dimension_numbers = #tpu.dot_dimension_numbers<[1], [0], [0], [1], [0, 0, 1, 1], [], []>} : vector<1x36xf32>, vector<36x32xf32>, vector<1x32xf32> -> vector<1x32xf32>
    %295 = arith.addf %294, %1 : vector<1x32xf32>
    %296 = math.tanh %295 : vector<1x32xf32>
    %cst_113 = arith.constant dense<0.000000e+00> : vector<1x36xf32>
    %297 = tpu.matmul %296, %2, %cst_113 {dimension_numbers = #tpu.dot_dimension_numbers<[1], [0], [0], [1], [0, 0, 1, 1], [], []>} : vector<1x32xf32>, vector<32x36xf32>, vector<1x36xf32> -> vector<1x36xf32>
    %298 = arith.addf %297, %3 : vector<1x36xf32>
    %cst_114 = arith.constant 6.250000e-02 : f32
    %299 = vector.broadcast %cst_114 : f32 to vector<1x36xf32>
    %300 = arith.mulf %299, %298 : vector<1x36xf32>
    %301 = arith.addf %277, %300 : vector<1x36xf32>
    %cst_115 = arith.constant dense<0.000000e+00> : vector<1x32xf32>
    %302 = tpu.matmul %301, %0, %cst_115 {dimension_numbers = #tpu.dot_dimension_numbers<[1], [0], [0], [1], [0, 0, 1, 1], [], []>} : vector<1x36xf32>, vector<36x32xf32>, vector<1x32xf32> -> vector<1x32xf32>
    %303 = arith.addf %302, %1 : vector<1x32xf32>
    %304 = math.tanh %303 : vector<1x32xf32>
    %cst_116 = arith.constant dense<0.000000e+00> : vector<1x36xf32>
    %305 = tpu.matmul %304, %2, %cst_116 {dimension_numbers = #tpu.dot_dimension_numbers<[1], [0], [0], [1], [0, 0, 1, 1], [], []>} : vector<1x32xf32>, vector<32x36xf32>, vector<1x36xf32> -> vector<1x36xf32>
    %306 = arith.addf %305, %3 : vector<1x36xf32>
    %cst_117 = arith.constant 2.000000e+00 : f32
    %307 = vector.broadcast %cst_117 : f32 to vector<1x36xf32>
    %308 = arith.mulf %307, %290 : vector<1x36xf32>
    %309 = arith.addf %282, %308 : vector<1x36xf32>
    %cst_118 = arith.constant 2.000000e+00 : f32
    %310 = vector.broadcast %cst_118 : f32 to vector<1x36xf32>
    %311 = arith.mulf %310, %298 : vector<1x36xf32>
    %312 = arith.addf %309, %311 : vector<1x36xf32>
    %313 = arith.addf %312, %306 : vector<1x36xf32>
    %cst_119 = arith.constant 0.010416667 : f32
    %314 = vector.broadcast %cst_119 : f32 to vector<1x36xf32>
    %315 = arith.mulf %314, %313 : vector<1x36xf32>
    %316 = arith.addf %277, %315 : vector<1x36xf32>
    %cst_120 = arith.constant dense<0.000000e+00> : vector<1x32xf32>
    %317 = tpu.matmul %316, %0, %cst_120 {dimension_numbers = #tpu.dot_dimension_numbers<[1], [0], [0], [1], [0, 0, 1, 1], [], []>} : vector<1x36xf32>, vector<36x32xf32>, vector<1x32xf32> -> vector<1x32xf32>
    %318 = arith.addf %317, %1 : vector<1x32xf32>
    %319 = math.tanh %318 : vector<1x32xf32>
    %cst_121 = arith.constant dense<0.000000e+00> : vector<1x36xf32>
    %320 = tpu.matmul %319, %2, %cst_121 {dimension_numbers = #tpu.dot_dimension_numbers<[1], [0], [0], [1], [0, 0, 1, 1], [], []>} : vector<1x32xf32>, vector<32x36xf32>, vector<1x36xf32> -> vector<1x36xf32>
    %321 = arith.addf %320, %3 : vector<1x36xf32>
    %cst_122 = arith.constant 3.125000e-02 : f32
    %322 = vector.broadcast %cst_122 : f32 to vector<1x36xf32>
    %323 = arith.mulf %322, %321 : vector<1x36xf32>
    %324 = arith.addf %316, %323 : vector<1x36xf32>
    %cst_123 = arith.constant dense<0.000000e+00> : vector<1x32xf32>
    %325 = tpu.matmul %324, %0, %cst_123 {dimension_numbers = #tpu.dot_dimension_numbers<[1], [0], [0], [1], [0, 0, 1, 1], [], []>} : vector<1x36xf32>, vector<36x32xf32>, vector<1x32xf32> -> vector<1x32xf32>
    %326 = arith.addf %325, %1 : vector<1x32xf32>
    %327 = math.tanh %326 : vector<1x32xf32>
    %cst_124 = arith.constant dense<0.000000e+00> : vector<1x36xf32>
    %328 = tpu.matmul %327, %2, %cst_124 {dimension_numbers = #tpu.dot_dimension_numbers<[1], [0], [0], [1], [0, 0, 1, 1], [], []>} : vector<1x32xf32>, vector<32x36xf32>, vector<1x36xf32> -> vector<1x36xf32>
    %329 = arith.addf %328, %3 : vector<1x36xf32>
    %cst_125 = arith.constant 3.125000e-02 : f32
    %330 = vector.broadcast %cst_125 : f32 to vector<1x36xf32>
    %331 = arith.mulf %330, %329 : vector<1x36xf32>
    %332 = arith.addf %316, %331 : vector<1x36xf32>
    %cst_126 = arith.constant dense<0.000000e+00> : vector<1x32xf32>
    %333 = tpu.matmul %332, %0, %cst_126 {dimension_numbers = #tpu.dot_dimension_numbers<[1], [0], [0], [1], [0, 0, 1, 1], [], []>} : vector<1x36xf32>, vector<36x32xf32>, vector<1x32xf32> -> vector<1x32xf32>
    %334 = arith.addf %333, %1 : vector<1x32xf32>
    %335 = math.tanh %334 : vector<1x32xf32>
    %cst_127 = arith.constant dense<0.000000e+00> : vector<1x36xf32>
    %336 = tpu.matmul %335, %2, %cst_127 {dimension_numbers = #tpu.dot_dimension_numbers<[1], [0], [0], [1], [0, 0, 1, 1], [], []>} : vector<1x32xf32>, vector<32x36xf32>, vector<1x36xf32> -> vector<1x36xf32>
    %337 = arith.addf %336, %3 : vector<1x36xf32>
    %cst_128 = arith.constant 6.250000e-02 : f32
    %338 = vector.broadcast %cst_128 : f32 to vector<1x36xf32>
    %339 = arith.mulf %338, %337 : vector<1x36xf32>
    %340 = arith.addf %316, %339 : vector<1x36xf32>
    %cst_129 = arith.constant dense<0.000000e+00> : vector<1x32xf32>
    %341 = tpu.matmul %340, %0, %cst_129 {dimension_numbers = #tpu.dot_dimension_numbers<[1], [0], [0], [1], [0, 0, 1, 1], [], []>} : vector<1x36xf32>, vector<36x32xf32>, vector<1x32xf32> -> vector<1x32xf32>
    %342 = arith.addf %341, %1 : vector<1x32xf32>
    %343 = math.tanh %342 : vector<1x32xf32>
    %cst_130 = arith.constant dense<0.000000e+00> : vector<1x36xf32>
    %344 = tpu.matmul %343, %2, %cst_130 {dimension_numbers = #tpu.dot_dimension_numbers<[1], [0], [0], [1], [0, 0, 1, 1], [], []>} : vector<1x32xf32>, vector<32x36xf32>, vector<1x36xf32> -> vector<1x36xf32>
    %345 = arith.addf %344, %3 : vector<1x36xf32>
    %cst_131 = arith.constant 2.000000e+00 : f32
    %346 = vector.broadcast %cst_131 : f32 to vector<1x36xf32>
    %347 = arith.mulf %346, %329 : vector<1x36xf32>
    %348 = arith.addf %321, %347 : vector<1x36xf32>
    %cst_132 = arith.constant 2.000000e+00 : f32
    %349 = vector.broadcast %cst_132 : f32 to vector<1x36xf32>
    %350 = arith.mulf %349, %337 : vector<1x36xf32>
    %351 = arith.addf %348, %350 : vector<1x36xf32>
    %352 = arith.addf %351, %345 : vector<1x36xf32>
    %cst_133 = arith.constant 0.010416667 : f32
    %353 = vector.broadcast %cst_133 : f32 to vector<1x36xf32>
    %354 = arith.mulf %353, %352 : vector<1x36xf32>
    %355 = arith.addf %316, %354 : vector<1x36xf32>
    %cst_134 = arith.constant dense<0.000000e+00> : vector<1x32xf32>
    %356 = tpu.matmul %355, %0, %cst_134 {dimension_numbers = #tpu.dot_dimension_numbers<[1], [0], [0], [1], [0, 0, 1, 1], [], []>} : vector<1x36xf32>, vector<36x32xf32>, vector<1x32xf32> -> vector<1x32xf32>
    %357 = arith.addf %356, %1 : vector<1x32xf32>
    %358 = math.tanh %357 : vector<1x32xf32>
    %cst_135 = arith.constant dense<0.000000e+00> : vector<1x36xf32>
    %359 = tpu.matmul %358, %2, %cst_135 {dimension_numbers = #tpu.dot_dimension_numbers<[1], [0], [0], [1], [0, 0, 1, 1], [], []>} : vector<1x32xf32>, vector<32x36xf32>, vector<1x36xf32> -> vector<1x36xf32>
    %360 = arith.addf %359, %3 : vector<1x36xf32>
    %cst_136 = arith.constant 3.125000e-02 : f32
    %361 = vector.broadcast %cst_136 : f32 to vector<1x36xf32>
    %362 = arith.mulf %361, %360 : vector<1x36xf32>
    %363 = arith.addf %355, %362 : vector<1x36xf32>
    %cst_137 = arith.constant dense<0.000000e+00> : vector<1x32xf32>
    %364 = tpu.matmul %363, %0, %cst_137 {dimension_numbers = #tpu.dot_dimension_numbers<[1], [0], [0], [1], [0, 0, 1, 1], [], []>} : vector<1x36xf32>, vector<36x32xf32>, vector<1x32xf32> -> vector<1x32xf32>
    %365 = arith.addf %364, %1 : vector<1x32xf32>
    %366 = math.tanh %365 : vector<1x32xf32>
    %cst_138 = arith.constant dense<0.000000e+00> : vector<1x36xf32>
    %367 = tpu.matmul %366, %2, %cst_138 {dimension_numbers = #tpu.dot_dimension_numbers<[1], [0], [0], [1], [0, 0, 1, 1], [], []>} : vector<1x32xf32>, vector<32x36xf32>, vector<1x36xf32> -> vector<1x36xf32>
    %368 = arith.addf %367, %3 : vector<1x36xf32>
    %cst_139 = arith.constant 3.125000e-02 : f32
    %369 = vector.broadcast %cst_139 : f32 to vector<1x36xf32>
    %370 = arith.mulf %369, %368 : vector<1x36xf32>
    %371 = arith.addf %355, %370 : vector<1x36xf32>
    %cst_140 = arith.constant dense<0.000000e+00> : vector<1x32xf32>
    %372 = tpu.matmul %371, %0, %cst_140 {dimension_numbers = #tpu.dot_dimension_numbers<[1], [0], [0], [1], [0, 0, 1, 1], [], []>} : vector<1x36xf32>, vector<36x32xf32>, vector<1x32xf32> -> vector<1x32xf32>
    %373 = arith.addf %372, %1 : vector<1x32xf32>
    %374 = math.tanh %373 : vector<1x32xf32>
    %cst_141 = arith.constant dense<0.000000e+00> : vector<1x36xf32>
    %375 = tpu.matmul %374, %2, %cst_141 {dimension_numbers = #tpu.dot_dimension_numbers<[1], [0], [0], [1], [0, 0, 1, 1], [], []>} : vector<1x32xf32>, vector<32x36xf32>, vector<1x36xf32> -> vector<1x36xf32>
    %376 = arith.addf %375, %3 : vector<1x36xf32>
    %cst_142 = arith.constant 6.250000e-02 : f32
    %377 = vector.broadcast %cst_142 : f32 to vector<1x36xf32>
    %378 = arith.mulf %377, %376 : vector<1x36xf32>
    %379 = arith.addf %355, %378 : vector<1x36xf32>
    %cst_143 = arith.constant dense<0.000000e+00> : vector<1x32xf32>
    %380 = tpu.matmul %379, %0, %cst_143 {dimension_numbers = #tpu.dot_dimension_numbers<[1], [0], [0], [1], [0, 0, 1, 1], [], []>} : vector<1x36xf32>, vector<36x32xf32>, vector<1x32xf32> -> vector<1x32xf32>
    %381 = arith.addf %380, %1 : vector<1x32xf32>
    %382 = math.tanh %381 : vector<1x32xf32>
    %cst_144 = arith.constant dense<0.000000e+00> : vector<1x36xf32>
    %383 = tpu.matmul %382, %2, %cst_144 {dimension_numbers = #tpu.dot_dimension_numbers<[1], [0], [0], [1], [0, 0, 1, 1], [], []>} : vector<1x32xf32>, vector<32x36xf32>, vector<1x36xf32> -> vector<1x36xf32>
    %384 = arith.addf %383, %3 : vector<1x36xf32>
    %cst_145 = arith.constant 2.000000e+00 : f32
    %385 = vector.broadcast %cst_145 : f32 to vector<1x36xf32>
    %386 = arith.mulf %385, %368 : vector<1x36xf32>
    %387 = arith.addf %360, %386 : vector<1x36xf32>
    %cst_146 = arith.constant 2.000000e+00 : f32
    %388 = vector.broadcast %cst_146 : f32 to vector<1x36xf32>
    %389 = arith.mulf %388, %376 : vector<1x36xf32>
    %390 = arith.addf %387, %389 : vector<1x36xf32>
    %391 = arith.addf %390, %384 : vector<1x36xf32>
    %cst_147 = arith.constant 0.010416667 : f32
    %392 = vector.broadcast %cst_147 : f32 to vector<1x36xf32>
    %393 = arith.mulf %392, %391 : vector<1x36xf32>
    %394 = arith.addf %355, %393 : vector<1x36xf32>
    %cst_148 = arith.constant dense<0.000000e+00> : vector<1x32xf32>
    %395 = tpu.matmul %394, %0, %cst_148 {dimension_numbers = #tpu.dot_dimension_numbers<[1], [0], [0], [1], [0, 0, 1, 1], [], []>} : vector<1x36xf32>, vector<36x32xf32>, vector<1x32xf32> -> vector<1x32xf32>
    %396 = arith.addf %395, %1 : vector<1x32xf32>
    %397 = math.tanh %396 : vector<1x32xf32>
    %cst_149 = arith.constant dense<0.000000e+00> : vector<1x36xf32>
    %398 = tpu.matmul %397, %2, %cst_149 {dimension_numbers = #tpu.dot_dimension_numbers<[1], [0], [0], [1], [0, 0, 1, 1], [], []>} : vector<1x32xf32>, vector<32x36xf32>, vector<1x36xf32> -> vector<1x36xf32>
    %399 = arith.addf %398, %3 : vector<1x36xf32>
    %cst_150 = arith.constant 3.125000e-02 : f32
    %400 = vector.broadcast %cst_150 : f32 to vector<1x36xf32>
    %401 = arith.mulf %400, %399 : vector<1x36xf32>
    %402 = arith.addf %394, %401 : vector<1x36xf32>
    %cst_151 = arith.constant dense<0.000000e+00> : vector<1x32xf32>
    %403 = tpu.matmul %402, %0, %cst_151 {dimension_numbers = #tpu.dot_dimension_numbers<[1], [0], [0], [1], [0, 0, 1, 1], [], []>} : vector<1x36xf32>, vector<36x32xf32>, vector<1x32xf32> -> vector<1x32xf32>
    %404 = arith.addf %403, %1 : vector<1x32xf32>
    %405 = math.tanh %404 : vector<1x32xf32>
    %cst_152 = arith.constant dense<0.000000e+00> : vector<1x36xf32>
    %406 = tpu.matmul %405, %2, %cst_152 {dimension_numbers = #tpu.dot_dimension_numbers<[1], [0], [0], [1], [0, 0, 1, 1], [], []>} : vector<1x32xf32>, vector<32x36xf32>, vector<1x36xf32> -> vector<1x36xf32>
    %407 = arith.addf %406, %3 : vector<1x36xf32>
    %cst_153 = arith.constant 3.125000e-02 : f32
    %408 = vector.broadcast %cst_153 : f32 to vector<1x36xf32>
    %409 = arith.mulf %408, %407 : vector<1x36xf32>
    %410 = arith.addf %394, %409 : vector<1x36xf32>
    %cst_154 = arith.constant dense<0.000000e+00> : vector<1x32xf32>
    %411 = tpu.matmul %410, %0, %cst_154 {dimension_numbers = #tpu.dot_dimension_numbers<[1], [0], [0], [1], [0, 0, 1, 1], [], []>} : vector<1x36xf32>, vector<36x32xf32>, vector<1x32xf32> -> vector<1x32xf32>
    %412 = arith.addf %411, %1 : vector<1x32xf32>
    %413 = math.tanh %412 : vector<1x32xf32>
    %cst_155 = arith.constant dense<0.000000e+00> : vector<1x36xf32>
    %414 = tpu.matmul %413, %2, %cst_155 {dimension_numbers = #tpu.dot_dimension_numbers<[1], [0], [0], [1], [0, 0, 1, 1], [], []>} : vector<1x32xf32>, vector<32x36xf32>, vector<1x36xf32> -> vector<1x36xf32>
    %415 = arith.addf %414, %3 : vector<1x36xf32>
    %cst_156 = arith.constant 6.250000e-02 : f32
    %416 = vector.broadcast %cst_156 : f32 to vector<1x36xf32>
    %417 = arith.mulf %416, %415 : vector<1x36xf32>
    %418 = arith.addf %394, %417 : vector<1x36xf32>
    %cst_157 = arith.constant dense<0.000000e+00> : vector<1x32xf32>
    %419 = tpu.matmul %418, %0, %cst_157 {dimension_numbers = #tpu.dot_dimension_numbers<[1], [0], [0], [1], [0, 0, 1, 1], [], []>} : vector<1x36xf32>, vector<36x32xf32>, vector<1x32xf32> -> vector<1x32xf32>
    %420 = arith.addf %419, %1 : vector<1x32xf32>
    %421 = math.tanh %420 : vector<1x32xf32>
    %cst_158 = arith.constant dense<0.000000e+00> : vector<1x36xf32>
    %422 = tpu.matmul %421, %2, %cst_158 {dimension_numbers = #tpu.dot_dimension_numbers<[1], [0], [0], [1], [0, 0, 1, 1], [], []>} : vector<1x32xf32>, vector<32x36xf32>, vector<1x36xf32> -> vector<1x36xf32>
    %423 = arith.addf %422, %3 : vector<1x36xf32>
    %cst_159 = arith.constant 2.000000e+00 : f32
    %424 = vector.broadcast %cst_159 : f32 to vector<1x36xf32>
    %425 = arith.mulf %424, %407 : vector<1x36xf32>
    %426 = arith.addf %399, %425 : vector<1x36xf32>
    %cst_160 = arith.constant 2.000000e+00 : f32
    %427 = vector.broadcast %cst_160 : f32 to vector<1x36xf32>
    %428 = arith.mulf %427, %415 : vector<1x36xf32>
    %429 = arith.addf %426, %428 : vector<1x36xf32>
    %430 = arith.addf %429, %423 : vector<1x36xf32>
    %cst_161 = arith.constant 0.010416667 : f32
    %431 = vector.broadcast %cst_161 : f32 to vector<1x36xf32>
    %432 = arith.mulf %431, %430 : vector<1x36xf32>
    %433 = arith.addf %394, %432 : vector<1x36xf32>
    %cst_162 = arith.constant dense<0.000000e+00> : vector<1x32xf32>
    %434 = tpu.matmul %433, %0, %cst_162 {dimension_numbers = #tpu.dot_dimension_numbers<[1], [0], [0], [1], [0, 0, 1, 1], [], []>} : vector<1x36xf32>, vector<36x32xf32>, vector<1x32xf32> -> vector<1x32xf32>
    %435 = arith.addf %434, %1 : vector<1x32xf32>
    %436 = math.tanh %435 : vector<1x32xf32>
    %cst_163 = arith.constant dense<0.000000e+00> : vector<1x36xf32>
    %437 = tpu.matmul %436, %2, %cst_163 {dimension_numbers = #tpu.dot_dimension_numbers<[1], [0], [0], [1], [0, 0, 1, 1], [], []>} : vector<1x32xf32>, vector<32x36xf32>, vector<1x36xf32> -> vector<1x36xf32>
    %438 = arith.addf %437, %3 : vector<1x36xf32>
    %cst_164 = arith.constant 3.125000e-02 : f32
    %439 = vector.broadcast %cst_164 : f32 to vector<1x36xf32>
    %440 = arith.mulf %439, %438 : vector<1x36xf32>
    %441 = arith.addf %433, %440 : vector<1x36xf32>
    %cst_165 = arith.constant dense<0.000000e+00> : vector<1x32xf32>
    %442 = tpu.matmul %441, %0, %cst_165 {dimension_numbers = #tpu.dot_dimension_numbers<[1], [0], [0], [1], [0, 0, 1, 1], [], []>} : vector<1x36xf32>, vector<36x32xf32>, vector<1x32xf32> -> vector<1x32xf32>
    %443 = arith.addf %442, %1 : vector<1x32xf32>
    %444 = math.tanh %443 : vector<1x32xf32>
    %cst_166 = arith.constant dense<0.000000e+00> : vector<1x36xf32>
    %445 = tpu.matmul %444, %2, %cst_166 {dimension_numbers = #tpu.dot_dimension_numbers<[1], [0], [0], [1], [0, 0, 1, 1], [], []>} : vector<1x32xf32>, vector<32x36xf32>, vector<1x36xf32> -> vector<1x36xf32>
    %446 = arith.addf %445, %3 : vector<1x36xf32>
    %cst_167 = arith.constant 3.125000e-02 : f32
    %447 = vector.broadcast %cst_167 : f32 to vector<1x36xf32>
    %448 = arith.mulf %447, %446 : vector<1x36xf32>
    %449 = arith.addf %433, %448 : vector<1x36xf32>
    %cst_168 = arith.constant dense<0.000000e+00> : vector<1x32xf32>
    %450 = tpu.matmul %449, %0, %cst_168 {dimension_numbers = #tpu.dot_dimension_numbers<[1], [0], [0], [1], [0, 0, 1, 1], [], []>} : vector<1x36xf32>, vector<36x32xf32>, vector<1x32xf32> -> vector<1x32xf32>
    %451 = arith.addf %450, %1 : vector<1x32xf32>
    %452 = math.tanh %451 : vector<1x32xf32>
    %cst_169 = arith.constant dense<0.000000e+00> : vector<1x36xf32>
    %453 = tpu.matmul %452, %2, %cst_169 {dimension_numbers = #tpu.dot_dimension_numbers<[1], [0], [0], [1], [0, 0, 1, 1], [], []>} : vector<1x32xf32>, vector<32x36xf32>, vector<1x36xf32> -> vector<1x36xf32>
    %454 = arith.addf %453, %3 : vector<1x36xf32>
    %cst_170 = arith.constant 6.250000e-02 : f32
    %455 = vector.broadcast %cst_170 : f32 to vector<1x36xf32>
    %456 = arith.mulf %455, %454 : vector<1x36xf32>
    %457 = arith.addf %433, %456 : vector<1x36xf32>
    %cst_171 = arith.constant dense<0.000000e+00> : vector<1x32xf32>
    %458 = tpu.matmul %457, %0, %cst_171 {dimension_numbers = #tpu.dot_dimension_numbers<[1], [0], [0], [1], [0, 0, 1, 1], [], []>} : vector<1x36xf32>, vector<36x32xf32>, vector<1x32xf32> -> vector<1x32xf32>
    %459 = arith.addf %458, %1 : vector<1x32xf32>
    %460 = math.tanh %459 : vector<1x32xf32>
    %cst_172 = arith.constant dense<0.000000e+00> : vector<1x36xf32>
    %461 = tpu.matmul %460, %2, %cst_172 {dimension_numbers = #tpu.dot_dimension_numbers<[1], [0], [0], [1], [0, 0, 1, 1], [], []>} : vector<1x32xf32>, vector<32x36xf32>, vector<1x36xf32> -> vector<1x36xf32>
    %462 = arith.addf %461, %3 : vector<1x36xf32>
    %cst_173 = arith.constant 2.000000e+00 : f32
    %463 = vector.broadcast %cst_173 : f32 to vector<1x36xf32>
    %464 = arith.mulf %463, %446 : vector<1x36xf32>
    %465 = arith.addf %438, %464 : vector<1x36xf32>
    %cst_174 = arith.constant 2.000000e+00 : f32
    %466 = vector.broadcast %cst_174 : f32 to vector<1x36xf32>
    %467 = arith.mulf %466, %454 : vector<1x36xf32>
    %468 = arith.addf %465, %467 : vector<1x36xf32>
    %469 = arith.addf %468, %462 : vector<1x36xf32>
    %cst_175 = arith.constant 0.010416667 : f32
    %470 = vector.broadcast %cst_175 : f32 to vector<1x36xf32>
    %471 = arith.mulf %470, %469 : vector<1x36xf32>
    %472 = arith.addf %433, %471 : vector<1x36xf32>
    %cst_176 = arith.constant dense<0.000000e+00> : vector<1x32xf32>
    %473 = tpu.matmul %472, %0, %cst_176 {dimension_numbers = #tpu.dot_dimension_numbers<[1], [0], [0], [1], [0, 0, 1, 1], [], []>} : vector<1x36xf32>, vector<36x32xf32>, vector<1x32xf32> -> vector<1x32xf32>
    %474 = arith.addf %473, %1 : vector<1x32xf32>
    %475 = math.tanh %474 : vector<1x32xf32>
    %cst_177 = arith.constant dense<0.000000e+00> : vector<1x36xf32>
    %476 = tpu.matmul %475, %2, %cst_177 {dimension_numbers = #tpu.dot_dimension_numbers<[1], [0], [0], [1], [0, 0, 1, 1], [], []>} : vector<1x32xf32>, vector<32x36xf32>, vector<1x36xf32> -> vector<1x36xf32>
    %477 = arith.addf %476, %3 : vector<1x36xf32>
    %cst_178 = arith.constant 3.125000e-02 : f32
    %478 = vector.broadcast %cst_178 : f32 to vector<1x36xf32>
    %479 = arith.mulf %478, %477 : vector<1x36xf32>
    %480 = arith.addf %472, %479 : vector<1x36xf32>
    %cst_179 = arith.constant dense<0.000000e+00> : vector<1x32xf32>
    %481 = tpu.matmul %480, %0, %cst_179 {dimension_numbers = #tpu.dot_dimension_numbers<[1], [0], [0], [1], [0, 0, 1, 1], [], []>} : vector<1x36xf32>, vector<36x32xf32>, vector<1x32xf32> -> vector<1x32xf32>
    %482 = arith.addf %481, %1 : vector<1x32xf32>
    %483 = math.tanh %482 : vector<1x32xf32>
    %cst_180 = arith.constant dense<0.000000e+00> : vector<1x36xf32>
    %484 = tpu.matmul %483, %2, %cst_180 {dimension_numbers = #tpu.dot_dimension_numbers<[1], [0], [0], [1], [0, 0, 1, 1], [], []>} : vector<1x32xf32>, vector<32x36xf32>, vector<1x36xf32> -> vector<1x36xf32>
    %485 = arith.addf %484, %3 : vector<1x36xf32>
    %cst_181 = arith.constant 3.125000e-02 : f32
    %486 = vector.broadcast %cst_181 : f32 to vector<1x36xf32>
    %487 = arith.mulf %486, %485 : vector<1x36xf32>
    %488 = arith.addf %472, %487 : vector<1x36xf32>
    %cst_182 = arith.constant dense<0.000000e+00> : vector<1x32xf32>
    %489 = tpu.matmul %488, %0, %cst_182 {dimension_numbers = #tpu.dot_dimension_numbers<[1], [0], [0], [1], [0, 0, 1, 1], [], []>} : vector<1x36xf32>, vector<36x32xf32>, vector<1x32xf32> -> vector<1x32xf32>
    %490 = arith.addf %489, %1 : vector<1x32xf32>
    %491 = math.tanh %490 : vector<1x32xf32>
    %cst_183 = arith.constant dense<0.000000e+00> : vector<1x36xf32>
    %492 = tpu.matmul %491, %2, %cst_183 {dimension_numbers = #tpu.dot_dimension_numbers<[1], [0], [0], [1], [0, 0, 1, 1], [], []>} : vector<1x32xf32>, vector<32x36xf32>, vector<1x36xf32> -> vector<1x36xf32>
    %493 = arith.addf %492, %3 : vector<1x36xf32>
    %cst_184 = arith.constant 6.250000e-02 : f32
    %494 = vector.broadcast %cst_184 : f32 to vector<1x36xf32>
    %495 = arith.mulf %494, %493 : vector<1x36xf32>
    %496 = arith.addf %472, %495 : vector<1x36xf32>
    %cst_185 = arith.constant dense<0.000000e+00> : vector<1x32xf32>
    %497 = tpu.matmul %496, %0, %cst_185 {dimension_numbers = #tpu.dot_dimension_numbers<[1], [0], [0], [1], [0, 0, 1, 1], [], []>} : vector<1x36xf32>, vector<36x32xf32>, vector<1x32xf32> -> vector<1x32xf32>
    %498 = arith.addf %497, %1 : vector<1x32xf32>
    %499 = math.tanh %498 : vector<1x32xf32>
    %cst_186 = arith.constant dense<0.000000e+00> : vector<1x36xf32>
    %500 = tpu.matmul %499, %2, %cst_186 {dimension_numbers = #tpu.dot_dimension_numbers<[1], [0], [0], [1], [0, 0, 1, 1], [], []>} : vector<1x32xf32>, vector<32x36xf32>, vector<1x36xf32> -> vector<1x36xf32>
    %501 = arith.addf %500, %3 : vector<1x36xf32>
    %cst_187 = arith.constant 2.000000e+00 : f32
    %502 = vector.broadcast %cst_187 : f32 to vector<1x36xf32>
    %503 = arith.mulf %502, %485 : vector<1x36xf32>
    %504 = arith.addf %477, %503 : vector<1x36xf32>
    %cst_188 = arith.constant 2.000000e+00 : f32
    %505 = vector.broadcast %cst_188 : f32 to vector<1x36xf32>
    %506 = arith.mulf %505, %493 : vector<1x36xf32>
    %507 = arith.addf %504, %506 : vector<1x36xf32>
    %508 = arith.addf %507, %501 : vector<1x36xf32>
    %cst_189 = arith.constant 0.010416667 : f32
    %509 = vector.broadcast %cst_189 : f32 to vector<1x36xf32>
    %510 = arith.mulf %509, %508 : vector<1x36xf32>
    %511 = arith.addf %472, %510 : vector<1x36xf32>
    %cst_190 = arith.constant dense<0.000000e+00> : vector<1x32xf32>
    %512 = tpu.matmul %511, %0, %cst_190 {dimension_numbers = #tpu.dot_dimension_numbers<[1], [0], [0], [1], [0, 0, 1, 1], [], []>} : vector<1x36xf32>, vector<36x32xf32>, vector<1x32xf32> -> vector<1x32xf32>
    %513 = arith.addf %512, %1 : vector<1x32xf32>
    %514 = math.tanh %513 : vector<1x32xf32>
    %cst_191 = arith.constant dense<0.000000e+00> : vector<1x36xf32>
    %515 = tpu.matmul %514, %2, %cst_191 {dimension_numbers = #tpu.dot_dimension_numbers<[1], [0], [0], [1], [0, 0, 1, 1], [], []>} : vector<1x32xf32>, vector<32x36xf32>, vector<1x36xf32> -> vector<1x36xf32>
    %516 = arith.addf %515, %3 : vector<1x36xf32>
    %cst_192 = arith.constant 3.125000e-02 : f32
    %517 = vector.broadcast %cst_192 : f32 to vector<1x36xf32>
    %518 = arith.mulf %517, %516 : vector<1x36xf32>
    %519 = arith.addf %511, %518 : vector<1x36xf32>
    %cst_193 = arith.constant dense<0.000000e+00> : vector<1x32xf32>
    %520 = tpu.matmul %519, %0, %cst_193 {dimension_numbers = #tpu.dot_dimension_numbers<[1], [0], [0], [1], [0, 0, 1, 1], [], []>} : vector<1x36xf32>, vector<36x32xf32>, vector<1x32xf32> -> vector<1x32xf32>
    %521 = arith.addf %520, %1 : vector<1x32xf32>
    %522 = math.tanh %521 : vector<1x32xf32>
    %cst_194 = arith.constant dense<0.000000e+00> : vector<1x36xf32>
    %523 = tpu.matmul %522, %2, %cst_194 {dimension_numbers = #tpu.dot_dimension_numbers<[1], [0], [0], [1], [0, 0, 1, 1], [], []>} : vector<1x32xf32>, vector<32x36xf32>, vector<1x36xf32> -> vector<1x36xf32>
    %524 = arith.addf %523, %3 : vector<1x36xf32>
    %cst_195 = arith.constant 3.125000e-02 : f32
    %525 = vector.broadcast %cst_195 : f32 to vector<1x36xf32>
    %526 = arith.mulf %525, %524 : vector<1x36xf32>
    %527 = arith.addf %511, %526 : vector<1x36xf32>
    %cst_196 = arith.constant dense<0.000000e+00> : vector<1x32xf32>
    %528 = tpu.matmul %527, %0, %cst_196 {dimension_numbers = #tpu.dot_dimension_numbers<[1], [0], [0], [1], [0, 0, 1, 1], [], []>} : vector<1x36xf32>, vector<36x32xf32>, vector<1x32xf32> -> vector<1x32xf32>
    %529 = arith.addf %528, %1 : vector<1x32xf32>
    %530 = math.tanh %529 : vector<1x32xf32>
    %cst_197 = arith.constant dense<0.000000e+00> : vector<1x36xf32>
    %531 = tpu.matmul %530, %2, %cst_197 {dimension_numbers = #tpu.dot_dimension_numbers<[1], [0], [0], [1], [0, 0, 1, 1], [], []>} : vector<1x32xf32>, vector<32x36xf32>, vector<1x36xf32> -> vector<1x36xf32>
    %532 = arith.addf %531, %3 : vector<1x36xf32>
    %cst_198 = arith.constant 6.250000e-02 : f32
    %533 = vector.broadcast %cst_198 : f32 to vector<1x36xf32>
    %534 = arith.mulf %533, %532 : vector<1x36xf32>
    %535 = arith.addf %511, %534 : vector<1x36xf32>
    %cst_199 = arith.constant dense<0.000000e+00> : vector<1x32xf32>
    %536 = tpu.matmul %535, %0, %cst_199 {dimension_numbers = #tpu.dot_dimension_numbers<[1], [0], [0], [1], [0, 0, 1, 1], [], []>} : vector<1x36xf32>, vector<36x32xf32>, vector<1x32xf32> -> vector<1x32xf32>
    %537 = arith.addf %536, %1 : vector<1x32xf32>
    %538 = math.tanh %537 : vector<1x32xf32>
    %cst_200 = arith.constant dense<0.000000e+00> : vector<1x36xf32>
    %539 = tpu.matmul %538, %2, %cst_200 {dimension_numbers = #tpu.dot_dimension_numbers<[1], [0], [0], [1], [0, 0, 1, 1], [], []>} : vector<1x32xf32>, vector<32x36xf32>, vector<1x36xf32> -> vector<1x36xf32>
    %540 = arith.addf %539, %3 : vector<1x36xf32>
    %cst_201 = arith.constant 2.000000e+00 : f32
    %541 = vector.broadcast %cst_201 : f32 to vector<1x36xf32>
    %542 = arith.mulf %541, %524 : vector<1x36xf32>
    %543 = arith.addf %516, %542 : vector<1x36xf32>
    %cst_202 = arith.constant 2.000000e+00 : f32
    %544 = vector.broadcast %cst_202 : f32 to vector<1x36xf32>
    %545 = arith.mulf %544, %532 : vector<1x36xf32>
    %546 = arith.addf %543, %545 : vector<1x36xf32>
    %547 = arith.addf %546, %540 : vector<1x36xf32>
    %cst_203 = arith.constant 0.010416667 : f32
    %548 = vector.broadcast %cst_203 : f32 to vector<1x36xf32>
    %549 = arith.mulf %548, %547 : vector<1x36xf32>
    %550 = arith.addf %511, %549 : vector<1x36xf32>
    %cst_204 = arith.constant dense<0.000000e+00> : vector<1x32xf32>
    %551 = tpu.matmul %550, %0, %cst_204 {dimension_numbers = #tpu.dot_dimension_numbers<[1], [0], [0], [1], [0, 0, 1, 1], [], []>} : vector<1x36xf32>, vector<36x32xf32>, vector<1x32xf32> -> vector<1x32xf32>
    %552 = arith.addf %551, %1 : vector<1x32xf32>
    %553 = math.tanh %552 : vector<1x32xf32>
    %cst_205 = arith.constant dense<0.000000e+00> : vector<1x36xf32>
    %554 = tpu.matmul %553, %2, %cst_205 {dimension_numbers = #tpu.dot_dimension_numbers<[1], [0], [0], [1], [0, 0, 1, 1], [], []>} : vector<1x32xf32>, vector<32x36xf32>, vector<1x36xf32> -> vector<1x36xf32>
    %555 = arith.addf %554, %3 : vector<1x36xf32>
    %cst_206 = arith.constant 3.125000e-02 : f32
    %556 = vector.broadcast %cst_206 : f32 to vector<1x36xf32>
    %557 = arith.mulf %556, %555 : vector<1x36xf32>
    %558 = arith.addf %550, %557 : vector<1x36xf32>
    %cst_207 = arith.constant dense<0.000000e+00> : vector<1x32xf32>
    %559 = tpu.matmul %558, %0, %cst_207 {dimension_numbers = #tpu.dot_dimension_numbers<[1], [0], [0], [1], [0, 0, 1, 1], [], []>} : vector<1x36xf32>, vector<36x32xf32>, vector<1x32xf32> -> vector<1x32xf32>
    %560 = arith.addf %559, %1 : vector<1x32xf32>
    %561 = math.tanh %560 : vector<1x32xf32>
    %cst_208 = arith.constant dense<0.000000e+00> : vector<1x36xf32>
    %562 = tpu.matmul %561, %2, %cst_208 {dimension_numbers = #tpu.dot_dimension_numbers<[1], [0], [0], [1], [0, 0, 1, 1], [], []>} : vector<1x32xf32>, vector<32x36xf32>, vector<1x36xf32> -> vector<1x36xf32>
    %563 = arith.addf %562, %3 : vector<1x36xf32>
    %cst_209 = arith.constant 3.125000e-02 : f32
    %564 = vector.broadcast %cst_209 : f32 to vector<1x36xf32>
    %565 = arith.mulf %564, %563 : vector<1x36xf32>
    %566 = arith.addf %550, %565 : vector<1x36xf32>
    %cst_210 = arith.constant dense<0.000000e+00> : vector<1x32xf32>
    %567 = tpu.matmul %566, %0, %cst_210 {dimension_numbers = #tpu.dot_dimension_numbers<[1], [0], [0], [1], [0, 0, 1, 1], [], []>} : vector<1x36xf32>, vector<36x32xf32>, vector<1x32xf32> -> vector<1x32xf32>
    %568 = arith.addf %567, %1 : vector<1x32xf32>
    %569 = math.tanh %568 : vector<1x32xf32>
    %cst_211 = arith.constant dense<0.000000e+00> : vector<1x36xf32>
    %570 = tpu.matmul %569, %2, %cst_211 {dimension_numbers = #tpu.dot_dimension_numbers<[1], [0], [0], [1], [0, 0, 1, 1], [], []>} : vector<1x32xf32>, vector<32x36xf32>, vector<1x36xf32> -> vector<1x36xf32>
    %571 = arith.addf %570, %3 : vector<1x36xf32>
    %cst_212 = arith.constant 6.250000e-02 : f32
    %572 = vector.broadcast %cst_212 : f32 to vector<1x36xf32>
    %573 = arith.mulf %572, %571 : vector<1x36xf32>
    %574 = arith.addf %550, %573 : vector<1x36xf32>
    %cst_213 = arith.constant dense<0.000000e+00> : vector<1x32xf32>
    %575 = tpu.matmul %574, %0, %cst_213 {dimension_numbers = #tpu.dot_dimension_numbers<[1], [0], [0], [1], [0, 0, 1, 1], [], []>} : vector<1x36xf32>, vector<36x32xf32>, vector<1x32xf32> -> vector<1x32xf32>
    %576 = arith.addf %575, %1 : vector<1x32xf32>
    %577 = math.tanh %576 : vector<1x32xf32>
    %cst_214 = arith.constant dense<0.000000e+00> : vector<1x36xf32>
    %578 = tpu.matmul %577, %2, %cst_214 {dimension_numbers = #tpu.dot_dimension_numbers<[1], [0], [0], [1], [0, 0, 1, 1], [], []>} : vector<1x32xf32>, vector<32x36xf32>, vector<1x36xf32> -> vector<1x36xf32>
    %579 = arith.addf %578, %3 : vector<1x36xf32>
    %cst_215 = arith.constant 2.000000e+00 : f32
    %580 = vector.broadcast %cst_215 : f32 to vector<1x36xf32>
    %581 = arith.mulf %580, %563 : vector<1x36xf32>
    %582 = arith.addf %555, %581 : vector<1x36xf32>
    %cst_216 = arith.constant 2.000000e+00 : f32
    %583 = vector.broadcast %cst_216 : f32 to vector<1x36xf32>
    %584 = arith.mulf %583, %571 : vector<1x36xf32>
    %585 = arith.addf %582, %584 : vector<1x36xf32>
    %586 = arith.addf %585, %579 : vector<1x36xf32>
    %cst_217 = arith.constant 0.010416667 : f32
    %587 = vector.broadcast %cst_217 : f32 to vector<1x36xf32>
    %588 = arith.mulf %587, %586 : vector<1x36xf32>
    %589 = arith.addf %550, %588 : vector<1x36xf32>
    %cst_218 = arith.constant dense<0.000000e+00> : vector<1x32xf32>
    %590 = tpu.matmul %589, %0, %cst_218 {dimension_numbers = #tpu.dot_dimension_numbers<[1], [0], [0], [1], [0, 0, 1, 1], [], []>} : vector<1x36xf32>, vector<36x32xf32>, vector<1x32xf32> -> vector<1x32xf32>
    %591 = arith.addf %590, %1 : vector<1x32xf32>
    %592 = math.tanh %591 : vector<1x32xf32>
    %cst_219 = arith.constant dense<0.000000e+00> : vector<1x36xf32>
    %593 = tpu.matmul %592, %2, %cst_219 {dimension_numbers = #tpu.dot_dimension_numbers<[1], [0], [0], [1], [0, 0, 1, 1], [], []>} : vector<1x32xf32>, vector<32x36xf32>, vector<1x36xf32> -> vector<1x36xf32>
    %594 = arith.addf %593, %3 : vector<1x36xf32>
    %cst_220 = arith.constant 3.125000e-02 : f32
    %595 = vector.broadcast %cst_220 : f32 to vector<1x36xf32>
    %596 = arith.mulf %595, %594 : vector<1x36xf32>
    %597 = arith.addf %589, %596 : vector<1x36xf32>
    %cst_221 = arith.constant dense<0.000000e+00> : vector<1x32xf32>
    %598 = tpu.matmul %597, %0, %cst_221 {dimension_numbers = #tpu.dot_dimension_numbers<[1], [0], [0], [1], [0, 0, 1, 1], [], []>} : vector<1x36xf32>, vector<36x32xf32>, vector<1x32xf32> -> vector<1x32xf32>
    %599 = arith.addf %598, %1 : vector<1x32xf32>
    %600 = math.tanh %599 : vector<1x32xf32>
    %cst_222 = arith.constant dense<0.000000e+00> : vector<1x36xf32>
    %601 = tpu.matmul %600, %2, %cst_222 {dimension_numbers = #tpu.dot_dimension_numbers<[1], [0], [0], [1], [0, 0, 1, 1], [], []>} : vector<1x32xf32>, vector<32x36xf32>, vector<1x36xf32> -> vector<1x36xf32>
    %602 = arith.addf %601, %3 : vector<1x36xf32>
    %cst_223 = arith.constant 3.125000e-02 : f32
    %603 = vector.broadcast %cst_223 : f32 to vector<1x36xf32>
    %604 = arith.mulf %603, %602 : vector<1x36xf32>
    %605 = arith.addf %589, %604 : vector<1x36xf32>
    %cst_224 = arith.constant dense<0.000000e+00> : vector<1x32xf32>
    %606 = tpu.matmul %605, %0, %cst_224 {dimension_numbers = #tpu.dot_dimension_numbers<[1], [0], [0], [1], [0, 0, 1, 1], [], []>} : vector<1x36xf32>, vector<36x32xf32>, vector<1x32xf32> -> vector<1x32xf32>
    %607 = arith.addf %606, %1 : vector<1x32xf32>
    %608 = math.tanh %607 : vector<1x32xf32>
    %cst_225 = arith.constant dense<0.000000e+00> : vector<1x36xf32>
    %609 = tpu.matmul %608, %2, %cst_225 {dimension_numbers = #tpu.dot_dimension_numbers<[1], [0], [0], [1], [0, 0, 1, 1], [], []>} : vector<1x32xf32>, vector<32x36xf32>, vector<1x36xf32> -> vector<1x36xf32>
    %610 = arith.addf %609, %3 : vector<1x36xf32>
    %cst_226 = arith.constant 6.250000e-02 : f32
    %611 = vector.broadcast %cst_226 : f32 to vector<1x36xf32>
    %612 = arith.mulf %611, %610 : vector<1x36xf32>
    %613 = arith.addf %589, %612 : vector<1x36xf32>
    %cst_227 = arith.constant dense<0.000000e+00> : vector<1x32xf32>
    %614 = tpu.matmul %613, %0, %cst_227 {dimension_numbers = #tpu.dot_dimension_numbers<[1], [0], [0], [1], [0, 0, 1, 1], [], []>} : vector<1x36xf32>, vector<36x32xf32>, vector<1x32xf32> -> vector<1x32xf32>
    %615 = arith.addf %614, %1 : vector<1x32xf32>
    %616 = math.tanh %615 : vector<1x32xf32>
    %cst_228 = arith.constant dense<0.000000e+00> : vector<1x36xf32>
    %617 = tpu.matmul %616, %2, %cst_228 {dimension_numbers = #tpu.dot_dimension_numbers<[1], [0], [0], [1], [0, 0, 1, 1], [], []>} : vector<1x32xf32>, vector<32x36xf32>, vector<1x36xf32> -> vector<1x36xf32>
    %618 = arith.addf %617, %3 : vector<1x36xf32>
    %cst_229 = arith.constant 2.000000e+00 : f32
    %619 = vector.broadcast %cst_229 : f32 to vector<1x36xf32>
    %620 = arith.mulf %619, %602 : vector<1x36xf32>
    %621 = arith.addf %594, %620 : vector<1x36xf32>
    %cst_230 = arith.constant 2.000000e+00 : f32
    %622 = vector.broadcast %cst_230 : f32 to vector<1x36xf32>
    %623 = arith.mulf %622, %610 : vector<1x36xf32>
    %624 = arith.addf %621, %623 : vector<1x36xf32>
    %625 = arith.addf %624, %618 : vector<1x36xf32>
    %cst_231 = arith.constant 0.010416667 : f32
    %626 = vector.broadcast %cst_231 : f32 to vector<1x36xf32>
    %627 = arith.mulf %626, %625 : vector<1x36xf32>
    %628 = arith.addf %589, %627 : vector<1x36xf32>
    %c0_232 = arith.constant 0 : index
    %c0_233 = arith.constant 0 : index
    %629 = vector.load %arg5[%c0_232, %c0_233] : memref<1x36xf32, #tpu.memory_space<vmem>>, vector<1x36xf32>
    tpu.vector_store %arg5[%c0_232, %c0_233], %628 {strides = array<i32>} : memref<1x36xf32, #tpu.memory_space<vmem>>, vector<1x36xf32>,
    return
  }
}

</mosaic_0001>

<llo_original>
// kernel: tpu_custom_call.1
$region0: #{tpu_custom_call.1}
  #allocation0 [shape = 'u32[]', space=smem, size = 0x4, offset = 0x4, fixed_abs, tag = 'smem constant byte address 0x4 - core index']
  #allocation1 [shape = 'u32[144,128]{1,0:T(1,128)}', space=vmem, size = 0x12000, scoped, tag = 'internal scratch']
  %s0 = inlined_call_operand.vmem [shape: f32[1,36], index: 0, kind: input, shape index: {}]
  %s1 = inlined_call_operand.vmem [shape: f32[36,32], index: 1, kind: input, shape index: {}]
  %s2 = inlined_call_operand.vmem [shape: f32[1,32], index: 2, kind: input, shape index: {}]
  %s3 = inlined_call_operand.vmem [shape: f32[32,36], index: 3, kind: input, shape index: {}]
  %s4 = inlined_call_operand.vmem [shape: f32[1,36], index: 4, kind: input, shape index: {}]
  %s5 = inlined_call_operand.hbm [shape: f32[1,36], index: 5, kind: output, shape index: {}]
  %s6 = sld [smem:[#allocation0]]
  $region30: #{tpu_custom_call.1} parent=0
    _
  %s8 = ssub.s32 1, %s6
  %s9 = scalar_select 0, %s8, %s6
  $region1: #{tpu_custom_call.1} parent=0
    #allocation2 [shape = 'u8[512]{0}', space=vmem, size = 0x400, scoped, tag = 'output window, operand 0, single buffered']
    #allocation3 [shape = 's32[1]{0}', space=sflag, size = 0x4, scoped, tag = 'scoped memory for tpu_custom_call.1']
    %10 = vsyncpa [#allocation3], 0
    // Predicated region
    $region2: #{tpu_custom_call.1} parent=1 // pred_check
      _
    $region3: #{tpu_custom_call.1} parent=1 // pred_check_branch
      %12 = sbr.rel (0) target = $region5
    $region4: #{tpu_custom_call.1} parent=1 // pred_region
      _
    $region5: #{tpu_custom_call.1} parent=1 // pred_fallthru
      _
    // Predicated region
    $region6: #{tpu_custom_call.1} parent=1 // pred_check
      _
    $region7: #{tpu_custom_call.1} parent=1 // pred_check_branch
      %14 = sbr.rel (0) target = $region9
    $region8: #{tpu_custom_call.1} parent=1 // pred_region
      _
    $region9: #{tpu_custom_call.1} parent=1 // pred_fallthru
      _
    // Predicated region
    $region10: #{tpu_custom_call.1} parent=1 // pred_check
      _
    $region11: #{tpu_custom_call.1} parent=1 // pred_check_branch
      %16 = sbr.rel (0) target = $region13
    $region12: #{tpu_custom_call.1} parent=1 // pred_region
      _
    $region13: #{tpu_custom_call.1} parent=1 // pred_fallthru
      _
    // Predicated region
    $region14: #{tpu_custom_call.1} parent=1 // pred_check
      _
    $region15: #{tpu_custom_call.1} parent=1 // pred_check_branch
      %18 = sbr.rel (0) target = $region17
    $region16: #{tpu_custom_call.1} parent=1 // pred_region
      _
    $region17: #{tpu_custom_call.1} parent=1 // pred_fallthru
      _
    // Predicated region
    $region18: #{tpu_custom_call.1} parent=1 // pred_check
      _
    $region19: #{tpu_custom_call.1} parent=1 // pred_check_branch
      %20 = sbr.rel (0) target = $region21
    $region20: #{tpu_custom_call.1} parent=1 // pred_region
      _
    $region21: #{tpu_custom_call.1} parent=1 // pred_fallthru
      _
    %v21 = vld [vmem:[%s1] sm:$0xff]
    %v22 = vld [vmem:[%s1 + $0x8] sm:$0xff]
    %v23 = vld [vmem:[%s1 + $0x10] sm:$0xff]
    %v24 = vld [vmem:[%s1 + $0x18] sm:$0xff]
    %v25 = vld [vmem:[%s1 + $0x20] sm:$0xf]
    %v26 = vld [vmem:[%s2] sm:$0x1]
    %v27 = vld [vmem:[%s3] sm:$0xff]
    %v28 = vld [vmem:[%s3 + $0x8] sm:$0xff]
    %v29 = vld [vmem:[%s3 + $0x10] sm:$0xff]
    %v30 = vld [vmem:[%s3 + $0x18] sm:$0xff]
    %v31 = vld [vmem:[%s4] sm:$0x1]
    %v32 = vld [vmem:[%s0] sm:$0x1]
    %vm33 = vcmask 293888
    %v35 = vsel %vm33, %v32, 0
    %vm37 = vcmask 1043456
    %v39 = vsel %vm37, %v25, 0
    %41 = vmatprep.subr.mxu0 0.0
    %42 = vmatpush1.msra.mxu0 %v21
    %43 = vmatprep.subr.mxu0 0.0
    %44 = vmatpush1.msra.mxu0 %v22
    %45 = vmatprep.subr.mxu0 0.0
    %46 = vmatpush1.msra.mxu0 %v23
    %47 = vmatprep.subr.mxu0 0.0
    %48 = vmatpush1.msra.mxu0 %v24
    %49 = vmatprep.subr.mxu0 0.0
    %50 = vmatpush1.msra.mxu0 %v39
    %51 = vmatprep.subr.mxu0 0.0
    %52 = vmatpush1.msra.mxu0 0.0
    %53 = vmatprep.subr.mxu0 0.0
    %54 = vmatpush1.msra.mxu0 0.0
    %55 = vmatprep.subr.mxu0 0.0
    %56 = vmatpush1.msra.mxu0 0.0
    %57 = vmatprep.subr.mxu0 0.0
    %58 = vmatpush1.msra.mxu0 0.0
    %59 = vmatprep.subr.mxu0 0.0
    %60 = vmatpush1.msra.mxu0 0.0
    %61 = vmatprep.subr.mxu0 0.0
    %62 = vmatpush1.msra.mxu0 0.0
    %63 = vmatprep.subr.mxu0 0.0
    %64 = vmatpush1.msra.mxu0 0.0
    %65 = vmatprep.subr.mxu0 0.0
    %66 = vmatpush1.msra.mxu0 0.0
    %67 = vmatprep.subr.mxu0 0.0
    %68 = vmatpush1.msra.mxu0 0.0
    %69 = vmatprep.subr.mxu0 0.0
    %70 = vmatpush1.msra.mxu0 0.0
    %71 = vmatprep.subr.mxu0 0.0
    %72 = vmatpush1.msra.mxu0 0.0
    %73 = vmatprep.subr.mxu0 0.0
    %74 = vmatpush1.msra.mxu0 0.0
    %75 = vmatprep.subr.mxu0 0.0
    %76 = vmatpush1.msra.mxu0 0.0
    %77 = vmatprep.subr.mxu0 0.0
    %78 = vmatpush1.msra.mxu0 0.0
    %79 = vmatprep.subr.mxu0 0.0
    %80 = vmatpush1.msra.mxu0 0.0
    %81 = vmatprep.subr.mxu0 0.0
    %82 = vmatpush1.msra.mxu0 0.0
    %83 = vmatprep.subr.mxu0 0.0
    %84 = vmatpush1.msra.mxu0 0.0
    %85 = vmatprep.subr.mxu0 0.0
    %86 = vmatpush1.msra.mxu0 0.0
    %87 = vmatprep.subr.mxu0 0.0
    %88 = vmatpush1.msra.mxu0 0.0
    %89 = vmatprep.subr.mxu0 0.0
    %90 = vmatpush1.msra.mxu0 0.0
    %91 = vmatprep.subr.mxu0 0.0
    %92 = vmatpush1.msra.mxu0 0.0
    %93 = vmatprep.subr.mxu0 0.0
    %94 = vmatpush1.msra.mxu0 0.0
    %95 = vmatprep.subr.mxu0 0.0
    %96 = vmatpush1.msra.mxu0 0.0
    %97 = vmatprep.subr.mxu0 0.0
    %98 = vmatpush1.msra.mxu0 0.0
    %99 = vmatprep.subr.mxu0 0.0
    %100 = vmatpush1.msra.mxu0 0.0
    %101 = vmatprep.subr.mxu0 0.0
    %102 = vmatpush1.msra.mxu0 0.0
    %103 = vmatprep.subr.mxu0 0.0
    %104 = vmatpush1.msra.mxu0 0.0
    %105 = vmatprep.mubr.f32.mxu0 0.0
    %106 = vmatmul.mubr.f32.gmra.mrb[0].mxu0 %v35
    %v107 = vpop.f32.mrb[0].mxu0
    %v108 = vadd.f32 %v26, %v107
    %v109 = vpop.f32.mrb[0].mxu0
    %110 = vdwg.mxu0
    %v111 = vtanh.pop %v108
    %vm112 = vcmask 261120
    %v114 = vsel %vm112, %v111, 0
    %116 = vmatprep.subr.mxu0 0.0
    %117 = vmatpush1.msra.mxu0 %v27
    %118 = vmatprep.subr.mxu0 0.0
    %119 = vmatpush1.msra.mxu0 %v28
    %120 = vmatprep.subr.mxu0 0.0
    %121 = vmatpush1.msra.mxu0 %v29
    %122 = vmatprep.subr.mxu0 0.0
    %123 = vmatpush1.msra.mxu0 %v30
    %124 = vmatprep.subr.mxu0 0.0
    %125 = vmatpush1.msra.mxu0 0.0
    %126 = vmatprep.subr.mxu0 0.0
    %127 = vmatpush1.msra.mxu0 0.0
    %128 = vmatprep.subr.mxu0 0.0
    %129 = vmatpush1.msra.mxu0 0.0
    %130 = vmatprep.subr.mxu0 0.0
    %131 = vmatpush1.msra.mxu0 0.0
    %132 = vmatprep.subr.mxu0 0.0
    %133 = vmatpush1.msra.mxu0 0.0
    %134 = vmatprep.subr.mxu0 0.0
    %135 = vmatpush1.msra.mxu0 0.0
    %136 = vmatprep.subr.mxu0 0.0
    %137 = vmatpush1.msra.mxu0 0.0
    %138 = vmatprep.subr.mxu0 0.0
    %139 = vmatpush1.msra.mxu0 0.0
    %140 = vmatprep.subr.mxu0 0.0
    %141 = vmatpush1.msra.mxu0 0.0
    %142 = vmatprep.subr.mxu0 0.0
    %143 = vmatpush1.msra.mxu0 0.0
    %144 = vmatprep.subr.mxu0 0.0
    %145 = vmatpush1.msra.mxu0 0.0
    %146 = vmatprep.subr.mxu0 0.0
    %147 = vmatpush1.msra.mxu0 0.0
    %148 = vmatprep.subr.mxu0 0.0
    %149 = vmatpush1.msra.mxu0 0.0
    %150 = vmatprep.subr.mxu0 0.0
    %151 = vmatpush1.msra.mxu0 0.0
    %152 = vmatprep.subr.mxu0 0.0
    %153 = vmatpush1.msra.mxu0 0.0
    %154 = vmatprep.subr.mxu0 0.0
    %155 = vmatpush1.msra.mxu0 0.0
    %156 = vmatprep.subr.mxu0 0.0
    %157 = vmatpush1.msra.mxu0 0.0
    %158 = vmatprep.subr.mxu0 0.0
    %159 = vmatpush1.msra.mxu0 0.0
    %160 = vmatprep.subr.mxu0 0.0
    %161 = vmatpush1.msra.mxu0 0.0
    %162 = vmatprep.subr.mxu0 0.0
    %163 = vmatpush1.msra.mxu0 0.0
    %164 = vmatprep.subr.mxu0 0.0
    %165 = vmatpush1.msra.mxu0 0.0
    %166 = vmatprep.subr.mxu0 0.0
    %167 = vmatpush1.msra.mxu0 0.0
    %168 = vmatprep.subr.mxu0 0.0
    %169 = vmatpush1.msra.mxu0 0.0
    %170 = vmatprep.subr.mxu0 0.0
    %171 = vmatpush1.msra.mxu0 0.0
    %172 = vmatprep.subr.mxu0 0.0
    %173 = vmatpush1.msra.mxu0 0.0
    %174 = vmatprep.subr.mxu0 0.0
    %175 = vmatpush1.msra.mxu0 0.0
    %176 = vmatprep.subr.mxu0 0.0
    %177 = vmatpush1.msra.mxu0 0.0
    %178 = vmatprep.subr.mxu0 0.0
    %179 = vmatpush1.msra.mxu0 0.0
    %180 = vmatprep.mubr.f32.mxu0 0.0
    %181 = vmatmul.mubr.f32.gmra.mrb[0].mxu0 %v114
    %v182 = vpop.f32.mrb[0].mxu0
    %v183 = vadd.f32 %v31, %v182
    %v184 = vpop.f32.mrb[0].mxu0
    %185 = vdwg.mxu0
    %v186 = vmul.f32 %v183, 0.03125
    %v187 = vadd.f32 %v32, %v186
    %v189 = vsel %vm33, %v187, 0
    %191 = vmatprep.subr.mxu0 0.0
    %192 = vmatpush1.msra.mxu0 %v21
    %193 = vmatprep.subr.mxu0 0.0
    %194 = vmatpush1.msra.mxu0 %v22
    %195 = vmatprep.subr.mxu0 0.0
    %196 = vmatpush1.msra.mxu0 %v23
    %197 = vmatprep.subr.mxu0 0.0
    %198 = vmatpush1.msra.mxu0 %v24
    %199 = vmatprep.subr.mxu0 0.0
    %200 = vmatpush1.msra.mxu0 %v39
    %201 = vmatprep.subr.mxu0 0.0
    %202 = vmatpush1.msra.mxu0 0.0
    %203 = vmatprep.subr.mxu0 0.0
    %204 = vmatpush1.msra.mxu0 0.0
    %205 = vmatprep.subr.mxu0 0.0
    %206 = vmatpush1.msra.mxu0 0.0
    %207 = vmatprep.subr.mxu0 0.0
    %208 = vmatpush1.msra.mxu0 0.0
    %209 = vmatprep.subr.mxu0 0.0
    %210 = vmatpush1.msra.mxu0 0.0
    %211 = vmatprep.subr.mxu0 0.0
    %212 = vmatpush1.msra.mxu0 0.0
    %213 = vmatprep.subr.mxu0 0.0
    %214 = vmatpush1.msra.mxu0 0.0
    %215 = vmatprep.subr.mxu0 0.0
    %216 = vmatpush1.msra.mxu0 0.0
    %217 = vmatprep.subr.mxu0 0.0
    %218 = vmatpush1.msra.mxu0 0.0
    %219 = vmatprep.subr.mxu0 0.0
    %220 = vmatpush1.msra.mxu0 0.0
    %221 = vmatprep.subr.mxu0 0.0
    %222 = vmatpush1.msra.mxu0 0.0
    %223 = vmatprep.subr.mxu0 0.0
    %224 = vmatpush1.msra.mxu0 0.0
    %225 = vmatprep.subr.mxu0 0.0
    %226 = vmatpush1.msra.mxu0 0.0
    %227 = vmatprep.subr.mxu0 0.0
    %228 = vmatpush1.msra.mxu0 0.0
    %229 = vmatprep.subr.mxu0 0.0
    %230 = vmatpush1.msra.mxu0 0.0
    %231 = vmatprep.subr.mxu0 0.0
    %232 = vmatpush1.msra.mxu0 0.0
    %233 = vmatprep.subr.mxu0 0.0
    %234 = vmatpush1.msra.mxu0 0.0
    %235 = vmatprep.subr.mxu0 0.0
    %236 = vmatpush1.msra.mxu0 0.0
    %237 = vmatprep.subr.mxu0 0.0
    %238 = vmatpush1.msra.mxu0 0.0
    %239 = vmatprep.subr.mxu0 0.0
    %240 = vmatpush1.msra.mxu0 0.0
    %241 = vmatprep.subr.mxu0 0.0
    %242 = vmatpush1.msra.mxu0 0.0
    %243 = vmatprep.subr.mxu0 0.0
    %244 = vmatpush1.msra.mxu0 0.0
    %245 = vmatprep.subr.mxu0 0.0
    %246 = vmatpush1.msra.mxu0 0.0
    %247 = vmatprep.subr.mxu0 0.0
    %248 = vmatpush1.msra.mxu0 0.0
    %249 = vmatprep.subr.mxu0 0.0
    %250 = vmatpush1.msra.mxu0 0.0
    %251 = vmatprep.subr.mxu0 0.0
    %252 = vmatpush1.msra.mxu0 0.0
    %253 = vmatprep.subr.mxu0 0.0
    %254 = vmatpush1.msra.mxu0 0.0
    %255 = vmatprep.mubr.f32.mxu0 0.0
    %256 = vmatmul.mubr.f32.gmra.mrb[0].mxu0 %v189
    %v257 = vpop.f32.mrb[0].mxu0
    %v258 = vadd.f32 %v26, %v257
    %v259 = vpop.f32.mrb[0].mxu0
    %260 = vdwg.mxu0
    %v261 = vtanh.pop %v258
    %v263 = vsel %vm112, %v261, 0
    %265 = vmatprep.subr.mxu0 0.0
    %266 = vmatpush1.msra.mxu0 %v27
    %267 = vmatprep.subr.mxu0 0.0
    %268 = vmatpush1.msra.mxu0 %v28
    %269 = vmatprep.subr.mxu0 0.0
    %270 = vmatpush1.msra.mxu0 %v29
    %271 = vmatprep.subr.mxu0 0.0
    %272 = vmatpush1.msra.mxu0 %v30
    %273 = vmatprep.subr.mxu0 0.0
    %274 = vmatpush1.msra.mxu0 0.0
    %275 = vmatprep.subr.mxu0 0.0
    %276 = vmatpush1.msra.mxu0 0.0
    %277 = vmatprep.subr.mxu0 0.0
    %278 = vmatpush1.msra.mxu0 0.0
    %279 = vmatprep.subr.mxu0 0.0
    %280 = vmatpush1.msra.mxu0 0.0
    %281 = vmatprep.subr.mxu0 0.0
    %282 = vmatpush1.msra.mxu0 0.0
    %283 = vmatprep.subr.mxu0 0.0
    %284 = vmatpush1.msra.mxu0 0.0
    %285 = vmatprep.subr.mxu0 0.0
    %286 = vmatpush1.msra.mxu0 0.0
    %287 = vmatprep.subr.mxu0 0.0
    %288 = vmatpush1.msra.mxu0 0.0
    %289 = vmatprep.subr.mxu0 0.0
    %290 = vmatpush1.msra.mxu0 0.0
    %291 = vmatprep.subr.mxu0 0.0
    %292 = vmatpush1.msra.mxu0 0.0
    %293 = vmatprep.subr.mxu0 0.0
    %294 = vmatpush1.msra.mxu0 0.0
    %295 = vmatprep.subr.mxu0 0.0
    %296 = vmatpush1.msra.mxu0 0.0
    %297 = vmatprep.subr.mxu0 0.0
    %298 = vmatpush1.msra.mxu0 0.0
    %299 = vmatprep.subr.mxu0 0.0
    %300 = vmatpush1.msra.mxu0 0.0
    %301 = vmatprep.subr.mxu0 0.0
    %302 = vmatpush1.msra.mxu0 0.0
    %303 = vmatprep.subr.mxu0 0.0
    %304 = vmatpush1.msra.mxu0 0.0
    %305 = vmatprep.subr.mxu0 0.0
    %306 = vmatpush1.msra.mxu0 0.0
    %307 = vmatprep.subr.mxu0 0.0
    %308 = vmatpush1.msra.mxu0 0.0
    %309 = vmatprep.subr.mxu0 0.0
    %310 = vmatpush1.msra.mxu0 0.0
    %311 = vmatprep.subr.mxu0 0.0
    %312 = vmatpush1.msra.mxu0 0.0
    %313 = vmatprep.subr.mxu0 0.0
    %314 = vmatpush1.msra.mxu0 0.0
    %315 = vmatprep.subr.mxu0 0.0
    %316 = vmatpush1.msra.mxu0 0.0
    %317 = vmatprep.subr.mxu0 0.0
    %318 = vmatpush1.msra.mxu0 0.0
    %319 = vmatprep.subr.mxu0 0.0
    %320 = vmatpush1.msra.mxu0 0.0
    %321 = vmatprep.subr.mxu0 0.0
    %322 = vmatpush1.msra.mxu0 0.0
    %323 = vmatprep.subr.mxu0 0.0
    %324 = vmatpush1.msra.mxu0 0.0
    %325 = vmatprep.subr.mxu0 0.0
    %326 = vmatpush1.msra.mxu0 0.0
    %327 = vmatprep.subr.mxu0 0.0
    %328 = vmatpush1.msra.mxu0 0.0
    %329 = vmatprep.mubr.f32.mxu0 0.0
    %330 = vmatmul.mubr.f32.gmra.mrb[0].mxu0 %v263
    %v331 = vpop.f32.mrb[0].mxu0
    %v332 = vadd.f32 %v31, %v331
    %v333 = vpop.f32.mrb[0].mxu0
    %334 = vdwg.mxu0
    %v335 = vmul.f32 %v332, 0.03125
    %v336 = vadd.f32 %v32, %v335
    %v338 = vsel %vm33, %v336, 0
    %340 = vmatprep.subr.mxu0 0.0
    %341 = vmatpush1.msra.mxu0 %v21
    %342 = vmatprep.subr.mxu0 0.0
    %343 = vmatpush1.msra.mxu0 %v22
    %344 = vmatprep.subr.mxu0 0.0
    %345 = vmatpush1.msra.mxu0 %v23
    %346 = vmatprep.subr.mxu0 0.0
    %347 = vmatpush1.msra.mxu0 %v24
    %348 = vmatprep.subr.mxu0 0.0
    %349 = vmatpush1.msra.mxu0 %v39
    %350 = vmatprep.subr.mxu0 0.0
    %351 = vmatpush1.msra.mxu0 0.0
    %352 = vmatprep.subr.mxu0 0.0
    %353 = vmatpush1.msra.mxu0 0.0
    %354 = vmatprep.subr.mxu0 0.0
    %355 = vmatpush1.msra.mxu0 0.0
    %356 = vmatprep.subr.mxu0 0.0
    %357 = vmatpush1.msra.mxu0 0.0
    %358 = vmatprep.subr.mxu0 0.0
    %359 = vmatpush1.msra.mxu0 0.0
    %360 = vmatprep.subr.mxu0 0.0
    %361 = vmatpush1.msra.mxu0 0.0
    %362 = vmatprep.subr.mxu0 0.0
    %363 = vmatpush1.msra.mxu0 0.0
    %364 = vmatprep.subr.mxu0 0.0
    %365 = vmatpush1.msra.mxu0 0.0
    %366 = vmatprep.subr.mxu0 0.0
    %367 = vmatpush1.msra.mxu0 0.0
    %368 = vmatprep.subr.mxu0 0.0
    %369 = vmatpush1.msra.mxu0 0.0
    %370 = vmatprep.subr.mxu0 0.0
    %371 = vmatpush1.msra.mxu0 0.0
    %372 = vmatprep.subr.mxu0 0.0
    %373 = vmatpush1.msra.mxu0 0.0
    %374 = vmatprep.subr.mxu0 0.0
    %375 = vmatpush1.msra.mxu0 0.0
    %376 = vmatprep.subr.mxu0 0.0
    %377 = vmatpush1.msra.mxu0 0.0
    %378 = vmatprep.subr.mxu0 0.0
    %379 = vmatpush1.msra.mxu0 0.0
    %380 = vmatprep.subr.mxu0 0.0
    %381 = vmatpush1.msra.mxu0 0.0
    %382 = vmatprep.subr.mxu0 0.0
    %383 = vmatpush1.msra.mxu0 0.0
    %384 = vmatprep.subr.mxu0 0.0
    %385 = vmatpush1.msra.mxu0 0.0
    %386 = vmatprep.subr.mxu0 0.0
    %387 = vmatpush1.msra.mxu0 0.0
    %388 = vmatprep.subr.mxu0 0.0
    %389 = vmatpush1.msra.mxu0 0.0
    %390 = vmatprep.subr.mxu0 0.0
    %391 = vmatpush1.msra.mxu0 0.0
    %392 = vmatprep.subr.mxu0 0.0
    %393 = vmatpush1.msra.mxu0 0.0
    %394 = vmatprep.subr.mxu0 0.0
    %395 = vmatpush1.msra.mxu0 0.0
    %396 = vmatprep.subr.mxu0 0.0
    %397 = vmatpush1.msra.mxu0 0.0
    %398 = vmatprep.subr.mxu0 0.0
    %399 = vmatpush1.msra.mxu0 0.0
    %400 = vmatprep.subr.mxu0 0.0
    %401 = vmatpush1.msra.mxu0 0.0
    %402 = vmatprep.subr.mxu0 0.0
    %403 = vmatpush1.msra.mxu0 0.0
    %404 = vmatprep.mubr.f32.mxu0 0.0
    %405 = vmatmul.mubr.f32.gmra.mrb[0].mxu0 %v338
    %v406 = vpop.f32.mrb[0].mxu0
    %v407 = vadd.f32 %v26, %v406
    %v408 = vpop.f32.mrb[0].mxu0
    %409 = vdwg.mxu0
    %v410 = vtanh.pop %v407
    %v412 = vsel %vm112, %v410, 0
    %414 = vmatprep.subr.mxu0 0.0
    %415 = vmatpush1.msra.mxu0 %v27
    %416 = vmatprep.subr.mxu0 0.0
    %417 = vmatpush1.msra.mxu0 %v28
    %418 = vmatprep.subr.mxu0 0.0
    %419 = vmatpush1.msra.mxu0 %v29
    %420 = vmatprep.subr.mxu0 0.0
    %421 = vmatpush1.msra.mxu0 %v30
    %422 = vmatprep.subr.mxu0 0.0
    %423 = vmatpush1.msra.mxu0 0.0
    %424 = vmatprep.subr.mxu0 0.0
    %425 = vmatpush1.msra.mxu0 0.0
    %426 = vmatprep.subr.mxu0 0.0
    %427 = vmatpush1.msra.mxu0 0.0
    %428 = vmatprep.subr.mxu0 0.0
    %429 = vmatpush1.msra.mxu0 0.0
    %430 = vmatprep.subr.mxu0 0.0
    %431 = vmatpush1.msra.mxu0 0.0
    %432 = vmatprep.subr.mxu0 0.0
    %433 = vmatpush1.msra.mxu0 0.0
    %434 = vmatprep.subr.mxu0 0.0
    %435 = vmatpush1.msra.mxu0 0.0
    %436 = vmatprep.subr.mxu0 0.0
    %437 = vmatpush1.msra.mxu0 0.0
    %438 = vmatprep.subr.mxu0 0.0
    %439 = vmatpush1.msra.mxu0 0.0
    %440 = vmatprep.subr.mxu0 0.0
    %441 = vmatpush1.msra.mxu0 0.0
    %442 = vmatprep.subr.mxu0 0.0
    %443 = vmatpush1.msra.mxu0 0.0
    %444 = vmatprep.subr.mxu0 0.0
    %445 = vmatpush1.msra.mxu0 0.0
    %446 = vmatprep.subr.mxu0 0.0
    %447 = vmatpush1.msra.mxu0 0.0
    %448 = vmatprep.subr.mxu0 0.0
    %449 = vmatpush1.msra.mxu0 0.0
    %450 = vmatprep.subr.mxu0 0.0
    %451 = vmatpush1.msra.mxu0 0.0
    %452 = vmatprep.subr.mxu0 0.0
    %453 = vmatpush1.msra.mxu0 0.0
    %454 = vmatprep.subr.mxu0 0.0
    %455 = vmatpush1.msra.mxu0 0.0
    %456 = vmatprep.subr.mxu0 0.0
    %457 = vmatpush1.msra.mxu0 0.0
    %458 = vmatprep.subr.mxu0 0.0
    %459 = vmatpush1.msra.mxu0 0.0
    %460 = vmatprep.subr.mxu0 0.0
    %461 = vmatpush1.msra.mxu0 0.0
    %462 = vmatprep.subr.mxu0 0.0
    %463 = vmatpush1.msra.mxu0 0.0
    %464 = vmatprep.subr.mxu0 0.0
    %465 = vmatpush1.msra.mxu0 0.0
    %466 = vmatprep.subr.mxu0 0.0
    %467 = vmatpush1.msra.mxu0 0.0
    %468 = vmatprep.subr.mxu0 0.0
    %469 = vmatpush1.msra.mxu0 0.0
    %470 = vmatprep.subr.mxu0 0.0
    %471 = vmatpush1.msra.mxu0 0.0
    %472 = vmatprep.subr.mxu0 0.0
    %473 = vmatpush1.msra.mxu0 0.0
    %474 = vmatprep.subr.mxu0 0.0
    %475 = vmatpush1.msra.mxu0 0.0
    %476 = vmatprep.subr.mxu0 0.0
    %477 = vmatpush1.msra.mxu0 0.0
    %478 = vmatprep.mubr.f32.mxu0 0.0
    %479 = vmatmul.mubr.f32.gmra.mrb[0].mxu0 %v412
    %v480 = vpop.f32.mrb[0].mxu0
    %v481 = vadd.f32 %v31, %v480
    %v482 = vpop.f32.mrb[0].mxu0
    %483 = vdwg.mxu0
    %v484 = vmul.f32 %v481, 0.0625
    %v485 = vadd.f32 %v32, %v484
    %v487 = vsel %vm33, %v485, 0
    %489 = vmatprep.subr.mxu0 0.0
    %490 = vmatpush1.msra.mxu0 %v21
    %491 = vmatprep.subr.mxu0 0.0
    %492 = vmatpush1.msra.mxu0 %v22
    %493 = vmatprep.subr.mxu0 0.0
    %494 = vmatpush1.msra.mxu0 %v23
    %495 = vmatprep.subr.mxu0 0.0
    %496 = vmatpush1.msra.mxu0 %v24
    %497 = vmatprep.subr.mxu0 0.0
    %498 = vmatpush1.msra.mxu0 %v39
    %499 = vmatprep.subr.mxu0 0.0
    %500 = vmatpush1.msra.mxu0 0.0
    %501 = vmatprep.subr.mxu0 0.0
    %502 = vmatpush1.msra.mxu0 0.0
    %503 = vmatprep.subr.mxu0 0.0
    %504 = vmatpush1.msra.mxu0 0.0
    %505 = vmatprep.subr.mxu0 0.0
    %506 = vmatpush1.msra.mxu0 0.0
    %507 = vmatprep.subr.mxu0 0.0
    %508 = vmatpush1.msra.mxu0 0.0
    %509 = vmatprep.subr.mxu0 0.0
    %510 = vmatpush1.msra.mxu0 0.0
    %511 = vmatprep.subr.mxu0 0.0
    %512 = vmatpush1.msra.mxu0 0.0
    %513 = vmatprep.subr.mxu0 0.0
    %514 = vmatpush1.msra.mxu0 0.0
    %515 = vmatprep.subr.mxu0 0.0
    %516 = vmatpush1.msra.mxu0 0.0
    %517 = vmatprep.subr.mxu0 0.0
    %518 = vmatpush1.msra.mxu0 0.0
    %519 = vmatprep.subr.mxu0 0.0
    %520 = vmatpush1.msra.mxu0 0.0
    %521 = vmatprep.subr.mxu0 0.0
    %522 = vmatpush1.msra.mxu0 0.0
    %523 = vmatprep.subr.mxu0 0.0
    %524 = vmatpush1.msra.mxu0 0.0
    %525 = vmatprep.subr.mxu0 0.0
    %526 = vmatpush1.msra.mxu0 0.0
    %527 = vmatprep.subr.mxu0 0.0
    %528 = vmatpush1.msra.mxu0 0.0
    %529 = vmatprep.subr.mxu0 0.0
    %530 = vmatpush1.msra.mxu0 0.0
    %531 = vmatprep.subr.mxu0 0.0
    %532 = vmatpush1.msra.mxu0 0.0
    %533 = vmatprep.subr.mxu0 0.0
    %534 = vmatpush1.msra.mxu0 0.0
    %535 = vmatprep.subr.mxu0 0.0
    %536 = vmatpush1.msra.mxu0 0.0
    %537 = vmatprep.subr.mxu0 0.0
    %538 = vmatpush1.msra.mxu0 0.0
    %539 = vmatprep.subr.mxu0 0.0
    %540 = vmatpush1.msra.mxu0 0.0
    %541 = vmatprep.subr.mxu0 0.0
    %542 = vmatpush1.msra.mxu0 0.0
    %543 = vmatprep.subr.mxu0 0.0
    %544 = vmatpush1.msra.mxu0 0.0
    %545 = vmatprep.subr.mxu0 0.0
    %546 = vmatpush1.msra.mxu0 0.0
    %547 = vmatprep.subr.mxu0 0.0
    %548 = vmatpush1.msra.mxu0 0.0
    %549 = vmatprep.subr.mxu0 0.0
    %550 = vmatpush1.msra.mxu0 0.0
    %551 = vmatprep.subr.mxu0 0.0
    %552 = vmatpush1.msra.mxu0 0.0
    %553 = vmatprep.mubr.f32.mxu0 0.0
    %554 = vmatmul.mubr.f32.gmra.mrb[0].mxu0 %v487
    %v555 = vpop.f32.mrb[0].mxu0
    %v556 = vadd.f32 %v26, %v555
    %v557 = vpop.f32.mrb[0].mxu0
    %558 = vdwg.mxu0
    %v559 = vtanh.pop %v556
    %v561 = vsel %vm112, %v559, 0
    %563 = vmatprep.subr.mxu0 0.0
    %564 = vmatpush1.msra.mxu0 %v27
    %565 = vmatprep.subr.mxu0 0.0
    %566 = vmatpush1.msra.mxu0 %v28
    %567 = vmatprep.subr.mxu0 0.0
    %568 = vmatpush1.msra.mxu0 %v29
    %569 = vmatprep.subr.mxu0 0.0
    %570 = vmatpush1.msra.mxu0 %v30
    %571 = vmatprep.subr.mxu0 0.0
    %572 = vmatpush1.msra.mxu0 0.0
    %573 = vmatprep.subr.mxu0 0.0
    %574 = vmatpush1.msra.mxu0 0.0
    %575 = vmatprep.subr.mxu0 0.0
    %576 = vmatpush1.msra.mxu0 0.0
    %577 = vmatprep.subr.mxu0 0.0
    %578 = vmatpush1.msra.mxu0 0.0
    %579 = vmatprep.subr.mxu0 0.0
    %580 = vmatpush1.msra.mxu0 0.0
    %581 = vmatprep.subr.mxu0 0.0
    %582 = vmatpush1.msra.mxu0 0.0
    %583 = vmatprep.subr.mxu0 0.0
    %584 = vmatpush1.msra.mxu0 0.0
    %585 = vmatprep.subr.mxu0 0.0
    %586 = vmatpush1.msra.mxu0 0.0
    %587 = vmatprep.subr.mxu0 0.0
    %588 = vmatpush1.msra.mxu0 0.0
    %589 = vmatprep.subr.mxu0 0.0
    %590 = vmatpush1.msra.mxu0 0.0
    %591 = vmatprep.subr.mxu0 0.0
    %592 = vmatpush1.msra.mxu0 0.0
    %593 = vmatprep.subr.mxu0 0.0
    %594 = vmatpush1.msra.mxu0 0.0
    %595 = vmatprep.subr.mxu0 0.0
    %596 = vmatpush1.msra.mxu0 0.0
    %597 = vmatprep.subr.mxu0 0.0
    %598 = vmatpush1.msra.mxu0 0.0
    %599 = vmatprep.subr.mxu0 0.0
    %600 = vmatpush1.msra.mxu0 0.0
    %601 = vmatprep.subr.mxu0 0.0
    %602 = vmatpush1.msra.mxu0 0.0
    %603 = vmatprep.subr.mxu0 0.0
    %604 = vmatpush1.msra.mxu0 0.0
    %605 = vmatprep.subr.mxu0 0.0
    %606 = vmatpush1.msra.mxu0 0.0
    %607 = vmatprep.subr.mxu0 0.0
    %608 = vmatpush1.msra.mxu0 0.0
    %609 = vmatprep.subr.mxu0 0.0
    %610 = vmatpush1.msra.mxu0 0.0
    %611 = vmatprep.subr.mxu0 0.0
    %612 = vmatpush1.msra.mxu0 0.0
    %613 = vmatprep.subr.mxu0 0.0
    %614 = vmatpush1.msra.mxu0 0.0
    %615 = vmatprep.subr.mxu0 0.0
    %616 = vmatpush1.msra.mxu0 0.0
    %617 = vmatprep.subr.mxu0 0.0
    %618 = vmatpush1.msra.mxu0 0.0
    %619 = vmatprep.subr.mxu0 0.0
    %620 = vmatpush1.msra.mxu0 0.0
    %621 = vmatprep.subr.mxu0 0.0
    %622 = vmatpush1.msra.mxu0 0.0
    %623 = vmatprep.subr.mxu0 0.0
    %624 = vmatpush1.msra.mxu0 0.0
    %625 = vmatprep.subr.mxu0 0.0
    %626 = vmatpush1.msra.mxu0 0.0
    %627 = vmatprep.mubr.f32.mxu0 0.0
    %628 = vmatmul.mubr.f32.gmra.mrb[0].mxu0 %v561
    %v629 = vpop.f32.mrb[0].mxu0
    %v630 = vadd.f32 %v31, %v629
    %v631 = vpop.f32.mrb[0].mxu0
    %632 = vdwg.mxu0
    %v633 = vmul.f32 %v332, 2.0
    %v634 = vadd.f32 %v183, %v633
    %v635 = vmul.f32 %v481, 2.0
    %v636 = vadd.f32 %v634, %v635
    %v637 = vadd.f32 %v636, %v630
    %v638 = vmul.f32 %v637, 0.010416667
    %v639 = vadd.f32 %v32, %v638
    %v641 = vsel %vm33, %v639, 0
    %643 = vmatprep.subr.mxu0 0.0
    %644 = vmatpush1.msra.mxu0 %v21
    %645 = vmatprep.subr.mxu0 0.0
    %646 = vmatpush1.msra.mxu0 %v22
    %647 = vmatprep.subr.mxu0 0.0
    %648 = vmatpush1.msra.mxu0 %v23
    %649 = vmatprep.subr.mxu0 0.0
    %650 = vmatpush1.msra.mxu0 %v24
    %651 = vmatprep.subr.mxu0 0.0
    %652 = vmatpush1.msra.mxu0 %v39
    %653 = vmatprep.subr.mxu0 0.0
    %654 = vmatpush1.msra.mxu0 0.0
    %655 = vmatprep.subr.mxu0 0.0
    %656 = vmatpush1.msra.mxu0 0.0
    %657 = vmatprep.subr.mxu0 0.0
    %658 = vmatpush1.msra.mxu0 0.0
    %659 = vmatprep.subr.mxu0 0.0
    %660 = vmatpush1.msra.mxu0 0.0
    %661 = vmatprep.subr.mxu0 0.0
    %662 = vmatpush1.msra.mxu0 0.0
    %663 = vmatprep.subr.mxu0 0.0
    %664 = vmatpush1.msra.mxu0 0.0
    %665 = vmatprep.subr.mxu0 0.0
    %666 = vmatpush1.msra.mxu0 0.0
    %667 = vmatprep.subr.mxu0 0.0
    %668 = vmatpush1.msra.mxu0 0.0
    %669 = vmatprep.subr.mxu0 0.0
    %670 = vmatpush1.msra.mxu0 0.0
    %671 = vmatprep.subr.mxu0 0.0
    %672 = vmatpush1.msra.mxu0 0.0
    %673 = vmatprep.subr.mxu0 0.0
    %674 = vmatpush1.msra.mxu0 0.0
    %675 = vmatprep.subr.mxu0 0.0
    %676 = vmatpush1.msra.mxu0 0.0
    %677 = vmatprep.subr.mxu0 0.0
    %678 = vmatpush1.msra.mxu0 0.0
    %679 = vmatprep.subr.mxu0 0.0
    %680 = vmatpush1.msra.mxu0 0.0
    %681 = vmatprep.subr.mxu0 0.0
    %682 = vmatpush1.msra.mxu0 0.0
    %683 = vmatprep.subr.mxu0 0.0
    %684 = vmatpush1.msra.mxu0 0.0
    %685 = vmatprep.subr.mxu0 0.0
    %686 = vmatpush1.msra.mxu0 0.0
    %687 = vmatprep.subr.mxu0 0.0
    %688 = vmatpush1.msra.mxu0 0.0
    %689 = vmatprep.subr.mxu0 0.0
    %690 = vmatpush1.msra.mxu0 0.0
    %691 = vmatprep.subr.mxu0 0.0
    %692 = vmatpush1.msra.mxu0 0.0
    %693 = vmatprep.subr.mxu0 0.0
    %694 = vmatpush1.msra.mxu0 0.0
    %695 = vmatprep.subr.mxu0 0.0
    %696 = vmatpush1.msra.mxu0 0.0
    %697 = vmatprep.subr.mxu0 0.0
    %698 = vmatpush1.msra.mxu0 0.0
    %699 = vmatprep.subr.mxu0 0.0
    %700 = vmatpush1.msra.mxu0 0.0
    %701 = vmatprep.subr.mxu0 0.0
    %702 = vmatpush1.msra.mxu0 0.0
    %703 = vmatprep.subr.mxu0 0.0
    %704 = vmatpush1.msra.mxu0 0.0
    %705 = vmatprep.subr.mxu0 0.0
    %706 = vmatpush1.msra.mxu0 0.0
    %707 = vmatprep.mubr.f32.mxu0 0.0
    %708 = vmatmul.mubr.f32.gmra.mrb[0].mxu0 %v641
    %v709 = vpop.f32.mrb[0].mxu0
    %v710 = vadd.f32 %v26, %v709
    %v711 = vpop.f32.mrb[0].mxu0
    %712 = vdwg.mxu0
    %v713 = vtanh.pop %v710
    %v715 = vsel %vm112, %v713, 0
    %717 = vmatprep.subr.mxu0 0.0
    %718 = vmatpush1.msra.mxu0 %v27
    %719 = vmatprep.subr.mxu0 0.0
    %720 = vmatpush1.msra.mxu0 %v28
    %721 = vmatprep.subr.mxu0 0.0
    %722 = vmatpush1.msra.mxu0 %v29
    %723 = vmatprep.subr.mxu0 0.0
    %724 = vmatpush1.msra.mxu0 %v30
    %725 = vmatprep.subr.mxu0 0.0
    %726 = vmatpush1.msra.mxu0 0.0
    %727 = vmatprep.subr.mxu0 0.0
    %728 = vmatpush1.msra.mxu0 0.0
    %729 = vmatprep.subr.mxu0 0.0
    %730 = vmatpush1.msra.mxu0 0.0
    %731 = vmatprep.subr.mxu0 0.0
    %732 = vmatpush1.msra.mxu0 0.0
    %733 = vmatprep.subr.mxu0 0.0
    %734 = vmatpush1.msra.mxu0 0.0
    %735 = vmatprep.subr.mxu0 0.0
    %736 = vmatpush1.msra.mxu0 0.0
    %737 = vmatprep.subr.mxu0 0.0
    %738 = vmatpush1.msra.mxu0 0.0
    %739 = vmatprep.subr.mxu0 0.0
    %740 = vmatpush1.msra.mxu0 0.0
    %741 = vmatprep.subr.mxu0 0.0
    %742 = vmatpush1.msra.mxu0 0.0
    %743 = vmatprep.subr.mxu0 0.0
    %744 = vmatpush1.msra.mxu0 0.0
    %745 = vmatprep.subr.mxu0 0.0
    %746 = vmatpush1.msra.mxu0 0.0
    %747 = vmatprep.subr.mxu0 0.0
    %748 = vmatpush1.msra.mxu0 0.0
    %749 = vmatprep.subr.mxu0 0.0
    %750 = vmatpush1.msra.mxu0 0.0
    %751 = vmatprep.subr.mxu0 0.0
    %752 = vmatpush1.msra.mxu0 0.0
    %753 = vmatprep.subr.mxu0 0.0
    %754 = vmatpush1.msra.mxu0 0.0
    %755 = vmatprep.subr.mxu0 0.0
    %756 = vmatpush1.msra.mxu0 0.0
    %757 = vmatprep.subr.mxu0 0.0
    %758 = vmatpush1.msra.mxu0 0.0
    %759 = vmatprep.subr.mxu0 0.0
    %760 = vmatpush1.msra.mxu0 0.0
    %761 = vmatprep.subr.mxu0 0.0
    %762 = vmatpush1.msra.mxu0 0.0
    %763 = vmatprep.subr.mxu0 0.0
    %764 = vmatpush1.msra.mxu0 0.0
    %765 = vmatprep.subr.mxu0 0.0
    %766 = vmatpush1.msra.mxu0 0.0
    %767 = vmatprep.subr.mxu0 0.0
    %768 = vmatpush1.msra.mxu0 0.0
    %769 = vmatprep.subr.mxu0 0.0
    %770 = vmatpush1.msra.mxu0 0.0
    %771 = vmatprep.subr.mxu0 0.0
    %772 = vmatpush1.msra.mxu0 0.0
    %773 = vmatprep.subr.mxu0 0.0
    %774 = vmatpush1.msra.mxu0 0.0
    %775 = vmatprep.subr.mxu0 0.0
    %776 = vmatpush1.msra.mxu0 0.0
    %777 = vmatprep.subr.mxu0 0.0
    %778 = vmatpush1.msra.mxu0 0.0
    %779 = vmatprep.subr.mxu0 0.0
    %780 = vmatpush1.msra.mxu0 0.0
    %781 = vmatprep.mubr.f32.mxu0 0.0
    %782 = vmatmul.mubr.f32.gmra.mrb[0].mxu0 %v715
    %v783 = vpop.f32.mrb[0].mxu0
    %v784 = vadd.f32 %v31, %v783
    %v785 = vpop.f32.mrb[0].mxu0
    %786 = vdwg.mxu0
    %v787 = vmul.f32 %v784, 0.03125
    %v788 = vadd.f32 %v639, %v787
    %v790 = vsel %vm33, %v788, 0
    %792 = vmatprep.subr.mxu0 0.0
    %793 = vmatpush1.msra.mxu0 %v21
    %794 = vmatprep.subr.mxu0 0.0
    %795 = vmatpush1.msra.mxu0 %v22
    %796 = vmatprep.subr.mxu0 0.0
    %797 = vmatpush1.msra.mxu0 %v23
    %798 = vmatprep.subr.mxu0 0.0
    %799 = vmatpush1.msra.mxu0 %v24
    %800 = vmatprep.subr.mxu0 0.0
    %801 = vmatpush1.msra.mxu0 %v39
    %802 = vmatprep.subr.mxu0 0.0
    %803 = vmatpush1.msra.mxu0 0.0
    %804 = vmatprep.subr.mxu0 0.0
    %805 = vmatpush1.msra.mxu0 0.0
    %806 = vmatprep.subr.mxu0 0.0
    %807 = vmatpush1.msra.mxu0 0.0
    %808 = vmatprep.subr.mxu0 0.0
    %809 = vmatpush1.msra.mxu0 0.0
    %810 = vmatprep.subr.mxu0 0.0
    %811 = vmatpush1.msra.mxu0 0.0
    %812 = vmatprep.subr.mxu0 0.0
    %813 = vmatpush1.msra.mxu0 0.0
    %814 = vmatprep.subr.mxu0 0.0
    %815 = vmatpush1.msra.mxu0 0.0
    %816 = vmatprep.subr.mxu0 0.0
    %817 = vmatpush1.msra.mxu0 0.0
    %818 = vmatprep.subr.mxu0 0.0
    %819 = vmatpush1.msra.mxu0 0.0
    %820 = vmatprep.subr.mxu0 0.0
    %821 = vmatpush1.msra.mxu0 0.0
    %822 = vmatprep.subr.mxu0 0.0
    %823 = vmatpush1.msra.mxu0 0.0
    %824 = vmatprep.subr.mxu0 0.0
    %825 = vmatpush1.msra.mxu0 0.0
    %826 = vmatprep.subr.mxu0 0.0
    %827 = vmatpush1.msra.mxu0 0.0
    %828 = vmatprep.subr.mxu0 0.0
    %829 = vmatpush1.msra.mxu0 0.0
    %830 = vmatprep.subr.mxu0 0.0
    %831 = vmatpush1.msra.mxu0 0.0
    %832 = vmatprep.subr.mxu0 0.0
    %833 = vmatpush1.msra.mxu0 0.0
    %834 = vmatprep.subr.mxu0 0.0
    %835 = vmatpush1.msra.mxu0 0.0
    %836 = vmatprep.subr.mxu0 0.0
    %837 = vmatpush1.msra.mxu0 0.0
    %838 = vmatprep.subr.mxu0 0.0
    %839 = vmatpush1.msra.mxu0 0.0
    %840 = vmatprep.subr.mxu0 0.0
    %841 = vmatpush1.msra.mxu0 0.0
    %842 = vmatprep.subr.mxu0 0.0
    %843 = vmatpush1.msra.mxu0 0.0
    %844 = vmatprep.subr.mxu0 0.0
    %845 = vmatpush1.msra.mxu0 0.0
    %846 = vmatprep.subr.mxu0 0.0
    %847 = vmatpush1.msra.mxu0 0.0
    %848 = vmatprep.subr.mxu0 0.0
    %849 = vmatpush1.msra.mxu0 0.0
    %850 = vmatprep.subr.mxu0 0.0
    %851 = vmatpush1.msra.mxu0 0.0
    %852 = vmatprep.subr.mxu0 0.0
    %853 = vmatpush1.msra.mxu0 0.0
    %854 = vmatprep.subr.mxu0 0.0
    %855 = vmatpush1.msra.mxu0 0.0
    %856 = vmatprep.mubr.f32.mxu0 0.0
    %857 = vmatmul.mubr.f32.gmra.mrb[0].mxu0 %v790
    %v858 = vpop.f32.mrb[0].mxu0
    %v859 = vadd.f32 %v26, %v858
    %v860 = vpop.f32.mrb[0].mxu0
    %861 = vdwg.mxu0
    %v862 = vtanh.pop %v859
    %v864 = vsel %vm112, %v862, 0
    %866 = vmatprep.subr.mxu0 0.0
    %867 = vmatpush1.msra.mxu0 %v27
    %868 = vmatprep.subr.mxu0 0.0
    %869 = vmatpush1.msra.mxu0 %v28
    %870 = vmatprep.subr.mxu0 0.0
    %871 = vmatpush1.msra.mxu0 %v29
    %872 = vmatprep.subr.mxu0 0.0
    %873 = vmatpush1.msra.mxu0 %v30
    %874 = vmatprep.subr.mxu0 0.0
    %875 = vmatpush1.msra.mxu0 0.0
    %876 = vmatprep.subr.mxu0 0.0
    %877 = vmatpush1.msra.mxu0 0.0
    %878 = vmatprep.subr.mxu0 0.0
    %879 = vmatpush1.msra.mxu0 0.0
    %880 = vmatprep.subr.mxu0 0.0
    %881 = vmatpush1.msra.mxu0 0.0
    %882 = vmatprep.subr.mxu0 0.0
    %883 = vmatpush1.msra.mxu0 0.0
    %884 = vmatprep.subr.mxu0 0.0
    %885 = vmatpush1.msra.mxu0 0.0
    %886 = vmatprep.subr.mxu0 0.0
    %887 = vmatpush1.msra.mxu0 0.0
    %888 = vmatprep.subr.mxu0 0.0
    %889 = vmatpush1.msra.mxu0 0.0
    %890 = vmatprep.subr.mxu0 0.0
    %891 = vmatpush1.msra.mxu0 0.0
    %892 = vmatprep.subr.mxu0 0.0
    %893 = vmatpush1.msra.mxu0 0.0
    %894 = vmatprep.subr.mxu0 0.0
    %895 = vmatpush1.msra.mxu0 0.0
    %896 = vmatprep.subr.mxu0 0.0
    %897 = vmatpush1.msra.mxu0 0.0
    %898 = vmatprep.subr.mxu0 0.0
    %899 = vmatpush1.msra.mxu0 0.0
    %900 = vmatprep.subr.mxu0 0.0
    %901 = vmatpush1.msra.mxu0 0.0
    %902 = vmatprep.subr.mxu0 0.0
    %903 = vmatpush1.msra.mxu0 0.0
    %904 = vmatprep.subr.mxu0 0.0
    %905 = vmatpush1.msra.mxu0 0.0
    %906 = vmatprep.subr.mxu0 0.0
    %907 = vmatpush1.msra.mxu0 0.0
    %908 = vmatprep.subr.mxu0 0.0
    %909 = vmatpush1.msra.mxu0 0.0
    %910 = vmatprep.subr.mxu0 0.0
    %911 = vmatpush1.msra.mxu0 0.0
    %912 = vmatprep.subr.mxu0 0.0
    %913 = vmatpush1.msra.mxu0 0.0
    %914 = vmatprep.subr.mxu0 0.0
    %915 = vmatpush1.msra.mxu0 0.0
    %916 = vmatprep.subr.mxu0 0.0
    %917 = vmatpush1.msra.mxu0 0.0
    %918 = vmatprep.subr.mxu0 0.0
    %919 = vmatpush1.msra.mxu0 0.0
    %920 = vmatprep.subr.mxu0 0.0
    %921 = vmatpush1.msra.mxu0 0.0
    %922 = vmatprep.subr.mxu0 0.0
    %923 = vmatpush1.msra.mxu0 0.0
    %924 = vmatprep.subr.mxu0 0.0
    %925 = vmatpush1.msra.mxu0 0.0
    %926 = vmatprep.subr.mxu0 0.0
    %927 = vmatpush1.msra.mxu0 0.0
    %928 = vmatprep.subr.mxu0 0.0
    %929 = vmatpush1.msra.mxu0 0.0
    %930 = vmatprep.mubr.f32.mxu0 0.0
    %931 = vmatmul.mubr.f32.gmra.mrb[0].mxu0 %v864
    %v932 = vpop.f32.mrb[0].mxu0
    %v933 = vadd.f32 %v31, %v932
    %v934 = vpop.f32.mrb[0].mxu0
    %935 = vdwg.mxu0
    %v936 = vmul.f32 %v933, 0.03125
    %v937 = vadd.f32 %v639, %v936
    %v939 = vsel %vm33, %v937, 0
    %941 = vmatprep.subr.mxu0 0.0
    %942 = vmatpush1.msra.mxu0 %v21
    %943 = vmatprep.subr.mxu0 0.0
    %944 = vmatpush1.msra.mxu0 %v22
    %945 = vmatprep.subr.mxu0 0.0
    %946 = vmatpush1.msra.mxu0 %v23
    %947 = vmatprep.subr.mxu0 0.0
    %948 = vmatpush1.msra.mxu0 %v24
    %949 = vmatprep.subr.mxu0 0.0
    %950 = vmatpush1.msra.mxu0 %v39
    %951 = vmatprep.subr.mxu0 0.0
    %952 = vmatpush1.msra.mxu0 0.0
    %953 = vmatprep.subr.mxu0 0.0
    %954 = vmatpush1.msra.mxu0 0.0
    %955 = vmatprep.subr.mxu0 0.0
    %956 = vmatpush1.msra.mxu0 0.0
    %957 = vmatprep.subr.mxu0 0.0
    %958 = vmatpush1.msra.mxu0 0.0
    %959 = vmatprep.subr.mxu0 0.0
    %960 = vmatpush1.msra.mxu0 0.0
    %961 = vmatprep.subr.mxu0 0.0
    %962 = vmatpush1.msra.mxu0 0.0
    %963 = vmatprep.subr.mxu0 0.0
    %964 = vmatpush1.msra.mxu0 0.0
    %965 = vmatprep.subr.mxu0 0.0
    %966 = vmatpush1.msra.mxu0 0.0
    %967 = vmatprep.subr.mxu0 0.0
    %968 = vmatpush1.msra.mxu0 0.0
    %969 = vmatprep.subr.mxu0 0.0
    %970 = vmatpush1.msra.mxu0 0.0
    %971 = vmatprep.subr.mxu0 0.0
    %972 = vmatpush1.msra.mxu0 0.0
    %973 = vmatprep.subr.mxu0 0.0
    %974 = vmatpush1.msra.mxu0 0.0
    %975 = vmatprep.subr.mxu0 0.0
    %976 = vmatpush1.msra.mxu0 0.0
    %977 = vmatprep.subr.mxu0 0.0
    %978 = vmatpush1.msra.mxu0 0.0
    %979 = vmatprep.subr.mxu0 0.0
    %980 = vmatpush1.msra.mxu0 0.0
    %981 = vmatprep.subr.mxu0 0.0
    %982 = vmatpush1.msra.mxu0 0.0
    %983 = vmatprep.subr.mxu0 0.0
    %984 = vmatpush1.msra.mxu0 0.0
    %985 = vmatprep.subr.mxu0 0.0
    %986 = vmatpush1.msra.mxu0 0.0
    %987 = vmatprep.subr.mxu0 0.0
    %988 = vmatpush1.msra.mxu0 0.0
    %989 = vmatprep.subr.mxu0 0.0
    %990 = vmatpush1.msra.mxu0 0.0
    %991 = vmatprep.subr.mxu0 0.0
    %992 = vmatpush1.msra.mxu0 0.0
    %993 = vmatprep.subr.mxu0 0.0
    %994 = vmatpush1.msra.mxu0 0.0
    %995 = vmatprep.subr.mxu0 0.0
    %996 = vmatpush1.msra.mxu0 0.0
    %997 = vmatprep.subr.mxu0 0.0
    %998 = vmatpush1.msra.mxu0 0.0
    %999 = vmatprep.subr.mxu0 0.0
    %1000 = vmatpush1.msra.mxu0 0.0
    %1001 = vmatprep.subr.mxu0 0.0
    %1002 = vmatpush1.msra.mxu0 0.0
    %1003 = vmatprep.subr.mxu0 0.0
    %1004 = vmatpush1.msra.mxu0 0.0
    %1005 = vmatprep.mubr.f32.mxu0 0.0
    %1006 = vmatmul.mubr.f32.gmra.mrb[0].mxu0 %v939
    %v1007 = vpop.f32.mrb[0].mxu0
    %v1008 = vadd.f32 %v26, %v1007
    %v1009 = vpop.f32.mrb[0].mxu0
    %1010 = vdwg.mxu0
    %v1011 = vtanh.pop %v1008
    %v1013 = vsel %vm112, %v1011, 0
    %1015 = vmatprep.subr.mxu0 0.0
    %1016 = vmatpush1.msra.mxu0 %v27
    %1017 = vmatprep.subr.mxu0 0.0
    %1018 = vmatpush1.msra.mxu0 %v28
    %1019 = vmatprep.subr.mxu0 0.0
    %1020 = vmatpush1.msra.mxu0 %v29
    %1021 = vmatprep.subr.mxu0 0.0
    %1022 = vmatpush1.msra.mxu0 %v30
    %1023 = vmatprep.subr.mxu0 0.0
    %1024 = vmatpush1.msra.mxu0 0.0
    %1025 = vmatprep.subr.mxu0 0.0
    %1026 = vmatpush1.msra.mxu0 0.0
    %1027 = vmatprep.subr.mxu0 0.0
    %1028 = vmatpush1.msra.mxu0 0.0
    %1029 = vmatprep.subr.mxu0 0.0
    %1030 = vmatpush1.msra.mxu0 0.0
    %1031 = vmatprep.subr.mxu0 0.0
    %1032 = vmatpush1.msra.mxu0 0.0
    %1033 = vmatprep.subr.mxu0 0.0
    %1034 = vmatpush1.msra.mxu0 0.0
    %1035 = vmatprep.subr.mxu0 0.0
    %1036 = vmatpush1.msra.mxu0 0.0
    %1037 = vmatprep.subr.mxu0 0.0
    %1038 = vmatpush1.msra.mxu0 0.0
    %1039 = vmatprep.subr.mxu0 0.0
    %1040 = vmatpush1.msra.mxu0 0.0
    %1041 = vmatprep.subr.mxu0 0.0
    %1042 = vmatpush1.msra.mxu0 0.0
    %1043 = vmatprep.subr.mxu0 0.0
    %1044 = vmatpush1.msra.mxu0 0.0
    %1045 = vmatprep.subr.mxu0 0.0
    %1046 = vmatpush1.msra.mxu0 0.0
    %1047 = vmatprep.subr.mxu0 0.0
    %1048 = vmatpush1.msra.mxu0 0.0
    %1049 = vmatprep.subr.mxu0 0.0
    %1050 = vmatpush1.msra.mxu0 0.0
    %1051 = vmatprep.subr.mxu0 0.0
    %1052 = vmatpush1.msra.mxu0 0.0
    %1053 = vmatprep.subr.mxu0 0.0
    %1054 = vmatpush1.msra.mxu0 0.0
    %1055 = vmatprep.subr.mxu0 0.0
    %1056 = vmatpush1.msra.mxu0 0.0
    %1057 = vmatprep.subr.mxu0 0.0
    %1058 = vmatpush1.msra.mxu0 0.0
    %1059 = vmatprep.subr.mxu0 0.0
    %1060 = vmatpush1.msra.mxu0 0.0
    %1061 = vmatprep.subr.mxu0 0.0
    %1062 = vmatpush1.msra.mxu0 0.0
    %1063 = vmatprep.subr.mxu0 0.0
    %1064 = vmatpush1.msra.mxu0 0.0
    %1065 = vmatprep.subr.mxu0 0.0
    %1066 = vmatpush1.msra.mxu0 0.0
    %1067 = vmatprep.subr.mxu0 0.0
    %1068 = vmatpush1.msra.mxu0 0.0
    %1069 = vmatprep.subr.mxu0 0.0
    %1070 = vmatpush1.msra.mxu0 0.0
    %1071 = vmatprep.subr.mxu0 0.0
    %1072 = vmatpush1.msra.mxu0 0.0
    %1073 = vmatprep.subr.mxu0 0.0
    %1074 = vmatpush1.msra.mxu0 0.0
    %1075 = vmatprep.subr.mxu0 0.0
    %1076 = vmatpush1.msra.mxu0 0.0
    %1077 = vmatprep.subr.mxu0 0.0
    %1078 = vmatpush1.msra.mxu0 0.0
    %1079 = vmatprep.mubr.f32.mxu0 0.0
    %1080 = vmatmul.mubr.f32.gmra.mrb[0].mxu0 %v1013
    %v1081 = vpop.f32.mrb[0].mxu0
    %v1082 = vadd.f32 %v31, %v1081
    %v1083 = vpop.f32.mrb[0].mxu0
    %1084 = vdwg.mxu0
    %v1085 = vmul.f32 %v1082, 0.0625
    %v1086 = vadd.f32 %v639, %v1085
    %v1088 = vsel %vm33, %v1086, 0
    %1090 = vmatprep.subr.mxu0 0.0
    %1091 = vmatpush1.msra.mxu0 %v21
    %1092 = vmatprep.subr.mxu0 0.0
    %1093 = vmatpush1.msra.mxu0 %v22
    %1094 = vmatprep.subr.mxu0 0.0
    %1095 = vmatpush1.msra.mxu0 %v23
    %1096 = vmatprep.subr.mxu0 0.0
    %1097 = vmatpush1.msra.mxu0 %v24
    %1098 = vmatprep.subr.mxu0 0.0
    %1099 = vmatpush1.msra.mxu0 %v39
    %1100 = vmatprep.subr.mxu0 0.0
    %1101 = vmatpush1.msra.mxu0 0.0
    %1102 = vmatprep.subr.mxu0 0.0
    %1103 = vmatpush1.msra.mxu0 0.0
    %1104 = vmatprep.subr.mxu0 0.0
    %1105 = vmatpush1.msra.mxu0 0.0
    %1106 = vmatprep.subr.mxu0 0.0
    %1107 = vmatpush1.msra.mxu0 0.0
    %1108 = vmatprep.subr.mxu0 0.0
    %1109 = vmatpush1.msra.mxu0 0.0
    %1110 = vmatprep.subr.mxu0 0.0
    %1111 = vmatpush1.msra.mxu0 0.0
    %1112 = vmatprep.subr.mxu0 0.0
    %1113 = vmatpush1.msra.mxu0 0.0
    %1114 = vmatprep.subr.mxu0 0.0
    %1115 = vmatpush1.msra.mxu0 0.0
    %1116 = vmatprep.subr.mxu0 0.0
    %1117 = vmatpush1.msra.mxu0 0.0
    %1118 = vmatprep.subr.mxu0 0.0
    %1119 = vmatpush1.msra.mxu0 0.0
    %1120 = vmatprep.subr.mxu0 0.0
    %1121 = vmatpush1.msra.mxu0 0.0
    %1122 = vmatprep.subr.mxu0 0.0
    %1123 = vmatpush1.msra.mxu0 0.0
    %1124 = vmatprep.subr.mxu0 0.0
    %1125 = vmatpush1.msra.mxu0 0.0
    %1126 = vmatprep.subr.mxu0 0.0
    %1127 = vmatpush1.msra.mxu0 0.0
    %1128 = vmatprep.subr.mxu0 0.0
    %1129 = vmatpush1.msra.mxu0 0.0
    %1130 = vmatprep.subr.mxu0 0.0
    %1131 = vmatpush1.msra.mxu0 0.0
    %1132 = vmatprep.subr.mxu0 0.0
    %1133 = vmatpush1.msra.mxu0 0.0
    %1134 = vmatprep.subr.mxu0 0.0
    %1135 = vmatpush1.msra.mxu0 0.0
    %1136 = vmatprep.subr.mxu0 0.0
    %1137 = vmatpush1.msra.mxu0 0.0
    %1138 = vmatprep.subr.mxu0 0.0
    %1139 = vmatpush1.msra.mxu0 0.0
    %1140 = vmatprep.subr.mxu0 0.0
    %1141 = vmatpush1.msra.mxu0 0.0
    %1142 = vmatprep.subr.mxu0 0.0
    %1143 = vmatpush1.msra.mxu0 0.0
    %1144 = vmatprep.subr.mxu0 0.0
    %1145 = vmatpush1.msra.mxu0 0.0
    %1146 = vmatprep.subr.mxu0 0.0
    %1147 = vmatpush1.msra.mxu0 0.0
    %1148 = vmatprep.subr.mxu0 0.0
    %1149 = vmatpush1.msra.mxu0 0.0
    %1150 = vmatprep.subr.mxu0 0.0
    %1151 = vmatpush1.msra.mxu0 0.0
    %1152 = vmatprep.subr.mxu0 0.0
    %1153 = vmatpush1.msra.mxu0 0.0
    %1154 = vmatprep.mubr.f32.mxu0 0.0
    %1155 = vmatmul.mubr.f32.gmra.mrb[0].mxu0 %v1088
    %v1156 = vpop.f32.mrb[0].mxu0
    %v1157 = vadd.f32 %v26, %v1156
    %v1158 = vpop.f32.mrb[0].mxu0
    %1159 = vdwg.mxu0
    %v1160 = vtanh.pop %v1157
    %v1162 = vsel %vm112, %v1160, 0
    %1164 = vmatprep.subr.mxu0 0.0
    %1165 = vmatpush1.msra.mxu0 %v27
    %1166 = vmatprep.subr.mxu0 0.0
    %1167 = vmatpush1.msra.mxu0 %v28
    %1168 = vmatprep.subr.mxu0 0.0
    %1169 = vmatpush1.msra.mxu0 %v29
    %1170 = vmatprep.subr.mxu0 0.0
    %1171 = vmatpush1.msra.mxu0 %v30
    %1172 = vmatprep.subr.mxu0 0.0
    %1173 = vmatpush1.msra.mxu0 0.0
    %1174 = vmatprep.subr.mxu0 0.0
    %1175 = vmatpush1.msra.mxu0 0.0
    %1176 = vmatprep.subr.mxu0 0.0
    %1177 = vmatpush1.msra.mxu0 0.0
    %1178 = vmatprep.subr.mxu0 0.0
    %1179 = vmatpush1.msra.mxu0 0.0
    %1180 = vmatprep.subr.mxu0 0.0
    %1181 = vmatpush1.msra.mxu0 0.0
    %1182 = vmatprep.subr.mxu0 0.0
    %1183 = vmatpush1.msra.mxu0 0.0
    %1184 = vmatprep.subr.mxu0 0.0
    %1185 = vmatpush1.msra.mxu0 0.0
    %1186 = vmatprep.subr.mxu0 0.0
    %1187 = vmatpush1.msra.mxu0 0.0
    %1188 = vmatprep.subr.mxu0 0.0
    %1189 = vmatpush1.msra.mxu0 0.0
    %1190 = vmatprep.subr.mxu0 0.0
    %1191 = vmatpush1.msra.mxu0 0.0
    %1192 = vmatprep.subr.mxu0 0.0
    %1193 = vmatpush1.msra.mxu0 0.0
    %1194 = vmatprep.subr.mxu0 0.0
    %1195 = vmatpush1.msra.mxu0 0.0
    %1196 = vmatprep.subr.mxu0 0.0
    %1197 = vmatpush1.msra.mxu0 0.0
    %1198 = vmatprep.subr.mxu0 0.0
    %1199 = vmatpush1.msra.mxu0 0.0
    %1200 = vmatprep.subr.mxu0 0.0
    %1201 = vmatpush1.msra.mxu0 0.0
    %1202 = vmatprep.subr.mxu0 0.0
    %1203 = vmatpush1.msra.mxu0 0.0
    %1204 = vmatprep.subr.mxu0 0.0
    %1205 = vmatpush1.msra.mxu0 0.0
    %1206 = vmatprep.subr.mxu0 0.0
    %1207 = vmatpush1.msra.mxu0 0.0
    %1208 = vmatprep.subr.mxu0 0.0
    %1209 = vmatpush1.msra.mxu0 0.0
    %1210 = vmatprep.subr.mxu0 0.0
    %1211 = vmatpush1.msra.mxu0 0.0
    %1212 = vmatprep.subr.mxu0 0.0
    %1213 = vmatpush1.msra.mxu0 0.0
    %1214 = vmatprep.subr.mxu0 0.0
    %1215 = vmatpush1.msra.mxu0 0.0
    %1216 = vmatprep.subr.mxu0 0.0
    %1217 = vmatpush1.msra.mxu0 0.0
    %1218 = vmatprep.subr.mxu0 0.0
    %1219 = vmatpush1.msra.mxu0 0.0
    %1220 = vmatprep.subr.mxu0 0.0
    %1221 = vmatpush1.msra.mxu0 0.0
    %1222 = vmatprep.subr.mxu0 0.0
    %1223 = vmatpush1.msra.mxu0 0.0
    %1224 = vmatprep.subr.mxu0 0.0
    %1225 = vmatpush1.msra.mxu0 0.0
    %1226 = vmatprep.subr.mxu0 0.0
    %1227 = vmatpush1.msra.mxu0 0.0
    %1228 = vmatprep.mubr.f32.mxu0 0.0
    %1229 = vmatmul.mubr.f32.gmra.mrb[0].mxu0 %v1162
    %v1230 = vpop.f32.mrb[0].mxu0
    %v1231 = vadd.f32 %v31, %v1230
    %v1232 = vpop.f32.mrb[0].mxu0
    %1233 = vdwg.mxu0
    %v1234 = vmul.f32 %v933, 2.0
    %v1235 = vadd.f32 %v784, %v1234
    %v1236 = vmul.f32 %v1082, 2.0
    %v1237 = vadd.f32 %v1235, %v1236
    %v1238 = vadd.f32 %v1237, %v1231
    %v1239 = vmul.f32 %v1238, 0.010416667
    %v1240 = vadd.f32 %v639, %v1239
    %v1242 = vsel %vm33, %v1240, 0
    %1244 = vmatprep.subr.mxu0 0.0
    %1245 = vmatpush1.msra.mxu0 %v21
    %1246 = vmatprep.subr.mxu0 0.0
    %1247 = vmatpush1.msra.mxu0 %v22
    %1248 = vmatprep.subr.mxu0 0.0
    %1249 = vmatpush1.msra.mxu0 %v23
    %1250 = vmatprep.subr.mxu0 0.0
    %1251 = vmatpush1.msra.mxu0 %v24
    %1252 = vmatprep.subr.mxu0 0.0
    %1253 = vmatpush1.msra.mxu0 %v39
    %1254 = vmatprep.subr.mxu0 0.0
    %1255 = vmatpush1.msra.mxu0 0.0
    %1256 = vmatprep.subr.mxu0 0.0
    %1257 = vmatpush1.msra.mxu0 0.0
    %1258 = vmatprep.subr.mxu0 0.0
    %1259 = vmatpush1.msra.mxu0 0.0
    %1260 = vmatprep.subr.mxu0 0.0
    %1261 = vmatpush1.msra.mxu0 0.0
    %1262 = vmatprep.subr.mxu0 0.0
    %1263 = vmatpush1.msra.mxu0 0.0
    %1264 = vmatprep.subr.mxu0 0.0
    %1265 = vmatpush1.msra.mxu0 0.0
    %1266 = vmatprep.subr.mxu0 0.0
    %1267 = vmatpush1.msra.mxu0 0.0
    %1268 = vmatprep.subr.mxu0 0.0
    %1269 = vmatpush1.msra.mxu0 0.0
    %1270 = vmatprep.subr.mxu0 0.0
    %1271 = vmatpush1.msra.mxu0 0.0
    %1272 = vmatprep.subr.mxu0 0.0
    %1273 = vmatpush1.msra.mxu0 0.0
    %1274 = vmatprep.subr.mxu0 0.0
    %1275 = vmatpush1.msra.mxu0 0.0
    %1276 = vmatprep.subr.mxu0 0.0
    %1277 = vmatpush1.msra.mxu0 0.0
    %1278 = vmatprep.subr.mxu0 0.0
    %1279 = vmatpush1.msra.mxu0 0.0
    %1280 = vmatprep.subr.mxu0 0.0
    %1281 = vmatpush1.msra.mxu0 0.0
    %1282 = vmatprep.subr.mxu0 0.0
    %1283 = vmatpush1.msra.mxu0 0.0
    %1284 = vmatprep.subr.mxu0 0.0
    %1285 = vmatpush1.msra.mxu0 0.0
    %1286 = vmatprep.subr.mxu0 0.0
    %1287 = vmatpush1.msra.mxu0 0.0
    %1288 = vmatprep.subr.mxu0 0.0
    %1289 = vmatpush1.msra.mxu0 0.0
    %1290 = vmatprep.subr.mxu0 0.0
    %1291 = vmatpush1.msra.mxu0 0.0
    %1292 = vmatprep.subr.mxu0 0.0
    %1293 = vmatpush1.msra.mxu0 0.0
    %1294 = vmatprep.subr.mxu0 0.0
    %1295 = vmatpush1.msra.mxu0 0.0
    %1296 = vmatprep.subr.mxu0 0.0
    %1297 = vmatpush1.msra.mxu0 0.0
    %1298 = vmatprep.subr.mxu0 0.0
    %1299 = vmatpush1.msra.mxu0 0.0
    %1300 = vmatprep.subr.mxu0 0.0
    %1301 = vmatpush1.msra.mxu0 0.0
    %1302 = vmatprep.subr.mxu0 0.0
    %1303 = vmatpush1.msra.mxu0 0.0
    %1304 = vmatprep.subr.mxu0 0.0
    %1305 = vmatpush1.msra.mxu0 0.0
    %1306 = vmatprep.subr.mxu0 0.0
    %1307 = vmatpush1.msra.mxu0 0.0
    %1308 = vmatprep.mubr.f32.mxu0 0.0
    %1309 = vmatmul.mubr.f32.gmra.mrb[0].mxu0 %v1242
    %v1310 = vpop.f32.mrb[0].mxu0
    %v1311 = vadd.f32 %v26, %v1310
    %v1312 = vpop.f32.mrb[0].mxu0
    %1313 = vdwg.mxu0
    %v1314 = vtanh.pop %v1311
    %v1316 = vsel %vm112, %v1314, 0
    %1318 = vmatprep.subr.mxu0 0.0
    %1319 = vmatpush1.msra.mxu0 %v27
    %1320 = vmatprep.subr.mxu0 0.0
    %1321 = vmatpush1.msra.mxu0 %v28
    %1322 = vmatprep.subr.mxu0 0.0
    %1323 = vmatpush1.msra.mxu0 %v29
    %1324 = vmatprep.subr.mxu0 0.0
    %1325 = vmatpush1.msra.mxu0 %v30
    %1326 = vmatprep.subr.mxu0 0.0
    %1327 = vmatpush1.msra.mxu0 0.0
    %1328 = vmatprep.subr.mxu0 0.0
    %1329 = vmatpush1.msra.mxu0 0.0
    %1330 = vmatprep.subr.mxu0 0.0
    %1331 = vmatpush1.msra.mxu0 0.0
    %1332 = vmatprep.subr.mxu0 0.0
    %1333 = vmatpush1.msra.mxu0 0.0
    %1334 = vmatprep.subr.mxu0 0.0
    %1335 = vmatpush1.msra.mxu0 0.0
    %1336 = vmatprep.subr.mxu0 0.0
    %1337 = vmatpush1.msra.mxu0 0.0
    %1338 = vmatprep.subr.mxu0 0.0
    %1339 = vmatpush1.msra.mxu0 0.0
    %1340 = vmatprep.subr.mxu0 0.0
    %1341 = vmatpush1.msra.mxu0 0.0
    %1342 = vmatprep.subr.mxu0 0.0
    %1343 = vmatpush1.msra.mxu0 0.0
    %1344 = vmatprep.subr.mxu0 0.0
    %1345 = vmatpush1.msra.mxu0 0.0
    %1346 = vmatprep.subr.mxu0 0.0
    %1347 = vmatpush1.msra.mxu0 0.0
    %1348 = vmatprep.subr.mxu0 0.0
    %1349 = vmatpush1.msra.mxu0 0.0
    %1350 = vmatprep.subr.mxu0 0.0
    %1351 = vmatpush1.msra.mxu0 0.0
    %1352 = vmatprep.subr.mxu0 0.0
    %1353 = vmatpush1.msra.mxu0 0.0
    %1354 = vmatprep.subr.mxu0 0.0
    %1355 = vmatpush1.msra.mxu0 0.0
    %1356 = vmatprep.subr.mxu0 0.0
    %1357 = vmatpush1.msra.mxu0 0.0
    %1358 = vmatprep.subr.mxu0 0.0
    %1359 = vmatpush1.msra.mxu0 0.0
    %1360 = vmatprep.subr.mxu0 0.0
    %1361 = vmatpush1.msra.mxu0 0.0
    %1362 = vmatprep.subr.mxu0 0.0
    %1363 = vmatpush1.msra.mxu0 0.0
    %1364 = vmatprep.subr.mxu0 0.0
    %1365 = vmatpush1.msra.mxu0 0.0
    %1366 = vmatprep.subr.mxu0 0.0
    %1367 = vmatpush1.msra.mxu0 0.0
    %1368 = vmatprep.subr.mxu0 0.0
    %1369 = vmatpush1.msra.mxu0 0.0
    %1370 = vmatprep.subr.mxu0 0.0
    %1371 = vmatpush1.msra.mxu0 0.0
    %1372 = vmatprep.subr.mxu0 0.0
    %1373 = vmatpush1.msra.mxu0 0.0
    %1374 = vmatprep.subr.mxu0 0.0
    %1375 = vmatpush1.msra.mxu0 0.0
    %1376 = vmatprep.subr.mxu0 0.0
    %1377 = vmatpush1.msra.mxu0 0.0
    %1378 = vmatprep.subr.mxu0 0.0
    %1379 = vmatpush1.msra.mxu0 0.0
    %1380 = vmatprep.subr.mxu0 0.0
    %1381 = vmatpush1.msra.mxu0 0.0
    %1382 = vmatprep.mubr.f32.mxu0 0.0
    %1383 = vmatmul.mubr.f32.gmra.mrb[0].mxu0 %v1316
    %v1384 = vpop.f32.mrb[0].mxu0
    %v1385 = vadd.f32 %v31, %v1384
    %v1386 = vpop.f32.mrb[0].mxu0
    %1387 = vdwg.mxu0
    %v1388 = vmul.f32 %v1385, 0.03125
    %v1389 = vadd.f32 %v1240, %v1388
    %v1391 = vsel %vm33, %v1389, 0
    %1393 = vmatprep.subr.mxu0 0.0
    %1394 = vmatpush1.msra.mxu0 %v21
    %1395 = vmatprep.subr.mxu0 0.0
    %1396 = vmatpush1.msra.mxu0 %v22
    %1397 = vmatprep.subr.mxu0 0.0
    %1398 = vmatpush1.msra.mxu0 %v23
    %1399 = vmatprep.subr.mxu0 0.0
    %1400 = vmatpush1.msra.mxu0 %v24
    %1401 = vmatprep.subr.mxu0 0.0
    %1402 = vmatpush1.msra.mxu0 %v39
    %1403 = vmatprep.subr.mxu0 0.0
    %1404 = vmatpush1.msra.mxu0 0.0
    %1405 = vmatprep.subr.mxu0 0.0
    %1406 = vmatpush1.msra.mxu0 0.0
    %1407 = vmatprep.subr.mxu0 0.0
    %1408 = vmatpush1.msra.mxu0 0.0
    %1409 = vmatprep.subr.mxu0 0.0
    %1410 = vmatpush1.msra.mxu0 0.0
    %1411 = vmatprep.subr.mxu0 0.0
    %1412 = vmatpush1.msra.mxu0 0.0
    %1413 = vmatprep.subr.mxu0 0.0
    %1414 = vmatpush1.msra.mxu0 0.0
    %1415 = vmatprep.subr.mxu0 0.0
    %1416 = vmatpush1.msra.mxu0 0.0
    %1417 = vmatprep.subr.mxu0 0.0
    %1418 = vmatpush1.msra.mxu0 0.0
    %1419 = vmatprep.subr.mxu0 0.0
    %1420 = vmatpush1.msra.mxu0 0.0
    %1421 = vmatprep.subr.mxu0 0.0
    %1422 = vmatpush1.msra.mxu0 0.0
    %1423 = vmatprep.subr.mxu0 0.0
    %1424 = vmatpush1.msra.mxu0 0.0
    %1425 = vmatprep.subr.mxu0 0.0
    %1426 = vmatpush1.msra.mxu0 0.0
    %1427 = vmatprep.subr.mxu0 0.0
    %1428 = vmatpush1.msra.mxu0 0.0
    %1429 = vmatprep.subr.mxu0 0.0
    %1430 = vmatpush1.msra.mxu0 0.0
    %1431 = vmatprep.subr.mxu0 0.0
    %1432 = vmatpush1.msra.mxu0 0.0
    %1433 = vmatprep.subr.mxu0 0.0
    %1434 = vmatpush1.msra.mxu0 0.0
    %1435 = vmatprep.subr.mxu0 0.0
    %1436 = vmatpush1.msra.mxu0 0.0
    %1437 = vmatprep.subr.mxu0 0.0
    %1438 = vmatpush1.msra.mxu0 0.0
    %1439 = vmatprep.subr.mxu0 0.0
    %1440 = vmatpush1.msra.mxu0 0.0
    %1441 = vmatprep.subr.mxu0 0.0
    %1442 = vmatpush1.msra.mxu0 0.0
    %1443 = vmatprep.subr.mxu0 0.0
    %1444 = vmatpush1.msra.mxu0 0.0
    %1445 = vmatprep.subr.mxu0 0.0
    %1446 = vmatpush1.msra.mxu0 0.0
    %1447 = vmatprep.subr.mxu0 0.0
    %1448 = vmatpush1.msra.mxu0 0.0
    %1449 = vmatprep.subr.mxu0 0.0
    %1450 = vmatpush1.msra.mxu0 0.0
    %1451 = vmatprep.subr.mxu0 0.0
    %1452 = vmatpush1.msra.mxu0 0.0
    %1453 = vmatprep.subr.mxu0 0.0
    %1454 = vmatpush1.msra.mxu0 0.0
    %1455 = vmatprep.subr.mxu0 0.0
    %1456 = vmatpush1.msra.mxu0 0.0
    %1457 = vmatprep.mubr.f32.mxu0 0.0
    %1458 = vmatmul.mubr.f32.gmra.mrb[0].mxu0 %v1391
    %v1459 = vpop.f32.mrb[0].mxu0
    %v1460 = vadd.f32 %v26, %v1459
    %v1461 = vpop.f32.mrb[0].mxu0
    %1462 = vdwg.mxu0
    %v1463 = vtanh.pop %v1460
    %v1465 = vsel %vm112, %v1463, 0
    %1467 = vmatprep.subr.mxu0 0.0
    %1468 = vmatpush1.msra.mxu0 %v27
    %1469 = vmatprep.subr.mxu0 0.0
    %1470 = vmatpush1.msra.mxu0 %v28
    %1471 = vmatprep.subr.mxu0 0.0
    %1472 = vmatpush1.msra.mxu0 %v29
    %1473 = vmatprep.subr.mxu0 0.0
    %1474 = vmatpush1.msra.mxu0 %v30
    %1475 = vmatprep.subr.mxu0 0.0
    %1476 = vmatpush1.msra.mxu0 0.0
    %1477 = vmatprep.subr.mxu0 0.0
    %1478 = vmatpush1.msra.mxu0 0.0
    %1479 = vmatprep.subr.mxu0 0.0
    %1480 = vmatpush1.msra.mxu0 0.0
    %1481 = vmatprep.subr.mxu0 0.0
    %1482 = vmatpush1.msra.mxu0 0.0
    %1483 = vmatprep.subr.mxu0 0.0
    %1484 = vmatpush1.msra.mxu0 0.0
    %1485 = vmatprep.subr.mxu0 0.0
    %1486 = vmatpush1.msra.mxu0 0.0
    %1487 = vmatprep.subr.mxu0 0.0
    %1488 = vmatpush1.msra.mxu0 0.0
    %1489 = vmatprep.subr.mxu0 0.0
    %1490 = vmatpush1.msra.mxu0 0.0
    %1491 = vmatprep.subr.mxu0 0.0
    %1492 = vmatpush1.msra.mxu0 0.0
    %1493 = vmatprep.subr.mxu0 0.0
    %1494 = vmatpush1.msra.mxu0 0.0
    %1495 = vmatprep.subr.mxu0 0.0
    %1496 = vmatpush1.msra.mxu0 0.0
    %1497 = vmatprep.subr.mxu0 0.0
    %1498 = vmatpush1.msra.mxu0 0.0
    %1499 = vmatprep.subr.mxu0 0.0
    %1500 = vmatpush1.msra.mxu0 0.0
    %1501 = vmatprep.subr.mxu0 0.0
    %1502 = vmatpush1.msra.mxu0 0.0
    %1503 = vmatprep.subr.mxu0 0.0
    %1504 = vmatpush1.msra.mxu0 0.0
    %1505 = vmatprep.subr.mxu0 0.0
    %1506 = vmatpush1.msra.mxu0 0.0
    %1507 = vmatprep.subr.mxu0 0.0
    %1508 = vmatpush1.msra.mxu0 0.0
    %1509 = vmatprep.subr.mxu0 0.0
    %1510 = vmatpush1.msra.mxu0 0.0
    %1511 = vmatprep.subr.mxu0 0.0
    %1512 = vmatpush1.msra.mxu0 0.0
    %1513 = vmatprep.subr.mxu0 0.0
    %1514 = vmatpush1.msra.mxu0 0.0
    %1515 = vmatprep.subr.mxu0 0.0
    %1516 = vmatpush1.msra.mxu0 0.0
    %1517 = vmatprep.subr.mxu0 0.0
    %1518 = vmatpush1.msra.mxu0 0.0
    %1519 = vmatprep.subr.mxu0 0.0
    %1520 = vmatpush1.msra.mxu0 0.0
    %1521 = vmatprep.subr.mxu0 0.0
    %1522 = vmatpush1.msra.mxu0 0.0
    %1523 = vmatprep.subr.mxu0 0.0
    %1524 = vmatpush1.msra.mxu0 0.0
    %1525 = vmatprep.subr.mxu0 0.0
    %1526 = vmatpush1.msra.mxu0 0.0
    %1527 = vmatprep.subr.mxu0 0.0
    %1528 = vmatpush1.msra.mxu0 0.0
    %1529 = vmatprep.subr.mxu0 0.0
    %1530 = vmatpush1.msra.mxu0 0.0
    %1531 = vmatprep.mubr.f32.mxu0 0.0
    %1532 = vmatmul.mubr.f32.gmra.mrb[0].mxu0 %v1465
    %v1533 = vpop.f32.mrb[0].mxu0
    %v1534 = vadd.f32 %v31, %v1533
    %v1535 = vpop.f32.mrb[0].mxu0
    %1536 = vdwg.mxu0
    %v1537 = vmul.f32 %v1534, 0.03125
    %v1538 = vadd.f32 %v1240, %v1537
    %v1540 = vsel %vm33, %v1538, 0
    %1542 = vmatprep.subr.mxu0 0.0
    %1543 = vmatpush1.msra.mxu0 %v21
    %1544 = vmatprep.subr.mxu0 0.0
    %1545 = vmatpush1.msra.mxu0 %v22
    %1546 = vmatprep.subr.mxu0 0.0
    %1547 = vmatpush1.msra.mxu0 %v23
    %1548 = vmatprep.subr.mxu0 0.0
    %1549 = vmatpush1.msra.mxu0 %v24
    %1550 = vmatprep.subr.mxu0 0.0
    %1551 = vmatpush1.msra.mxu0 %v39
    %1552 = vmatprep.subr.mxu0 0.0
    %1553 = vmatpush1.msra.mxu0 0.0
    %1554 = vmatprep.subr.mxu0 0.0
    %1555 = vmatpush1.msra.mxu0 0.0
    %1556 = vmatprep.subr.mxu0 0.0
    %1557 = vmatpush1.msra.mxu0 0.0
    %1558 = vmatprep.subr.mxu0 0.0
    %1559 = vmatpush1.msra.mxu0 0.0
    %1560 = vmatprep.subr.mxu0 0.0
    %1561 = vmatpush1.msra.mxu0 0.0
    %1562 = vmatprep.subr.mxu0 0.0
    %1563 = vmatpush1.msra.mxu0 0.0
    %1564 = vmatprep.subr.mxu0 0.0
    %1565 = vmatpush1.msra.mxu0 0.0
    %1566 = vmatprep.subr.mxu0 0.0
    %1567 = vmatpush1.msra.mxu0 0.0
    %1568 = vmatprep.subr.mxu0 0.0
    %1569 = vmatpush1.msra.mxu0 0.0
    %1570 = vmatprep.subr.mxu0 0.0
    %1571 = vmatpush1.msra.mxu0 0.0
    %1572 = vmatprep.subr.mxu0 0.0
    %1573 = vmatpush1.msra.mxu0 0.0
    %1574 = vmatprep.subr.mxu0 0.0
    %1575 = vmatpush1.msra.mxu0 0.0
    %1576 = vmatprep.subr.mxu0 0.0
    %1577 = vmatpush1.msra.mxu0 0.0
    %1578 = vmatprep.subr.mxu0 0.0
    %1579 = vmatpush1.msra.mxu0 0.0
    %1580 = vmatprep.subr.mxu0 0.0
    %1581 = vmatpush1.msra.mxu0 0.0
    %1582 = vmatprep.subr.mxu0 0.0
    %1583 = vmatpush1.msra.mxu0 0.0
    %1584 = vmatprep.subr.mxu0 0.0
    %1585 = vmatpush1.msra.mxu0 0.0
    %1586 = vmatprep.subr.mxu0 0.0
    %1587 = vmatpush1.msra.mxu0 0.0
    %1588 = vmatprep.subr.mxu0 0.0
    %1589 = vmatpush1.msra.mxu0 0.0
    %1590 = vmatprep.subr.mxu0 0.0
    %1591 = vmatpush1.msra.mxu0 0.0
    %1592 = vmatprep.subr.mxu0 0.0
    %1593 = vmatpush1.msra.mxu0 0.0
    %1594 = vmatprep.subr.mxu0 0.0
    %1595 = vmatpush1.msra.mxu0 0.0
    %1596 = vmatprep.subr.mxu0 0.0
    %1597 = vmatpush1.msra.mxu0 0.0
    %1598 = vmatprep.subr.mxu0 0.0
    %1599 = vmatpush1.msra.mxu0 0.0
    %1600 = vmatprep.subr.mxu0 0.0
    %1601 = vmatpush1.msra.mxu0 0.0
    %1602 = vmatprep.subr.mxu0 0.0
    %1603 = vmatpush1.msra.mxu0 0.0
    %1604 = vmatprep.subr.mxu0 0.0
    %1605 = vmatpush1.msra.mxu0 0.0
    %1606 = vmatprep.mubr.f32.mxu0 0.0
    %1607 = vmatmul.mubr.f32.gmra.mrb[0].mxu0 %v1540
    %v1608 = vpop.f32.mrb[0].mxu0
    %v1609 = vadd.f32 %v26, %v1608
    %v1610 = vpop.f32.mrb[0].mxu0
    %1611 = vdwg.mxu0
    %v1612 = vtanh.pop %v1609
    %v1614 = vsel %vm112, %v1612, 0
    %1616 = vmatprep.subr.mxu0 0.0
    %1617 = vmatpush1.msra.mxu0 %v27
    %1618 = vmatprep.subr.mxu0 0.0
    %1619 = vmatpush1.msra.mxu0 %v28
    %1620 = vmatprep.subr.mxu0 0.0
    %1621 = vmatpush1.msra.mxu0 %v29
    %1622 = vmatprep.subr.mxu0 0.0
    %1623 = vmatpush1.msra.mxu0 %v30
    %1624 = vmatprep.subr.mxu0 0.0
    %1625 = vmatpush1.msra.mxu0 0.0
    %1626 = vmatprep.subr.mxu0 0.0
    %1627 = vmatpush1.msra.mxu0 0.0
    %1628 = vmatprep.subr.mxu0 0.0
    %1629 = vmatpush1.msra.mxu0 0.0
    %1630 = vmatprep.subr.mxu0 0.0
    %1631 = vmatpush1.msra.mxu0 0.0
    %1632 = vmatprep.subr.mxu0 0.0
    %1633 = vmatpush1.msra.mxu0 0.0
    %1634 = vmatprep.subr.mxu0 0.0
    %1635 = vmatpush1.msra.mxu0 0.0
    %1636 = vmatprep.subr.mxu0 0.0
    %1637 = vmatpush1.msra.mxu0 0.0
    %1638 = vmatprep.subr.mxu0 0.0
    %1639 = vmatpush1.msra.mxu0 0.0
    %1640 = vmatprep.subr.mxu0 0.0
    %1641 = vmatpush1.msra.mxu0 0.0
    %1642 = vmatprep.subr.mxu0 0.0
    %1643 = vmatpush1.msra.mxu0 0.0
    %1644 = vmatprep.subr.mxu0 0.0
    %1645 = vmatpush1.msra.mxu0 0.0
    %1646 = vmatprep.subr.mxu0 0.0
    %1647 = vmatpush1.msra.mxu0 0.0
    %1648 = vmatprep.subr.mxu0 0.0
    %1649 = vmatpush1.msra.mxu0 0.0
    %1650 = vmatprep.subr.mxu0 0.0
    %1651 = vmatpush1.msra.mxu0 0.0
    %1652 = vmatprep.subr.mxu0 0.0
    %1653 = vmatpush1.msra.mxu0 0.0
    %1654 = vmatprep.subr.mxu0 0.0
    %1655 = vmatpush1.msra.mxu0 0.0
    %1656 = vmatprep.subr.mxu0 0.0
    %1657 = vmatpush1.msra.mxu0 0.0
    %1658 = vmatprep.subr.mxu0 0.0
    %1659 = vmatpush1.msra.mxu0 0.0
    %1660 = vmatprep.subr.mxu0 0.0
    %1661 = vmatpush1.msra.mxu0 0.0
    %1662 = vmatprep.subr.mxu0 0.0
    %1663 = vmatpush1.msra.mxu0 0.0
    %1664 = vmatprep.subr.mxu0 0.0
    %1665 = vmatpush1.msra.mxu0 0.0
    %1666 = vmatprep.subr.mxu0 0.0
    %1667 = vmatpush1.msra.mxu0 0.0
    %1668 = vmatprep.subr.mxu0 0.0
    %1669 = vmatpush1.msra.mxu0 0.0
    %1670 = vmatprep.subr.mxu0 0.0
    %1671 = vmatpush1.msra.mxu0 0.0
    %1672 = vmatprep.subr.mxu0 0.0
    %1673 = vmatpush1.msra.mxu0 0.0
    %1674 = vmatprep.subr.mxu0 0.0
    %1675 = vmatpush1.msra.mxu0 0.0
    %1676 = vmatprep.subr.mxu0 0.0
    %1677 = vmatpush1.msra.mxu0 0.0
    %1678 = vmatprep.subr.mxu0 0.0
    %1679 = vmatpush1.msra.mxu0 0.0
    %1680 = vmatprep.mubr.f32.mxu0 0.0
    %1681 = vmatmul.mubr.f32.gmra.mrb[0].mxu0 %v1614
    %v1682 = vpop.f32.mrb[0].mxu0
    %v1683 = vadd.f32 %v31, %v1682
    %v1684 = vpop.f32.mrb[0].mxu0
    %1685 = vdwg.mxu0
    %v1686 = vmul.f32 %v1683, 0.0625
    %v1687 = vadd.f32 %v1240, %v1686
    %v1689 = vsel %vm33, %v1687, 0
    %1691 = vmatprep.subr.mxu0 0.0
    %1692 = vmatpush1.msra.mxu0 %v21
    %1693 = vmatprep.subr.mxu0 0.0
    %1694 = vmatpush1.msra.mxu0 %v22
    %1695 = vmatprep.subr.mxu0 0.0
    %1696 = vmatpush1.msra.mxu0 %v23
    %1697 = vmatprep.subr.mxu0 0.0
    %1698 = vmatpush1.msra.mxu0 %v24
    %1699 = vmatprep.subr.mxu0 0.0
    %1700 = vmatpush1.msra.mxu0 %v39
    %1701 = vmatprep.subr.mxu0 0.0
    %1702 = vmatpush1.msra.mxu0 0.0
    %1703 = vmatprep.subr.mxu0 0.0
    %1704 = vmatpush1.msra.mxu0 0.0
    %1705 = vmatprep.subr.mxu0 0.0
    %1706 = vmatpush1.msra.mxu0 0.0
    %1707 = vmatprep.subr.mxu0 0.0
    %1708 = vmatpush1.msra.mxu0 0.0
    %1709 = vmatprep.subr.mxu0 0.0
    %1710 = vmatpush1.msra.mxu0 0.0
    %1711 = vmatprep.subr.mxu0 0.0
    %1712 = vmatpush1.msra.mxu0 0.0
    %1713 = vmatprep.subr.mxu0 0.0
    %1714 = vmatpush1.msra.mxu0 0.0
    %1715 = vmatprep.subr.mxu0 0.0
    %1716 = vmatpush1.msra.mxu0 0.0
    %1717 = vmatprep.subr.mxu0 0.0
    %1718 = vmatpush1.msra.mxu0 0.0
    %1719 = vmatprep.subr.mxu0 0.0
    %1720 = vmatpush1.msra.mxu0 0.0
    %1721 = vmatprep.subr.mxu0 0.0
    %1722 = vmatpush1.msra.mxu0 0.0
    %1723 = vmatprep.subr.mxu0 0.0
    %1724 = vmatpush1.msra.mxu0 0.0
    %1725 = vmatprep.subr.mxu0 0.0
    %1726 = vmatpush1.msra.mxu0 0.0
    %1727 = vmatprep.subr.mxu0 0.0
    %1728 = vmatpush1.msra.mxu0 0.0
    %1729 = vmatprep.subr.mxu0 0.0
    %1730 = vmatpush1.msra.mxu0 0.0
    %1731 = vmatprep.subr.mxu0 0.0
    %1732 = vmatpush1.msra.mxu0 0.0
    %1733 = vmatprep.subr.mxu0 0.0
    %1734 = vmatpush1.msra.mxu0 0.0
    %1735 = vmatprep.subr.mxu0 0.0
    %1736 = vmatpush1.msra.mxu0 0.0
    %1737 = vmatprep.subr.mxu0 0.0
    %1738 = vmatpush1.msra.mxu0 0.0
    %1739 = vmatprep.subr.mxu0 0.0
    %1740 = vmatpush1.msra.mxu0 0.0
    %1741 = vmatprep.subr.mxu0 0.0
    %1742 = vmatpush1.msra.mxu0 0.0
    %1743 = vmatprep.subr.mxu0 0.0
    %1744 = vmatpush1.msra.mxu0 0.0
    %1745 = vmatprep.subr.mxu0 0.0
    %1746 = vmatpush1.msra.mxu0 0.0
    %1747 = vmatprep.subr.mxu0 0.0
    %1748 = vmatpush1.msra.mxu0 0.0
    %1749 = vmatprep.subr.mxu0 0.0
    %1750 = vmatpush1.msra.mxu0 0.0
    %1751 = vmatprep.subr.mxu0 0.0
    %1752 = vmatpush1.msra.mxu0 0.0
    %1753 = vmatprep.subr.mxu0 0.0
    %1754 = vmatpush1.msra.mxu0 0.0
    %1755 = vmatprep.mubr.f32.mxu0 0.0
    %1756 = vmatmul.mubr.f32.gmra.mrb[0].mxu0 %v1689
    %v1757 = vpop.f32.mrb[0].mxu0
    %v1758 = vadd.f32 %v26, %v1757
    %v1759 = vpop.f32.mrb[0].mxu0
    %1760 = vdwg.mxu0
    %v1761 = vtanh.pop %v1758
    %v1763 = vsel %vm112, %v1761, 0
    %1765 = vmatprep.subr.mxu0 0.0
    %1766 = vmatpush1.msra.mxu0 %v27
    %1767 = vmatprep.subr.mxu0 0.0
    %1768 = vmatpush1.msra.mxu0 %v28
    %1769 = vmatprep.subr.mxu0 0.0
    %1770 = vmatpush1.msra.mxu0 %v29
    %1771 = vmatprep.subr.mxu0 0.0
    %1772 = vmatpush1.msra.mxu0 %v30
    %1773 = vmatprep.subr.mxu0 0.0
    %1774 = vmatpush1.msra.mxu0 0.0
    %1775 = vmatprep.subr.mxu0 0.0
    %1776 = vmatpush1.msra.mxu0 0.0
    %1777 = vmatprep.subr.mxu0 0.0
    %1778 = vmatpush1.msra.mxu0 0.0
    %1779 = vmatprep.subr.mxu0 0.0
    %1780 = vmatpush1.msra.mxu0 0.0
    %1781 = vmatprep.subr.mxu0 0.0
    %1782 = vmatpush1.msra.mxu0 0.0
    %1783 = vmatprep.subr.mxu0 0.0
    %1784 = vmatpush1.msra.mxu0 0.0
    %1785 = vmatprep.subr.mxu0 0.0
    %1786 = vmatpush1.msra.mxu0 0.0
    %1787 = vmatprep.subr.mxu0 0.0
    %1788 = vmatpush1.msra.mxu0 0.0
    %1789 = vmatprep.subr.mxu0 0.0
    %1790 = vmatpush1.msra.mxu0 0.0
    %1791 = vmatprep.subr.mxu0 0.0
    %1792 = vmatpush1.msra.mxu0 0.0
    %1793 = vmatprep.subr.mxu0 0.0
    %1794 = vmatpush1.msra.mxu0 0.0
    %1795 = vmatprep.subr.mxu0 0.0
    %1796 = vmatpush1.msra.mxu0 0.0
    %1797 = vmatprep.subr.mxu0 0.0
    %1798 = vmatpush1.msra.mxu0 0.0
    %1799 = vmatprep.subr.mxu0 0.0
    %1800 = vmatpush1.msra.mxu0 0.0
    %1801 = vmatprep.subr.mxu0 0.0
    %1802 = vmatpush1.msra.mxu0 0.0
    %1803 = vmatprep.subr.mxu0 0.0
    %1804 = vmatpush1.msra.mxu0 0.0
    %1805 = vmatprep.subr.mxu0 0.0
    %1806 = vmatpush1.msra.mxu0 0.0
    %1807 = vmatprep.subr.mxu0 0.0
    %1808 = vmatpush1.msra.mxu0 0.0
    %1809 = vmatprep.subr.mxu0 0.0
    %1810 = vmatpush1.msra.mxu0 0.0
    %1811 = vmatprep.subr.mxu0 0.0
    %1812 = vmatpush1.msra.mxu0 0.0
    %1813 = vmatprep.subr.mxu0 0.0
    %1814 = vmatpush1.msra.mxu0 0.0
    %1815 = vmatprep.subr.mxu0 0.0
    %1816 = vmatpush1.msra.mxu0 0.0
    %1817 = vmatprep.subr.mxu0 0.0
    %1818 = vmatpush1.msra.mxu0 0.0
    %1819 = vmatprep.subr.mxu0 0.0
    %1820 = vmatpush1.msra.mxu0 0.0
    %1821 = vmatprep.subr.mxu0 0.0
    %1822 = vmatpush1.msra.mxu0 0.0
    %1823 = vmatprep.subr.mxu0 0.0
    %1824 = vmatpush1.msra.mxu0 0.0
    %1825 = vmatprep.subr.mxu0 0.0
    %1826 = vmatpush1.msra.mxu0 0.0
    %1827 = vmatprep.subr.mxu0 0.0
    %1828 = vmatpush1.msra.mxu0 0.0
    %1829 = vmatprep.mubr.f32.mxu0 0.0
    %1830 = vmatmul.mubr.f32.gmra.mrb[0].mxu0 %v1763
    %v1831 = vpop.f32.mrb[0].mxu0
    %v1832 = vadd.f32 %v31, %v1831
    %v1833 = vpop.f32.mrb[0].mxu0
    %1834 = vdwg.mxu0
    %v1835 = vmul.f32 %v1534, 2.0
    %v1836 = vadd.f32 %v1385, %v1835
    %v1837 = vmul.f32 %v1683, 2.0
    %v1838 = vadd.f32 %v1836, %v1837
    %v1839 = vadd.f32 %v1838, %v1832
    %v1840 = vmul.f32 %v1839, 0.010416667
    %v1841 = vadd.f32 %v1240, %v1840
    %v1843 = vsel %vm33, %v1841, 0
    %1845 = vmatprep.subr.mxu0 0.0
    %1846 = vmatpush1.msra.mxu0 %v21
    %1847 = vmatprep.subr.mxu0 0.0
    %1848 = vmatpush1.msra.mxu0 %v22
    %1849 = vmatprep.subr.mxu0 0.0
    %1850 = vmatpush1.msra.mxu0 %v23
    %1851 = vmatprep.subr.mxu0 0.0
    %1852 = vmatpush1.msra.mxu0 %v24
    %1853 = vmatprep.subr.mxu0 0.0
    %1854 = vmatpush1.msra.mxu0 %v39
    %1855 = vmatprep.subr.mxu0 0.0
    %1856 = vmatpush1.msra.mxu0 0.0
    %1857 = vmatprep.subr.mxu0 0.0
    %1858 = vmatpush1.msra.mxu0 0.0
    %1859 = vmatprep.subr.mxu0 0.0
    %1860 = vmatpush1.msra.mxu0 0.0
    %1861 = vmatprep.subr.mxu0 0.0
    %1862 = vmatpush1.msra.mxu0 0.0
    %1863 = vmatprep.subr.mxu0 0.0
    %1864 = vmatpush1.msra.mxu0 0.0
    %1865 = vmatprep.subr.mxu0 0.0
    %1866 = vmatpush1.msra.mxu0 0.0
    %1867 = vmatprep.subr.mxu0 0.0
    %1868 = vmatpush1.msra.mxu0 0.0
    %1869 = vmatprep.subr.mxu0 0.0
    %1870 = vmatpush1.msra.mxu0 0.0
    %1871 = vmatprep.subr.mxu0 0.0
    %1872 = vmatpush1.msra.mxu0 0.0
    %1873 = vmatprep.subr.mxu0 0.0
    %1874 = vmatpush1.msra.mxu0 0.0
    %1875 = vmatprep.subr.mxu0 0.0
    %1876 = vmatpush1.msra.mxu0 0.0
    %1877 = vmatprep.subr.mxu0 0.0
    %1878 = vmatpush1.msra.mxu0 0.0
    %1879 = vmatprep.subr.mxu0 0.0
    %1880 = vmatpush1.msra.mxu0 0.0
    %1881 = vmatprep.subr.mxu0 0.0
    %1882 = vmatpush1.msra.mxu0 0.0
    %1883 = vmatprep.subr.mxu0 0.0
    %1884 = vmatpush1.msra.mxu0 0.0
    %1885 = vmatprep.subr.mxu0 0.0
    %1886 = vmatpush1.msra.mxu0 0.0
    %1887 = vmatprep.subr.mxu0 0.0
    %1888 = vmatpush1.msra.mxu0 0.0
    %1889 = vmatprep.subr.mxu0 0.0
    %1890 = vmatpush1.msra.mxu0 0.0
    %1891 = vmatprep.subr.mxu0 0.0
    %1892 = vmatpush1.msra.mxu0 0.0
    %1893 = vmatprep.subr.mxu0 0.0
    %1894 = vmatpush1.msra.mxu0 0.0
    %1895 = vmatprep.subr.mxu0 0.0
    %1896 = vmatpush1.msra.mxu0 0.0
    %1897 = vmatprep.subr.mxu0 0.0
    %1898 = vmatpush1.msra.mxu0 0.0
    %1899 = vmatprep.subr.mxu0 0.0
    %1900 = vmatpush1.msra.mxu0 0.0
    %1901 = vmatprep.subr.mxu0 0.0
    %1902 = vmatpush1.msra.mxu0 0.0
    %1903 = vmatprep.subr.mxu0 0.0
    %1904 = vmatpush1.msra.mxu0 0.0
    %1905 = vmatprep.subr.mxu0 0.0
    %1906 = vmatpush1.msra.mxu0 0.0
    %1907 = vmatprep.subr.mxu0 0.0
    %1908 = vmatpush1.msra.mxu0 0.0
    %1909 = vmatprep.mubr.f32.mxu0 0.0
    %1910 = vmatmul.mubr.f32.gmra.mrb[0].mxu0 %v1843
    %v1911 = vpop.f32.mrb[0].mxu0
    %v1912 = vadd.f32 %v26, %v1911
    %v1913 = vpop.f32.mrb[0].mxu0
    %1914 = vdwg.mxu0
    %v1915 = vtanh.pop %v1912
    %v1917 = vsel %vm112, %v1915, 0
    %1919 = vmatprep.subr.mxu0 0.0
    %1920 = vmatpush1.msra.mxu0 %v27
    %1921 = vmatprep.subr.mxu0 0.0
    %1922 = vmatpush1.msra.mxu0 %v28
    %1923 = vmatprep.subr.mxu0 0.0
    %1924 = vmatpush1.msra.mxu0 %v29
    %1925 = vmatprep.subr.mxu0 0.0
    %1926 = vmatpush1.msra.mxu0 %v30
    %1927 = vmatprep.subr.mxu0 0.0
    %1928 = vmatpush1.msra.mxu0 0.0
    %1929 = vmatprep.subr.mxu0 0.0
    %1930 = vmatpush1.msra.mxu0 0.0
    %1931 = vmatprep.subr.mxu0 0.0
    %1932 = vmatpush1.msra.mxu0 0.0
    %1933 = vmatprep.subr.mxu0 0.0
    %1934 = vmatpush1.msra.mxu0 0.0
    %1935 = vmatprep.subr.mxu0 0.0
    %1936 = vmatpush1.msra.mxu0 0.0
    %1937 = vmatprep.subr.mxu0 0.0
    %1938 = vmatpush1.msra.mxu0 0.0
    %1939 = vmatprep.subr.mxu0 0.0
    %1940 = vmatpush1.msra.mxu0 0.0
    %1941 = vmatprep.subr.mxu0 0.0
    %1942 = vmatpush1.msra.mxu0 0.0
    %1943 = vmatprep.subr.mxu0 0.0
    %1944 = vmatpush1.msra.mxu0 0.0
    %1945 = vmatprep.subr.mxu0 0.0
    %1946 = vmatpush1.msra.mxu0 0.0
    %1947 = vmatprep.subr.mxu0 0.0
    %1948 = vmatpush1.msra.mxu0 0.0
    %1949 = vmatprep.subr.mxu0 0.0
    %1950 = vmatpush1.msra.mxu0 0.0
    %1951 = vmatprep.subr.mxu0 0.0
    %1952 = vmatpush1.msra.mxu0 0.0
    %1953 = vmatprep.subr.mxu0 0.0
    %1954 = vmatpush1.msra.mxu0 0.0
    %1955 = vmatprep.subr.mxu0 0.0
    %1956 = vmatpush1.msra.mxu0 0.0
    %1957 = vmatprep.subr.mxu0 0.0
    %1958 = vmatpush1.msra.mxu0 0.0
    %1959 = vmatprep.subr.mxu0 0.0
    %1960 = vmatpush1.msra.mxu0 0.0
    %1961 = vmatprep.subr.mxu0 0.0
    %1962 = vmatpush1.msra.mxu0 0.0
    %1963 = vmatprep.subr.mxu0 0.0
    %1964 = vmatpush1.msra.mxu0 0.0
    %1965 = vmatprep.subr.mxu0 0.0
    %1966 = vmatpush1.msra.mxu0 0.0
    %1967 = vmatprep.subr.mxu0 0.0
    %1968 = vmatpush1.msra.mxu0 0.0
    %1969 = vmatprep.subr.mxu0 0.0
    %1970 = vmatpush1.msra.mxu0 0.0
    %1971 = vmatprep.subr.mxu0 0.0
    %1972 = vmatpush1.msra.mxu0 0.0
    %1973 = vmatprep.subr.mxu0 0.0
    %1974 = vmatpush1.msra.mxu0 0.0
    %1975 = vmatprep.subr.mxu0 0.0
    %1976 = vmatpush1.msra.mxu0 0.0
    %1977 = vmatprep.subr.mxu0 0.0
    %1978 = vmatpush1.msra.mxu0 0.0
    %1979 = vmatprep.subr.mxu0 0.0
    %1980 = vmatpush1.msra.mxu0 0.0
    %1981 = vmatprep.subr.mxu0 0.0
    %1982 = vmatpush1.msra.mxu0 0.0
    %1983 = vmatprep.mubr.f32.mxu0 0.0
    %1984 = vmatmul.mubr.f32.gmra.mrb[0].mxu0 %v1917
    %v1985 = vpop.f32.mrb[0].mxu0
    %v1986 = vadd.f32 %v31, %v1985
    %v1987 = vpop.f32.mrb[0].mxu0
    %1988 = vdwg.mxu0
    %v1989 = vmul.f32 %v1986, 0.03125
    %v1990 = vadd.f32 %v1841, %v1989
    %v1992 = vsel %vm33, %v1990, 0
    %1994 = vmatprep.subr.mxu0 0.0
    %1995 = vmatpush1.msra.mxu0 %v21
    %1996 = vmatprep.subr.mxu0 0.0
    %1997 = vmatpush1.msra.mxu0 %v22
    %1998 = vmatprep.subr.mxu0 0.0
    %1999 = vmatpush1.msra.mxu0 %v23
    %2000 = vmatprep.subr.mxu0 0.0
    %2001 = vmatpush1.msra.mxu0 %v24
    %2002 = vmatprep.subr.mxu0 0.0
    %2003 = vmatpush1.msra.mxu0 %v39
    %2004 = vmatprep.subr.mxu0 0.0
    %2005 = vmatpush1.msra.mxu0 0.0
    %2006 = vmatprep.subr.mxu0 0.0
    %2007 = vmatpush1.msra.mxu0 0.0
    %2008 = vmatprep.subr.mxu0 0.0
    %2009 = vmatpush1.msra.mxu0 0.0
    %2010 = vmatprep.subr.mxu0 0.0
    %2011 = vmatpush1.msra.mxu0 0.0
    %2012 = vmatprep.subr.mxu0 0.0
    %2013 = vmatpush1.msra.mxu0 0.0
    %2014 = vmatprep.subr.mxu0 0.0
    %2015 = vmatpush1.msra.mxu0 0.0
    %2016 = vmatprep.subr.mxu0 0.0
    %2017 = vmatpush1.msra.mxu0 0.0
    %2018 = vmatprep.subr.mxu0 0.0
    %2019 = vmatpush1.msra.mxu0 0.0
    %2020 = vmatprep.subr.mxu0 0.0
    %2021 = vmatpush1.msra.mxu0 0.0
    %2022 = vmatprep.subr.mxu0 0.0
    %2023 = vmatpush1.msra.mxu0 0.0
    %2024 = vmatprep.subr.mxu0 0.0
    %2025 = vmatpush1.msra.mxu0 0.0
    %2026 = vmatprep.subr.mxu0 0.0
    %2027 = vmatpush1.msra.mxu0 0.0
    %2028 = vmatprep.subr.mxu0 0.0
    %2029 = vmatpush1.msra.mxu0 0.0
    %2030 = vmatprep.subr.mxu0 0.0
    %2031 = vmatpush1.msra.mxu0 0.0
    %2032 = vmatprep.subr.mxu0 0.0
    %2033 = vmatpush1.msra.mxu0 0.0
    %2034 = vmatprep.subr.mxu0 0.0
    %2035 = vmatpush1.msra.mxu0 0.0
    %2036 = vmatprep.subr.mxu0 0.0
    %2037 = vmatpush1.msra.mxu0 0.0
    %2038 = vmatprep.subr.mxu0 0.0
    %2039 = vmatpush1.msra.mxu0 0.0
    %2040 = vmatprep.subr.mxu0 0.0
    %2041 = vmatpush1.msra.mxu0 0.0
    %2042 = vmatprep.subr.mxu0 0.0
    %2043 = vmatpush1.msra.mxu0 0.0
    %2044 = vmatprep.subr.mxu0 0.0
    %2045 = vmatpush1.msra.mxu0 0.0
    %2046 = vmatprep.subr.mxu0 0.0
    %2047 = vmatpush1.msra.mxu0 0.0
    %2048 = vmatprep.subr.mxu0 0.0
    %2049 = vmatpush1.msra.mxu0 0.0
    %2050 = vmatprep.subr.mxu0 0.0
    %2051 = vmatpush1.msra.mxu0 0.0
    %2052 = vmatprep.subr.mxu0 0.0
    %2053 = vmatpush1.msra.mxu0 0.0
    %2054 = vmatprep.subr.mxu0 0.0
    %2055 = vmatpush1.msra.mxu0 0.0
    %2056 = vmatprep.subr.mxu0 0.0
    %2057 = vmatpush1.msra.mxu0 0.0
    %2058 = vmatprep.mubr.f32.mxu0 0.0
    %2059 = vmatmul.mubr.f32.gmra.mrb[0].mxu0 %v1992
    %v2060 = vpop.f32.mrb[0].mxu0
    %v2061 = vadd.f32 %v26, %v2060
    %v2062 = vpop.f32.mrb[0].mxu0
    %2063 = vdwg.mxu0
    %v2064 = vtanh.pop %v2061
    %v2066 = vsel %vm112, %v2064, 0
    %2068 = vmatprep.subr.mxu0 0.0
    %2069 = vmatpush1.msra.mxu0 %v27
    %2070 = vmatprep.subr.mxu0 0.0
    %2071 = vmatpush1.msra.mxu0 %v28
    %2072 = vmatprep.subr.mxu0 0.0
    %2073 = vmatpush1.msra.mxu0 %v29
    %2074 = vmatprep.subr.mxu0 0.0
    %2075 = vmatpush1.msra.mxu0 %v30
    %2076 = vmatprep.subr.mxu0 0.0
    %2077 = vmatpush1.msra.mxu0 0.0
    %2078 = vmatprep.subr.mxu0 0.0
    %2079 = vmatpush1.msra.mxu0 0.0
    %2080 = vmatprep.subr.mxu0 0.0
    %2081 = vmatpush1.msra.mxu0 0.0
    %2082 = vmatprep.subr.mxu0 0.0
    %2083 = vmatpush1.msra.mxu0 0.0
    %2084 = vmatprep.subr.mxu0 0.0
    %2085 = vmatpush1.msra.mxu0 0.0
    %2086 = vmatprep.subr.mxu0 0.0
    %2087 = vmatpush1.msra.mxu0 0.0
    %2088 = vmatprep.subr.mxu0 0.0
    %2089 = vmatpush1.msra.mxu0 0.0
    %2090 = vmatprep.subr.mxu0 0.0
    %2091 = vmatpush1.msra.mxu0 0.0
    %2092 = vmatprep.subr.mxu0 0.0
    %2093 = vmatpush1.msra.mxu0 0.0
    %2094 = vmatprep.subr.mxu0 0.0
    %2095 = vmatpush1.msra.mxu0 0.0
    %2096 = vmatprep.subr.mxu0 0.0
    %2097 = vmatpush1.msra.mxu0 0.0
    %2098 = vmatprep.subr.mxu0 0.0
    %2099 = vmatpush1.msra.mxu0 0.0
    %2100 = vmatprep.subr.mxu0 0.0
    %2101 = vmatpush1.msra.mxu0 0.0
    %2102 = vmatprep.subr.mxu0 0.0
    %2103 = vmatpush1.msra.mxu0 0.0
    %2104 = vmatprep.subr.mxu0 0.0
    %2105 = vmatpush1.msra.mxu0 0.0
    %2106 = vmatprep.subr.mxu0 0.0
    %2107 = vmatpush1.msra.mxu0 0.0
    %2108 = vmatprep.subr.mxu0 0.0
    %2109 = vmatpush1.msra.mxu0 0.0
    %2110 = vmatprep.subr.mxu0 0.0
    %2111 = vmatpush1.msra.mxu0 0.0
    %2112 = vmatprep.subr.mxu0 0.0
    %2113 = vmatpush1.msra.mxu0 0.0
    %2114 = vmatprep.subr.mxu0 0.0
    %2115 = vmatpush1.msra.mxu0 0.0
    %2116 = vmatprep.subr.mxu0 0.0
    %2117 = vmatpush1.msra.mxu0 0.0
    %2118 = vmatprep.subr.mxu0 0.0
    %2119 = vmatpush1.msra.mxu0 0.0
    %2120 = vmatprep.subr.mxu0 0.0
    %2121 = vmatpush1.msra.mxu0 0.0
    %2122 = vmatprep.subr.mxu0 0.0
    %2123 = vmatpush1.msra.mxu0 0.0
    %2124 = vmatprep.subr.mxu0 0.0
    %2125 = vmatpush1.msra.mxu0 0.0
    %2126 = vmatprep.subr.mxu0 0.0
    %2127 = vmatpush1.msra.mxu0 0.0
    %2128 = vmatprep.subr.mxu0 0.0
    %2129 = vmatpush1.msra.mxu0 0.0
    %2130 = vmatprep.subr.mxu0 0.0
    %2131 = vmatpush1.msra.mxu0 0.0
    %2132 = vmatprep.mubr.f32.mxu0 0.0
    %2133 = vmatmul.mubr.f32.gmra.mrb[0].mxu0 %v2066
    %v2134 = vpop.f32.mrb[0].mxu0
    %v2135 = vadd.f32 %v31, %v2134
    %v2136 = vpop.f32.mrb[0].mxu0
    %2137 = vdwg.mxu0
    %v2138 = vmul.f32 %v2135, 0.03125
    %v2139 = vadd.f32 %v1841, %v2138
    %v2141 = vsel %vm33, %v2139, 0
    %2143 = vmatprep.subr.mxu0 0.0
    %2144 = vmatpush1.msra.mxu0 %v21
    %2145 = vmatprep.subr.mxu0 0.0
    %2146 = vmatpush1.msra.mxu0 %v22
    %2147 = vmatprep.subr.mxu0 0.0
    %2148 = vmatpush1.msra.mxu0 %v23
    %2149 = vmatprep.subr.mxu0 0.0
    %2150 = vmatpush1.msra.mxu0 %v24
    %2151 = vmatprep.subr.mxu0 0.0
    %2152 = vmatpush1.msra.mxu0 %v39
    %2153 = vmatprep.subr.mxu0 0.0
    %2154 = vmatpush1.msra.mxu0 0.0
    %2155 = vmatprep.subr.mxu0 0.0
    %2156 = vmatpush1.msra.mxu0 0.0
    %2157 = vmatprep.subr.mxu0 0.0
    %2158 = vmatpush1.msra.mxu0 0.0
    %2159 = vmatprep.subr.mxu0 0.0
    %2160 = vmatpush1.msra.mxu0 0.0
    %2161 = vmatprep.subr.mxu0 0.0
    %2162 = vmatpush1.msra.mxu0 0.0
    %2163 = vmatprep.subr.mxu0 0.0
    %2164 = vmatpush1.msra.mxu0 0.0
    %2165 = vmatprep.subr.mxu0 0.0
    %2166 = vmatpush1.msra.mxu0 0.0
    %2167 = vmatprep.subr.mxu0 0.0
    %2168 = vmatpush1.msra.mxu0 0.0
    %2169 = vmatprep.subr.mxu0 0.0
    %2170 = vmatpush1.msra.mxu0 0.0
    %2171 = vmatprep.subr.mxu0 0.0
    %2172 = vmatpush1.msra.mxu0 0.0
    %2173 = vmatprep.subr.mxu0 0.0
    %2174 = vmatpush1.msra.mxu0 0.0
    %2175 = vmatprep.subr.mxu0 0.0
    %2176 = vmatpush1.msra.mxu0 0.0
    %2177 = vmatprep.subr.mxu0 0.0
    %2178 = vmatpush1.msra.mxu0 0.0
    %2179 = vmatprep.subr.mxu0 0.0
    %2180 = vmatpush1.msra.mxu0 0.0
    %2181 = vmatprep.subr.mxu0 0.0
    %2182 = vmatpush1.msra.mxu0 0.0
    %2183 = vmatprep.subr.mxu0 0.0
    %2184 = vmatpush1.msra.mxu0 0.0
    %2185 = vmatprep.subr.mxu0 0.0
    %2186 = vmatpush1.msra.mxu0 0.0
    %2187 = vmatprep.subr.mxu0 0.0
    %2188 = vmatpush1.msra.mxu0 0.0
    %2189 = vmatprep.subr.mxu0 0.0
    %2190 = vmatpush1.msra.mxu0 0.0
    %2191 = vmatprep.subr.mxu0 0.0
    %2192 = vmatpush1.msra.mxu0 0.0
    %2193 = vmatprep.subr.mxu0 0.0
    %2194 = vmatpush1.msra.mxu0 0.0
    %2195 = vmatprep.subr.mxu0 0.0
    %2196 = vmatpush1.msra.mxu0 0.0
    %2197 = vmatprep.subr.mxu0 0.0
    %2198 = vmatpush1.msra.mxu0 0.0
    %2199 = vmatprep.subr.mxu0 0.0
    %2200 = vmatpush1.msra.mxu0 0.0
    %2201 = vmatprep.subr.mxu0 0.0
    %2202 = vmatpush1.msra.mxu0 0.0
    %2203 = vmatprep.subr.mxu0 0.0
    %2204 = vmatpush1.msra.mxu0 0.0
    %2205 = vmatprep.subr.mxu0 0.0
    %2206 = vmatpush1.msra.mxu0 0.0
    %2207 = vmatprep.mubr.f32.mxu0 0.0
    %2208 = vmatmul.mubr.f32.gmra.mrb[0].mxu0 %v2141
    %v2209 = vpop.f32.mrb[0].mxu0
    %v2210 = vadd.f32 %v26, %v2209
    %v2211 = vpop.f32.mrb[0].mxu0
    %2212 = vdwg.mxu0
    %v2213 = vtanh.pop %v2210
    %v2215 = vsel %vm112, %v2213, 0
    %2217 = vmatprep.subr.mxu0 0.0
    %2218 = vmatpush1.msra.mxu0 %v27
    %2219 = vmatprep.subr.mxu0 0.0
    %2220 = vmatpush1.msra.mxu0 %v28
    %2221 = vmatprep.subr.mxu0 0.0
    %2222 = vmatpush1.msra.mxu0 %v29
    %2223 = vmatprep.subr.mxu0 0.0
    %2224 = vmatpush1.msra.mxu0 %v30
    %2225 = vmatprep.subr.mxu0 0.0
    %2226 = vmatpush1.msra.mxu0 0.0
    %2227 = vmatprep.subr.mxu0 0.0
    %2228 = vmatpush1.msra.mxu0 0.0
    %2229 = vmatprep.subr.mxu0 0.0
    %2230 = vmatpush1.msra.mxu0 0.0
    %2231 = vmatprep.subr.mxu0 0.0
    %2232 = vmatpush1.msra.mxu0 0.0
    %2233 = vmatprep.subr.mxu0 0.0
    %2234 = vmatpush1.msra.mxu0 0.0
    %2235 = vmatprep.subr.mxu0 0.0
    %2236 = vmatpush1.msra.mxu0 0.0
    %2237 = vmatprep.subr.mxu0 0.0
    %2238 = vmatpush1.msra.mxu0 0.0
    %2239 = vmatprep.subr.mxu0 0.0
    %2240 = vmatpush1.msra.mxu0 0.0
    %2241 = vmatprep.subr.mxu0 0.0
    %2242 = vmatpush1.msra.mxu0 0.0
    %2243 = vmatprep.subr.mxu0 0.0
    %2244 = vmatpush1.msra.mxu0 0.0
    %2245 = vmatprep.subr.mxu0 0.0
    %2246 = vmatpush1.msra.mxu0 0.0
    %2247 = vmatprep.subr.mxu0 0.0
    %2248 = vmatpush1.msra.mxu0 0.0
    %2249 = vmatprep.subr.mxu0 0.0
    %2250 = vmatpush1.msra.mxu0 0.0
    %2251 = vmatprep.subr.mxu0 0.0
    %2252 = vmatpush1.msra.mxu0 0.0
    %2253 = vmatprep.subr.mxu0 0.0
    %2254 = vmatpush1.msra.mxu0 0.0
    %2255 = vmatprep.subr.mxu0 0.0
    %2256 = vmatpush1.msra.mxu0 0.0
    %2257 = vmatprep.subr.mxu0 0.0
    %2258 = vmatpush1.msra.mxu0 0.0
    %2259 = vmatprep.subr.mxu0 0.0
    %2260 = vmatpush1.msra.mxu0 0.0
    %2261 = vmatprep.subr.mxu0 0.0
    %2262 = vmatpush1.msra.mxu0 0.0
    %2263 = vmatprep.subr.mxu0 0.0
    %2264 = vmatpush1.msra.mxu0 0.0
    %2265 = vmatprep.subr.mxu0 0.0
    %2266 = vmatpush1.msra.mxu0 0.0
    %2267 = vmatprep.subr.mxu0 0.0
    %2268 = vmatpush1.msra.mxu0 0.0
    %2269 = vmatprep.subr.mxu0 0.0
    %2270 = vmatpush1.msra.mxu0 0.0
    %2271 = vmatprep.subr.mxu0 0.0
    %2272 = vmatpush1.msra.mxu0 0.0
    %2273 = vmatprep.subr.mxu0 0.0
    %2274 = vmatpush1.msra.mxu0 0.0
    %2275 = vmatprep.subr.mxu0 0.0
    %2276 = vmatpush1.msra.mxu0 0.0
    %2277 = vmatprep.subr.mxu0 0.0
    %2278 = vmatpush1.msra.mxu0 0.0
    %2279 = vmatprep.subr.mxu0 0.0
    %2280 = vmatpush1.msra.mxu0 0.0
    %2281 = vmatprep.mubr.f32.mxu0 0.0
    %2282 = vmatmul.mubr.f32.gmra.mrb[0].mxu0 %v2215
    %v2283 = vpop.f32.mrb[0].mxu0
    %v2284 = vadd.f32 %v31, %v2283
    %v2285 = vpop.f32.mrb[0].mxu0
    %2286 = vdwg.mxu0
    %v2287 = vmul.f32 %v2284, 0.0625
    %v2288 = vadd.f32 %v1841, %v2287
    %v2290 = vsel %vm33, %v2288, 0
    %2292 = vmatprep.subr.mxu0 0.0
    %2293 = vmatpush1.msra.mxu0 %v21
    %2294 = vmatprep.subr.mxu0 0.0
    %2295 = vmatpush1.msra.mxu0 %v22
    %2296 = vmatprep.subr.mxu0 0.0
    %2297 = vmatpush1.msra.mxu0 %v23
    %2298 = vmatprep.subr.mxu0 0.0
    %2299 = vmatpush1.msra.mxu0 %v24
    %2300 = vmatprep.subr.mxu0 0.0
    %2301 = vmatpush1.msra.mxu0 %v39
    %2302 = vmatprep.subr.mxu0 0.0
    %2303 = vmatpush1.msra.mxu0 0.0
    %2304 = vmatprep.subr.mxu0 0.0
    %2305 = vmatpush1.msra.mxu0 0.0
    %2306 = vmatprep.subr.mxu0 0.0
    %2307 = vmatpush1.msra.mxu0 0.0
    %2308 = vmatprep.subr.mxu0 0.0
    %2309 = vmatpush1.msra.mxu0 0.0
    %2310 = vmatprep.subr.mxu0 0.0
    %2311 = vmatpush1.msra.mxu0 0.0
    %2312 = vmatprep.subr.mxu0 0.0
    %2313 = vmatpush1.msra.mxu0 0.0
    %2314 = vmatprep.subr.mxu0 0.0
    %2315 = vmatpush1.msra.mxu0 0.0
    %2316 = vmatprep.subr.mxu0 0.0
    %2317 = vmatpush1.msra.mxu0 0.0
    %2318 = vmatprep.subr.mxu0 0.0
    %2319 = vmatpush1.msra.mxu0 0.0
    %2320 = vmatprep.subr.mxu0 0.0
    %2321 = vmatpush1.msra.mxu0 0.0
    %2322 = vmatprep.subr.mxu0 0.0
    %2323 = vmatpush1.msra.mxu0 0.0
    %2324 = vmatprep.subr.mxu0 0.0
    %2325 = vmatpush1.msra.mxu0 0.0
    %2326 = vmatprep.subr.mxu0 0.0
    %2327 = vmatpush1.msra.mxu0 0.0
    %2328 = vmatprep.subr.mxu0 0.0
    %2329 = vmatpush1.msra.mxu0 0.0
    %2330 = vmatprep.subr.mxu0 0.0
    %2331 = vmatpush1.msra.mxu0 0.0
    %2332 = vmatprep.subr.mxu0 0.0
    %2333 = vmatpush1.msra.mxu0 0.0
    %2334 = vmatprep.subr.mxu0 0.0
    %2335 = vmatpush1.msra.mxu0 0.0
    %2336 = vmatprep.subr.mxu0 0.0
    %2337 = vmatpush1.msra.mxu0 0.0
    %2338 = vmatprep.subr.mxu0 0.0
    %2339 = vmatpush1.msra.mxu0 0.0
    %2340 = vmatprep.subr.mxu0 0.0
    %2341 = vmatpush1.msra.mxu0 0.0
    %2342 = vmatprep.subr.mxu0 0.0
    %2343 = vmatpush1.msra.mxu0 0.0
    %2344 = vmatprep.subr.mxu0 0.0
    %2345 = vmatpush1.msra.mxu0 0.0
    %2346 = vmatprep.subr.mxu0 0.0
    %2347 = vmatpush1.msra.mxu0 0.0
    %2348 = vmatprep.subr.mxu0 0.0
    %2349 = vmatpush1.msra.mxu0 0.0
    %2350 = vmatprep.subr.mxu0 0.0
    %2351 = vmatpush1.msra.mxu0 0.0
    %2352 = vmatprep.subr.mxu0 0.0
    %2353 = vmatpush1.msra.mxu0 0.0
    %2354 = vmatprep.subr.mxu0 0.0
    %2355 = vmatpush1.msra.mxu0 0.0
    %2356 = vmatprep.mubr.f32.mxu0 0.0
    %2357 = vmatmul.mubr.f32.gmra.mrb[0].mxu0 %v2290
    %v2358 = vpop.f32.mrb[0].mxu0
    %v2359 = vadd.f32 %v26, %v2358
    %v2360 = vpop.f32.mrb[0].mxu0
    %2361 = vdwg.mxu0
    %v2362 = vtanh.pop %v2359
    %v2364 = vsel %vm112, %v2362, 0
    %2366 = vmatprep.subr.mxu0 0.0
    %2367 = vmatpush1.msra.mxu0 %v27
    %2368 = vmatprep.subr.mxu0 0.0
    %2369 = vmatpush1.msra.mxu0 %v28
    %2370 = vmatprep.subr.mxu0 0.0
    %2371 = vmatpush1.msra.mxu0 %v29
    %2372 = vmatprep.subr.mxu0 0.0
    %2373 = vmatpush1.msra.mxu0 %v30
    %2374 = vmatprep.subr.mxu0 0.0
    %2375 = vmatpush1.msra.mxu0 0.0
    %2376 = vmatprep.subr.mxu0 0.0
    %2377 = vmatpush1.msra.mxu0 0.0
    %2378 = vmatprep.subr.mxu0 0.0
    %2379 = vmatpush1.msra.mxu0 0.0
    %2380 = vmatprep.subr.mxu0 0.0
    %2381 = vmatpush1.msra.mxu0 0.0
    %2382 = vmatprep.subr.mxu0 0.0
    %2383 = vmatpush1.msra.mxu0 0.0
    %2384 = vmatprep.subr.mxu0 0.0
    %2385 = vmatpush1.msra.mxu0 0.0
    %2386 = vmatprep.subr.mxu0 0.0
    %2387 = vmatpush1.msra.mxu0 0.0
    %2388 = vmatprep.subr.mxu0 0.0
    %2389 = vmatpush1.msra.mxu0 0.0
    %2390 = vmatprep.subr.mxu0 0.0
    %2391 = vmatpush1.msra.mxu0 0.0
    %2392 = vmatprep.subr.mxu0 0.0
    %2393 = vmatpush1.msra.mxu0 0.0
    %2394 = vmatprep.subr.mxu0 0.0
    %2395 = vmatpush1.msra.mxu0 0.0
    %2396 = vmatprep.subr.mxu0 0.0
    %2397 = vmatpush1.msra.mxu0 0.0
    %2398 = vmatprep.subr.mxu0 0.0
    %2399 = vmatpush1.msra.mxu0 0.0
    %2400 = vmatprep.subr.mxu0 0.0
    %2401 = vmatpush1.msra.mxu0 0.0
    %2402 = vmatprep.subr.mxu0 0.0
    %2403 = vmatpush1.msra.mxu0 0.0
    %2404 = vmatprep.subr.mxu0 0.0
    %2405 = vmatpush1.msra.mxu0 0.0
    %2406 = vmatprep.subr.mxu0 0.0
    %2407 = vmatpush1.msra.mxu0 0.0
    %2408 = vmatprep.subr.mxu0 0.0
    %2409 = vmatpush1.msra.mxu0 0.0
    %2410 = vmatprep.subr.mxu0 0.0
    %2411 = vmatpush1.msra.mxu0 0.0
    %2412 = vmatprep.subr.mxu0 0.0
    %2413 = vmatpush1.msra.mxu0 0.0
    %2414 = vmatprep.subr.mxu0 0.0
    %2415 = vmatpush1.msra.mxu0 0.0
    %2416 = vmatprep.subr.mxu0 0.0
    %2417 = vmatpush1.msra.mxu0 0.0
    %2418 = vmatprep.subr.mxu0 0.0
    %2419 = vmatpush1.msra.mxu0 0.0
    %2420 = vmatprep.subr.mxu0 0.0
    %2421 = vmatpush1.msra.mxu0 0.0
    %2422 = vmatprep.subr.mxu0 0.0
    %2423 = vmatpush1.msra.mxu0 0.0
    %2424 = vmatprep.subr.mxu0 0.0
    %2425 = vmatpush1.msra.mxu0 0.0
    %2426 = vmatprep.subr.mxu0 0.0
    %2427 = vmatpush1.msra.mxu0 0.0
    %2428 = vmatprep.subr.mxu0 0.0
    %2429 = vmatpush1.msra.mxu0 0.0
    %2430 = vmatprep.mubr.f32.mxu0 0.0
    %2431 = vmatmul.mubr.f32.gmra.mrb[0].mxu0 %v2364
    %v2432 = vpop.f32.mrb[0].mxu0
    %v2433 = vadd.f32 %v31, %v2432
    %v2434 = vpop.f32.mrb[0].mxu0
    %2435 = vdwg.mxu0
    %v2436 = vmul.f32 %v2135, 2.0
    %v2437 = vadd.f32 %v1986, %v2436
    %v2438 = vmul.f32 %v2284, 2.0
    %v2439 = vadd.f32 %v2437, %v2438
    %v2440 = vadd.f32 %v2439, %v2433
    %v2441 = vmul.f32 %v2440, 0.010416667
    %v2442 = vadd.f32 %v1841, %v2441
    %v2444 = vsel %vm33, %v2442, 0
    %2446 = vmatprep.subr.mxu0 0.0
    %2447 = vmatpush1.msra.mxu0 %v21
    %2448 = vmatprep.subr.mxu0 0.0
    %2449 = vmatpush1.msra.mxu0 %v22
    %2450 = vmatprep.subr.mxu0 0.0
    %2451 = vmatpush1.msra.mxu0 %v23
    %2452 = vmatprep.subr.mxu0 0.0
    %2453 = vmatpush1.msra.mxu0 %v24
    %2454 = vmatprep.subr.mxu0 0.0
    %2455 = vmatpush1.msra.mxu0 %v39
    %2456 = vmatprep.subr.mxu0 0.0
    %2457 = vmatpush1.msra.mxu0 0.0
    %2458 = vmatprep.subr.mxu0 0.0
    %2459 = vmatpush1.msra.mxu0 0.0
    %2460 = vmatprep.subr.mxu0 0.0
    %2461 = vmatpush1.msra.mxu0 0.0
    %2462 = vmatprep.subr.mxu0 0.0
    %2463 = vmatpush1.msra.mxu0 0.0
    %2464 = vmatprep.subr.mxu0 0.0
    %2465 = vmatpush1.msra.mxu0 0.0
    %2466 = vmatprep.subr.mxu0 0.0
    %2467 = vmatpush1.msra.mxu0 0.0
    %2468 = vmatprep.subr.mxu0 0.0
    %2469 = vmatpush1.msra.mxu0 0.0
    %2470 = vmatprep.subr.mxu0 0.0
    %2471 = vmatpush1.msra.mxu0 0.0
    %2472 = vmatprep.subr.mxu0 0.0
    %2473 = vmatpush1.msra.mxu0 0.0
    %2474 = vmatprep.subr.mxu0 0.0
    %2475 = vmatpush1.msra.mxu0 0.0
    %2476 = vmatprep.subr.mxu0 0.0
    %2477 = vmatpush1.msra.mxu0 0.0
    %2478 = vmatprep.subr.mxu0 0.0
    %2479 = vmatpush1.msra.mxu0 0.0
    %2480 = vmatprep.subr.mxu0 0.0
    %2481 = vmatpush1.msra.mxu0 0.0
    %2482 = vmatprep.subr.mxu0 0.0
    %2483 = vmatpush1.msra.mxu0 0.0
    %2484 = vmatprep.subr.mxu0 0.0
    %2485 = vmatpush1.msra.mxu0 0.0
    %2486 = vmatprep.subr.mxu0 0.0
    %2487 = vmatpush1.msra.mxu0 0.0
    %2488 = vmatprep.subr.mxu0 0.0
    %2489 = vmatpush1.msra.mxu0 0.0
    %2490 = vmatprep.subr.mxu0 0.0
    %2491 = vmatpush1.msra.mxu0 0.0
    %2492 = vmatprep.subr.mxu0 0.0
    %2493 = vmatpush1.msra.mxu0 0.0
    %2494 = vmatprep.subr.mxu0 0.0
    %2495 = vmatpush1.msra.mxu0 0.0
    %2496 = vmatprep.subr.mxu0 0.0
    %2497 = vmatpush1.msra.mxu0 0.0
    %2498 = vmatprep.subr.mxu0 0.0
    %2499 = vmatpush1.msra.mxu0 0.0
    %2500 = vmatprep.subr.mxu0 0.0
    %2501 = vmatpush1.msra.mxu0 0.0
    %2502 = vmatprep.subr.mxu0 0.0
    %2503 = vmatpush1.msra.mxu0 0.0
    %2504 = vmatprep.subr.mxu0 0.0
    %2505 = vmatpush1.msra.mxu0 0.0
    %2506 = vmatprep.subr.mxu0 0.0
    %2507 = vmatpush1.msra.mxu0 0.0
    %2508 = vmatprep.subr.mxu0 0.0
    %2509 = vmatpush1.msra.mxu0 0.0
    %2510 = vmatprep.mubr.f32.mxu0 0.0
    %2511 = vmatmul.mubr.f32.gmra.mrb[0].mxu0 %v2444
    %v2512 = vpop.f32.mrb[0].mxu0
    %v2513 = vadd.f32 %v26, %v2512
    %v2514 = vpop.f32.mrb[0].mxu0
    %2515 = vdwg.mxu0
    %v2516 = vtanh.pop %v2513
    %v2518 = vsel %vm112, %v2516, 0
    %2520 = vmatprep.subr.mxu0 0.0
    %2521 = vmatpush1.msra.mxu0 %v27
    %2522 = vmatprep.subr.mxu0 0.0
    %2523 = vmatpush1.msra.mxu0 %v28
    %2524 = vmatprep.subr.mxu0 0.0
    %2525 = vmatpush1.msra.mxu0 %v29
    %2526 = vmatprep.subr.mxu0 0.0
    %2527 = vmatpush1.msra.mxu0 %v30
    %2528 = vmatprep.subr.mxu0 0.0
    %2529 = vmatpush1.msra.mxu0 0.0
    %2530 = vmatprep.subr.mxu0 0.0
    %2531 = vmatpush1.msra.mxu0 0.0
    %2532 = vmatprep.subr.mxu0 0.0
    %2533 = vmatpush1.msra.mxu0 0.0
    %2534 = vmatprep.subr.mxu0 0.0
    %2535 = vmatpush1.msra.mxu0 0.0
    %2536 = vmatprep.subr.mxu0 0.0
    %2537 = vmatpush1.msra.mxu0 0.0
    %2538 = vmatprep.subr.mxu0 0.0
    %2539 = vmatpush1.msra.mxu0 0.0
    %2540 = vmatprep.subr.mxu0 0.0
    %2541 = vmatpush1.msra.mxu0 0.0
    %2542 = vmatprep.subr.mxu0 0.0
    %2543 = vmatpush1.msra.mxu0 0.0
    %2544 = vmatprep.subr.mxu0 0.0
    %2545 = vmatpush1.msra.mxu0 0.0
    %2546 = vmatprep.subr.mxu0 0.0
    %2547 = vmatpush1.msra.mxu0 0.0
    %2548 = vmatprep.subr.mxu0 0.0
    %2549 = vmatpush1.msra.mxu0 0.0
    %2550 = vmatprep.subr.mxu0 0.0
    %2551 = vmatpush1.msra.mxu0 0.0
    %2552 = vmatprep.subr.mxu0 0.0
    %2553 = vmatpush1.msra.mxu0 0.0
    %2554 = vmatprep.subr.mxu0 0.0
    %2555 = vmatpush1.msra.mxu0 0.0
    %2556 = vmatprep.subr.mxu0 0.0
    %2557 = vmatpush1.msra.mxu0 0.0
    %2558 = vmatprep.subr.mxu0 0.0
    %2559 = vmatpush1.msra.mxu0 0.0
    %2560 = vmatprep.subr.mxu0 0.0
    %2561 = vmatpush1.msra.mxu0 0.0
    %2562 = vmatprep.subr.mxu0 0.0
    %2563 = vmatpush1.msra.mxu0 0.0
    %2564 = vmatprep.subr.mxu0 0.0
    %2565 = vmatpush1.msra.mxu0 0.0
    %2566 = vmatprep.subr.mxu0 0.0
    %2567 = vmatpush1.msra.mxu0 0.0
    %2568 = vmatprep.subr.mxu0 0.0
    %2569 = vmatpush1.msra.mxu0 0.0
    %2570 = vmatprep.subr.mxu0 0.0
    %2571 = vmatpush1.msra.mxu0 0.0
    %2572 = vmatprep.subr.mxu0 0.0
    %2573 = vmatpush1.msra.mxu0 0.0
    %2574 = vmatprep.subr.mxu0 0.0
    %2575 = vmatpush1.msra.mxu0 0.0
    %2576 = vmatprep.subr.mxu0 0.0
    %2577 = vmatpush1.msra.mxu0 0.0
    %2578 = vmatprep.subr.mxu0 0.0
    %2579 = vmatpush1.msra.mxu0 0.0
    %2580 = vmatprep.subr.mxu0 0.0
    %2581 = vmatpush1.msra.mxu0 0.0
    %2582 = vmatprep.subr.mxu0 0.0
    %2583 = vmatpush1.msra.mxu0 0.0
    %2584 = vmatprep.mubr.f32.mxu0 0.0
    %2585 = vmatmul.mubr.f32.gmra.mrb[0].mxu0 %v2518
    %v2586 = vpop.f32.mrb[0].mxu0
    %v2587 = vadd.f32 %v31, %v2586
    %v2588 = vpop.f32.mrb[0].mxu0
    %2589 = vdwg.mxu0
    %v2590 = vmul.f32 %v2587, 0.03125
    %v2591 = vadd.f32 %v2442, %v2590
    %v2593 = vsel %vm33, %v2591, 0
    %2595 = vmatprep.subr.mxu0 0.0
    %2596 = vmatpush1.msra.mxu0 %v21
    %2597 = vmatprep.subr.mxu0 0.0
    %2598 = vmatpush1.msra.mxu0 %v22
    %2599 = vmatprep.subr.mxu0 0.0
    %2600 = vmatpush1.msra.mxu0 %v23
    %2601 = vmatprep.subr.mxu0 0.0
    %2602 = vmatpush1.msra.mxu0 %v24
    %2603 = vmatprep.subr.mxu0 0.0
    %2604 = vmatpush1.msra.mxu0 %v39
    %2605 = vmatprep.subr.mxu0 0.0
    %2606 = vmatpush1.msra.mxu0 0.0
    %2607 = vmatprep.subr.mxu0 0.0
    %2608 = vmatpush1.msra.mxu0 0.0
    %2609 = vmatprep.subr.mxu0 0.0
    %2610 = vmatpush1.msra.mxu0 0.0
    %2611 = vmatprep.subr.mxu0 0.0
    %2612 = vmatpush1.msra.mxu0 0.0
    %2613 = vmatprep.subr.mxu0 0.0
    %2614 = vmatpush1.msra.mxu0 0.0
    %2615 = vmatprep.subr.mxu0 0.0
    %2616 = vmatpush1.msra.mxu0 0.0
    %2617 = vmatprep.subr.mxu0 0.0
    %2618 = vmatpush1.msra.mxu0 0.0
    %2619 = vmatprep.subr.mxu0 0.0
    %2620 = vmatpush1.msra.mxu0 0.0
    %2621 = vmatprep.subr.mxu0 0.0
    %2622 = vmatpush1.msra.mxu0 0.0
    %2623 = vmatprep.subr.mxu0 0.0
    %2624 = vmatpush1.msra.mxu0 0.0
    %2625 = vmatprep.subr.mxu0 0.0
    %2626 = vmatpush1.msra.mxu0 0.0
    %2627 = vmatprep.subr.mxu0 0.0
    %2628 = vmatpush1.msra.mxu0 0.0
    %2629 = vmatprep.subr.mxu0 0.0
    %2630 = vmatpush1.msra.mxu0 0.0
    %2631 = vmatprep.subr.mxu0 0.0
    %2632 = vmatpush1.msra.mxu0 0.0
    %2633 = vmatprep.subr.mxu0 0.0
    %2634 = vmatpush1.msra.mxu0 0.0
    %2635 = vmatprep.subr.mxu0 0.0
    %2636 = vmatpush1.msra.mxu0 0.0
    %2637 = vmatprep.subr.mxu0 0.0
    %2638 = vmatpush1.msra.mxu0 0.0
    %2639 = vmatprep.subr.mxu0 0.0
    %2640 = vmatpush1.msra.mxu0 0.0
    %2641 = vmatprep.subr.mxu0 0.0
    %2642 = vmatpush1.msra.mxu0 0.0
    %2643 = vmatprep.subr.mxu0 0.0
    %2644 = vmatpush1.msra.mxu0 0.0
    %2645 = vmatprep.subr.mxu0 0.0
    %2646 = vmatpush1.msra.mxu0 0.0
    %2647 = vmatprep.subr.mxu0 0.0
    %2648 = vmatpush1.msra.mxu0 0.0
    %2649 = vmatprep.subr.mxu0 0.0
    %2650 = vmatpush1.msra.mxu0 0.0
    %2651 = vmatprep.subr.mxu0 0.0
    %2652 = vmatpush1.msra.mxu0 0.0
    %2653 = vmatprep.subr.mxu0 0.0
    %2654 = vmatpush1.msra.mxu0 0.0
    %2655 = vmatprep.subr.mxu0 0.0
    %2656 = vmatpush1.msra.mxu0 0.0
    %2657 = vmatprep.subr.mxu0 0.0
    %2658 = vmatpush1.msra.mxu0 0.0
    %2659 = vmatprep.mubr.f32.mxu0 0.0
    %2660 = vmatmul.mubr.f32.gmra.mrb[0].mxu0 %v2593
    %v2661 = vpop.f32.mrb[0].mxu0
    %v2662 = vadd.f32 %v26, %v2661
    %v2663 = vpop.f32.mrb[0].mxu0
    %2664 = vdwg.mxu0
    %v2665 = vtanh.pop %v2662
    %v2667 = vsel %vm112, %v2665, 0
    %2669 = vmatprep.subr.mxu0 0.0
    %2670 = vmatpush1.msra.mxu0 %v27
    %2671 = vmatprep.subr.mxu0 0.0
    %2672 = vmatpush1.msra.mxu0 %v28
    %2673 = vmatprep.subr.mxu0 0.0
    %2674 = vmatpush1.msra.mxu0 %v29
    %2675 = vmatprep.subr.mxu0 0.0
    %2676 = vmatpush1.msra.mxu0 %v30
    %2677 = vmatprep.subr.mxu0 0.0
    %2678 = vmatpush1.msra.mxu0 0.0
    %2679 = vmatprep.subr.mxu0 0.0
    %2680 = vmatpush1.msra.mxu0 0.0
    %2681 = vmatprep.subr.mxu0 0.0
    %2682 = vmatpush1.msra.mxu0 0.0
    %2683 = vmatprep.subr.mxu0 0.0
    %2684 = vmatpush1.msra.mxu0 0.0
    %2685 = vmatprep.subr.mxu0 0.0
    %2686 = vmatpush1.msra.mxu0 0.0
    %2687 = vmatprep.subr.mxu0 0.0
    %2688 = vmatpush1.msra.mxu0 0.0
    %2689 = vmatprep.subr.mxu0 0.0
    %2690 = vmatpush1.msra.mxu0 0.0
    %2691 = vmatprep.subr.mxu0 0.0
    %2692 = vmatpush1.msra.mxu0 0.0
    %2693 = vmatprep.subr.mxu0 0.0
    %2694 = vmatpush1.msra.mxu0 0.0
    %2695 = vmatprep.subr.mxu0 0.0
    %2696 = vmatpush1.msra.mxu0 0.0
    %2697 = vmatprep.subr.mxu0 0.0
    %2698 = vmatpush1.msra.mxu0 0.0
    %2699 = vmatprep.subr.mxu0 0.0
    %2700 = vmatpush1.msra.mxu0 0.0
    %2701 = vmatprep.subr.mxu0 0.0
    %2702 = vmatpush1.msra.mxu0 0.0
    %2703 = vmatprep.subr.mxu0 0.0
    %2704 = vmatpush1.msra.mxu0 0.0
    %2705 = vmatprep.subr.mxu0 0.0
    %2706 = vmatpush1.msra.mxu0 0.0
    %2707 = vmatprep.subr.mxu0 0.0
    %2708 = vmatpush1.msra.mxu0 0.0
    %2709 = vmatprep.subr.mxu0 0.0
    %2710 = vmatpush1.msra.mxu0 0.0
    %2711 = vmatprep.subr.mxu0 0.0
    %2712 = vmatpush1.msra.mxu0 0.0
    %2713 = vmatprep.subr.mxu0 0.0
    %2714 = vmatpush1.msra.mxu0 0.0
    %2715 = vmatprep.subr.mxu0 0.0
    %2716 = vmatpush1.msra.mxu0 0.0
    %2717 = vmatprep.subr.mxu0 0.0
    %2718 = vmatpush1.msra.mxu0 0.0
    %2719 = vmatprep.subr.mxu0 0.0
    %2720 = vmatpush1.msra.mxu0 0.0
    %2721 = vmatprep.subr.mxu0 0.0
    %2722 = vmatpush1.msra.mxu0 0.0
    %2723 = vmatprep.subr.mxu0 0.0
    %2724 = vmatpush1.msra.mxu0 0.0
    %2725 = vmatprep.subr.mxu0 0.0
    %2726 = vmatpush1.msra.mxu0 0.0
    %2727 = vmatprep.subr.mxu0 0.0
    %2728 = vmatpush1.msra.mxu0 0.0
    %2729 = vmatprep.subr.mxu0 0.0
    %2730 = vmatpush1.msra.mxu0 0.0
    %2731 = vmatprep.subr.mxu0 0.0
    %2732 = vmatpush1.msra.mxu0 0.0
    %2733 = vmatprep.mubr.f32.mxu0 0.0
    %2734 = vmatmul.mubr.f32.gmra.mrb[0].mxu0 %v2667
    %v2735 = vpop.f32.mrb[0].mxu0
    %v2736 = vadd.f32 %v31, %v2735
    %v2737 = vpop.f32.mrb[0].mxu0
    %2738 = vdwg.mxu0
    %v2739 = vmul.f32 %v2736, 0.03125
    %v2740 = vadd.f32 %v2442, %v2739
    %v2742 = vsel %vm33, %v2740, 0
    %2744 = vmatprep.subr.mxu0 0.0
    %2745 = vmatpush1.msra.mxu0 %v21
    %2746 = vmatprep.subr.mxu0 0.0
    %2747 = vmatpush1.msra.mxu0 %v22
    %2748 = vmatprep.subr.mxu0 0.0
    %2749 = vmatpush1.msra.mxu0 %v23
    %2750 = vmatprep.subr.mxu0 0.0
    %2751 = vmatpush1.msra.mxu0 %v24
    %2752 = vmatprep.subr.mxu0 0.0
    %2753 = vmatpush1.msra.mxu0 %v39
    %2754 = vmatprep.subr.mxu0 0.0
    %2755 = vmatpush1.msra.mxu0 0.0
    %2756 = vmatprep.subr.mxu0 0.0
    %2757 = vmatpush1.msra.mxu0 0.0
    %2758 = vmatprep.subr.mxu0 0.0
    %2759 = vmatpush1.msra.mxu0 0.0
    %2760 = vmatprep.subr.mxu0 0.0
    %2761 = vmatpush1.msra.mxu0 0.0
    %2762 = vmatprep.subr.mxu0 0.0
    %2763 = vmatpush1.msra.mxu0 0.0
    %2764 = vmatprep.subr.mxu0 0.0
    %2765 = vmatpush1.msra.mxu0 0.0
    %2766 = vmatprep.subr.mxu0 0.0
    %2767 = vmatpush1.msra.mxu0 0.0
    %2768 = vmatprep.subr.mxu0 0.0
    %2769 = vmatpush1.msra.mxu0 0.0
    %2770 = vmatprep.subr.mxu0 0.0
    %2771 = vmatpush1.msra.mxu0 0.0
    %2772 = vmatprep.subr.mxu0 0.0
    %2773 = vmatpush1.msra.mxu0 0.0
    %2774 = vmatprep.subr.mxu0 0.0
    %2775 = vmatpush1.msra.mxu0 0.0
    %2776 = vmatprep.subr.mxu0 0.0
    %2777 = vmatpush1.msra.mxu0 0.0
    %2778 = vmatprep.subr.mxu0 0.0
    %2779 = vmatpush1.msra.mxu0 0.0
    %2780 = vmatprep.subr.mxu0 0.0
    %2781 = vmatpush1.msra.mxu0 0.0
    %2782 = vmatprep.subr.mxu0 0.0
    %2783 = vmatpush1.msra.mxu0 0.0
    %2784 = vmatprep.subr.mxu0 0.0
    %2785 = vmatpush1.msra.mxu0 0.0
    %2786 = vmatprep.subr.mxu0 0.0
    %2787 = vmatpush1.msra.mxu0 0.0
    %2788 = vmatprep.subr.mxu0 0.0
    %2789 = vmatpush1.msra.mxu0 0.0
    %2790 = vmatprep.subr.mxu0 0.0
    %2791 = vmatpush1.msra.mxu0 0.0
    %2792 = vmatprep.subr.mxu0 0.0
    %2793 = vmatpush1.msra.mxu0 0.0
    %2794 = vmatprep.subr.mxu0 0.0
    %2795 = vmatpush1.msra.mxu0 0.0
    %2796 = vmatprep.subr.mxu0 0.0
    %2797 = vmatpush1.msra.mxu0 0.0
    %2798 = vmatprep.subr.mxu0 0.0
    %2799 = vmatpush1.msra.mxu0 0.0
    %2800 = vmatprep.subr.mxu0 0.0
    %2801 = vmatpush1.msra.mxu0 0.0
    %2802 = vmatprep.subr.mxu0 0.0
    %2803 = vmatpush1.msra.mxu0 0.0
    %2804 = vmatprep.subr.mxu0 0.0
    %2805 = vmatpush1.msra.mxu0 0.0
    %2806 = vmatprep.subr.mxu0 0.0
    %2807 = vmatpush1.msra.mxu0 0.0
    %2808 = vmatprep.mubr.f32.mxu0 0.0
    %2809 = vmatmul.mubr.f32.gmra.mrb[0].mxu0 %v2742
    %v2810 = vpop.f32.mrb[0].mxu0
    %v2811 = vadd.f32 %v26, %v2810
    %v2812 = vpop.f32.mrb[0].mxu0
    %2813 = vdwg.mxu0
    %v2814 = vtanh.pop %v2811
    %v2816 = vsel %vm112, %v2814, 0
    %2818 = vmatprep.subr.mxu0 0.0
    %2819 = vmatpush1.msra.mxu0 %v27
    %2820 = vmatprep.subr.mxu0 0.0
    %2821 = vmatpush1.msra.mxu0 %v28
    %2822 = vmatprep.subr.mxu0 0.0
    %2823 = vmatpush1.msra.mxu0 %v29
    %2824 = vmatprep.subr.mxu0 0.0
    %2825 = vmatpush1.msra.mxu0 %v30
    %2826 = vmatprep.subr.mxu0 0.0
    %2827 = vmatpush1.msra.mxu0 0.0
    %2828 = vmatprep.subr.mxu0 0.0
    %2829 = vmatpush1.msra.mxu0 0.0
    %2830 = vmatprep.subr.mxu0 0.0
    %2831 = vmatpush1.msra.mxu0 0.0
    %2832 = vmatprep.subr.mxu0 0.0
    %2833 = vmatpush1.msra.mxu0 0.0
    %2834 = vmatprep.subr.mxu0 0.0
    %2835 = vmatpush1.msra.mxu0 0.0
    %2836 = vmatprep.subr.mxu0 0.0
    %2837 = vmatpush1.msra.mxu0 0.0
    %2838 = vmatprep.subr.mxu0 0.0
    %2839 = vmatpush1.msra.mxu0 0.0
    %2840 = vmatprep.subr.mxu0 0.0
    %2841 = vmatpush1.msra.mxu0 0.0
    %2842 = vmatprep.subr.mxu0 0.0
    %2843 = vmatpush1.msra.mxu0 0.0
    %2844 = vmatprep.subr.mxu0 0.0
    %2845 = vmatpush1.msra.mxu0 0.0
    %2846 = vmatprep.subr.mxu0 0.0
    %2847 = vmatpush1.msra.mxu0 0.0
    %2848 = vmatprep.subr.mxu0 0.0
    %2849 = vmatpush1.msra.mxu0 0.0
    %2850 = vmatprep.subr.mxu0 0.0
    %2851 = vmatpush1.msra.mxu0 0.0
    %2852 = vmatprep.subr.mxu0 0.0
    %2853 = vmatpush1.msra.mxu0 0.0
    %2854 = vmatprep.subr.mxu0 0.0
    %2855 = vmatpush1.msra.mxu0 0.0
    %2856 = vmatprep.subr.mxu0 0.0
    %2857 = vmatpush1.msra.mxu0 0.0
    %2858 = vmatprep.subr.mxu0 0.0
    %2859 = vmatpush1.msra.mxu0 0.0
    %2860 = vmatprep.subr.mxu0 0.0
    %2861 = vmatpush1.msra.mxu0 0.0
    %2862 = vmatprep.subr.mxu0 0.0
    %2863 = vmatpush1.msra.mxu0 0.0
    %2864 = vmatprep.subr.mxu0 0.0
    %2865 = vmatpush1.msra.mxu0 0.0
    %2866 = vmatprep.subr.mxu0 0.0
    %2867 = vmatpush1.msra.mxu0 0.0
    %2868 = vmatprep.subr.mxu0 0.0
    %2869 = vmatpush1.msra.mxu0 0.0
    %2870 = vmatprep.subr.mxu0 0.0
    %2871 = vmatpush1.msra.mxu0 0.0
    %2872 = vmatprep.subr.mxu0 0.0
    %2873 = vmatpush1.msra.mxu0 0.0
    %2874 = vmatprep.subr.mxu0 0.0
    %2875 = vmatpush1.msra.mxu0 0.0
    %2876 = vmatprep.subr.mxu0 0.0
    %2877 = vmatpush1.msra.mxu0 0.0
    %2878 = vmatprep.subr.mxu0 0.0
    %2879 = vmatpush1.msra.mxu0 0.0
    %2880 = vmatprep.subr.mxu0 0.0
    %2881 = vmatpush1.msra.mxu0 0.0
    %2882 = vmatprep.mubr.f32.mxu0 0.0
    %2883 = vmatmul.mubr.f32.gmra.mrb[0].mxu0 %v2816
    %v2884 = vpop.f32.mrb[0].mxu0
    %v2885 = vadd.f32 %v31, %v2884
    %v2886 = vpop.f32.mrb[0].mxu0
    %2887 = vdwg.mxu0
    %v2888 = vmul.f32 %v2885, 0.0625
    %v2889 = vadd.f32 %v2442, %v2888
    %v2891 = vsel %vm33, %v2889, 0
    %2893 = vmatprep.subr.mxu0 0.0
    %2894 = vmatpush1.msra.mxu0 %v21
    %2895 = vmatprep.subr.mxu0 0.0
    %2896 = vmatpush1.msra.mxu0 %v22
    %2897 = vmatprep.subr.mxu0 0.0
    %2898 = vmatpush1.msra.mxu0 %v23
    %2899 = vmatprep.subr.mxu0 0.0
    %2900 = vmatpush1.msra.mxu0 %v24
    %2901 = vmatprep.subr.mxu0 0.0
    %2902 = vmatpush1.msra.mxu0 %v39
    %2903 = vmatprep.subr.mxu0 0.0
    %2904 = vmatpush1.msra.mxu0 0.0
    %2905 = vmatprep.subr.mxu0 0.0
    %2906 = vmatpush1.msra.mxu0 0.0
    %2907 = vmatprep.subr.mxu0 0.0
    %2908 = vmatpush1.msra.mxu0 0.0
    %2909 = vmatprep.subr.mxu0 0.0
    %2910 = vmatpush1.msra.mxu0 0.0
    %2911 = vmatprep.subr.mxu0 0.0
    %2912 = vmatpush1.msra.mxu0 0.0
    %2913 = vmatprep.subr.mxu0 0.0
    %2914 = vmatpush1.msra.mxu0 0.0
    %2915 = vmatprep.subr.mxu0 0.0
    %2916 = vmatpush1.msra.mxu0 0.0
    %2917 = vmatprep.subr.mxu0 0.0
    %2918 = vmatpush1.msra.mxu0 0.0
    %2919 = vmatprep.subr.mxu0 0.0
    %2920 = vmatpush1.msra.mxu0 0.0
    %2921 = vmatprep.subr.mxu0 0.0
    %2922 = vmatpush1.msra.mxu0 0.0
    %2923 = vmatprep.subr.mxu0 0.0
    %2924 = vmatpush1.msra.mxu0 0.0
    %2925 = vmatprep.subr.mxu0 0.0
    %2926 = vmatpush1.msra.mxu0 0.0
    %2927 = vmatprep.subr.mxu0 0.0
    %2928 = vmatpush1.msra.mxu0 0.0
    %2929 = vmatprep.subr.mxu0 0.0
    %2930 = vmatpush1.msra.mxu0 0.0
    %2931 = vmatprep.subr.mxu0 0.0
    %2932 = vmatpush1.msra.mxu0 0.0
    %2933 = vmatprep.subr.mxu0 0.0
    %2934 = vmatpush1.msra.mxu0 0.0
    %2935 = vmatprep.subr.mxu0 0.0
    %2936 = vmatpush1.msra.mxu0 0.0
    %2937 = vmatprep.subr.mxu0 0.0
    %2938 = vmatpush1.msra.mxu0 0.0
    %2939 = vmatprep.subr.mxu0 0.0
    %2940 = vmatpush1.msra.mxu0 0.0
    %2941 = vmatprep.subr.mxu0 0.0
    %2942 = vmatpush1.msra.mxu0 0.0
    %2943 = vmatprep.subr.mxu0 0.0
    %2944 = vmatpush1.msra.mxu0 0.0
    %2945 = vmatprep.subr.mxu0 0.0
    %2946 = vmatpush1.msra.mxu0 0.0
    %2947 = vmatprep.subr.mxu0 0.0
    %2948 = vmatpush1.msra.mxu0 0.0
    %2949 = vmatprep.subr.mxu0 0.0
    %2950 = vmatpush1.msra.mxu0 0.0
    %2951 = vmatprep.subr.mxu0 0.0
    %2952 = vmatpush1.msra.mxu0 0.0
    %2953 = vmatprep.subr.mxu0 0.0
    %2954 = vmatpush1.msra.mxu0 0.0
    %2955 = vmatprep.subr.mxu0 0.0
    %2956 = vmatpush1.msra.mxu0 0.0
    %2957 = vmatprep.mubr.f32.mxu0 0.0
    %2958 = vmatmul.mubr.f32.gmra.mrb[0].mxu0 %v2891
    %v2959 = vpop.f32.mrb[0].mxu0
    %v2960 = vadd.f32 %v26, %v2959
    %v2961 = vpop.f32.mrb[0].mxu0
    %2962 = vdwg.mxu0
    %v2963 = vtanh.pop %v2960
    %v2965 = vsel %vm112, %v2963, 0
    %2967 = vmatprep.subr.mxu0 0.0
    %2968 = vmatpush1.msra.mxu0 %v27
    %2969 = vmatprep.subr.mxu0 0.0
    %2970 = vmatpush1.msra.mxu0 %v28
    %2971 = vmatprep.subr.mxu0 0.0
    %2972 = vmatpush1.msra.mxu0 %v29
    %2973 = vmatprep.subr.mxu0 0.0
    %2974 = vmatpush1.msra.mxu0 %v30
    %2975 = vmatprep.subr.mxu0 0.0
    %2976 = vmatpush1.msra.mxu0 0.0
    %2977 = vmatprep.subr.mxu0 0.0
    %2978 = vmatpush1.msra.mxu0 0.0
    %2979 = vmatprep.subr.mxu0 0.0
    %2980 = vmatpush1.msra.mxu0 0.0
    %2981 = vmatprep.subr.mxu0 0.0
    %2982 = vmatpush1.msra.mxu0 0.0
    %2983 = vmatprep.subr.mxu0 0.0
    %2984 = vmatpush1.msra.mxu0 0.0
    %2985 = vmatprep.subr.mxu0 0.0
    %2986 = vmatpush1.msra.mxu0 0.0
    %2987 = vmatprep.subr.mxu0 0.0
    %2988 = vmatpush1.msra.mxu0 0.0
    %2989 = vmatprep.subr.mxu0 0.0
    %2990 = vmatpush1.msra.mxu0 0.0
    %2991 = vmatprep.subr.mxu0 0.0
    %2992 = vmatpush1.msra.mxu0 0.0
    %2993 = vmatprep.subr.mxu0 0.0
    %2994 = vmatpush1.msra.mxu0 0.0
    %2995 = vmatprep.subr.mxu0 0.0
    %2996 = vmatpush1.msra.mxu0 0.0
    %2997 = vmatprep.subr.mxu0 0.0
    %2998 = vmatpush1.msra.mxu0 0.0
    %2999 = vmatprep.subr.mxu0 0.0
    %3000 = vmatpush1.msra.mxu0 0.0
    %3001 = vmatprep.subr.mxu0 0.0
    %3002 = vmatpush1.msra.mxu0 0.0
    %3003 = vmatprep.subr.mxu0 0.0
    %3004 = vmatpush1.msra.mxu0 0.0
    %3005 = vmatprep.subr.mxu0 0.0
    %3006 = vmatpush1.msra.mxu0 0.0
    %3007 = vmatprep.subr.mxu0 0.0
    %3008 = vmatpush1.msra.mxu0 0.0
    %3009 = vmatprep.subr.mxu0 0.0
    %3010 = vmatpush1.msra.mxu0 0.0
    %3011 = vmatprep.subr.mxu0 0.0
    %3012 = vmatpush1.msra.mxu0 0.0
    %3013 = vmatprep.subr.mxu0 0.0
    %3014 = vmatpush1.msra.mxu0 0.0
    %3015 = vmatprep.subr.mxu0 0.0
    %3016 = vmatpush1.msra.mxu0 0.0
    %3017 = vmatprep.subr.mxu0 0.0
    %3018 = vmatpush1.msra.mxu0 0.0
    %3019 = vmatprep.subr.mxu0 0.0
    %3020 = vmatpush1.msra.mxu0 0.0
    %3021 = vmatprep.subr.mxu0 0.0
    %3022 = vmatpush1.msra.mxu0 0.0
    %3023 = vmatprep.subr.mxu0 0.0
    %3024 = vmatpush1.msra.mxu0 0.0
    %3025 = vmatprep.subr.mxu0 0.0
    %3026 = vmatpush1.msra.mxu0 0.0
    %3027 = vmatprep.subr.mxu0 0.0
    %3028 = vmatpush1.msra.mxu0 0.0
    %3029 = vmatprep.subr.mxu0 0.0
    %3030 = vmatpush1.msra.mxu0 0.0
    %3031 = vmatprep.mubr.f32.mxu0 0.0
    %3032 = vmatmul.mubr.f32.gmra.mrb[0].mxu0 %v2965
    %v3033 = vpop.f32.mrb[0].mxu0
    %v3034 = vadd.f32 %v31, %v3033
    %v3035 = vpop.f32.mrb[0].mxu0
    %3036 = vdwg.mxu0
    %v3037 = vmul.f32 %v2736, 2.0
    %v3038 = vadd.f32 %v2587, %v3037
    %v3039 = vmul.f32 %v2885, 2.0
    %v3040 = vadd.f32 %v3038, %v3039
    %v3041 = vadd.f32 %v3040, %v3034
    %v3042 = vmul.f32 %v3041, 0.010416667
    %v3043 = vadd.f32 %v2442, %v3042
    %v3045 = vsel %vm33, %v3043, 0
    %3047 = vmatprep.subr.mxu0 0.0
    %3048 = vmatpush1.msra.mxu0 %v21
    %3049 = vmatprep.subr.mxu0 0.0
    %3050 = vmatpush1.msra.mxu0 %v22
    %3051 = vmatprep.subr.mxu0 0.0
    %3052 = vmatpush1.msra.mxu0 %v23
    %3053 = vmatprep.subr.mxu0 0.0
    %3054 = vmatpush1.msra.mxu0 %v24
    %3055 = vmatprep.subr.mxu0 0.0
    %3056 = vmatpush1.msra.mxu0 %v39
    %3057 = vmatprep.subr.mxu0 0.0
    %3058 = vmatpush1.msra.mxu0 0.0
    %3059 = vmatprep.subr.mxu0 0.0
    %3060 = vmatpush1.msra.mxu0 0.0
    %3061 = vmatprep.subr.mxu0 0.0
    %3062 = vmatpush1.msra.mxu0 0.0
    %3063 = vmatprep.subr.mxu0 0.0
    %3064 = vmatpush1.msra.mxu0 0.0
    %3065 = vmatprep.subr.mxu0 0.0
    %3066 = vmatpush1.msra.mxu0 0.0
    %3067 = vmatprep.subr.mxu0 0.0
    %3068 = vmatpush1.msra.mxu0 0.0
    %3069 = vmatprep.subr.mxu0 0.0
    %3070 = vmatpush1.msra.mxu0 0.0
    %3071 = vmatprep.subr.mxu0 0.0
    %3072 = vmatpush1.msra.mxu0 0.0
    %3073 = vmatprep.subr.mxu0 0.0
    %3074 = vmatpush1.msra.mxu0 0.0
    %3075 = vmatprep.subr.mxu0 0.0
    %3076 = vmatpush1.msra.mxu0 0.0
    %3077 = vmatprep.subr.mxu0 0.0
    %3078 = vmatpush1.msra.mxu0 0.0
    %3079 = vmatprep.subr.mxu0 0.0
    %3080 = vmatpush1.msra.mxu0 0.0
    %3081 = vmatprep.subr.mxu0 0.0
    %3082 = vmatpush1.msra.mxu0 0.0
    %3083 = vmatprep.subr.mxu0 0.0
    %3084 = vmatpush1.msra.mxu0 0.0
    %3085 = vmatprep.subr.mxu0 0.0
    %3086 = vmatpush1.msra.mxu0 0.0
    %3087 = vmatprep.subr.mxu0 0.0
    %3088 = vmatpush1.msra.mxu0 0.0
    %3089 = vmatprep.subr.mxu0 0.0
    %3090 = vmatpush1.msra.mxu0 0.0
    %3091 = vmatprep.subr.mxu0 0.0
    %3092 = vmatpush1.msra.mxu0 0.0
    %3093 = vmatprep.subr.mxu0 0.0
    %3094 = vmatpush1.msra.mxu0 0.0
    %3095 = vmatprep.subr.mxu0 0.0
    %3096 = vmatpush1.msra.mxu0 0.0
    %3097 = vmatprep.subr.mxu0 0.0
    %3098 = vmatpush1.msra.mxu0 0.0
    %3099 = vmatprep.subr.mxu0 0.0
    %3100 = vmatpush1.msra.mxu0 0.0
    %3101 = vmatprep.subr.mxu0 0.0
    %3102 = vmatpush1.msra.mxu0 0.0
    %3103 = vmatprep.subr.mxu0 0.0
    %3104 = vmatpush1.msra.mxu0 0.0
    %3105 = vmatprep.subr.mxu0 0.0
    %3106 = vmatpush1.msra.mxu0 0.0
    %3107 = vmatprep.subr.mxu0 0.0
    %3108 = vmatpush1.msra.mxu0 0.0
    %3109 = vmatprep.subr.mxu0 0.0
    %3110 = vmatpush1.msra.mxu0 0.0
    %3111 = vmatprep.mubr.f32.mxu0 0.0
    %3112 = vmatmul.mubr.f32.gmra.mrb[0].mxu0 %v3045
    %v3113 = vpop.f32.mrb[0].mxu0
    %v3114 = vadd.f32 %v26, %v3113
    %v3115 = vpop.f32.mrb[0].mxu0
    %3116 = vdwg.mxu0
    %v3117 = vtanh.pop %v3114
    %v3119 = vsel %vm112, %v3117, 0
    %3121 = vmatprep.subr.mxu0 0.0
    %3122 = vmatpush1.msra.mxu0 %v27
    %3123 = vmatprep.subr.mxu0 0.0
    %3124 = vmatpush1.msra.mxu0 %v28
    %3125 = vmatprep.subr.mxu0 0.0
    %3126 = vmatpush1.msra.mxu0 %v29
    %3127 = vmatprep.subr.mxu0 0.0
    %3128 = vmatpush1.msra.mxu0 %v30
    %3129 = vmatprep.subr.mxu0 0.0
    %3130 = vmatpush1.msra.mxu0 0.0
    %3131 = vmatprep.subr.mxu0 0.0
    %3132 = vmatpush1.msra.mxu0 0.0
    %3133 = vmatprep.subr.mxu0 0.0
    %3134 = vmatpush1.msra.mxu0 0.0
    %3135 = vmatprep.subr.mxu0 0.0
    %3136 = vmatpush1.msra.mxu0 0.0
    %3137 = vmatprep.subr.mxu0 0.0
    %3138 = vmatpush1.msra.mxu0 0.0
    %3139 = vmatprep.subr.mxu0 0.0
    %3140 = vmatpush1.msra.mxu0 0.0
    %3141 = vmatprep.subr.mxu0 0.0
    %3142 = vmatpush1.msra.mxu0 0.0
    %3143 = vmatprep.subr.mxu0 0.0
    %3144 = vmatpush1.msra.mxu0 0.0
    %3145 = vmatprep.subr.mxu0 0.0
    %3146 = vmatpush1.msra.mxu0 0.0
    %3147 = vmatprep.subr.mxu0 0.0
    %3148 = vmatpush1.msra.mxu0 0.0
    %3149 = vmatprep.subr.mxu0 0.0
    %3150 = vmatpush1.msra.mxu0 0.0
    %3151 = vmatprep.subr.mxu0 0.0
    %3152 = vmatpush1.msra.mxu0 0.0
    %3153 = vmatprep.subr.mxu0 0.0
    %3154 = vmatpush1.msra.mxu0 0.0
    %3155 = vmatprep.subr.mxu0 0.0
    %3156 = vmatpush1.msra.mxu0 0.0
    %3157 = vmatprep.subr.mxu0 0.0
    %3158 = vmatpush1.msra.mxu0 0.0
    %3159 = vmatprep.subr.mxu0 0.0
    %3160 = vmatpush1.msra.mxu0 0.0
    %3161 = vmatprep.subr.mxu0 0.0
    %3162 = vmatpush1.msra.mxu0 0.0
    %3163 = vmatprep.subr.mxu0 0.0
    %3164 = vmatpush1.msra.mxu0 0.0
    %3165 = vmatprep.subr.mxu0 0.0
    %3166 = vmatpush1.msra.mxu0 0.0
    %3167 = vmatprep.subr.mxu0 0.0
    %3168 = vmatpush1.msra.mxu0 0.0
    %3169 = vmatprep.subr.mxu0 0.0
    %3170 = vmatpush1.msra.mxu0 0.0
    %3171 = vmatprep.subr.mxu0 0.0
    %3172 = vmatpush1.msra.mxu0 0.0
    %3173 = vmatprep.subr.mxu0 0.0
    %3174 = vmatpush1.msra.mxu0 0.0
    %3175 = vmatprep.subr.mxu0 0.0
    %3176 = vmatpush1.msra.mxu0 0.0
    %3177 = vmatprep.subr.mxu0 0.0
    %3178 = vmatpush1.msra.mxu0 0.0
    %3179 = vmatprep.subr.mxu0 0.0
    %3180 = vmatpush1.msra.mxu0 0.0
    %3181 = vmatprep.subr.mxu0 0.0
    %3182 = vmatpush1.msra.mxu0 0.0
    %3183 = vmatprep.subr.mxu0 0.0
    %3184 = vmatpush1.msra.mxu0 0.0
    %3185 = vmatprep.mubr.f32.mxu0 0.0
    %3186 = vmatmul.mubr.f32.gmra.mrb[0].mxu0 %v3119
    %v3187 = vpop.f32.mrb[0].mxu0
    %v3188 = vadd.f32 %v31, %v3187
    %v3189 = vpop.f32.mrb[0].mxu0
    %3190 = vdwg.mxu0
    %v3191 = vmul.f32 %v3188, 0.03125
    %v3192 = vadd.f32 %v3043, %v3191
    %v3194 = vsel %vm33, %v3192, 0
    %3196 = vmatprep.subr.mxu0 0.0
    %3197 = vmatpush1.msra.mxu0 %v21
    %3198 = vmatprep.subr.mxu0 0.0
    %3199 = vmatpush1.msra.mxu0 %v22
    %3200 = vmatprep.subr.mxu0 0.0
    %3201 = vmatpush1.msra.mxu0 %v23
    %3202 = vmatprep.subr.mxu0 0.0
    %3203 = vmatpush1.msra.mxu0 %v24
    %3204 = vmatprep.subr.mxu0 0.0
    %3205 = vmatpush1.msra.mxu0 %v39
    %3206 = vmatprep.subr.mxu0 0.0
    %3207 = vmatpush1.msra.mxu0 0.0
    %3208 = vmatprep.subr.mxu0 0.0
    %3209 = vmatpush1.msra.mxu0 0.0
    %3210 = vmatprep.subr.mxu0 0.0
    %3211 = vmatpush1.msra.mxu0 0.0
    %3212 = vmatprep.subr.mxu0 0.0
    %3213 = vmatpush1.msra.mxu0 0.0
    %3214 = vmatprep.subr.mxu0 0.0
    %3215 = vmatpush1.msra.mxu0 0.0
    %3216 = vmatprep.subr.mxu0 0.0
    %3217 = vmatpush1.msra.mxu0 0.0
    %3218 = vmatprep.subr.mxu0 0.0
    %3219 = vmatpush1.msra.mxu0 0.0
    %3220 = vmatprep.subr.mxu0 0.0
    %3221 = vmatpush1.msra.mxu0 0.0
    %3222 = vmatprep.subr.mxu0 0.0
    %3223 = vmatpush1.msra.mxu0 0.0
    %3224 = vmatprep.subr.mxu0 0.0
    %3225 = vmatpush1.msra.mxu0 0.0
    %3226 = vmatprep.subr.mxu0 0.0
    %3227 = vmatpush1.msra.mxu0 0.0
    %3228 = vmatprep.subr.mxu0 0.0
    %3229 = vmatpush1.msra.mxu0 0.0
    %3230 = vmatprep.subr.mxu0 0.0
    %3231 = vmatpush1.msra.mxu0 0.0
    %3232 = vmatprep.subr.mxu0 0.0
    %3233 = vmatpush1.msra.mxu0 0.0
    %3234 = vmatprep.subr.mxu0 0.0
    %3235 = vmatpush1.msra.mxu0 0.0
    %3236 = vmatprep.subr.mxu0 0.0
    %3237 = vmatpush1.msra.mxu0 0.0
    %3238 = vmatprep.subr.mxu0 0.0
    %3239 = vmatpush1.msra.mxu0 0.0
    %3240 = vmatprep.subr.mxu0 0.0
    %3241 = vmatpush1.msra.mxu0 0.0
    %3242 = vmatprep.subr.mxu0 0.0
    %3243 = vmatpush1.msra.mxu0 0.0
    %3244 = vmatprep.subr.mxu0 0.0
    %3245 = vmatpush1.msra.mxu0 0.0
    %3246 = vmatprep.subr.mxu0 0.0
    %3247 = vmatpush1.msra.mxu0 0.0
    %3248 = vmatprep.subr.mxu0 0.0
    %3249 = vmatpush1.msra.mxu0 0.0
    %3250 = vmatprep.subr.mxu0 0.0
    %3251 = vmatpush1.msra.mxu0 0.0
    %3252 = vmatprep.subr.mxu0 0.0
    %3253 = vmatpush1.msra.mxu0 0.0
    %3254 = vmatprep.subr.mxu0 0.0
    %3255 = vmatpush1.msra.mxu0 0.0
    %3256 = vmatprep.subr.mxu0 0.0
    %3257 = vmatpush1.msra.mxu0 0.0
    %3258 = vmatprep.subr.mxu0 0.0
    %3259 = vmatpush1.msra.mxu0 0.0
    %3260 = vmatprep.mubr.f32.mxu0 0.0
    %3261 = vmatmul.mubr.f32.gmra.mrb[0].mxu0 %v3194
    %v3262 = vpop.f32.mrb[0].mxu0
    %v3263 = vadd.f32 %v26, %v3262
    %v3264 = vpop.f32.mrb[0].mxu0
    %3265 = vdwg.mxu0
    %v3266 = vtanh.pop %v3263
    %v3268 = vsel %vm112, %v3266, 0
    %3270 = vmatprep.subr.mxu0 0.0
    %3271 = vmatpush1.msra.mxu0 %v27
    %3272 = vmatprep.subr.mxu0 0.0
    %3273 = vmatpush1.msra.mxu0 %v28
    %3274 = vmatprep.subr.mxu0 0.0
    %3275 = vmatpush1.msra.mxu0 %v29
    %3276 = vmatprep.subr.mxu0 0.0
    %3277 = vmatpush1.msra.mxu0 %v30
    %3278 = vmatprep.subr.mxu0 0.0
    %3279 = vmatpush1.msra.mxu0 0.0
    %3280 = vmatprep.subr.mxu0 0.0
    %3281 = vmatpush1.msra.mxu0 0.0
    %3282 = vmatprep.subr.mxu0 0.0
    %3283 = vmatpush1.msra.mxu0 0.0
    %3284 = vmatprep.subr.mxu0 0.0
    %3285 = vmatpush1.msra.mxu0 0.0
    %3286 = vmatprep.subr.mxu0 0.0
    %3287 = vmatpush1.msra.mxu0 0.0
    %3288 = vmatprep.subr.mxu0 0.0
    %3289 = vmatpush1.msra.mxu0 0.0
    %3290 = vmatprep.subr.mxu0 0.0
    %3291 = vmatpush1.msra.mxu0 0.0
    %3292 = vmatprep.subr.mxu0 0.0
    %3293 = vmatpush1.msra.mxu0 0.0
    %3294 = vmatprep.subr.mxu0 0.0
    %3295 = vmatpush1.msra.mxu0 0.0
    %3296 = vmatprep.subr.mxu0 0.0
    %3297 = vmatpush1.msra.mxu0 0.0
    %3298 = vmatprep.subr.mxu0 0.0
    %3299 = vmatpush1.msra.mxu0 0.0
    %3300 = vmatprep.subr.mxu0 0.0
    %3301 = vmatpush1.msra.mxu0 0.0
    %3302 = vmatprep.subr.mxu0 0.0
    %3303 = vmatpush1.msra.mxu0 0.0
    %3304 = vmatprep.subr.mxu0 0.0
    %3305 = vmatpush1.msra.mxu0 0.0
    %3306 = vmatprep.subr.mxu0 0.0
    %3307 = vmatpush1.msra.mxu0 0.0
    %3308 = vmatprep.subr.mxu0 0.0
    %3309 = vmatpush1.msra.mxu0 0.0
    %3310 = vmatprep.subr.mxu0 0.0
    %3311 = vmatpush1.msra.mxu0 0.0
    %3312 = vmatprep.subr.mxu0 0.0
    %3313 = vmatpush1.msra.mxu0 0.0
    %3314 = vmatprep.subr.mxu0 0.0
    %3315 = vmatpush1.msra.mxu0 0.0
    %3316 = vmatprep.subr.mxu0 0.0
    %3317 = vmatpush1.msra.mxu0 0.0
    %3318 = vmatprep.subr.mxu0 0.0
    %3319 = vmatpush1.msra.mxu0 0.0
    %3320 = vmatprep.subr.mxu0 0.0
    %3321 = vmatpush1.msra.mxu0 0.0
    %3322 = vmatprep.subr.mxu0 0.0
    %3323 = vmatpush1.msra.mxu0 0.0
    %3324 = vmatprep.subr.mxu0 0.0
    %3325 = vmatpush1.msra.mxu0 0.0
    %3326 = vmatprep.subr.mxu0 0.0
    %3327 = vmatpush1.msra.mxu0 0.0
    %3328 = vmatprep.subr.mxu0 0.0
    %3329 = vmatpush1.msra.mxu0 0.0
    %3330 = vmatprep.subr.mxu0 0.0
    %3331 = vmatpush1.msra.mxu0 0.0
    %3332 = vmatprep.subr.mxu0 0.0
    %3333 = vmatpush1.msra.mxu0 0.0
    %3334 = vmatprep.mubr.f32.mxu0 0.0
    %3335 = vmatmul.mubr.f32.gmra.mrb[0].mxu0 %v3268
    %v3336 = vpop.f32.mrb[0].mxu0
    %v3337 = vadd.f32 %v31, %v3336
    %v3338 = vpop.f32.mrb[0].mxu0
    %3339 = vdwg.mxu0
    %v3340 = vmul.f32 %v3337, 0.03125
    %v3341 = vadd.f32 %v3043, %v3340
    %v3343 = vsel %vm33, %v3341, 0
    %3345 = vmatprep.subr.mxu0 0.0
    %3346 = vmatpush1.msra.mxu0 %v21
    %3347 = vmatprep.subr.mxu0 0.0
    %3348 = vmatpush1.msra.mxu0 %v22
    %3349 = vmatprep.subr.mxu0 0.0
    %3350 = vmatpush1.msra.mxu0 %v23
    %3351 = vmatprep.subr.mxu0 0.0
    %3352 = vmatpush1.msra.mxu0 %v24
    %3353 = vmatprep.subr.mxu0 0.0
    %3354 = vmatpush1.msra.mxu0 %v39
    %3355 = vmatprep.subr.mxu0 0.0
    %3356 = vmatpush1.msra.mxu0 0.0
    %3357 = vmatprep.subr.mxu0 0.0
    %3358 = vmatpush1.msra.mxu0 0.0
    %3359 = vmatprep.subr.mxu0 0.0
    %3360 = vmatpush1.msra.mxu0 0.0
    %3361 = vmatprep.subr.mxu0 0.0
    %3362 = vmatpush1.msra.mxu0 0.0
    %3363 = vmatprep.subr.mxu0 0.0
    %3364 = vmatpush1.msra.mxu0 0.0
    %3365 = vmatprep.subr.mxu0 0.0
    %3366 = vmatpush1.msra.mxu0 0.0
    %3367 = vmatprep.subr.mxu0 0.0
    %3368 = vmatpush1.msra.mxu0 0.0
    %3369 = vmatprep.subr.mxu0 0.0
    %3370 = vmatpush1.msra.mxu0 0.0
    %3371 = vmatprep.subr.mxu0 0.0
    %3372 = vmatpush1.msra.mxu0 0.0
    %3373 = vmatprep.subr.mxu0 0.0
    %3374 = vmatpush1.msra.mxu0 0.0
    %3375 = vmatprep.subr.mxu0 0.0
    %3376 = vmatpush1.msra.mxu0 0.0
    %3377 = vmatprep.subr.mxu0 0.0
    %3378 = vmatpush1.msra.mxu0 0.0
    %3379 = vmatprep.subr.mxu0 0.0
    %3380 = vmatpush1.msra.mxu0 0.0
    %3381 = vmatprep.subr.mxu0 0.0
    %3382 = vmatpush1.msra.mxu0 0.0
    %3383 = vmatprep.subr.mxu0 0.0
    %3384 = vmatpush1.msra.mxu0 0.0
    %3385 = vmatprep.subr.mxu0 0.0
    %3386 = vmatpush1.msra.mxu0 0.0
    %3387 = vmatprep.subr.mxu0 0.0
    %3388 = vmatpush1.msra.mxu0 0.0
    %3389 = vmatprep.subr.mxu0 0.0
    %3390 = vmatpush1.msra.mxu0 0.0
    %3391 = vmatprep.subr.mxu0 0.0
    %3392 = vmatpush1.msra.mxu0 0.0
    %3393 = vmatprep.subr.mxu0 0.0
    %3394 = vmatpush1.msra.mxu0 0.0
    %3395 = vmatprep.subr.mxu0 0.0
    %3396 = vmatpush1.msra.mxu0 0.0
    %3397 = vmatprep.subr.mxu0 0.0
    %3398 = vmatpush1.msra.mxu0 0.0
    %3399 = vmatprep.subr.mxu0 0.0
    %3400 = vmatpush1.msra.mxu0 0.0
    %3401 = vmatprep.subr.mxu0 0.0
    %3402 = vmatpush1.msra.mxu0 0.0
    %3403 = vmatprep.subr.mxu0 0.0
    %3404 = vmatpush1.msra.mxu0 0.0
    %3405 = vmatprep.subr.mxu0 0.0
    %3406 = vmatpush1.msra.mxu0 0.0
    %3407 = vmatprep.subr.mxu0 0.0
    %3408 = vmatpush1.msra.mxu0 0.0
    %3409 = vmatprep.mubr.f32.mxu0 0.0
    %3410 = vmatmul.mubr.f32.gmra.mrb[0].mxu0 %v3343
    %v3411 = vpop.f32.mrb[0].mxu0
    %v3412 = vadd.f32 %v26, %v3411
    %v3413 = vpop.f32.mrb[0].mxu0
    %3414 = vdwg.mxu0
    %v3415 = vtanh.pop %v3412
    %v3417 = vsel %vm112, %v3415, 0
    %3419 = vmatprep.subr.mxu0 0.0
    %3420 = vmatpush1.msra.mxu0 %v27
    %3421 = vmatprep.subr.mxu0 0.0
    %3422 = vmatpush1.msra.mxu0 %v28
    %3423 = vmatprep.subr.mxu0 0.0
    %3424 = vmatpush1.msra.mxu0 %v29
    %3425 = vmatprep.subr.mxu0 0.0
    %3426 = vmatpush1.msra.mxu0 %v30
    %3427 = vmatprep.subr.mxu0 0.0
    %3428 = vmatpush1.msra.mxu0 0.0
    %3429 = vmatprep.subr.mxu0 0.0
    %3430 = vmatpush1.msra.mxu0 0.0
    %3431 = vmatprep.subr.mxu0 0.0
    %3432 = vmatpush1.msra.mxu0 0.0
    %3433 = vmatprep.subr.mxu0 0.0
    %3434 = vmatpush1.msra.mxu0 0.0
    %3435 = vmatprep.subr.mxu0 0.0
    %3436 = vmatpush1.msra.mxu0 0.0
    %3437 = vmatprep.subr.mxu0 0.0
    %3438 = vmatpush1.msra.mxu0 0.0
    %3439 = vmatprep.subr.mxu0 0.0
    %3440 = vmatpush1.msra.mxu0 0.0
    %3441 = vmatprep.subr.mxu0 0.0
    %3442 = vmatpush1.msra.mxu0 0.0
    %3443 = vmatprep.subr.mxu0 0.0
    %3444 = vmatpush1.msra.mxu0 0.0
    %3445 = vmatprep.subr.mxu0 0.0
    %3446 = vmatpush1.msra.mxu0 0.0
    %3447 = vmatprep.subr.mxu0 0.0
    %3448 = vmatpush1.msra.mxu0 0.0
    %3449 = vmatprep.subr.mxu0 0.0
    %3450 = vmatpush1.msra.mxu0 0.0
    %3451 = vmatprep.subr.mxu0 0.0
    %3452 = vmatpush1.msra.mxu0 0.0
    %3453 = vmatprep.subr.mxu0 0.0
    %3454 = vmatpush1.msra.mxu0 0.0
    %3455 = vmatprep.subr.mxu0 0.0
    %3456 = vmatpush1.msra.mxu0 0.0
    %3457 = vmatprep.subr.mxu0 0.0
    %3458 = vmatpush1.msra.mxu0 0.0
    %3459 = vmatprep.subr.mxu0 0.0
    %3460 = vmatpush1.msra.mxu0 0.0
    %3461 = vmatprep.subr.mxu0 0.0
    %3462 = vmatpush1.msra.mxu0 0.0
    %3463 = vmatprep.subr.mxu0 0.0
    %3464 = vmatpush1.msra.mxu0 0.0
    %3465 = vmatprep.subr.mxu0 0.0
    %3466 = vmatpush1.msra.mxu0 0.0
    %3467 = vmatprep.subr.mxu0 0.0
    %3468 = vmatpush1.msra.mxu0 0.0
    %3469 = vmatprep.subr.mxu0 0.0
    %3470 = vmatpush1.msra.mxu0 0.0
    %3471 = vmatprep.subr.mxu0 0.0
    %3472 = vmatpush1.msra.mxu0 0.0
    %3473 = vmatprep.subr.mxu0 0.0
    %3474 = vmatpush1.msra.mxu0 0.0
    %3475 = vmatprep.subr.mxu0 0.0
    %3476 = vmatpush1.msra.mxu0 0.0
    %3477 = vmatprep.subr.mxu0 0.0
    %3478 = vmatpush1.msra.mxu0 0.0
    %3479 = vmatprep.subr.mxu0 0.0
    %3480 = vmatpush1.msra.mxu0 0.0
    %3481 = vmatprep.subr.mxu0 0.0
    %3482 = vmatpush1.msra.mxu0 0.0
    %3483 = vmatprep.mubr.f32.mxu0 0.0
    %3484 = vmatmul.mubr.f32.gmra.mrb[0].mxu0 %v3417
    %v3485 = vpop.f32.mrb[0].mxu0
    %v3486 = vadd.f32 %v31, %v3485
    %v3487 = vpop.f32.mrb[0].mxu0
    %3488 = vdwg.mxu0
    %v3489 = vmul.f32 %v3486, 0.0625
    %v3490 = vadd.f32 %v3043, %v3489
    %v3492 = vsel %vm33, %v3490, 0
    %3494 = vmatprep.subr.mxu0 0.0
    %3495 = vmatpush1.msra.mxu0 %v21
    %3496 = vmatprep.subr.mxu0 0.0
    %3497 = vmatpush1.msra.mxu0 %v22
    %3498 = vmatprep.subr.mxu0 0.0
    %3499 = vmatpush1.msra.mxu0 %v23
    %3500 = vmatprep.subr.mxu0 0.0
    %3501 = vmatpush1.msra.mxu0 %v24
    %3502 = vmatprep.subr.mxu0 0.0
    %3503 = vmatpush1.msra.mxu0 %v39
    %3504 = vmatprep.subr.mxu0 0.0
    %3505 = vmatpush1.msra.mxu0 0.0
    %3506 = vmatprep.subr.mxu0 0.0
    %3507 = vmatpush1.msra.mxu0 0.0
    %3508 = vmatprep.subr.mxu0 0.0
    %3509 = vmatpush1.msra.mxu0 0.0
    %3510 = vmatprep.subr.mxu0 0.0
    %3511 = vmatpush1.msra.mxu0 0.0
    %3512 = vmatprep.subr.mxu0 0.0
    %3513 = vmatpush1.msra.mxu0 0.0
    %3514 = vmatprep.subr.mxu0 0.0
    %3515 = vmatpush1.msra.mxu0 0.0
    %3516 = vmatprep.subr.mxu0 0.0
    %3517 = vmatpush1.msra.mxu0 0.0
    %3518 = vmatprep.subr.mxu0 0.0
    %3519 = vmatpush1.msra.mxu0 0.0
    %3520 = vmatprep.subr.mxu0 0.0
    %3521 = vmatpush1.msra.mxu0 0.0
    %3522 = vmatprep.subr.mxu0 0.0
    %3523 = vmatpush1.msra.mxu0 0.0
    %3524 = vmatprep.subr.mxu0 0.0
    %3525 = vmatpush1.msra.mxu0 0.0
    %3526 = vmatprep.subr.mxu0 0.0
    %3527 = vmatpush1.msra.mxu0 0.0
    %3528 = vmatprep.subr.mxu0 0.0
    %3529 = vmatpush1.msra.mxu0 0.0
    %3530 = vmatprep.subr.mxu0 0.0
    %3531 = vmatpush1.msra.mxu0 0.0
    %3532 = vmatprep.subr.mxu0 0.0
    %3533 = vmatpush1.msra.mxu0 0.0
    %3534 = vmatprep.subr.mxu0 0.0
    %3535 = vmatpush1.msra.mxu0 0.0
    %3536 = vmatprep.subr.mxu0 0.0
    %3537 = vmatpush1.msra.mxu0 0.0
    %3538 = vmatprep.subr.mxu0 0.0
    %3539 = vmatpush1.msra.mxu0 0.0
    %3540 = vmatprep.subr.mxu0 0.0
    %3541 = vmatpush1.msra.mxu0 0.0
    %3542 = vmatprep.subr.mxu0 0.0
    %3543 = vmatpush1.msra.mxu0 0.0
    %3544 = vmatprep.subr.mxu0 0.0
    %3545 = vmatpush1.msra.mxu0 0.0
    %3546 = vmatprep.subr.mxu0 0.0
    %3547 = vmatpush1.msra.mxu0 0.0
    %3548 = vmatprep.subr.mxu0 0.0
    %3549 = vmatpush1.msra.mxu0 0.0
    %3550 = vmatprep.subr.mxu0 0.0
    %3551 = vmatpush1.msra.mxu0 0.0
    %3552 = vmatprep.subr.mxu0 0.0
    %3553 = vmatpush1.msra.mxu0 0.0
    %3554 = vmatprep.subr.mxu0 0.0
    %3555 = vmatpush1.msra.mxu0 0.0
    %3556 = vmatprep.subr.mxu0 0.0
    %3557 = vmatpush1.msra.mxu0 0.0
    %3558 = vmatprep.mubr.f32.mxu0 0.0
    %3559 = vmatmul.mubr.f32.gmra.mrb[0].mxu0 %v3492
    %v3560 = vpop.f32.mrb[0].mxu0
    %v3561 = vadd.f32 %v26, %v3560
    %v3562 = vpop.f32.mrb[0].mxu0
    %3563 = vdwg.mxu0
    %v3564 = vtanh.pop %v3561
    %v3566 = vsel %vm112, %v3564, 0
    %3568 = vmatprep.subr.mxu0 0.0
    %3569 = vmatpush1.msra.mxu0 %v27
    %3570 = vmatprep.subr.mxu0 0.0
    %3571 = vmatpush1.msra.mxu0 %v28
    %3572 = vmatprep.subr.mxu0 0.0
    %3573 = vmatpush1.msra.mxu0 %v29
    %3574 = vmatprep.subr.mxu0 0.0
    %3575 = vmatpush1.msra.mxu0 %v30
    %3576 = vmatprep.subr.mxu0 0.0
    %3577 = vmatpush1.msra.mxu0 0.0
    %3578 = vmatprep.subr.mxu0 0.0
    %3579 = vmatpush1.msra.mxu0 0.0
    %3580 = vmatprep.subr.mxu0 0.0
    %3581 = vmatpush1.msra.mxu0 0.0
    %3582 = vmatprep.subr.mxu0 0.0
    %3583 = vmatpush1.msra.mxu0 0.0
    %3584 = vmatprep.subr.mxu0 0.0
    %3585 = vmatpush1.msra.mxu0 0.0
    %3586 = vmatprep.subr.mxu0 0.0
    %3587 = vmatpush1.msra.mxu0 0.0
    %3588 = vmatprep.subr.mxu0 0.0
    %3589 = vmatpush1.msra.mxu0 0.0
    %3590 = vmatprep.subr.mxu0 0.0
    %3591 = vmatpush1.msra.mxu0 0.0
    %3592 = vmatprep.subr.mxu0 0.0
    %3593 = vmatpush1.msra.mxu0 0.0
    %3594 = vmatprep.subr.mxu0 0.0
    %3595 = vmatpush1.msra.mxu0 0.0
    %3596 = vmatprep.subr.mxu0 0.0
    %3597 = vmatpush1.msra.mxu0 0.0
    %3598 = vmatprep.subr.mxu0 0.0
    %3599 = vmatpush1.msra.mxu0 0.0
    %3600 = vmatprep.subr.mxu0 0.0
    %3601 = vmatpush1.msra.mxu0 0.0
    %3602 = vmatprep.subr.mxu0 0.0
    %3603 = vmatpush1.msra.mxu0 0.0
    %3604 = vmatprep.subr.mxu0 0.0
    %3605 = vmatpush1.msra.mxu0 0.0
    %3606 = vmatprep.subr.mxu0 0.0
    %3607 = vmatpush1.msra.mxu0 0.0
    %3608 = vmatprep.subr.mxu0 0.0
    %3609 = vmatpush1.msra.mxu0 0.0
    %3610 = vmatprep.subr.mxu0 0.0
    %3611 = vmatpush1.msra.mxu0 0.0
    %3612 = vmatprep.subr.mxu0 0.0
    %3613 = vmatpush1.msra.mxu0 0.0
    %3614 = vmatprep.subr.mxu0 0.0
    %3615 = vmatpush1.msra.mxu0 0.0
    %3616 = vmatprep.subr.mxu0 0.0
    %3617 = vmatpush1.msra.mxu0 0.0
    %3618 = vmatprep.subr.mxu0 0.0
    %3619 = vmatpush1.msra.mxu0 0.0
    %3620 = vmatprep.subr.mxu0 0.0
    %3621 = vmatpush1.msra.mxu0 0.0
    %3622 = vmatprep.subr.mxu0 0.0
    %3623 = vmatpush1.msra.mxu0 0.0
    %3624 = vmatprep.subr.mxu0 0.0
    %3625 = vmatpush1.msra.mxu0 0.0
    %3626 = vmatprep.subr.mxu0 0.0
    %3627 = vmatpush1.msra.mxu0 0.0
    %3628 = vmatprep.subr.mxu0 0.0
    %3629 = vmatpush1.msra.mxu0 0.0
    %3630 = vmatprep.subr.mxu0 0.0
    %3631 = vmatpush1.msra.mxu0 0.0
    %3632 = vmatprep.mubr.f32.mxu0 0.0
    %3633 = vmatmul.mubr.f32.gmra.mrb[0].mxu0 %v3566
    %v3634 = vpop.f32.mrb[0].mxu0
    %v3635 = vadd.f32 %v31, %v3634
    %v3636 = vpop.f32.mrb[0].mxu0
    %3637 = vdwg.mxu0
    %v3638 = vmul.f32 %v3337, 2.0
    %v3639 = vadd.f32 %v3188, %v3638
    %v3640 = vmul.f32 %v3486, 2.0
    %v3641 = vadd.f32 %v3639, %v3640
    %v3642 = vadd.f32 %v3641, %v3635
    %v3643 = vmul.f32 %v3642, 0.010416667
    %v3644 = vadd.f32 %v3043, %v3643
    %v3646 = vsel %vm33, %v3644, 0
    %3648 = vmatprep.subr.mxu0 0.0
    %3649 = vmatpush1.msra.mxu0 %v21
    %3650 = vmatprep.subr.mxu0 0.0
    %3651 = vmatpush1.msra.mxu0 %v22
    %3652 = vmatprep.subr.mxu0 0.0
    %3653 = vmatpush1.msra.mxu0 %v23
    %3654 = vmatprep.subr.mxu0 0.0
    %3655 = vmatpush1.msra.mxu0 %v24
    %3656 = vmatprep.subr.mxu0 0.0
    %3657 = vmatpush1.msra.mxu0 %v39
    %3658 = vmatprep.subr.mxu0 0.0
    %3659 = vmatpush1.msra.mxu0 0.0
    %3660 = vmatprep.subr.mxu0 0.0
    %3661 = vmatpush1.msra.mxu0 0.0
    %3662 = vmatprep.subr.mxu0 0.0
    %3663 = vmatpush1.msra.mxu0 0.0
    %3664 = vmatprep.subr.mxu0 0.0
    %3665 = vmatpush1.msra.mxu0 0.0
    %3666 = vmatprep.subr.mxu0 0.0
    %3667 = vmatpush1.msra.mxu0 0.0
    %3668 = vmatprep.subr.mxu0 0.0
    %3669 = vmatpush1.msra.mxu0 0.0
    %3670 = vmatprep.subr.mxu0 0.0
    %3671 = vmatpush1.msra.mxu0 0.0
    %3672 = vmatprep.subr.mxu0 0.0
    %3673 = vmatpush1.msra.mxu0 0.0
    %3674 = vmatprep.subr.mxu0 0.0
    %3675 = vmatpush1.msra.mxu0 0.0
    %3676 = vmatprep.subr.mxu0 0.0
    %3677 = vmatpush1.msra.mxu0 0.0
    %3678 = vmatprep.subr.mxu0 0.0
    %3679 = vmatpush1.msra.mxu0 0.0
    %3680 = vmatprep.subr.mxu0 0.0
    %3681 = vmatpush1.msra.mxu0 0.0
    %3682 = vmatprep.subr.mxu0 0.0
    %3683 = vmatpush1.msra.mxu0 0.0
    %3684 = vmatprep.subr.mxu0 0.0
    %3685 = vmatpush1.msra.mxu0 0.0
    %3686 = vmatprep.subr.mxu0 0.0
    %3687 = vmatpush1.msra.mxu0 0.0
    %3688 = vmatprep.subr.mxu0 0.0
    %3689 = vmatpush1.msra.mxu0 0.0
    %3690 = vmatprep.subr.mxu0 0.0
    %3691 = vmatpush1.msra.mxu0 0.0
    %3692 = vmatprep.subr.mxu0 0.0
    %3693 = vmatpush1.msra.mxu0 0.0
    %3694 = vmatprep.subr.mxu0 0.0
    %3695 = vmatpush1.msra.mxu0 0.0
    %3696 = vmatprep.subr.mxu0 0.0
    %3697 = vmatpush1.msra.mxu0 0.0
    %3698 = vmatprep.subr.mxu0 0.0
    %3699 = vmatpush1.msra.mxu0 0.0
    %3700 = vmatprep.subr.mxu0 0.0
    %3701 = vmatpush1.msra.mxu0 0.0
    %3702 = vmatprep.subr.mxu0 0.0
    %3703 = vmatpush1.msra.mxu0 0.0
    %3704 = vmatprep.subr.mxu0 0.0
    %3705 = vmatpush1.msra.mxu0 0.0
    %3706 = vmatprep.subr.mxu0 0.0
    %3707 = vmatpush1.msra.mxu0 0.0
    %3708 = vmatprep.subr.mxu0 0.0
    %3709 = vmatpush1.msra.mxu0 0.0
    %3710 = vmatprep.subr.mxu0 0.0
    %3711 = vmatpush1.msra.mxu0 0.0
    %3712 = vmatprep.mubr.f32.mxu0 0.0
    %3713 = vmatmul.mubr.f32.gmra.mrb[0].mxu0 %v3646
    %v3714 = vpop.f32.mrb[0].mxu0
    %v3715 = vadd.f32 %v26, %v3714
    %v3716 = vpop.f32.mrb[0].mxu0
    %3717 = vdwg.mxu0
    %v3718 = vtanh.pop %v3715
    %v3720 = vsel %vm112, %v3718, 0
    %3722 = vmatprep.subr.mxu0 0.0
    %3723 = vmatpush1.msra.mxu0 %v27
    %3724 = vmatprep.subr.mxu0 0.0
    %3725 = vmatpush1.msra.mxu0 %v28
    %3726 = vmatprep.subr.mxu0 0.0
    %3727 = vmatpush1.msra.mxu0 %v29
    %3728 = vmatprep.subr.mxu0 0.0
    %3729 = vmatpush1.msra.mxu0 %v30
    %3730 = vmatprep.subr.mxu0 0.0
    %3731 = vmatpush1.msra.mxu0 0.0
    %3732 = vmatprep.subr.mxu0 0.0
    %3733 = vmatpush1.msra.mxu0 0.0
    %3734 = vmatprep.subr.mxu0 0.0
    %3735 = vmatpush1.msra.mxu0 0.0
    %3736 = vmatprep.subr.mxu0 0.0
    %3737 = vmatpush1.msra.mxu0 0.0
    %3738 = vmatprep.subr.mxu0 0.0
    %3739 = vmatpush1.msra.mxu0 0.0
    %3740 = vmatprep.subr.mxu0 0.0
    %3741 = vmatpush1.msra.mxu0 0.0
    %3742 = vmatprep.subr.mxu0 0.0
    %3743 = vmatpush1.msra.mxu0 0.0
    %3744 = vmatprep.subr.mxu0 0.0
    %3745 = vmatpush1.msra.mxu0 0.0
    %3746 = vmatprep.subr.mxu0 0.0
    %3747 = vmatpush1.msra.mxu0 0.0
    %3748 = vmatprep.subr.mxu0 0.0
    %3749 = vmatpush1.msra.mxu0 0.0
    %3750 = vmatprep.subr.mxu0 0.0
    %3751 = vmatpush1.msra.mxu0 0.0
    %3752 = vmatprep.subr.mxu0 0.0
    %3753 = vmatpush1.msra.mxu0 0.0
    %3754 = vmatprep.subr.mxu0 0.0
    %3755 = vmatpush1.msra.mxu0 0.0
    %3756 = vmatprep.subr.mxu0 0.0
    %3757 = vmatpush1.msra.mxu0 0.0
    %3758 = vmatprep.subr.mxu0 0.0
    %3759 = vmatpush1.msra.mxu0 0.0
    %3760 = vmatprep.subr.mxu0 0.0
    %3761 = vmatpush1.msra.mxu0 0.0
    %3762 = vmatprep.subr.mxu0 0.0
    %3763 = vmatpush1.msra.mxu0 0.0
    %3764 = vmatprep.subr.mxu0 0.0
    %3765 = vmatpush1.msra.mxu0 0.0
    %3766 = vmatprep.subr.mxu0 0.0
    %3767 = vmatpush1.msra.mxu0 0.0
    %3768 = vmatprep.subr.mxu0 0.0
    %3769 = vmatpush1.msra.mxu0 0.0
    %3770 = vmatprep.subr.mxu0 0.0
    %3771 = vmatpush1.msra.mxu0 0.0
    %3772 = vmatprep.subr.mxu0 0.0
    %3773 = vmatpush1.msra.mxu0 0.0
    %3774 = vmatprep.subr.mxu0 0.0
    %3775 = vmatpush1.msra.mxu0 0.0
    %3776 = vmatprep.subr.mxu0 0.0
    %3777 = vmatpush1.msra.mxu0 0.0
    %3778 = vmatprep.subr.mxu0 0.0
    %3779 = vmatpush1.msra.mxu0 0.0
    %3780 = vmatprep.subr.mxu0 0.0
    %3781 = vmatpush1.msra.mxu0 0.0
    %3782 = vmatprep.subr.mxu0 0.0
    %3783 = vmatpush1.msra.mxu0 0.0
    %3784 = vmatprep.subr.mxu0 0.0
    %3785 = vmatpush1.msra.mxu0 0.0
    %3786 = vmatprep.mubr.f32.mxu0 0.0
    %3787 = vmatmul.mubr.f32.gmra.mrb[0].mxu0 %v3720
    %v3788 = vpop.f32.mrb[0].mxu0
    %v3789 = vadd.f32 %v31, %v3788
    %v3790 = vpop.f32.mrb[0].mxu0
    %3791 = vdwg.mxu0
    %v3792 = vmul.f32 %v3789, 0.03125
    %v3793 = vadd.f32 %v3644, %v3792
    %v3795 = vsel %vm33, %v3793, 0
    %3797 = vmatprep.subr.mxu0 0.0
    %3798 = vmatpush1.msra.mxu0 %v21
    %3799 = vmatprep.subr.mxu0 0.0
    %3800 = vmatpush1.msra.mxu0 %v22
    %3801 = vmatprep.subr.mxu0 0.0
    %3802 = vmatpush1.msra.mxu0 %v23
    %3803 = vmatprep.subr.mxu0 0.0
    %3804 = vmatpush1.msra.mxu0 %v24
    %3805 = vmatprep.subr.mxu0 0.0
    %3806 = vmatpush1.msra.mxu0 %v39
    %3807 = vmatprep.subr.mxu0 0.0
    %3808 = vmatpush1.msra.mxu0 0.0
    %3809 = vmatprep.subr.mxu0 0.0
    %3810 = vmatpush1.msra.mxu0 0.0
    %3811 = vmatprep.subr.mxu0 0.0
    %3812 = vmatpush1.msra.mxu0 0.0
    %3813 = vmatprep.subr.mxu0 0.0
    %3814 = vmatpush1.msra.mxu0 0.0
    %3815 = vmatprep.subr.mxu0 0.0
    %3816 = vmatpush1.msra.mxu0 0.0
    %3817 = vmatprep.subr.mxu0 0.0
    %3818 = vmatpush1.msra.mxu0 0.0
    %3819 = vmatprep.subr.mxu0 0.0
    %3820 = vmatpush1.msra.mxu0 0.0
    %3821 = vmatprep.subr.mxu0 0.0
    %3822 = vmatpush1.msra.mxu0 0.0
    %3823 = vmatprep.subr.mxu0 0.0
    %3824 = vmatpush1.msra.mxu0 0.0
    %3825 = vmatprep.subr.mxu0 0.0
    %3826 = vmatpush1.msra.mxu0 0.0
    %3827 = vmatprep.subr.mxu0 0.0
    %3828 = vmatpush1.msra.mxu0 0.0
    %3829 = vmatprep.subr.mxu0 0.0
    %3830 = vmatpush1.msra.mxu0 0.0
    %3831 = vmatprep.subr.mxu0 0.0
    %3832 = vmatpush1.msra.mxu0 0.0
    %3833 = vmatprep.subr.mxu0 0.0
    %3834 = vmatpush1.msra.mxu0 0.0
    %3835 = vmatprep.subr.mxu0 0.0
    %3836 = vmatpush1.msra.mxu0 0.0
    %3837 = vmatprep.subr.mxu0 0.0
    %3838 = vmatpush1.msra.mxu0 0.0
    %3839 = vmatprep.subr.mxu0 0.0
    %3840 = vmatpush1.msra.mxu0 0.0
    %3841 = vmatprep.subr.mxu0 0.0
    %3842 = vmatpush1.msra.mxu0 0.0
    %3843 = vmatprep.subr.mxu0 0.0
    %3844 = vmatpush1.msra.mxu0 0.0
    %3845 = vmatprep.subr.mxu0 0.0
    %3846 = vmatpush1.msra.mxu0 0.0
    %3847 = vmatprep.subr.mxu0 0.0
    %3848 = vmatpush1.msra.mxu0 0.0
    %3849 = vmatprep.subr.mxu0 0.0
    %3850 = vmatpush1.msra.mxu0 0.0
    %3851 = vmatprep.subr.mxu0 0.0
    %3852 = vmatpush1.msra.mxu0 0.0
    %3853 = vmatprep.subr.mxu0 0.0
    %3854 = vmatpush1.msra.mxu0 0.0
    %3855 = vmatprep.subr.mxu0 0.0
    %3856 = vmatpush1.msra.mxu0 0.0
    %3857 = vmatprep.subr.mxu0 0.0
    %3858 = vmatpush1.msra.mxu0 0.0
    %3859 = vmatprep.subr.mxu0 0.0
    %3860 = vmatpush1.msra.mxu0 0.0
    %3861 = vmatprep.mubr.f32.mxu0 0.0
    %3862 = vmatmul.mubr.f32.gmra.mrb[0].mxu0 %v3795
    %v3863 = vpop.f32.mrb[0].mxu0
    %v3864 = vadd.f32 %v26, %v3863
    %v3865 = vpop.f32.mrb[0].mxu0
    %3866 = vdwg.mxu0
    %v3867 = vtanh.pop %v3864
    %v3869 = vsel %vm112, %v3867, 0
    %3871 = vmatprep.subr.mxu0 0.0
    %3872 = vmatpush1.msra.mxu0 %v27
    %3873 = vmatprep.subr.mxu0 0.0
    %3874 = vmatpush1.msra.mxu0 %v28
    %3875 = vmatprep.subr.mxu0 0.0
    %3876 = vmatpush1.msra.mxu0 %v29
    %3877 = vmatprep.subr.mxu0 0.0
    %3878 = vmatpush1.msra.mxu0 %v30
    %3879 = vmatprep.subr.mxu0 0.0
    %3880 = vmatpush1.msra.mxu0 0.0
    %3881 = vmatprep.subr.mxu0 0.0
    %3882 = vmatpush1.msra.mxu0 0.0
    %3883 = vmatprep.subr.mxu0 0.0
    %3884 = vmatpush1.msra.mxu0 0.0
    %3885 = vmatprep.subr.mxu0 0.0
    %3886 = vmatpush1.msra.mxu0 0.0
    %3887 = vmatprep.subr.mxu0 0.0
    %3888 = vmatpush1.msra.mxu0 0.0
    %3889 = vmatprep.subr.mxu0 0.0
    %3890 = vmatpush1.msra.mxu0 0.0
    %3891 = vmatprep.subr.mxu0 0.0
    %3892 = vmatpush1.msra.mxu0 0.0
    %3893 = vmatprep.subr.mxu0 0.0
    %3894 = vmatpush1.msra.mxu0 0.0
    %3895 = vmatprep.subr.mxu0 0.0
    %3896 = vmatpush1.msra.mxu0 0.0
    %3897 = vmatprep.subr.mxu0 0.0
    %3898 = vmatpush1.msra.mxu0 0.0
    %3899 = vmatprep.subr.mxu0 0.0
    %3900 = vmatpush1.msra.mxu0 0.0
    %3901 = vmatprep.subr.mxu0 0.0
    %3902 = vmatpush1.msra.mxu0 0.0
    %3903 = vmatprep.subr.mxu0 0.0
    %3904 = vmatpush1.msra.mxu0 0.0
    %3905 = vmatprep.subr.mxu0 0.0
    %3906 = vmatpush1.msra.mxu0 0.0
    %3907 = vmatprep.subr.mxu0 0.0
    %3908 = vmatpush1.msra.mxu0 0.0
    %3909 = vmatprep.subr.mxu0 0.0
    %3910 = vmatpush1.msra.mxu0 0.0
    %3911 = vmatprep.subr.mxu0 0.0
    %3912 = vmatpush1.msra.mxu0 0.0
    %3913 = vmatprep.subr.mxu0 0.0
    %3914 = vmatpush1.msra.mxu0 0.0
    %3915 = vmatprep.subr.mxu0 0.0
    %3916 = vmatpush1.msra.mxu0 0.0
    %3917 = vmatprep.subr.mxu0 0.0
    %3918 = vmatpush1.msra.mxu0 0.0
    %3919 = vmatprep.subr.mxu0 0.0
    %3920 = vmatpush1.msra.mxu0 0.0
    %3921 = vmatprep.subr.mxu0 0.0
    %3922 = vmatpush1.msra.mxu0 0.0
    %3923 = vmatprep.subr.mxu0 0.0
    %3924 = vmatpush1.msra.mxu0 0.0
    %3925 = vmatprep.subr.mxu0 0.0
    %3926 = vmatpush1.msra.mxu0 0.0
    %3927 = vmatprep.subr.mxu0 0.0
    %3928 = vmatpush1.msra.mxu0 0.0
    %3929 = vmatprep.subr.mxu0 0.0
    %3930 = vmatpush1.msra.mxu0 0.0
    %3931 = vmatprep.subr.mxu0 0.0
    %3932 = vmatpush1.msra.mxu0 0.0
    %3933 = vmatprep.subr.mxu0 0.0
    %3934 = vmatpush1.msra.mxu0 0.0
    %3935 = vmatprep.mubr.f32.mxu0 0.0
    %3936 = vmatmul.mubr.f32.gmra.mrb[0].mxu0 %v3869
    %v3937 = vpop.f32.mrb[0].mxu0
    %v3938 = vadd.f32 %v31, %v3937
    %v3939 = vpop.f32.mrb[0].mxu0
    %3940 = vdwg.mxu0
    %v3941 = vmul.f32 %v3938, 0.03125
    %v3942 = vadd.f32 %v3644, %v3941
    %v3944 = vsel %vm33, %v3942, 0
    %3946 = vmatprep.subr.mxu0 0.0
    %3947 = vmatpush1.msra.mxu0 %v21
    %3948 = vmatprep.subr.mxu0 0.0
    %3949 = vmatpush1.msra.mxu0 %v22
    %3950 = vmatprep.subr.mxu0 0.0
    %3951 = vmatpush1.msra.mxu0 %v23
    %3952 = vmatprep.subr.mxu0 0.0
    %3953 = vmatpush1.msra.mxu0 %v24
    %3954 = vmatprep.subr.mxu0 0.0
    %3955 = vmatpush1.msra.mxu0 %v39
    %3956 = vmatprep.subr.mxu0 0.0
    %3957 = vmatpush1.msra.mxu0 0.0
    %3958 = vmatprep.subr.mxu0 0.0
    %3959 = vmatpush1.msra.mxu0 0.0
    %3960 = vmatprep.subr.mxu0 0.0
    %3961 = vmatpush1.msra.mxu0 0.0
    %3962 = vmatprep.subr.mxu0 0.0
    %3963 = vmatpush1.msra.mxu0 0.0
    %3964 = vmatprep.subr.mxu0 0.0
    %3965 = vmatpush1.msra.mxu0 0.0
    %3966 = vmatprep.subr.mxu0 0.0
    %3967 = vmatpush1.msra.mxu0 0.0
    %3968 = vmatprep.subr.mxu0 0.0
    %3969 = vmatpush1.msra.mxu0 0.0
    %3970 = vmatprep.subr.mxu0 0.0
    %3971 = vmatpush1.msra.mxu0 0.0
    %3972 = vmatprep.subr.mxu0 0.0
    %3973 = vmatpush1.msra.mxu0 0.0
    %3974 = vmatprep.subr.mxu0 0.0
    %3975 = vmatpush1.msra.mxu0 0.0
    %3976 = vmatprep.subr.mxu0 0.0
    %3977 = vmatpush1.msra.mxu0 0.0
    %3978 = vmatprep.subr.mxu0 0.0
    %3979 = vmatpush1.msra.mxu0 0.0
    %3980 = vmatprep.subr.mxu0 0.0
    %3981 = vmatpush1.msra.mxu0 0.0
    %3982 = vmatprep.subr.mxu0 0.0
    %3983 = vmatpush1.msra.mxu0 0.0
    %3984 = vmatprep.subr.mxu0 0.0
    %3985 = vmatpush1.msra.mxu0 0.0
    %3986 = vmatprep.subr.mxu0 0.0
    %3987 = vmatpush1.msra.mxu0 0.0
    %3988 = vmatprep.subr.mxu0 0.0
    %3989 = vmatpush1.msra.mxu0 0.0
    %3990 = vmatprep.subr.mxu0 0.0
    %3991 = vmatpush1.msra.mxu0 0.0
    %3992 = vmatprep.subr.mxu0 0.0
    %3993 = vmatpush1.msra.mxu0 0.0
    %3994 = vmatprep.subr.mxu0 0.0
    %3995 = vmatpush1.msra.mxu0 0.0
    %3996 = vmatprep.subr.mxu0 0.0
    %3997 = vmatpush1.msra.mxu0 0.0
    %3998 = vmatprep.subr.mxu0 0.0
    %3999 = vmatpush1.msra.mxu0 0.0
    %4000 = vmatprep.subr.mxu0 0.0
    %4001 = vmatpush1.msra.mxu0 0.0
    %4002 = vmatprep.subr.mxu0 0.0
    %4003 = vmatpush1.msra.mxu0 0.0
    %4004 = vmatprep.subr.mxu0 0.0
    %4005 = vmatpush1.msra.mxu0 0.0
    %4006 = vmatprep.subr.mxu0 0.0
    %4007 = vmatpush1.msra.mxu0 0.0
    %4008 = vmatprep.subr.mxu0 0.0
    %4009 = vmatpush1.msra.mxu0 0.0
    %4010 = vmatprep.mubr.f32.mxu0 0.0
    %4011 = vmatmul.mubr.f32.gmra.mrb[0].mxu0 %v3944
    %v4012 = vpop.f32.mrb[0].mxu0
    %v4013 = vadd.f32 %v26, %v4012
    %v4014 = vpop.f32.mrb[0].mxu0
    %4015 = vdwg.mxu0
    %v4016 = vtanh.pop %v4013
    %v4018 = vsel %vm112, %v4016, 0
    %4020 = vmatprep.subr.mxu0 0.0
    %4021 = vmatpush1.msra.mxu0 %v27
    %4022 = vmatprep.subr.mxu0 0.0
    %4023 = vmatpush1.msra.mxu0 %v28
    %4024 = vmatprep.subr.mxu0 0.0
    %4025 = vmatpush1.msra.mxu0 %v29
    %4026 = vmatprep.subr.mxu0 0.0
    %4027 = vmatpush1.msra.mxu0 %v30
    %4028 = vmatprep.subr.mxu0 0.0
    %4029 = vmatpush1.msra.mxu0 0.0
    %4030 = vmatprep.subr.mxu0 0.0
    %4031 = vmatpush1.msra.mxu0 0.0
    %4032 = vmatprep.subr.mxu0 0.0
    %4033 = vmatpush1.msra.mxu0 0.0
    %4034 = vmatprep.subr.mxu0 0.0
    %4035 = vmatpush1.msra.mxu0 0.0
    %4036 = vmatprep.subr.mxu0 0.0
    %4037 = vmatpush1.msra.mxu0 0.0
    %4038 = vmatprep.subr.mxu0 0.0
    %4039 = vmatpush1.msra.mxu0 0.0
    %4040 = vmatprep.subr.mxu0 0.0
    %4041 = vmatpush1.msra.mxu0 0.0
    %4042 = vmatprep.subr.mxu0 0.0
    %4043 = vmatpush1.msra.mxu0 0.0
    %4044 = vmatprep.subr.mxu0 0.0
    %4045 = vmatpush1.msra.mxu0 0.0
    %4046 = vmatprep.subr.mxu0 0.0
    %4047 = vmatpush1.msra.mxu0 0.0
    %4048 = vmatprep.subr.mxu0 0.0
    %4049 = vmatpush1.msra.mxu0 0.0
    %4050 = vmatprep.subr.mxu0 0.0
    %4051 = vmatpush1.msra.mxu0 0.0
    %4052 = vmatprep.subr.mxu0 0.0
    %4053 = vmatpush1.msra.mxu0 0.0
    %4054 = vmatprep.subr.mxu0 0.0
    %4055 = vmatpush1.msra.mxu0 0.0
    %4056 = vmatprep.subr.mxu0 0.0
    %4057 = vmatpush1.msra.mxu0 0.0
    %4058 = vmatprep.subr.mxu0 0.0
    %4059 = vmatpush1.msra.mxu0 0.0
    %4060 = vmatprep.subr.mxu0 0.0
    %4061 = vmatpush1.msra.mxu0 0.0
    %4062 = vmatprep.subr.mxu0 0.0
    %4063 = vmatpush1.msra.mxu0 0.0
    %4064 = vmatprep.subr.mxu0 0.0
    %4065 = vmatpush1.msra.mxu0 0.0
    %4066 = vmatprep.subr.mxu0 0.0
    %4067 = vmatpush1.msra.mxu0 0.0
    %4068 = vmatprep.subr.mxu0 0.0
    %4069 = vmatpush1.msra.mxu0 0.0
    %4070 = vmatprep.subr.mxu0 0.0
    %4071 = vmatpush1.msra.mxu0 0.0
    %4072 = vmatprep.subr.mxu0 0.0
    %4073 = vmatpush1.msra.mxu0 0.0
    %4074 = vmatprep.subr.mxu0 0.0
    %4075 = vmatpush1.msra.mxu0 0.0
    %4076 = vmatprep.subr.mxu0 0.0
    %4077 = vmatpush1.msra.mxu0 0.0
    %4078 = vmatprep.subr.mxu0 0.0
    %4079 = vmatpush1.msra.mxu0 0.0
    %4080 = vmatprep.subr.mxu0 0.0
    %4081 = vmatpush1.msra.mxu0 0.0
    %4082 = vmatprep.subr.mxu0 0.0
    %4083 = vmatpush1.msra.mxu0 0.0
    %4084 = vmatprep.mubr.f32.mxu0 0.0
    %4085 = vmatmul.mubr.f32.gmra.mrb[0].mxu0 %v4018
    %v4086 = vpop.f32.mrb[0].mxu0
    %v4087 = vadd.f32 %v31, %v4086
    %v4088 = vpop.f32.mrb[0].mxu0
    %4089 = vdwg.mxu0
    %v4090 = vmul.f32 %v4087, 0.0625
    %v4091 = vadd.f32 %v3644, %v4090
    %v4093 = vsel %vm33, %v4091, 0
    %4095 = vmatprep.subr.mxu0 0.0
    %4096 = vmatpush1.msra.mxu0 %v21
    %4097 = vmatprep.subr.mxu0 0.0
    %4098 = vmatpush1.msra.mxu0 %v22
    %4099 = vmatprep.subr.mxu0 0.0
    %4100 = vmatpush1.msra.mxu0 %v23
    %4101 = vmatprep.subr.mxu0 0.0
    %4102 = vmatpush1.msra.mxu0 %v24
    %4103 = vmatprep.subr.mxu0 0.0
    %4104 = vmatpush1.msra.mxu0 %v39
    %4105 = vmatprep.subr.mxu0 0.0
    %4106 = vmatpush1.msra.mxu0 0.0
    %4107 = vmatprep.subr.mxu0 0.0
    %4108 = vmatpush1.msra.mxu0 0.0
    %4109 = vmatprep.subr.mxu0 0.0
    %4110 = vmatpush1.msra.mxu0 0.0
    %4111 = vmatprep.subr.mxu0 0.0
    %4112 = vmatpush1.msra.mxu0 0.0
    %4113 = vmatprep.subr.mxu0 0.0
    %4114 = vmatpush1.msra.mxu0 0.0
    %4115 = vmatprep.subr.mxu0 0.0
    %4116 = vmatpush1.msra.mxu0 0.0
    %4117 = vmatprep.subr.mxu0 0.0
    %4118 = vmatpush1.msra.mxu0 0.0
    %4119 = vmatprep.subr.mxu0 0.0
    %4120 = vmatpush1.msra.mxu0 0.0
    %4121 = vmatprep.subr.mxu0 0.0
    %4122 = vmatpush1.msra.mxu0 0.0
    %4123 = vmatprep.subr.mxu0 0.0
    %4124 = vmatpush1.msra.mxu0 0.0
    %4125 = vmatprep.subr.mxu0 0.0
    %4126 = vmatpush1.msra.mxu0 0.0
    %4127 = vmatprep.subr.mxu0 0.0
    %4128 = vmatpush1.msra.mxu0 0.0
    %4129 = vmatprep.subr.mxu0 0.0
    %4130 = vmatpush1.msra.mxu0 0.0
    %4131 = vmatprep.subr.mxu0 0.0
    %4132 = vmatpush1.msra.mxu0 0.0
    %4133 = vmatprep.subr.mxu0 0.0
    %4134 = vmatpush1.msra.mxu0 0.0
    %4135 = vmatprep.subr.mxu0 0.0
    %4136 = vmatpush1.msra.mxu0 0.0
    %4137 = vmatprep.subr.mxu0 0.0
    %4138 = vmatpush1.msra.mxu0 0.0
    %4139 = vmatprep.subr.mxu0 0.0
    %4140 = vmatpush1.msra.mxu0 0.0
    %4141 = vmatprep.subr.mxu0 0.0
    %4142 = vmatpush1.msra.mxu0 0.0
    %4143 = vmatprep.subr.mxu0 0.0
    %4144 = vmatpush1.msra.mxu0 0.0
    %4145 = vmatprep.subr.mxu0 0.0
    %4146 = vmatpush1.msra.mxu0 0.0
    %4147 = vmatprep.subr.mxu0 0.0
    %4148 = vmatpush1.msra.mxu0 0.0
    %4149 = vmatprep.subr.mxu0 0.0
    %4150 = vmatpush1.msra.mxu0 0.0
    %4151 = vmatprep.subr.mxu0 0.0
    %4152 = vmatpush1.msra.mxu0 0.0
    %4153 = vmatprep.subr.mxu0 0.0
    %4154 = vmatpush1.msra.mxu0 0.0
    %4155 = vmatprep.subr.mxu0 0.0
    %4156 = vmatpush1.msra.mxu0 0.0
    %4157 = vmatprep.subr.mxu0 0.0
    %4158 = vmatpush1.msra.mxu0 0.0
    %4159 = vmatprep.mubr.f32.mxu0 0.0
    %4160 = vmatmul.mubr.f32.gmra.mrb[0].mxu0 %v4093
    %v4161 = vpop.f32.mrb[0].mxu0
    %v4162 = vadd.f32 %v26, %v4161
    %v4163 = vpop.f32.mrb[0].mxu0
    %4164 = vdwg.mxu0
    %v4165 = vtanh.pop %v4162
    %v4167 = vsel %vm112, %v4165, 0
    %4169 = vmatprep.subr.mxu0 0.0
    %4170 = vmatpush1.msra.mxu0 %v27
    %4171 = vmatprep.subr.mxu0 0.0
    %4172 = vmatpush1.msra.mxu0 %v28
    %4173 = vmatprep.subr.mxu0 0.0
    %4174 = vmatpush1.msra.mxu0 %v29
    %4175 = vmatprep.subr.mxu0 0.0
    %4176 = vmatpush1.msra.mxu0 %v30
    %4177 = vmatprep.subr.mxu0 0.0
    %4178 = vmatpush1.msra.mxu0 0.0
    %4179 = vmatprep.subr.mxu0 0.0
    %4180 = vmatpush1.msra.mxu0 0.0
    %4181 = vmatprep.subr.mxu0 0.0
    %4182 = vmatpush1.msra.mxu0 0.0
    %4183 = vmatprep.subr.mxu0 0.0
    %4184 = vmatpush1.msra.mxu0 0.0
    %4185 = vmatprep.subr.mxu0 0.0
    %4186 = vmatpush1.msra.mxu0 0.0
    %4187 = vmatprep.subr.mxu0 0.0
    %4188 = vmatpush1.msra.mxu0 0.0
    %4189 = vmatprep.subr.mxu0 0.0
    %4190 = vmatpush1.msra.mxu0 0.0
    %4191 = vmatprep.subr.mxu0 0.0
    %4192 = vmatpush1.msra.mxu0 0.0
    %4193 = vmatprep.subr.mxu0 0.0
    %4194 = vmatpush1.msra.mxu0 0.0
    %4195 = vmatprep.subr.mxu0 0.0
    %4196 = vmatpush1.msra.mxu0 0.0
    %4197 = vmatprep.subr.mxu0 0.0
    %4198 = vmatpush1.msra.mxu0 0.0
    %4199 = vmatprep.subr.mxu0 0.0
    %4200 = vmatpush1.msra.mxu0 0.0
    %4201 = vmatprep.subr.mxu0 0.0
    %4202 = vmatpush1.msra.mxu0 0.0
    %4203 = vmatprep.subr.mxu0 0.0
    %4204 = vmatpush1.msra.mxu0 0.0
    %4205 = vmatprep.subr.mxu0 0.0
    %4206 = vmatpush1.msra.mxu0 0.0
    %4207 = vmatprep.subr.mxu0 0.0
    %4208 = vmatpush1.msra.mxu0 0.0
    %4209 = vmatprep.subr.mxu0 0.0
    %4210 = vmatpush1.msra.mxu0 0.0
    %4211 = vmatprep.subr.mxu0 0.0
    %4212 = vmatpush1.msra.mxu0 0.0
    %4213 = vmatprep.subr.mxu0 0.0
    %4214 = vmatpush1.msra.mxu0 0.0
    %4215 = vmatprep.subr.mxu0 0.0
    %4216 = vmatpush1.msra.mxu0 0.0
    %4217 = vmatprep.subr.mxu0 0.0
    %4218 = vmatpush1.msra.mxu0 0.0
    %4219 = vmatprep.subr.mxu0 0.0
    %4220 = vmatpush1.msra.mxu0 0.0
    %4221 = vmatprep.subr.mxu0 0.0
    %4222 = vmatpush1.msra.mxu0 0.0
    %4223 = vmatprep.subr.mxu0 0.0
    %4224 = vmatpush1.msra.mxu0 0.0
    %4225 = vmatprep.subr.mxu0 0.0
    %4226 = vmatpush1.msra.mxu0 0.0
    %4227 = vmatprep.subr.mxu0 0.0
    %4228 = vmatpush1.msra.mxu0 0.0
    %4229 = vmatprep.subr.mxu0 0.0
    %4230 = vmatpush1.msra.mxu0 0.0
    %4231 = vmatprep.subr.mxu0 0.0
    %4232 = vmatpush1.msra.mxu0 0.0
    %4233 = vmatprep.mubr.f32.mxu0 0.0
    %4234 = vmatmul.mubr.f32.gmra.mrb[0].mxu0 %v4167
    %v4235 = vpop.f32.mrb[0].mxu0
    %v4236 = vadd.f32 %v31, %v4235
    %v4237 = vpop.f32.mrb[0].mxu0
    %4238 = vdwg.mxu0
    %v4239 = vmul.f32 %v3938, 2.0
    %v4240 = vadd.f32 %v3789, %v4239
    %v4241 = vmul.f32 %v4087, 2.0
    %v4242 = vadd.f32 %v4240, %v4241
    %v4243 = vadd.f32 %v4242, %v4236
    %v4244 = vmul.f32 %v4243, 0.010416667
    %v4245 = vadd.f32 %v3644, %v4244
    %v4247 = vsel %vm33, %v4245, 0
    %4249 = vmatprep.subr.mxu0 0.0
    %4250 = vmatpush1.msra.mxu0 %v21
    %4251 = vmatprep.subr.mxu0 0.0
    %4252 = vmatpush1.msra.mxu0 %v22
    %4253 = vmatprep.subr.mxu0 0.0
    %4254 = vmatpush1.msra.mxu0 %v23
    %4255 = vmatprep.subr.mxu0 0.0
    %4256 = vmatpush1.msra.mxu0 %v24
    %4257 = vmatprep.subr.mxu0 0.0
    %4258 = vmatpush1.msra.mxu0 %v39
    %4259 = vmatprep.subr.mxu0 0.0
    %4260 = vmatpush1.msra.mxu0 0.0
    %4261 = vmatprep.subr.mxu0 0.0
    %4262 = vmatpush1.msra.mxu0 0.0
    %4263 = vmatprep.subr.mxu0 0.0
    %4264 = vmatpush1.msra.mxu0 0.0
    %4265 = vmatprep.subr.mxu0 0.0
    %4266 = vmatpush1.msra.mxu0 0.0
    %4267 = vmatprep.subr.mxu0 0.0
    %4268 = vmatpush1.msra.mxu0 0.0
    %4269 = vmatprep.subr.mxu0 0.0
    %4270 = vmatpush1.msra.mxu0 0.0
    %4271 = vmatprep.subr.mxu0 0.0
    %4272 = vmatpush1.msra.mxu0 0.0
    %4273 = vmatprep.subr.mxu0 0.0
    %4274 = vmatpush1.msra.mxu0 0.0
    %4275 = vmatprep.subr.mxu0 0.0
    %4276 = vmatpush1.msra.mxu0 0.0
    %4277 = vmatprep.subr.mxu0 0.0
    %4278 = vmatpush1.msra.mxu0 0.0
    %4279 = vmatprep.subr.mxu0 0.0
    %4280 = vmatpush1.msra.mxu0 0.0
    %4281 = vmatprep.subr.mxu0 0.0
    %4282 = vmatpush1.msra.mxu0 0.0
    %4283 = vmatprep.subr.mxu0 0.0
    %4284 = vmatpush1.msra.mxu0 0.0
    %4285 = vmatprep.subr.mxu0 0.0
    %4286 = vmatpush1.msra.mxu0 0.0
    %4287 = vmatprep.subr.mxu0 0.0
    %4288 = vmatpush1.msra.mxu0 0.0
    %4289 = vmatprep.subr.mxu0 0.0
    %4290 = vmatpush1.msra.mxu0 0.0
    %4291 = vmatprep.subr.mxu0 0.0
    %4292 = vmatpush1.msra.mxu0 0.0
    %4293 = vmatprep.subr.mxu0 0.0
    %4294 = vmatpush1.msra.mxu0 0.0
    %4295 = vmatprep.subr.mxu0 0.0
    %4296 = vmatpush1.msra.mxu0 0.0
    %4297 = vmatprep.subr.mxu0 0.0
    %4298 = vmatpush1.msra.mxu0 0.0
    %4299 = vmatprep.subr.mxu0 0.0
    %4300 = vmatpush1.msra.mxu0 0.0
    %4301 = vmatprep.subr.mxu0 0.0
    %4302 = vmatpush1.msra.mxu0 0.0
    %4303 = vmatprep.subr.mxu0 0.0
    %4304 = vmatpush1.msra.mxu0 0.0
    %4305 = vmatprep.subr.mxu0 0.0
    %4306 = vmatpush1.msra.mxu0 0.0
    %4307 = vmatprep.subr.mxu0 0.0
    %4308 = vmatpush1.msra.mxu0 0.0
    %4309 = vmatprep.subr.mxu0 0.0
    %4310 = vmatpush1.msra.mxu0 0.0
    %4311 = vmatprep.subr.mxu0 0.0
    %4312 = vmatpush1.msra.mxu0 0.0
    %4313 = vmatprep.mubr.f32.mxu0 0.0
    %4314 = vmatmul.mubr.f32.gmra.mrb[0].mxu0 %v4247
    %v4315 = vpop.f32.mrb[0].mxu0
    %v4316 = vadd.f32 %v26, %v4315
    %v4317 = vpop.f32.mrb[0].mxu0
    %4318 = vdwg.mxu0
    %v4319 = vtanh.pop %v4316
    %v4321 = vsel %vm112, %v4319, 0
    %4323 = vmatprep.subr.mxu0 0.0
    %4324 = vmatpush1.msra.mxu0 %v27
    %4325 = vmatprep.subr.mxu0 0.0
    %4326 = vmatpush1.msra.mxu0 %v28
    %4327 = vmatprep.subr.mxu0 0.0
    %4328 = vmatpush1.msra.mxu0 %v29
    %4329 = vmatprep.subr.mxu0 0.0
    %4330 = vmatpush1.msra.mxu0 %v30
    %4331 = vmatprep.subr.mxu0 0.0
    %4332 = vmatpush1.msra.mxu0 0.0
    %4333 = vmatprep.subr.mxu0 0.0
    %4334 = vmatpush1.msra.mxu0 0.0
    %4335 = vmatprep.subr.mxu0 0.0
    %4336 = vmatpush1.msra.mxu0 0.0
    %4337 = vmatprep.subr.mxu0 0.0
    %4338 = vmatpush1.msra.mxu0 0.0
    %4339 = vmatprep.subr.mxu0 0.0
    %4340 = vmatpush1.msra.mxu0 0.0
    %4341 = vmatprep.subr.mxu0 0.0
    %4342 = vmatpush1.msra.mxu0 0.0
    %4343 = vmatprep.subr.mxu0 0.0
    %4344 = vmatpush1.msra.mxu0 0.0
    %4345 = vmatprep.subr.mxu0 0.0
    %4346 = vmatpush1.msra.mxu0 0.0
    %4347 = vmatprep.subr.mxu0 0.0
    %4348 = vmatpush1.msra.mxu0 0.0
    %4349 = vmatprep.subr.mxu0 0.0
    %4350 = vmatpush1.msra.mxu0 0.0
    %4351 = vmatprep.subr.mxu0 0.0
    %4352 = vmatpush1.msra.mxu0 0.0
    %4353 = vmatprep.subr.mxu0 0.0
    %4354 = vmatpush1.msra.mxu0 0.0
    %4355 = vmatprep.subr.mxu0 0.0
    %4356 = vmatpush1.msra.mxu0 0.0
    %4357 = vmatprep.subr.mxu0 0.0
    %4358 = vmatpush1.msra.mxu0 0.0
    %4359 = vmatprep.subr.mxu0 0.0
    %4360 = vmatpush1.msra.mxu0 0.0
    %4361 = vmatprep.subr.mxu0 0.0
    %4362 = vmatpush1.msra.mxu0 0.0
    %4363 = vmatprep.subr.mxu0 0.0
    %4364 = vmatpush1.msra.mxu0 0.0
    %4365 = vmatprep.subr.mxu0 0.0
    %4366 = vmatpush1.msra.mxu0 0.0
    %4367 = vmatprep.subr.mxu0 0.0
    %4368 = vmatpush1.msra.mxu0 0.0
    %4369 = vmatprep.subr.mxu0 0.0
    %4370 = vmatpush1.msra.mxu0 0.0
    %4371 = vmatprep.subr.mxu0 0.0
    %4372 = vmatpush1.msra.mxu0 0.0
    %4373 = vmatprep.subr.mxu0 0.0
    %4374 = vmatpush1.msra.mxu0 0.0
    %4375 = vmatprep.subr.mxu0 0.0
    %4376 = vmatpush1.msra.mxu0 0.0
    %4377 = vmatprep.subr.mxu0 0.0
    %4378 = vmatpush1.msra.mxu0 0.0
    %4379 = vmatprep.subr.mxu0 0.0
    %4380 = vmatpush1.msra.mxu0 0.0
    %4381 = vmatprep.subr.mxu0 0.0
    %4382 = vmatpush1.msra.mxu0 0.0
    %4383 = vmatprep.subr.mxu0 0.0
    %4384 = vmatpush1.msra.mxu0 0.0
    %4385 = vmatprep.subr.mxu0 0.0
    %4386 = vmatpush1.msra.mxu0 0.0
    %4387 = vmatprep.mubr.f32.mxu0 0.0
    %4388 = vmatmul.mubr.f32.gmra.mrb[0].mxu0 %v4321
    %v4389 = vpop.f32.mrb[0].mxu0
    %v4390 = vadd.f32 %v31, %v4389
    %v4391 = vpop.f32.mrb[0].mxu0
    %4392 = vdwg.mxu0
    %v4393 = vmul.f32 %v4390, 0.03125
    %v4394 = vadd.f32 %v4245, %v4393
    %v4396 = vsel %vm33, %v4394, 0
    %4398 = vmatprep.subr.mxu0 0.0
    %4399 = vmatpush1.msra.mxu0 %v21
    %4400 = vmatprep.subr.mxu0 0.0
    %4401 = vmatpush1.msra.mxu0 %v22
    %4402 = vmatprep.subr.mxu0 0.0
    %4403 = vmatpush1.msra.mxu0 %v23
    %4404 = vmatprep.subr.mxu0 0.0
    %4405 = vmatpush1.msra.mxu0 %v24
    %4406 = vmatprep.subr.mxu0 0.0
    %4407 = vmatpush1.msra.mxu0 %v39
    %4408 = vmatprep.subr.mxu0 0.0
    %4409 = vmatpush1.msra.mxu0 0.0
    %4410 = vmatprep.subr.mxu0 0.0
    %4411 = vmatpush1.msra.mxu0 0.0
    %4412 = vmatprep.subr.mxu0 0.0
    %4413 = vmatpush1.msra.mxu0 0.0
    %4414 = vmatprep.subr.mxu0 0.0
    %4415 = vmatpush1.msra.mxu0 0.0
    %4416 = vmatprep.subr.mxu0 0.0
    %4417 = vmatpush1.msra.mxu0 0.0
    %4418 = vmatprep.subr.mxu0 0.0
    %4419 = vmatpush1.msra.mxu0 0.0
    %4420 = vmatprep.subr.mxu0 0.0
    %4421 = vmatpush1.msra.mxu0 0.0
    %4422 = vmatprep.subr.mxu0 0.0
    %4423 = vmatpush1.msra.mxu0 0.0
    %4424 = vmatprep.subr.mxu0 0.0
    %4425 = vmatpush1.msra.mxu0 0.0
    %4426 = vmatprep.subr.mxu0 0.0
    %4427 = vmatpush1.msra.mxu0 0.0
    %4428 = vmatprep.subr.mxu0 0.0
    %4429 = vmatpush1.msra.mxu0 0.0
    %4430 = vmatprep.subr.mxu0 0.0
    %4431 = vmatpush1.msra.mxu0 0.0
    %4432 = vmatprep.subr.mxu0 0.0
    %4433 = vmatpush1.msra.mxu0 0.0
    %4434 = vmatprep.subr.mxu0 0.0
    %4435 = vmatpush1.msra.mxu0 0.0
    %4436 = vmatprep.subr.mxu0 0.0
    %4437 = vmatpush1.msra.mxu0 0.0
    %4438 = vmatprep.subr.mxu0 0.0
    %4439 = vmatpush1.msra.mxu0 0.0
    %4440 = vmatprep.subr.mxu0 0.0
    %4441 = vmatpush1.msra.mxu0 0.0
    %4442 = vmatprep.subr.mxu0 0.0
    %4443 = vmatpush1.msra.mxu0 0.0
    %4444 = vmatprep.subr.mxu0 0.0
    %4445 = vmatpush1.msra.mxu0 0.0
    %4446 = vmatprep.subr.mxu0 0.0
    %4447 = vmatpush1.msra.mxu0 0.0
    %4448 = vmatprep.subr.mxu0 0.0
    %4449 = vmatpush1.msra.mxu0 0.0
    %4450 = vmatprep.subr.mxu0 0.0
    %4451 = vmatpush1.msra.mxu0 0.0
    %4452 = vmatprep.subr.mxu0 0.0
    %4453 = vmatpush1.msra.mxu0 0.0
    %4454 = vmatprep.subr.mxu0 0.0
    %4455 = vmatpush1.msra.mxu0 0.0
    %4456 = vmatprep.subr.mxu0 0.0
    %4457 = vmatpush1.msra.mxu0 0.0
    %4458 = vmatprep.subr.mxu0 0.0
    %4459 = vmatpush1.msra.mxu0 0.0
    %4460 = vmatprep.subr.mxu0 0.0
    %4461 = vmatpush1.msra.mxu0 0.0
    %4462 = vmatprep.mubr.f32.mxu0 0.0
    %4463 = vmatmul.mubr.f32.gmra.mrb[0].mxu0 %v4396
    %v4464 = vpop.f32.mrb[0].mxu0
    %v4465 = vadd.f32 %v26, %v4464
    %v4466 = vpop.f32.mrb[0].mxu0
    %4467 = vdwg.mxu0
    %v4468 = vtanh.pop %v4465
    %v4470 = vsel %vm112, %v4468, 0
    %4472 = vmatprep.subr.mxu0 0.0
    %4473 = vmatpush1.msra.mxu0 %v27
    %4474 = vmatprep.subr.mxu0 0.0
    %4475 = vmatpush1.msra.mxu0 %v28
    %4476 = vmatprep.subr.mxu0 0.0
    %4477 = vmatpush1.msra.mxu0 %v29
    %4478 = vmatprep.subr.mxu0 0.0
    %4479 = vmatpush1.msra.mxu0 %v30
    %4480 = vmatprep.subr.mxu0 0.0
    %4481 = vmatpush1.msra.mxu0 0.0
    %4482 = vmatprep.subr.mxu0 0.0
    %4483 = vmatpush1.msra.mxu0 0.0
    %4484 = vmatprep.subr.mxu0 0.0
    %4485 = vmatpush1.msra.mxu0 0.0
    %4486 = vmatprep.subr.mxu0 0.0
    %4487 = vmatpush1.msra.mxu0 0.0
    %4488 = vmatprep.subr.mxu0 0.0
    %4489 = vmatpush1.msra.mxu0 0.0
    %4490 = vmatprep.subr.mxu0 0.0
    %4491 = vmatpush1.msra.mxu0 0.0
    %4492 = vmatprep.subr.mxu0 0.0
    %4493 = vmatpush1.msra.mxu0 0.0
    %4494 = vmatprep.subr.mxu0 0.0
    %4495 = vmatpush1.msra.mxu0 0.0
    %4496 = vmatprep.subr.mxu0 0.0
    %4497 = vmatpush1.msra.mxu0 0.0
    %4498 = vmatprep.subr.mxu0 0.0
    %4499 = vmatpush1.msra.mxu0 0.0
    %4500 = vmatprep.subr.mxu0 0.0
    %4501 = vmatpush1.msra.mxu0 0.0
    %4502 = vmatprep.subr.mxu0 0.0
    %4503 = vmatpush1.msra.mxu0 0.0
    %4504 = vmatprep.subr.mxu0 0.0
    %4505 = vmatpush1.msra.mxu0 0.0
    %4506 = vmatprep.subr.mxu0 0.0
    %4507 = vmatpush1.msra.mxu0 0.0
    %4508 = vmatprep.subr.mxu0 0.0
    %4509 = vmatpush1.msra.mxu0 0.0
    %4510 = vmatprep.subr.mxu0 0.0
    %4511 = vmatpush1.msra.mxu0 0.0
    %4512 = vmatprep.subr.mxu0 0.0
    %4513 = vmatpush1.msra.mxu0 0.0
    %4514 = vmatprep.subr.mxu0 0.0
    %4515 = vmatpush1.msra.mxu0 0.0
    %4516 = vmatprep.subr.mxu0 0.0
    %4517 = vmatpush1.msra.mxu0 0.0
    %4518 = vmatprep.subr.mxu0 0.0
    %4519 = vmatpush1.msra.mxu0 0.0
    %4520 = vmatprep.subr.mxu0 0.0
    %4521 = vmatpush1.msra.mxu0 0.0
    %4522 = vmatprep.subr.mxu0 0.0
    %4523 = vmatpush1.msra.mxu0 0.0
    %4524 = vmatprep.subr.mxu0 0.0
    %4525 = vmatpush1.msra.mxu0 0.0
    %4526 = vmatprep.subr.mxu0 0.0
    %4527 = vmatpush1.msra.mxu0 0.0
    %4528 = vmatprep.subr.mxu0 0.0
    %4529 = vmatpush1.msra.mxu0 0.0
    %4530 = vmatprep.subr.mxu0 0.0
    %4531 = vmatpush1.msra.mxu0 0.0
    %4532 = vmatprep.subr.mxu0 0.0
    %4533 = vmatpush1.msra.mxu0 0.0
    %4534 = vmatprep.subr.mxu0 0.0
    %4535 = vmatpush1.msra.mxu0 0.0
    %4536 = vmatprep.mubr.f32.mxu0 0.0
    %4537 = vmatmul.mubr.f32.gmra.mrb[0].mxu0 %v4470
    %v4538 = vpop.f32.mrb[0].mxu0
    %v4539 = vadd.f32 %v31, %v4538
    %v4540 = vpop.f32.mrb[0].mxu0
    %4541 = vdwg.mxu0
    %v4542 = vmul.f32 %v4539, 0.03125
    %v4543 = vadd.f32 %v4245, %v4542
    %v4545 = vsel %vm33, %v4543, 0
    %4547 = vmatprep.subr.mxu0 0.0
    %4548 = vmatpush1.msra.mxu0 %v21
    %4549 = vmatprep.subr.mxu0 0.0
    %4550 = vmatpush1.msra.mxu0 %v22
    %4551 = vmatprep.subr.mxu0 0.0
    %4552 = vmatpush1.msra.mxu0 %v23
    %4553 = vmatprep.subr.mxu0 0.0
    %4554 = vmatpush1.msra.mxu0 %v24
    %4555 = vmatprep.subr.mxu0 0.0
    %4556 = vmatpush1.msra.mxu0 %v39
    %4557 = vmatprep.subr.mxu0 0.0
    %4558 = vmatpush1.msra.mxu0 0.0
    %4559 = vmatprep.subr.mxu0 0.0
    %4560 = vmatpush1.msra.mxu0 0.0
    %4561 = vmatprep.subr.mxu0 0.0
    %4562 = vmatpush1.msra.mxu0 0.0
    %4563 = vmatprep.subr.mxu0 0.0
    %4564 = vmatpush1.msra.mxu0 0.0
    %4565 = vmatprep.subr.mxu0 0.0
    %4566 = vmatpush1.msra.mxu0 0.0
    %4567 = vmatprep.subr.mxu0 0.0
    %4568 = vmatpush1.msra.mxu0 0.0
    %4569 = vmatprep.subr.mxu0 0.0
    %4570 = vmatpush1.msra.mxu0 0.0
    %4571 = vmatprep.subr.mxu0 0.0
    %4572 = vmatpush1.msra.mxu0 0.0
    %4573 = vmatprep.subr.mxu0 0.0
    %4574 = vmatpush1.msra.mxu0 0.0
    %4575 = vmatprep.subr.mxu0 0.0
    %4576 = vmatpush1.msra.mxu0 0.0
    %4577 = vmatprep.subr.mxu0 0.0
    %4578 = vmatpush1.msra.mxu0 0.0
    %4579 = vmatprep.subr.mxu0 0.0
    %4580 = vmatpush1.msra.mxu0 0.0
    %4581 = vmatprep.subr.mxu0 0.0
    %4582 = vmatpush1.msra.mxu0 0.0
    %4583 = vmatprep.subr.mxu0 0.0
    %4584 = vmatpush1.msra.mxu0 0.0
    %4585 = vmatprep.subr.mxu0 0.0
    %4586 = vmatpush1.msra.mxu0 0.0
    %4587 = vmatprep.subr.mxu0 0.0
    %4588 = vmatpush1.msra.mxu0 0.0
    %4589 = vmatprep.subr.mxu0 0.0
    %4590 = vmatpush1.msra.mxu0 0.0
    %4591 = vmatprep.subr.mxu0 0.0
    %4592 = vmatpush1.msra.mxu0 0.0
    %4593 = vmatprep.subr.mxu0 0.0
    %4594 = vmatpush1.msra.mxu0 0.0
    %4595 = vmatprep.subr.mxu0 0.0
    %4596 = vmatpush1.msra.mxu0 0.0
    %4597 = vmatprep.subr.mxu0 0.0
    %4598 = vmatpush1.msra.mxu0 0.0
    %4599 = vmatprep.subr.mxu0 0.0
    %4600 = vmatpush1.msra.mxu0 0.0
    %4601 = vmatprep.subr.mxu0 0.0
    %4602 = vmatpush1.msra.mxu0 0.0
    %4603 = vmatprep.subr.mxu0 0.0
    %4604 = vmatpush1.msra.mxu0 0.0
    %4605 = vmatprep.subr.mxu0 0.0
    %4606 = vmatpush1.msra.mxu0 0.0
    %4607 = vmatprep.subr.mxu0 0.0
    %4608 = vmatpush1.msra.mxu0 0.0
    %4609 = vmatprep.subr.mxu0 0.0
    %4610 = vmatpush1.msra.mxu0 0.0
    %4611 = vmatprep.mubr.f32.mxu0 0.0
    %4612 = vmatmul.mubr.f32.gmra.mrb[0].mxu0 %v4545
    %v4613 = vpop.f32.mrb[0].mxu0
    %v4614 = vadd.f32 %v26, %v4613
    %v4615 = vpop.f32.mrb[0].mxu0
    %4616 = vdwg.mxu0
    %v4617 = vtanh.pop %v4614
    %v4619 = vsel %vm112, %v4617, 0
    %4621 = vmatprep.subr.mxu0 0.0
    %4622 = vmatpush1.msra.mxu0 %v27
    %4623 = vmatprep.subr.mxu0 0.0
    %4624 = vmatpush1.msra.mxu0 %v28
    %4625 = vmatprep.subr.mxu0 0.0
    %4626 = vmatpush1.msra.mxu0 %v29
    %4627 = vmatprep.subr.mxu0 0.0
    %4628 = vmatpush1.msra.mxu0 %v30
    %4629 = vmatprep.subr.mxu0 0.0
    %4630 = vmatpush1.msra.mxu0 0.0
    %4631 = vmatprep.subr.mxu0 0.0
    %4632 = vmatpush1.msra.mxu0 0.0
    %4633 = vmatprep.subr.mxu0 0.0
    %4634 = vmatpush1.msra.mxu0 0.0
    %4635 = vmatprep.subr.mxu0 0.0
    %4636 = vmatpush1.msra.mxu0 0.0
    %4637 = vmatprep.subr.mxu0 0.0
    %4638 = vmatpush1.msra.mxu0 0.0
    %4639 = vmatprep.subr.mxu0 0.0
    %4640 = vmatpush1.msra.mxu0 0.0
    %4641 = vmatprep.subr.mxu0 0.0
    %4642 = vmatpush1.msra.mxu0 0.0
    %4643 = vmatprep.subr.mxu0 0.0
    %4644 = vmatpush1.msra.mxu0 0.0
    %4645 = vmatprep.subr.mxu0 0.0
    %4646 = vmatpush1.msra.mxu0 0.0
    %4647 = vmatprep.subr.mxu0 0.0
    %4648 = vmatpush1.msra.mxu0 0.0
    %4649 = vmatprep.subr.mxu0 0.0
    %4650 = vmatpush1.msra.mxu0 0.0
    %4651 = vmatprep.subr.mxu0 0.0
    %4652 = vmatpush1.msra.mxu0 0.0
    %4653 = vmatprep.subr.mxu0 0.0
    %4654 = vmatpush1.msra.mxu0 0.0
    %4655 = vmatprep.subr.mxu0 0.0
    %4656 = vmatpush1.msra.mxu0 0.0
    %4657 = vmatprep.subr.mxu0 0.0
    %4658 = vmatpush1.msra.mxu0 0.0
    %4659 = vmatprep.subr.mxu0 0.0
    %4660 = vmatpush1.msra.mxu0 0.0
    %4661 = vmatprep.subr.mxu0 0.0
    %4662 = vmatpush1.msra.mxu0 0.0
    %4663 = vmatprep.subr.mxu0 0.0
    %4664 = vmatpush1.msra.mxu0 0.0
    %4665 = vmatprep.subr.mxu0 0.0
    %4666 = vmatpush1.msra.mxu0 0.0
    %4667 = vmatprep.subr.mxu0 0.0
    %4668 = vmatpush1.msra.mxu0 0.0
    %4669 = vmatprep.subr.mxu0 0.0
    %4670 = vmatpush1.msra.mxu0 0.0
    %4671 = vmatprep.subr.mxu0 0.0
    %4672 = vmatpush1.msra.mxu0 0.0
    %4673 = vmatprep.subr.mxu0 0.0
    %4674 = vmatpush1.msra.mxu0 0.0
    %4675 = vmatprep.subr.mxu0 0.0
    %4676 = vmatpush1.msra.mxu0 0.0
    %4677 = vmatprep.subr.mxu0 0.0
    %4678 = vmatpush1.msra.mxu0 0.0
    %4679 = vmatprep.subr.mxu0 0.0
    %4680 = vmatpush1.msra.mxu0 0.0
    %4681 = vmatprep.subr.mxu0 0.0
    %4682 = vmatpush1.msra.mxu0 0.0
    %4683 = vmatprep.subr.mxu0 0.0
    %4684 = vmatpush1.msra.mxu0 0.0
    %4685 = vmatprep.mubr.f32.mxu0 0.0
    %4686 = vmatmul.mubr.f32.gmra.mrb[0].mxu0 %v4619
    %v4687 = vpop.f32.mrb[0].mxu0
    %v4688 = vadd.f32 %v31, %v4687
    %v4689 = vpop.f32.mrb[0].mxu0
    %4690 = vdwg.mxu0
    %v4691 = vmul.f32 %v4688, 0.0625
    %v4692 = vadd.f32 %v4245, %v4691
    %v4694 = vsel %vm33, %v4692, 0
    %4696 = vmatprep.subr.mxu0 0.0
    %4697 = vmatpush1.msra.mxu0 %v21
    %4698 = vmatprep.subr.mxu0 0.0
    %4699 = vmatpush1.msra.mxu0 %v22
    %4700 = vmatprep.subr.mxu0 0.0
    %4701 = vmatpush1.msra.mxu0 %v23
    %4702 = vmatprep.subr.mxu0 0.0
    %4703 = vmatpush1.msra.mxu0 %v24
    %4704 = vmatprep.subr.mxu0 0.0
    %4705 = vmatpush1.msra.mxu0 %v39
    %4706 = vmatprep.subr.mxu0 0.0
    %4707 = vmatpush1.msra.mxu0 0.0
    %4708 = vmatprep.subr.mxu0 0.0
    %4709 = vmatpush1.msra.mxu0 0.0
    %4710 = vmatprep.subr.mxu0 0.0
    %4711 = vmatpush1.msra.mxu0 0.0
    %4712 = vmatprep.subr.mxu0 0.0
    %4713 = vmatpush1.msra.mxu0 0.0
    %4714 = vmatprep.subr.mxu0 0.0
    %4715 = vmatpush1.msra.mxu0 0.0
    %4716 = vmatprep.subr.mxu0 0.0
    %4717 = vmatpush1.msra.mxu0 0.0
    %4718 = vmatprep.subr.mxu0 0.0
    %4719 = vmatpush1.msra.mxu0 0.0
    %4720 = vmatprep.subr.mxu0 0.0
    %4721 = vmatpush1.msra.mxu0 0.0
    %4722 = vmatprep.subr.mxu0 0.0
    %4723 = vmatpush1.msra.mxu0 0.0
    %4724 = vmatprep.subr.mxu0 0.0
    %4725 = vmatpush1.msra.mxu0 0.0
    %4726 = vmatprep.subr.mxu0 0.0
    %4727 = vmatpush1.msra.mxu0 0.0
    %4728 = vmatprep.subr.mxu0 0.0
    %4729 = vmatpush1.msra.mxu0 0.0
    %4730 = vmatprep.subr.mxu0 0.0
    %4731 = vmatpush1.msra.mxu0 0.0
    %4732 = vmatprep.subr.mxu0 0.0
    %4733 = vmatpush1.msra.mxu0 0.0
    %4734 = vmatprep.subr.mxu0 0.0
    %4735 = vmatpush1.msra.mxu0 0.0
    %4736 = vmatprep.subr.mxu0 0.0
    %4737 = vmatpush1.msra.mxu0 0.0
    %4738 = vmatprep.subr.mxu0 0.0
    %4739 = vmatpush1.msra.mxu0 0.0
    %4740 = vmatprep.subr.mxu0 0.0
    %4741 = vmatpush1.msra.mxu0 0.0
    %4742 = vmatprep.subr.mxu0 0.0
    %4743 = vmatpush1.msra.mxu0 0.0
    %4744 = vmatprep.subr.mxu0 0.0
    %4745 = vmatpush1.msra.mxu0 0.0
    %4746 = vmatprep.subr.mxu0 0.0
    %4747 = vmatpush1.msra.mxu0 0.0
    %4748 = vmatprep.subr.mxu0 0.0
    %4749 = vmatpush1.msra.mxu0 0.0
    %4750 = vmatprep.subr.mxu0 0.0
    %4751 = vmatpush1.msra.mxu0 0.0
    %4752 = vmatprep.subr.mxu0 0.0
    %4753 = vmatpush1.msra.mxu0 0.0
    %4754 = vmatprep.subr.mxu0 0.0
    %4755 = vmatpush1.msra.mxu0 0.0
    %4756 = vmatprep.subr.mxu0 0.0
    %4757 = vmatpush1.msra.mxu0 0.0
    %4758 = vmatprep.subr.mxu0 0.0
    %4759 = vmatpush1.msra.mxu0 0.0
    %4760 = vmatprep.mubr.f32.mxu0 0.0
    %4761 = vmatmul.mubr.f32.gmra.mrb[0].mxu0 %v4694
    %v4762 = vpop.f32.mrb[0].mxu0
    %v4763 = vadd.f32 %v26, %v4762
    %v4764 = vpop.f32.mrb[0].mxu0
    %4765 = vdwg.mxu0
    %v4766 = vtanh.pop %v4763
    %v4768 = vsel %vm112, %v4766, 0
    %4770 = vmatprep.subr.mxu0 0.0
    %4771 = vmatpush1.msra.mxu0 %v27
    %4772 = vmatprep.subr.mxu0 0.0
    %4773 = vmatpush1.msra.mxu0 %v28
    %4774 = vmatprep.subr.mxu0 0.0
    %4775 = vmatpush1.msra.mxu0 %v29
    %4776 = vmatprep.subr.mxu0 0.0
    %4777 = vmatpush1.msra.mxu0 %v30
    %4778 = vmatprep.subr.mxu0 0.0
    %4779 = vmatpush1.msra.mxu0 0.0
    %4780 = vmatprep.subr.mxu0 0.0
    %4781 = vmatpush1.msra.mxu0 0.0
    %4782 = vmatprep.subr.mxu0 0.0
    %4783 = vmatpush1.msra.mxu0 0.0
    %4784 = vmatprep.subr.mxu0 0.0
    %4785 = vmatpush1.msra.mxu0 0.0
    %4786 = vmatprep.subr.mxu0 0.0
    %4787 = vmatpush1.msra.mxu0 0.0
    %4788 = vmatprep.subr.mxu0 0.0
    %4789 = vmatpush1.msra.mxu0 0.0
    %4790 = vmatprep.subr.mxu0 0.0
    %4791 = vmatpush1.msra.mxu0 0.0
    %4792 = vmatprep.subr.mxu0 0.0
    %4793 = vmatpush1.msra.mxu0 0.0
    %4794 = vmatprep.subr.mxu0 0.0
    %4795 = vmatpush1.msra.mxu0 0.0
    %4796 = vmatprep.subr.mxu0 0.0
    %4797 = vmatpush1.msra.mxu0 0.0
    %4798 = vmatprep.subr.mxu0 0.0
    %4799 = vmatpush1.msra.mxu0 0.0
    %4800 = vmatprep.subr.mxu0 0.0
    %4801 = vmatpush1.msra.mxu0 0.0
    %4802 = vmatprep.subr.mxu0 0.0
    %4803 = vmatpush1.msra.mxu0 0.0
    %4804 = vmatprep.subr.mxu0 0.0
    %4805 = vmatpush1.msra.mxu0 0.0
    %4806 = vmatprep.subr.mxu0 0.0
    %4807 = vmatpush1.msra.mxu0 0.0
    %4808 = vmatprep.subr.mxu0 0.0
    %4809 = vmatpush1.msra.mxu0 0.0
    %4810 = vmatprep.subr.mxu0 0.0
    %4811 = vmatpush1.msra.mxu0 0.0
    %4812 = vmatprep.subr.mxu0 0.0
    %4813 = vmatpush1.msra.mxu0 0.0
    %4814 = vmatprep.subr.mxu0 0.0
    %4815 = vmatpush1.msra.mxu0 0.0
    %4816 = vmatprep.subr.mxu0 0.0
    %4817 = vmatpush1.msra.mxu0 0.0
    %4818 = vmatprep.subr.mxu0 0.0
    %4819 = vmatpush1.msra.mxu0 0.0
    %4820 = vmatprep.subr.mxu0 0.0
    %4821 = vmatpush1.msra.mxu0 0.0
    %4822 = vmatprep.subr.mxu0 0.0
    %4823 = vmatpush1.msra.mxu0 0.0
    %4824 = vmatprep.subr.mxu0 0.0
    %4825 = vmatpush1.msra.mxu0 0.0
    %4826 = vmatprep.subr.mxu0 0.0
    %4827 = vmatpush1.msra.mxu0 0.0
    %4828 = vmatprep.subr.mxu0 0.0
    %4829 = vmatpush1.msra.mxu0 0.0
    %4830 = vmatprep.subr.mxu0 0.0
    %4831 = vmatpush1.msra.mxu0 0.0
    %4832 = vmatprep.subr.mxu0 0.0
    %4833 = vmatpush1.msra.mxu0 0.0
    %4834 = vmatprep.mubr.f32.mxu0 0.0
    %4835 = vmatmul.mubr.f32.gmra.mrb[0].mxu0 %v4768
    %v4836 = vpop.f32.mrb[0].mxu0
    %v4837 = vadd.f32 %v31, %v4836
    %v4838 = vpop.f32.mrb[0].mxu0
    %4839 = vdwg.mxu0
    %v4840 = vmul.f32 %v4539, 2.0
    %v4841 = vadd.f32 %v4390, %v4840
    %v4842 = vmul.f32 %v4688, 2.0
    %v4843 = vadd.f32 %v4841, %v4842
    %v4844 = vadd.f32 %v4843, %v4837
    %v4845 = vmul.f32 %v4844, 0.010416667
    %v4846 = vadd.f32 %v4245, %v4845
    %v4848 = vsel %vm33, %v4846, 0
    %4850 = vmatprep.subr.mxu0 0.0
    %4851 = vmatpush1.msra.mxu0 %v21
    %4852 = vmatprep.subr.mxu0 0.0
    %4853 = vmatpush1.msra.mxu0 %v22
    %4854 = vmatprep.subr.mxu0 0.0
    %4855 = vmatpush1.msra.mxu0 %v23
    %4856 = vmatprep.subr.mxu0 0.0
    %4857 = vmatpush1.msra.mxu0 %v24
    %4858 = vmatprep.subr.mxu0 0.0
    %4859 = vmatpush1.msra.mxu0 %v39
    %4860 = vmatprep.subr.mxu0 0.0
    %4861 = vmatpush1.msra.mxu0 0.0
    %4862 = vmatprep.subr.mxu0 0.0
    %4863 = vmatpush1.msra.mxu0 0.0
    %4864 = vmatprep.subr.mxu0 0.0
    %4865 = vmatpush1.msra.mxu0 0.0
    %4866 = vmatprep.subr.mxu0 0.0
    %4867 = vmatpush1.msra.mxu0 0.0
    %4868 = vmatprep.subr.mxu0 0.0
    %4869 = vmatpush1.msra.mxu0 0.0
    %4870 = vmatprep.subr.mxu0 0.0
    %4871 = vmatpush1.msra.mxu0 0.0
    %4872 = vmatprep.subr.mxu0 0.0
    %4873 = vmatpush1.msra.mxu0 0.0
    %4874 = vmatprep.subr.mxu0 0.0
    %4875 = vmatpush1.msra.mxu0 0.0
    %4876 = vmatprep.subr.mxu0 0.0
    %4877 = vmatpush1.msra.mxu0 0.0
    %4878 = vmatprep.subr.mxu0 0.0
    %4879 = vmatpush1.msra.mxu0 0.0
    %4880 = vmatprep.subr.mxu0 0.0
    %4881 = vmatpush1.msra.mxu0 0.0
    %4882 = vmatprep.subr.mxu0 0.0
    %4883 = vmatpush1.msra.mxu0 0.0
    %4884 = vmatprep.subr.mxu0 0.0
    %4885 = vmatpush1.msra.mxu0 0.0
    %4886 = vmatprep.subr.mxu0 0.0
    %4887 = vmatpush1.msra.mxu0 0.0
    %4888 = vmatprep.subr.mxu0 0.0
    %4889 = vmatpush1.msra.mxu0 0.0
    %4890 = vmatprep.subr.mxu0 0.0
    %4891 = vmatpush1.msra.mxu0 0.0
    %4892 = vmatprep.subr.mxu0 0.0
    %4893 = vmatpush1.msra.mxu0 0.0
    %4894 = vmatprep.subr.mxu0 0.0
    %4895 = vmatpush1.msra.mxu0 0.0
    %4896 = vmatprep.subr.mxu0 0.0
    %4897 = vmatpush1.msra.mxu0 0.0
    %4898 = vmatprep.subr.mxu0 0.0
    %4899 = vmatpush1.msra.mxu0 0.0
    %4900 = vmatprep.subr.mxu0 0.0
    %4901 = vmatpush1.msra.mxu0 0.0
    %4902 = vmatprep.subr.mxu0 0.0
    %4903 = vmatpush1.msra.mxu0 0.0
    %4904 = vmatprep.subr.mxu0 0.0
    %4905 = vmatpush1.msra.mxu0 0.0
    %4906 = vmatprep.subr.mxu0 0.0
    %4907 = vmatpush1.msra.mxu0 0.0
    %4908 = vmatprep.subr.mxu0 0.0
    %4909 = vmatpush1.msra.mxu0 0.0
    %4910 = vmatprep.subr.mxu0 0.0
    %4911 = vmatpush1.msra.mxu0 0.0
    %4912 = vmatprep.subr.mxu0 0.0
    %4913 = vmatpush1.msra.mxu0 0.0
    %4914 = vmatprep.mubr.f32.mxu0 0.0
    %4915 = vmatmul.mubr.f32.gmra.mrb[0].mxu0 %v4848
    %v4916 = vpop.f32.mrb[0].mxu0
    %v4917 = vadd.f32 %v26, %v4916
    %v4918 = vpop.f32.mrb[0].mxu0
    %4919 = vdwg.mxu0
    %v4920 = vtanh.pop %v4917
    %v4922 = vsel %vm112, %v4920, 0
    %4924 = vmatprep.subr.mxu0 0.0
    %4925 = vmatpush1.msra.mxu0 %v27
    %4926 = vmatprep.subr.mxu0 0.0
    %4927 = vmatpush1.msra.mxu0 %v28
    %4928 = vmatprep.subr.mxu0 0.0
    %4929 = vmatpush1.msra.mxu0 %v29
    %4930 = vmatprep.subr.mxu0 0.0
    %4931 = vmatpush1.msra.mxu0 %v30
    %4932 = vmatprep.subr.mxu0 0.0
    %4933 = vmatpush1.msra.mxu0 0.0
    %4934 = vmatprep.subr.mxu0 0.0
    %4935 = vmatpush1.msra.mxu0 0.0
    %4936 = vmatprep.subr.mxu0 0.0
    %4937 = vmatpush1.msra.mxu0 0.0
    %4938 = vmatprep.subr.mxu0 0.0
    %4939 = vmatpush1.msra.mxu0 0.0
    %4940 = vmatprep.subr.mxu0 0.0
    %4941 = vmatpush1.msra.mxu0 0.0
    %4942 = vmatprep.subr.mxu0 0.0
    %4943 = vmatpush1.msra.mxu0 0.0
    %4944 = vmatprep.subr.mxu0 0.0
    %4945 = vmatpush1.msra.mxu0 0.0
    %4946 = vmatprep.subr.mxu0 0.0
    %4947 = vmatpush1.msra.mxu0 0.0
    %4948 = vmatprep.subr.mxu0 0.0
    %4949 = vmatpush1.msra.mxu0 0.0
    %4950 = vmatprep.subr.mxu0 0.0
    %4951 = vmatpush1.msra.mxu0 0.0
    %4952 = vmatprep.subr.mxu0 0.0
    %4953 = vmatpush1.msra.mxu0 0.0
    %4954 = vmatprep.subr.mxu0 0.0
    %4955 = vmatpush1.msra.mxu0 0.0
    %4956 = vmatprep.subr.mxu0 0.0
    %4957 = vmatpush1.msra.mxu0 0.0
    %4958 = vmatprep.subr.mxu0 0.0
    %4959 = vmatpush1.msra.mxu0 0.0
    %4960 = vmatprep.subr.mxu0 0.0
    %4961 = vmatpush1.msra.mxu0 0.0
    %4962 = vmatprep.subr.mxu0 0.0
    %4963 = vmatpush1.msra.mxu0 0.0
    %4964 = vmatprep.subr.mxu0 0.0
    %4965 = vmatpush1.msra.mxu0 0.0
    %4966 = vmatprep.subr.mxu0 0.0
    %4967 = vmatpush1.msra.mxu0 0.0
    %4968 = vmatprep.subr.mxu0 0.0
    %4969 = vmatpush1.msra.mxu0 0.0
    %4970 = vmatprep.subr.mxu0 0.0
    %4971 = vmatpush1.msra.mxu0 0.0
    %4972 = vmatprep.subr.mxu0 0.0
    %4973 = vmatpush1.msra.mxu0 0.0
    %4974 = vmatprep.subr.mxu0 0.0
    %4975 = vmatpush1.msra.mxu0 0.0
    %4976 = vmatprep.subr.mxu0 0.0
    %4977 = vmatpush1.msra.mxu0 0.0
    %4978 = vmatprep.subr.mxu0 0.0
    %4979 = vmatpush1.msra.mxu0 0.0
    %4980 = vmatprep.subr.mxu0 0.0
    %4981 = vmatpush1.msra.mxu0 0.0
    %4982 = vmatprep.subr.mxu0 0.0
    %4983 = vmatpush1.msra.mxu0 0.0
    %4984 = vmatprep.subr.mxu0 0.0
    %4985 = vmatpush1.msra.mxu0 0.0
    %4986 = vmatprep.subr.mxu0 0.0
    %4987 = vmatpush1.msra.mxu0 0.0
    %4988 = vmatprep.mubr.f32.mxu0 0.0
    %4989 = vmatmul.mubr.f32.gmra.mrb[0].mxu0 %v4922
    %v4990 = vpop.f32.mrb[0].mxu0
    %v4991 = vadd.f32 %v31, %v4990
    %v4992 = vpop.f32.mrb[0].mxu0
    %4993 = vdwg.mxu0
    %v4994 = vmul.f32 %v4991, 0.03125
    %v4995 = vadd.f32 %v4846, %v4994
    %v4997 = vsel %vm33, %v4995, 0
    %4999 = vmatprep.subr.mxu0 0.0
    %5000 = vmatpush1.msra.mxu0 %v21
    %5001 = vmatprep.subr.mxu0 0.0
    %5002 = vmatpush1.msra.mxu0 %v22
    %5003 = vmatprep.subr.mxu0 0.0
    %5004 = vmatpush1.msra.mxu0 %v23
    %5005 = vmatprep.subr.mxu0 0.0
    %5006 = vmatpush1.msra.mxu0 %v24
    %5007 = vmatprep.subr.mxu0 0.0
    %5008 = vmatpush1.msra.mxu0 %v39
    %5009 = vmatprep.subr.mxu0 0.0
    %5010 = vmatpush1.msra.mxu0 0.0
    %5011 = vmatprep.subr.mxu0 0.0
    %5012 = vmatpush1.msra.mxu0 0.0
    %5013 = vmatprep.subr.mxu0 0.0
    %5014 = vmatpush1.msra.mxu0 0.0
    %5015 = vmatprep.subr.mxu0 0.0
    %5016 = vmatpush1.msra.mxu0 0.0
    %5017 = vmatprep.subr.mxu0 0.0
    %5018 = vmatpush1.msra.mxu0 0.0
    %5019 = vmatprep.subr.mxu0 0.0
    %5020 = vmatpush1.msra.mxu0 0.0
    %5021 = vmatprep.subr.mxu0 0.0
    %5022 = vmatpush1.msra.mxu0 0.0
    %5023 = vmatprep.subr.mxu0 0.0
    %5024 = vmatpush1.msra.mxu0 0.0
    %5025 = vmatprep.subr.mxu0 0.0
    %5026 = vmatpush1.msra.mxu0 0.0
    %5027 = vmatprep.subr.mxu0 0.0
    %5028 = vmatpush1.msra.mxu0 0.0
    %5029 = vmatprep.subr.mxu0 0.0
    %5030 = vmatpush1.msra.mxu0 0.0
    %5031 = vmatprep.subr.mxu0 0.0
    %5032 = vmatpush1.msra.mxu0 0.0
    %5033 = vmatprep.subr.mxu0 0.0
    %5034 = vmatpush1.msra.mxu0 0.0
    %5035 = vmatprep.subr.mxu0 0.0
    %5036 = vmatpush1.msra.mxu0 0.0
    %5037 = vmatprep.subr.mxu0 0.0
    %5038 = vmatpush1.msra.mxu0 0.0
    %5039 = vmatprep.subr.mxu0 0.0
    %5040 = vmatpush1.msra.mxu0 0.0
    %5041 = vmatprep.subr.mxu0 0.0
    %5042 = vmatpush1.msra.mxu0 0.0
    %5043 = vmatprep.subr.mxu0 0.0
    %5044 = vmatpush1.msra.mxu0 0.0
    %5045 = vmatprep.subr.mxu0 0.0
    %5046 = vmatpush1.msra.mxu0 0.0
    %5047 = vmatprep.subr.mxu0 0.0
    %5048 = vmatpush1.msra.mxu0 0.0
    %5049 = vmatprep.subr.mxu0 0.0
    %5050 = vmatpush1.msra.mxu0 0.0
    %5051 = vmatprep.subr.mxu0 0.0
    %5052 = vmatpush1.msra.mxu0 0.0
    %5053 = vmatprep.subr.mxu0 0.0
    %5054 = vmatpush1.msra.mxu0 0.0
    %5055 = vmatprep.subr.mxu0 0.0
    %5056 = vmatpush1.msra.mxu0 0.0
    %5057 = vmatprep.subr.mxu0 0.0
    %5058 = vmatpush1.msra.mxu0 0.0
    %5059 = vmatprep.subr.mxu0 0.0
    %5060 = vmatpush1.msra.mxu0 0.0
    %5061 = vmatprep.subr.mxu0 0.0
    %5062 = vmatpush1.msra.mxu0 0.0
    %5063 = vmatprep.mubr.f32.mxu0 0.0
    %5064 = vmatmul.mubr.f32.gmra.mrb[0].mxu0 %v4997
    %v5065 = vpop.f32.mrb[0].mxu0
    %v5066 = vadd.f32 %v26, %v5065
    %v5067 = vpop.f32.mrb[0].mxu0
    %5068 = vdwg.mxu0
    %v5069 = vtanh.pop %v5066
    %v5071 = vsel %vm112, %v5069, 0
    %5073 = vmatprep.subr.mxu0 0.0
    %5074 = vmatpush1.msra.mxu0 %v27
    %5075 = vmatprep.subr.mxu0 0.0
    %5076 = vmatpush1.msra.mxu0 %v28
    %5077 = vmatprep.subr.mxu0 0.0
    %5078 = vmatpush1.msra.mxu0 %v29
    %5079 = vmatprep.subr.mxu0 0.0
    %5080 = vmatpush1.msra.mxu0 %v30
    %5081 = vmatprep.subr.mxu0 0.0
    %5082 = vmatpush1.msra.mxu0 0.0
    %5083 = vmatprep.subr.mxu0 0.0
    %5084 = vmatpush1.msra.mxu0 0.0
    %5085 = vmatprep.subr.mxu0 0.0
    %5086 = vmatpush1.msra.mxu0 0.0
    %5087 = vmatprep.subr.mxu0 0.0
    %5088 = vmatpush1.msra.mxu0 0.0
    %5089 = vmatprep.subr.mxu0 0.0
    %5090 = vmatpush1.msra.mxu0 0.0
    %5091 = vmatprep.subr.mxu0 0.0
    %5092 = vmatpush1.msra.mxu0 0.0
    %5093 = vmatprep.subr.mxu0 0.0
    %5094 = vmatpush1.msra.mxu0 0.0
    %5095 = vmatprep.subr.mxu0 0.0
    %5096 = vmatpush1.msra.mxu0 0.0
    %5097 = vmatprep.subr.mxu0 0.0
    %5098 = vmatpush1.msra.mxu0 0.0
    %5099 = vmatprep.subr.mxu0 0.0
    %5100 = vmatpush1.msra.mxu0 0.0
    %5101 = vmatprep.subr.mxu0 0.0
    %5102 = vmatpush1.msra.mxu0 0.0
    %5103 = vmatprep.subr.mxu0 0.0
    %5104 = vmatpush1.msra.mxu0 0.0
    %5105 = vmatprep.subr.mxu0 0.0
    %5106 = vmatpush1.msra.mxu0 0.0
    %5107 = vmatprep.subr.mxu0 0.0
    %5108 = vmatpush1.msra.mxu0 0.0
    %5109 = vmatprep.subr.mxu0 0.0
    %5110 = vmatpush1.msra.mxu0 0.0
    %5111 = vmatprep.subr.mxu0 0.0
    %5112 = vmatpush1.msra.mxu0 0.0
    %5113 = vmatprep.subr.mxu0 0.0
    %5114 = vmatpush1.msra.mxu0 0.0
    %5115 = vmatprep.subr.mxu0 0.0
    %5116 = vmatpush1.msra.mxu0 0.0
    %5117 = vmatprep.subr.mxu0 0.0
    %5118 = vmatpush1.msra.mxu0 0.0
    %5119 = vmatprep.subr.mxu0 0.0
    %5120 = vmatpush1.msra.mxu0 0.0
    %5121 = vmatprep.subr.mxu0 0.0
    %5122 = vmatpush1.msra.mxu0 0.0
    %5123 = vmatprep.subr.mxu0 0.0
    %5124 = vmatpush1.msra.mxu0 0.0
    %5125 = vmatprep.subr.mxu0 0.0
    %5126 = vmatpush1.msra.mxu0 0.0
    %5127 = vmatprep.subr.mxu0 0.0
    %5128 = vmatpush1.msra.mxu0 0.0
    %5129 = vmatprep.subr.mxu0 0.0
    %5130 = vmatpush1.msra.mxu0 0.0
    %5131 = vmatprep.subr.mxu0 0.0
    %5132 = vmatpush1.msra.mxu0 0.0
    %5133 = vmatprep.subr.mxu0 0.0
    %5134 = vmatpush1.msra.mxu0 0.0
    %5135 = vmatprep.subr.mxu0 0.0
    %5136 = vmatpush1.msra.mxu0 0.0
    %5137 = vmatprep.mubr.f32.mxu0 0.0
    %5138 = vmatmul.mubr.f32.gmra.mrb[0].mxu0 %v5071
    %v5139 = vpop.f32.mrb[0].mxu0
    %v5140 = vadd.f32 %v31, %v5139
    %v5141 = vpop.f32.mrb[0].mxu0
    %5142 = vdwg.mxu0
    %v5143 = vmul.f32 %v5140, 0.03125
    %v5144 = vadd.f32 %v4846, %v5143
    %v5146 = vsel %vm33, %v5144, 0
    %5148 = vmatprep.subr.mxu0 0.0
    %5149 = vmatpush1.msra.mxu0 %v21
    %5150 = vmatprep.subr.mxu0 0.0
    %5151 = vmatpush1.msra.mxu0 %v22
    %5152 = vmatprep.subr.mxu0 0.0
    %5153 = vmatpush1.msra.mxu0 %v23
    %5154 = vmatprep.subr.mxu0 0.0
    %5155 = vmatpush1.msra.mxu0 %v24
    %5156 = vmatprep.subr.mxu0 0.0
    %5157 = vmatpush1.msra.mxu0 %v39
    %5158 = vmatprep.subr.mxu0 0.0
    %5159 = vmatpush1.msra.mxu0 0.0
    %5160 = vmatprep.subr.mxu0 0.0
    %5161 = vmatpush1.msra.mxu0 0.0
    %5162 = vmatprep.subr.mxu0 0.0
    %5163 = vmatpush1.msra.mxu0 0.0
    %5164 = vmatprep.subr.mxu0 0.0
    %5165 = vmatpush1.msra.mxu0 0.0
    %5166 = vmatprep.subr.mxu0 0.0
    %5167 = vmatpush1.msra.mxu0 0.0
    %5168 = vmatprep.subr.mxu0 0.0
    %5169 = vmatpush1.msra.mxu0 0.0
    %5170 = vmatprep.subr.mxu0 0.0
    %5171 = vmatpush1.msra.mxu0 0.0
    %5172 = vmatprep.subr.mxu0 0.0
    %5173 = vmatpush1.msra.mxu0 0.0
    %5174 = vmatprep.subr.mxu0 0.0
    %5175 = vmatpush1.msra.mxu0 0.0
    %5176 = vmatprep.subr.mxu0 0.0
    %5177 = vmatpush1.msra.mxu0 0.0
    %5178 = vmatprep.subr.mxu0 0.0
    %5179 = vmatpush1.msra.mxu0 0.0
    %5180 = vmatprep.subr.mxu0 0.0
    %5181 = vmatpush1.msra.mxu0 0.0
    %5182 = vmatprep.subr.mxu0 0.0
    %5183 = vmatpush1.msra.mxu0 0.0
    %5184 = vmatprep.subr.mxu0 0.0
    %5185 = vmatpush1.msra.mxu0 0.0
    %5186 = vmatprep.subr.mxu0 0.0
    %5187 = vmatpush1.msra.mxu0 0.0
    %5188 = vmatprep.subr.mxu0 0.0
    %5189 = vmatpush1.msra.mxu0 0.0
    %5190 = vmatprep.subr.mxu0 0.0
    %5191 = vmatpush1.msra.mxu0 0.0
    %5192 = vmatprep.subr.mxu0 0.0
    %5193 = vmatpush1.msra.mxu0 0.0
    %5194 = vmatprep.subr.mxu0 0.0
    %5195 = vmatpush1.msra.mxu0 0.0
    %5196 = vmatprep.subr.mxu0 0.0
    %5197 = vmatpush1.msra.mxu0 0.0
    %5198 = vmatprep.subr.mxu0 0.0
    %5199 = vmatpush1.msra.mxu0 0.0
    %5200 = vmatprep.subr.mxu0 0.0
    %5201 = vmatpush1.msra.mxu0 0.0
    %5202 = vmatprep.subr.mxu0 0.0
    %5203 = vmatpush1.msra.mxu0 0.0
    %5204 = vmatprep.subr.mxu0 0.0
    %5205 = vmatpush1.msra.mxu0 0.0
    %5206 = vmatprep.subr.mxu0 0.0
    %5207 = vmatpush1.msra.mxu0 0.0
    %5208 = vmatprep.subr.mxu0 0.0
    %5209 = vmatpush1.msra.mxu0 0.0
    %5210 = vmatprep.subr.mxu0 0.0
    %5211 = vmatpush1.msra.mxu0 0.0
    %5212 = vmatprep.mubr.f32.mxu0 0.0
    %5213 = vmatmul.mubr.f32.gmra.mrb[0].mxu0 %v5146
    %v5214 = vpop.f32.mrb[0].mxu0
    %v5215 = vadd.f32 %v26, %v5214
    %v5216 = vpop.f32.mrb[0].mxu0
    %5217 = vdwg.mxu0
    %v5218 = vtanh.pop %v5215
    %v5220 = vsel %vm112, %v5218, 0
    %5222 = vmatprep.subr.mxu0 0.0
    %5223 = vmatpush1.msra.mxu0 %v27
    %5224 = vmatprep.subr.mxu0 0.0
    %5225 = vmatpush1.msra.mxu0 %v28
    %5226 = vmatprep.subr.mxu0 0.0
    %5227 = vmatpush1.msra.mxu0 %v29
    %5228 = vmatprep.subr.mxu0 0.0
    %5229 = vmatpush1.msra.mxu0 %v30
    %5230 = vmatprep.subr.mxu0 0.0
    %5231 = vmatpush1.msra.mxu0 0.0
    %5232 = vmatprep.subr.mxu0 0.0
    %5233 = vmatpush1.msra.mxu0 0.0
    %5234 = vmatprep.subr.mxu0 0.0
    %5235 = vmatpush1.msra.mxu0 0.0
    %5236 = vmatprep.subr.mxu0 0.0
    %5237 = vmatpush1.msra.mxu0 0.0
    %5238 = vmatprep.subr.mxu0 0.0
    %5239 = vmatpush1.msra.mxu0 0.0
    %5240 = vmatprep.subr.mxu0 0.0
    %5241 = vmatpush1.msra.mxu0 0.0
    %5242 = vmatprep.subr.mxu0 0.0
    %5243 = vmatpush1.msra.mxu0 0.0
    %5244 = vmatprep.subr.mxu0 0.0
    %5245 = vmatpush1.msra.mxu0 0.0
    %5246 = vmatprep.subr.mxu0 0.0
    %5247 = vmatpush1.msra.mxu0 0.0
    %5248 = vmatprep.subr.mxu0 0.0
    %5249 = vmatpush1.msra.mxu0 0.0
    %5250 = vmatprep.subr.mxu0 0.0
    %5251 = vmatpush1.msra.mxu0 0.0
    %5252 = vmatprep.subr.mxu0 0.0
    %5253 = vmatpush1.msra.mxu0 0.0
    %5254 = vmatprep.subr.mxu0 0.0
    %5255 = vmatpush1.msra.mxu0 0.0
    %5256 = vmatprep.subr.mxu0 0.0
    %5257 = vmatpush1.msra.mxu0 0.0
    %5258 = vmatprep.subr.mxu0 0.0
    %5259 = vmatpush1.msra.mxu0 0.0
    %5260 = vmatprep.subr.mxu0 0.0
    %5261 = vmatpush1.msra.mxu0 0.0
    %5262 = vmatprep.subr.mxu0 0.0
    %5263 = vmatpush1.msra.mxu0 0.0
    %5264 = vmatprep.subr.mxu0 0.0
    %5265 = vmatpush1.msra.mxu0 0.0
    %5266 = vmatprep.subr.mxu0 0.0
    %5267 = vmatpush1.msra.mxu0 0.0
    %5268 = vmatprep.subr.mxu0 0.0
    %5269 = vmatpush1.msra.mxu0 0.0
    %5270 = vmatprep.subr.mxu0 0.0
    %5271 = vmatpush1.msra.mxu0 0.0
    %5272 = vmatprep.subr.mxu0 0.0
    %5273 = vmatpush1.msra.mxu0 0.0
    %5274 = vmatprep.subr.mxu0 0.0
    %5275 = vmatpush1.msra.mxu0 0.0
    %5276 = vmatprep.subr.mxu0 0.0
    %5277 = vmatpush1.msra.mxu0 0.0
    %5278 = vmatprep.subr.mxu0 0.0
    %5279 = vmatpush1.msra.mxu0 0.0
    %5280 = vmatprep.subr.mxu0 0.0
    %5281 = vmatpush1.msra.mxu0 0.0
    %5282 = vmatprep.subr.mxu0 0.0
    %5283 = vmatpush1.msra.mxu0 0.0
    %5284 = vmatprep.subr.mxu0 0.0
    %5285 = vmatpush1.msra.mxu0 0.0
    %5286 = vmatprep.mubr.f32.mxu0 0.0
    %5287 = vmatmul.mubr.f32.gmra.mrb[0].mxu0 %v5220
    %v5288 = vpop.f32.mrb[0].mxu0
    %v5289 = vadd.f32 %v31, %v5288
    %v5290 = vpop.f32.mrb[0].mxu0
    %5291 = vdwg.mxu0
    %v5292 = vmul.f32 %v5289, 0.0625
    %v5293 = vadd.f32 %v4846, %v5292
    %v5295 = vsel %vm33, %v5293, 0
    %5297 = vmatprep.subr.mxu0 0.0
    %5298 = vmatpush1.msra.mxu0 %v21
    %5299 = vmatprep.subr.mxu0 0.0
    %5300 = vmatpush1.msra.mxu0 %v22
    %5301 = vmatprep.subr.mxu0 0.0
    %5302 = vmatpush1.msra.mxu0 %v23
    %5303 = vmatprep.subr.mxu0 0.0
    %5304 = vmatpush1.msra.mxu0 %v24
    %5305 = vmatprep.subr.mxu0 0.0
    %5306 = vmatpush1.msra.mxu0 %v39
    %5307 = vmatprep.subr.mxu0 0.0
    %5308 = vmatpush1.msra.mxu0 0.0
    %5309 = vmatprep.subr.mxu0 0.0
    %5310 = vmatpush1.msra.mxu0 0.0
    %5311 = vmatprep.subr.mxu0 0.0
    %5312 = vmatpush1.msra.mxu0 0.0
    %5313 = vmatprep.subr.mxu0 0.0
    %5314 = vmatpush1.msra.mxu0 0.0
    %5315 = vmatprep.subr.mxu0 0.0
    %5316 = vmatpush1.msra.mxu0 0.0
    %5317 = vmatprep.subr.mxu0 0.0
    %5318 = vmatpush1.msra.mxu0 0.0
    %5319 = vmatprep.subr.mxu0 0.0
    %5320 = vmatpush1.msra.mxu0 0.0
    %5321 = vmatprep.subr.mxu0 0.0
    %5322 = vmatpush1.msra.mxu0 0.0
    %5323 = vmatprep.subr.mxu0 0.0
    %5324 = vmatpush1.msra.mxu0 0.0
    %5325 = vmatprep.subr.mxu0 0.0
    %5326 = vmatpush1.msra.mxu0 0.0
    %5327 = vmatprep.subr.mxu0 0.0
    %5328 = vmatpush1.msra.mxu0 0.0
    %5329 = vmatprep.subr.mxu0 0.0
    %5330 = vmatpush1.msra.mxu0 0.0
    %5331 = vmatprep.subr.mxu0 0.0
    %5332 = vmatpush1.msra.mxu0 0.0
    %5333 = vmatprep.subr.mxu0 0.0
    %5334 = vmatpush1.msra.mxu0 0.0
    %5335 = vmatprep.subr.mxu0 0.0
    %5336 = vmatpush1.msra.mxu0 0.0
    %5337 = vmatprep.subr.mxu0 0.0
    %5338 = vmatpush1.msra.mxu0 0.0
    %5339 = vmatprep.subr.mxu0 0.0
    %5340 = vmatpush1.msra.mxu0 0.0
    %5341 = vmatprep.subr.mxu0 0.0
    %5342 = vmatpush1.msra.mxu0 0.0
    %5343 = vmatprep.subr.mxu0 0.0
    %5344 = vmatpush1.msra.mxu0 0.0
    %5345 = vmatprep.subr.mxu0 0.0
    %5346 = vmatpush1.msra.mxu0 0.0
    %5347 = vmatprep.subr.mxu0 0.0
    %5348 = vmatpush1.msra.mxu0 0.0
    %5349 = vmatprep.subr.mxu0 0.0
    %5350 = vmatpush1.msra.mxu0 0.0
    %5351 = vmatprep.subr.mxu0 0.0
    %5352 = vmatpush1.msra.mxu0 0.0
    %5353 = vmatprep.subr.mxu0 0.0
    %5354 = vmatpush1.msra.mxu0 0.0
    %5355 = vmatprep.subr.mxu0 0.0
    %5356 = vmatpush1.msra.mxu0 0.0
    %5357 = vmatprep.subr.mxu0 0.0
    %5358 = vmatpush1.msra.mxu0 0.0
    %5359 = vmatprep.subr.mxu0 0.0
    %5360 = vmatpush1.msra.mxu0 0.0
    %5361 = vmatprep.mubr.f32.mxu0 0.0
    %5362 = vmatmul.mubr.f32.gmra.mrb[0].mxu0 %v5295
    %v5363 = vpop.f32.mrb[0].mxu0
    %v5364 = vadd.f32 %v26, %v5363
    %v5365 = vpop.f32.mrb[0].mxu0
    %5366 = vdwg.mxu0
    %v5367 = vtanh.pop %v5364
    %v5369 = vsel %vm112, %v5367, 0
    %5371 = vmatprep.subr.mxu0 0.0
    %5372 = vmatpush1.msra.mxu0 %v27
    %5373 = vmatprep.subr.mxu0 0.0
    %5374 = vmatpush1.msra.mxu0 %v28
    %5375 = vmatprep.subr.mxu0 0.0
    %5376 = vmatpush1.msra.mxu0 %v29
    %5377 = vmatprep.subr.mxu0 0.0
    %5378 = vmatpush1.msra.mxu0 %v30
    %5379 = vmatprep.subr.mxu0 0.0
    %5380 = vmatpush1.msra.mxu0 0.0
    %5381 = vmatprep.subr.mxu0 0.0
    %5382 = vmatpush1.msra.mxu0 0.0
    %5383 = vmatprep.subr.mxu0 0.0
    %5384 = vmatpush1.msra.mxu0 0.0
    %5385 = vmatprep.subr.mxu0 0.0
    %5386 = vmatpush1.msra.mxu0 0.0
    %5387 = vmatprep.subr.mxu0 0.0
    %5388 = vmatpush1.msra.mxu0 0.0
    %5389 = vmatprep.subr.mxu0 0.0
    %5390 = vmatpush1.msra.mxu0 0.0
    %5391 = vmatprep.subr.mxu0 0.0
    %5392 = vmatpush1.msra.mxu0 0.0
    %5393 = vmatprep.subr.mxu0 0.0
    %5394 = vmatpush1.msra.mxu0 0.0
    %5395 = vmatprep.subr.mxu0 0.0
    %5396 = vmatpush1.msra.mxu0 0.0
    %5397 = vmatprep.subr.mxu0 0.0
    %5398 = vmatpush1.msra.mxu0 0.0
    %5399 = vmatprep.subr.mxu0 0.0
    %5400 = vmatpush1.msra.mxu0 0.0
    %5401 = vmatprep.subr.mxu0 0.0
    %5402 = vmatpush1.msra.mxu0 0.0
    %5403 = vmatprep.subr.mxu0 0.0
    %5404 = vmatpush1.msra.mxu0 0.0
    %5405 = vmatprep.subr.mxu0 0.0
    %5406 = vmatpush1.msra.mxu0 0.0
    %5407 = vmatprep.subr.mxu0 0.0
    %5408 = vmatpush1.msra.mxu0 0.0
    %5409 = vmatprep.subr.mxu0 0.0
    %5410 = vmatpush1.msra.mxu0 0.0
    %5411 = vmatprep.subr.mxu0 0.0
    %5412 = vmatpush1.msra.mxu0 0.0
    %5413 = vmatprep.subr.mxu0 0.0
    %5414 = vmatpush1.msra.mxu0 0.0
    %5415 = vmatprep.subr.mxu0 0.0
    %5416 = vmatpush1.msra.mxu0 0.0
    %5417 = vmatprep.subr.mxu0 0.0
    %5418 = vmatpush1.msra.mxu0 0.0
    %5419 = vmatprep.subr.mxu0 0.0
    %5420 = vmatpush1.msra.mxu0 0.0
    %5421 = vmatprep.subr.mxu0 0.0
    %5422 = vmatpush1.msra.mxu0 0.0
    %5423 = vmatprep.subr.mxu0 0.0
    %5424 = vmatpush1.msra.mxu0 0.0
    %5425 = vmatprep.subr.mxu0 0.0
    %5426 = vmatpush1.msra.mxu0 0.0
    %5427 = vmatprep.subr.mxu0 0.0
    %5428 = vmatpush1.msra.mxu0 0.0
    %5429 = vmatprep.subr.mxu0 0.0
    %5430 = vmatpush1.msra.mxu0 0.0
    %5431 = vmatprep.subr.mxu0 0.0
    %5432 = vmatpush1.msra.mxu0 0.0
    %5433 = vmatprep.subr.mxu0 0.0
    %5434 = vmatpush1.msra.mxu0 0.0
    %5435 = vmatprep.mubr.f32.mxu0 0.0
    %5436 = vmatmul.mubr.f32.gmra.mrb[0].mxu0 %v5369
    %v5437 = vpop.f32.mrb[0].mxu0
    %v5438 = vadd.f32 %v31, %v5437
    %v5439 = vpop.f32.mrb[0].mxu0
    %5440 = vdwg.mxu0
    %v5441 = vmul.f32 %v5140, 2.0
    %v5442 = vadd.f32 %v4991, %v5441
    %v5443 = vmul.f32 %v5289, 2.0
    %v5444 = vadd.f32 %v5442, %v5443
    %v5445 = vadd.f32 %v5444, %v5438
    %v5446 = vmul.f32 %v5445, 0.010416667
    %v5447 = vadd.f32 %v4846, %v5446
    %v5449 = vsel %vm33, %v5447, 0
    %5451 = vmatprep.subr.mxu0 0.0
    %5452 = vmatpush1.msra.mxu0 %v21
    %5453 = vmatprep.subr.mxu0 0.0
    %5454 = vmatpush1.msra.mxu0 %v22
    %5455 = vmatprep.subr.mxu0 0.0
    %5456 = vmatpush1.msra.mxu0 %v23
    %5457 = vmatprep.subr.mxu0 0.0
    %5458 = vmatpush1.msra.mxu0 %v24
    %5459 = vmatprep.subr.mxu0 0.0
    %5460 = vmatpush1.msra.mxu0 %v39
    %5461 = vmatprep.subr.mxu0 0.0
    %5462 = vmatpush1.msra.mxu0 0.0
    %5463 = vmatprep.subr.mxu0 0.0
    %5464 = vmatpush1.msra.mxu0 0.0
    %5465 = vmatprep.subr.mxu0 0.0
    %5466 = vmatpush1.msra.mxu0 0.0
    %5467 = vmatprep.subr.mxu0 0.0
    %5468 = vmatpush1.msra.mxu0 0.0
    %5469 = vmatprep.subr.mxu0 0.0
    %5470 = vmatpush1.msra.mxu0 0.0
    %5471 = vmatprep.subr.mxu0 0.0
    %5472 = vmatpush1.msra.mxu0 0.0
    %5473 = vmatprep.subr.mxu0 0.0
    %5474 = vmatpush1.msra.mxu0 0.0
    %5475 = vmatprep.subr.mxu0 0.0
    %5476 = vmatpush1.msra.mxu0 0.0
    %5477 = vmatprep.subr.mxu0 0.0
    %5478 = vmatpush1.msra.mxu0 0.0
    %5479 = vmatprep.subr.mxu0 0.0
    %5480 = vmatpush1.msra.mxu0 0.0
    %5481 = vmatprep.subr.mxu0 0.0
    %5482 = vmatpush1.msra.mxu0 0.0
    %5483 = vmatprep.subr.mxu0 0.0
    %5484 = vmatpush1.msra.mxu0 0.0
    %5485 = vmatprep.subr.mxu0 0.0
    %5486 = vmatpush1.msra.mxu0 0.0
    %5487 = vmatprep.subr.mxu0 0.0
    %5488 = vmatpush1.msra.mxu0 0.0
    %5489 = vmatprep.subr.mxu0 0.0
    %5490 = vmatpush1.msra.mxu0 0.0
    %5491 = vmatprep.subr.mxu0 0.0
    %5492 = vmatpush1.msra.mxu0 0.0
    %5493 = vmatprep.subr.mxu0 0.0
    %5494 = vmatpush1.msra.mxu0 0.0
    %5495 = vmatprep.subr.mxu0 0.0
    %5496 = vmatpush1.msra.mxu0 0.0
    %5497 = vmatprep.subr.mxu0 0.0
    %5498 = vmatpush1.msra.mxu0 0.0
    %5499 = vmatprep.subr.mxu0 0.0
    %5500 = vmatpush1.msra.mxu0 0.0
    %5501 = vmatprep.subr.mxu0 0.0
    %5502 = vmatpush1.msra.mxu0 0.0
    %5503 = vmatprep.subr.mxu0 0.0
    %5504 = vmatpush1.msra.mxu0 0.0
    %5505 = vmatprep.subr.mxu0 0.0
    %5506 = vmatpush1.msra.mxu0 0.0
    %5507 = vmatprep.subr.mxu0 0.0
    %5508 = vmatpush1.msra.mxu0 0.0
    %5509 = vmatprep.subr.mxu0 0.0
    %5510 = vmatpush1.msra.mxu0 0.0
    %5511 = vmatprep.subr.mxu0 0.0
    %5512 = vmatpush1.msra.mxu0 0.0
    %5513 = vmatprep.subr.mxu0 0.0
    %5514 = vmatpush1.msra.mxu0 0.0
    %5515 = vmatprep.mubr.f32.mxu0 0.0
    %5516 = vmatmul.mubr.f32.gmra.mrb[0].mxu0 %v5449
    %v5517 = vpop.f32.mrb[0].mxu0
    %v5518 = vadd.f32 %v26, %v5517
    %v5519 = vpop.f32.mrb[0].mxu0
    %5520 = vdwg.mxu0
    %v5521 = vtanh.pop %v5518
    %v5523 = vsel %vm112, %v5521, 0
    %5525 = vmatprep.subr.mxu0 0.0
    %5526 = vmatpush1.msra.mxu0 %v27
    %5527 = vmatprep.subr.mxu0 0.0
    %5528 = vmatpush1.msra.mxu0 %v28
    %5529 = vmatprep.subr.mxu0 0.0
    %5530 = vmatpush1.msra.mxu0 %v29
    %5531 = vmatprep.subr.mxu0 0.0
    %5532 = vmatpush1.msra.mxu0 %v30
    %5533 = vmatprep.subr.mxu0 0.0
    %5534 = vmatpush1.msra.mxu0 0.0
    %5535 = vmatprep.subr.mxu0 0.0
    %5536 = vmatpush1.msra.mxu0 0.0
    %5537 = vmatprep.subr.mxu0 0.0
    %5538 = vmatpush1.msra.mxu0 0.0
    %5539 = vmatprep.subr.mxu0 0.0
    %5540 = vmatpush1.msra.mxu0 0.0
    %5541 = vmatprep.subr.mxu0 0.0
    %5542 = vmatpush1.msra.mxu0 0.0
    %5543 = vmatprep.subr.mxu0 0.0
    %5544 = vmatpush1.msra.mxu0 0.0
    %5545 = vmatprep.subr.mxu0 0.0
    %5546 = vmatpush1.msra.mxu0 0.0
    %5547 = vmatprep.subr.mxu0 0.0
    %5548 = vmatpush1.msra.mxu0 0.0
    %5549 = vmatprep.subr.mxu0 0.0
    %5550 = vmatpush1.msra.mxu0 0.0
    %5551 = vmatprep.subr.mxu0 0.0
    %5552 = vmatpush1.msra.mxu0 0.0
    %5553 = vmatprep.subr.mxu0 0.0
    %5554 = vmatpush1.msra.mxu0 0.0
    %5555 = vmatprep.subr.mxu0 0.0
    %5556 = vmatpush1.msra.mxu0 0.0
    %5557 = vmatprep.subr.mxu0 0.0
    %5558 = vmatpush1.msra.mxu0 0.0
    %5559 = vmatprep.subr.mxu0 0.0
    %5560 = vmatpush1.msra.mxu0 0.0
    %5561 = vmatprep.subr.mxu0 0.0
    %5562 = vmatpush1.msra.mxu0 0.0
    %5563 = vmatprep.subr.mxu0 0.0
    %5564 = vmatpush1.msra.mxu0 0.0
    %5565 = vmatprep.subr.mxu0 0.0
    %5566 = vmatpush1.msra.mxu0 0.0
    %5567 = vmatprep.subr.mxu0 0.0
    %5568 = vmatpush1.msra.mxu0 0.0
    %5569 = vmatprep.subr.mxu0 0.0
    %5570 = vmatpush1.msra.mxu0 0.0
    %5571 = vmatprep.subr.mxu0 0.0
    %5572 = vmatpush1.msra.mxu0 0.0
    %5573 = vmatprep.subr.mxu0 0.0
    %5574 = vmatpush1.msra.mxu0 0.0
    %5575 = vmatprep.subr.mxu0 0.0
    %5576 = vmatpush1.msra.mxu0 0.0
    %5577 = vmatprep.subr.mxu0 0.0
    %5578 = vmatpush1.msra.mxu0 0.0
    %5579 = vmatprep.subr.mxu0 0.0
    %5580 = vmatpush1.msra.mxu0 0.0
    %5581 = vmatprep.subr.mxu0 0.0
    %5582 = vmatpush1.msra.mxu0 0.0
    %5583 = vmatprep.subr.mxu0 0.0
    %5584 = vmatpush1.msra.mxu0 0.0
    %5585 = vmatprep.subr.mxu0 0.0
    %5586 = vmatpush1.msra.mxu0 0.0
    %5587 = vmatprep.subr.mxu0 0.0
    %5588 = vmatpush1.msra.mxu0 0.0
    %5589 = vmatprep.mubr.f32.mxu0 0.0
    %5590 = vmatmul.mubr.f32.gmra.mrb[0].mxu0 %v5523
    %v5591 = vpop.f32.mrb[0].mxu0
    %v5592 = vadd.f32 %v31, %v5591
    %v5593 = vpop.f32.mrb[0].mxu0
    %5594 = vdwg.mxu0
    %v5595 = vmul.f32 %v5592, 0.03125
    %v5596 = vadd.f32 %v5447, %v5595
    %v5598 = vsel %vm33, %v5596, 0
    %5600 = vmatprep.subr.mxu0 0.0
    %5601 = vmatpush1.msra.mxu0 %v21
    %5602 = vmatprep.subr.mxu0 0.0
    %5603 = vmatpush1.msra.mxu0 %v22
    %5604 = vmatprep.subr.mxu0 0.0
    %5605 = vmatpush1.msra.mxu0 %v23
    %5606 = vmatprep.subr.mxu0 0.0
    %5607 = vmatpush1.msra.mxu0 %v24
    %5608 = vmatprep.subr.mxu0 0.0
    %5609 = vmatpush1.msra.mxu0 %v39
    %5610 = vmatprep.subr.mxu0 0.0
    %5611 = vmatpush1.msra.mxu0 0.0
    %5612 = vmatprep.subr.mxu0 0.0
    %5613 = vmatpush1.msra.mxu0 0.0
    %5614 = vmatprep.subr.mxu0 0.0
    %5615 = vmatpush1.msra.mxu0 0.0
    %5616 = vmatprep.subr.mxu0 0.0
    %5617 = vmatpush1.msra.mxu0 0.0
    %5618 = vmatprep.subr.mxu0 0.0
    %5619 = vmatpush1.msra.mxu0 0.0
    %5620 = vmatprep.subr.mxu0 0.0
    %5621 = vmatpush1.msra.mxu0 0.0
    %5622 = vmatprep.subr.mxu0 0.0
    %5623 = vmatpush1.msra.mxu0 0.0
    %5624 = vmatprep.subr.mxu0 0.0
    %5625 = vmatpush1.msra.mxu0 0.0
    %5626 = vmatprep.subr.mxu0 0.0
    %5627 = vmatpush1.msra.mxu0 0.0
    %5628 = vmatprep.subr.mxu0 0.0
    %5629 = vmatpush1.msra.mxu0 0.0
    %5630 = vmatprep.subr.mxu0 0.0
    %5631 = vmatpush1.msra.mxu0 0.0
    %5632 = vmatprep.subr.mxu0 0.0
    %5633 = vmatpush1.msra.mxu0 0.0
    %5634 = vmatprep.subr.mxu0 0.0
    %5635 = vmatpush1.msra.mxu0 0.0
    %5636 = vmatprep.subr.mxu0 0.0
    %5637 = vmatpush1.msra.mxu0 0.0
    %5638 = vmatprep.subr.mxu0 0.0
    %5639 = vmatpush1.msra.mxu0 0.0
    %5640 = vmatprep.subr.mxu0 0.0
    %5641 = vmatpush1.msra.mxu0 0.0
    %5642 = vmatprep.subr.mxu0 0.0
    %5643 = vmatpush1.msra.mxu0 0.0
    %5644 = vmatprep.subr.mxu0 0.0
    %5645 = vmatpush1.msra.mxu0 0.0
    %5646 = vmatprep.subr.mxu0 0.0
    %5647 = vmatpush1.msra.mxu0 0.0
    %5648 = vmatprep.subr.mxu0 0.0
    %5649 = vmatpush1.msra.mxu0 0.0
    %5650 = vmatprep.subr.mxu0 0.0
    %5651 = vmatpush1.msra.mxu0 0.0
    %5652 = vmatprep.subr.mxu0 0.0
    %5653 = vmatpush1.msra.mxu0 0.0
    %5654 = vmatprep.subr.mxu0 0.0
    %5655 = vmatpush1.msra.mxu0 0.0
    %5656 = vmatprep.subr.mxu0 0.0
    %5657 = vmatpush1.msra.mxu0 0.0
    %5658 = vmatprep.subr.mxu0 0.0
    %5659 = vmatpush1.msra.mxu0 0.0
    %5660 = vmatprep.subr.mxu0 0.0
    %5661 = vmatpush1.msra.mxu0 0.0
    %5662 = vmatprep.subr.mxu0 0.0
    %5663 = vmatpush1.msra.mxu0 0.0
    %5664 = vmatprep.mubr.f32.mxu0 0.0
    %5665 = vmatmul.mubr.f32.gmra.mrb[0].mxu0 %v5598
    %v5666 = vpop.f32.mrb[0].mxu0
    %v5667 = vadd.f32 %v26, %v5666
    %v5668 = vpop.f32.mrb[0].mxu0
    %5669 = vdwg.mxu0
    %v5670 = vtanh.pop %v5667
    %v5672 = vsel %vm112, %v5670, 0
    %5674 = vmatprep.subr.mxu0 0.0
    %5675 = vmatpush1.msra.mxu0 %v27
    %5676 = vmatprep.subr.mxu0 0.0
    %5677 = vmatpush1.msra.mxu0 %v28
    %5678 = vmatprep.subr.mxu0 0.0
    %5679 = vmatpush1.msra.mxu0 %v29
    %5680 = vmatprep.subr.mxu0 0.0
    %5681 = vmatpush1.msra.mxu0 %v30
    %5682 = vmatprep.subr.mxu0 0.0
    %5683 = vmatpush1.msra.mxu0 0.0
    %5684 = vmatprep.subr.mxu0 0.0
    %5685 = vmatpush1.msra.mxu0 0.0
    %5686 = vmatprep.subr.mxu0 0.0
    %5687 = vmatpush1.msra.mxu0 0.0
    %5688 = vmatprep.subr.mxu0 0.0
    %5689 = vmatpush1.msra.mxu0 0.0
    %5690 = vmatprep.subr.mxu0 0.0
    %5691 = vmatpush1.msra.mxu0 0.0
    %5692 = vmatprep.subr.mxu0 0.0
    %5693 = vmatpush1.msra.mxu0 0.0
    %5694 = vmatprep.subr.mxu0 0.0
    %5695 = vmatpush1.msra.mxu0 0.0
    %5696 = vmatprep.subr.mxu0 0.0
    %5697 = vmatpush1.msra.mxu0 0.0
    %5698 = vmatprep.subr.mxu0 0.0
    %5699 = vmatpush1.msra.mxu0 0.0
    %5700 = vmatprep.subr.mxu0 0.0
    %5701 = vmatpush1.msra.mxu0 0.0
    %5702 = vmatprep.subr.mxu0 0.0
    %5703 = vmatpush1.msra.mxu0 0.0
    %5704 = vmatprep.subr.mxu0 0.0
    %5705 = vmatpush1.msra.mxu0 0.0
    %5706 = vmatprep.subr.mxu0 0.0
    %5707 = vmatpush1.msra.mxu0 0.0
    %5708 = vmatprep.subr.mxu0 0.0
    %5709 = vmatpush1.msra.mxu0 0.0
    %5710 = vmatprep.subr.mxu0 0.0
    %5711 = vmatpush1.msra.mxu0 0.0
    %5712 = vmatprep.subr.mxu0 0.0
    %5713 = vmatpush1.msra.mxu0 0.0
    %5714 = vmatprep.subr.mxu0 0.0
    %5715 = vmatpush1.msra.mxu0 0.0
    %5716 = vmatprep.subr.mxu0 0.0
    %5717 = vmatpush1.msra.mxu0 0.0
    %5718 = vmatprep.subr.mxu0 0.0
    %5719 = vmatpush1.msra.mxu0 0.0
    %5720 = vmatprep.subr.mxu0 0.0
    %5721 = vmatpush1.msra.mxu0 0.0
    %5722 = vmatprep.subr.mxu0 0.0
    %5723 = vmatpush1.msra.mxu0 0.0
    %5724 = vmatprep.subr.mxu0 0.0
    %5725 = vmatpush1.msra.mxu0 0.0
    %5726 = vmatprep.subr.mxu0 0.0
    %5727 = vmatpush1.msra.mxu0 0.0
    %5728 = vmatprep.subr.mxu0 0.0
    %5729 = vmatpush1.msra.mxu0 0.0
    %5730 = vmatprep.subr.mxu0 0.0
    %5731 = vmatpush1.msra.mxu0 0.0
    %5732 = vmatprep.subr.mxu0 0.0
    %5733 = vmatpush1.msra.mxu0 0.0
    %5734 = vmatprep.subr.mxu0 0.0
    %5735 = vmatpush1.msra.mxu0 0.0
    %5736 = vmatprep.subr.mxu0 0.0
    %5737 = vmatpush1.msra.mxu0 0.0
    %5738 = vmatprep.mubr.f32.mxu0 0.0
    %5739 = vmatmul.mubr.f32.gmra.mrb[0].mxu0 %v5672
    %v5740 = vpop.f32.mrb[0].mxu0
    %v5741 = vadd.f32 %v31, %v5740
    %v5742 = vpop.f32.mrb[0].mxu0
    %5743 = vdwg.mxu0
    %v5744 = vmul.f32 %v5741, 0.03125
    %v5745 = vadd.f32 %v5447, %v5744
    %v5747 = vsel %vm33, %v5745, 0
    %5749 = vmatprep.subr.mxu0 0.0
    %5750 = vmatpush1.msra.mxu0 %v21
    %5751 = vmatprep.subr.mxu0 0.0
    %5752 = vmatpush1.msra.mxu0 %v22
    %5753 = vmatprep.subr.mxu0 0.0
    %5754 = vmatpush1.msra.mxu0 %v23
    %5755 = vmatprep.subr.mxu0 0.0
    %5756 = vmatpush1.msra.mxu0 %v24
    %5757 = vmatprep.subr.mxu0 0.0
    %5758 = vmatpush1.msra.mxu0 %v39
    %5759 = vmatprep.subr.mxu0 0.0
    %5760 = vmatpush1.msra.mxu0 0.0
    %5761 = vmatprep.subr.mxu0 0.0
    %5762 = vmatpush1.msra.mxu0 0.0
    %5763 = vmatprep.subr.mxu0 0.0
    %5764 = vmatpush1.msra.mxu0 0.0
    %5765 = vmatprep.subr.mxu0 0.0
    %5766 = vmatpush1.msra.mxu0 0.0
    %5767 = vmatprep.subr.mxu0 0.0
    %5768 = vmatpush1.msra.mxu0 0.0
    %5769 = vmatprep.subr.mxu0 0.0
    %5770 = vmatpush1.msra.mxu0 0.0
    %5771 = vmatprep.subr.mxu0 0.0
    %5772 = vmatpush1.msra.mxu0 0.0
    %5773 = vmatprep.subr.mxu0 0.0
    %5774 = vmatpush1.msra.mxu0 0.0
    %5775 = vmatprep.subr.mxu0 0.0
    %5776 = vmatpush1.msra.mxu0 0.0
    %5777 = vmatprep.subr.mxu0 0.0
    %5778 = vmatpush1.msra.mxu0 0.0
    %5779 = vmatprep.subr.mxu0 0.0
    %5780 = vmatpush1.msra.mxu0 0.0
    %5781 = vmatprep.subr.mxu0 0.0
    %5782 = vmatpush1.msra.mxu0 0.0
    %5783 = vmatprep.subr.mxu0 0.0
    %5784 = vmatpush1.msra.mxu0 0.0
    %5785 = vmatprep.subr.mxu0 0.0
    %5786 = vmatpush1.msra.mxu0 0.0
    %5787 = vmatprep.subr.mxu0 0.0
    %5788 = vmatpush1.msra.mxu0 0.0
    %5789 = vmatprep.subr.mxu0 0.0
    %5790 = vmatpush1.msra.mxu0 0.0
    %5791 = vmatprep.subr.mxu0 0.0
    %5792 = vmatpush1.msra.mxu0 0.0
    %5793 = vmatprep.subr.mxu0 0.0
    %5794 = vmatpush1.msra.mxu0 0.0
    %5795 = vmatprep.subr.mxu0 0.0
    %5796 = vmatpush1.msra.mxu0 0.0
    %5797 = vmatprep.subr.mxu0 0.0
    %5798 = vmatpush1.msra.mxu0 0.0
    %5799 = vmatprep.subr.mxu0 0.0
    %5800 = vmatpush1.msra.mxu0 0.0
    %5801 = vmatprep.subr.mxu0 0.0
    %5802 = vmatpush1.msra.mxu0 0.0
    %5803 = vmatprep.subr.mxu0 0.0
    %5804 = vmatpush1.msra.mxu0 0.0
    %5805 = vmatprep.subr.mxu0 0.0
    %5806 = vmatpush1.msra.mxu0 0.0
    %5807 = vmatprep.subr.mxu0 0.0
    %5808 = vmatpush1.msra.mxu0 0.0
    %5809 = vmatprep.subr.mxu0 0.0
    %5810 = vmatpush1.msra.mxu0 0.0
    %5811 = vmatprep.subr.mxu0 0.0
    %5812 = vmatpush1.msra.mxu0 0.0
    %5813 = vmatprep.mubr.f32.mxu0 0.0
    %5814 = vmatmul.mubr.f32.gmra.mrb[0].mxu0 %v5747
    %v5815 = vpop.f32.mrb[0].mxu0
    %v5816 = vadd.f32 %v26, %v5815
    %v5817 = vpop.f32.mrb[0].mxu0
    %5818 = vdwg.mxu0
    %v5819 = vtanh.pop %v5816
    %v5821 = vsel %vm112, %v5819, 0
    %5823 = vmatprep.subr.mxu0 0.0
    %5824 = vmatpush1.msra.mxu0 %v27
    %5825 = vmatprep.subr.mxu0 0.0
    %5826 = vmatpush1.msra.mxu0 %v28
    %5827 = vmatprep.subr.mxu0 0.0
    %5828 = vmatpush1.msra.mxu0 %v29
    %5829 = vmatprep.subr.mxu0 0.0
    %5830 = vmatpush1.msra.mxu0 %v30
    %5831 = vmatprep.subr.mxu0 0.0
    %5832 = vmatpush1.msra.mxu0 0.0
    %5833 = vmatprep.subr.mxu0 0.0
    %5834 = vmatpush1.msra.mxu0 0.0
    %5835 = vmatprep.subr.mxu0 0.0
    %5836 = vmatpush1.msra.mxu0 0.0
    %5837 = vmatprep.subr.mxu0 0.0
    %5838 = vmatpush1.msra.mxu0 0.0
    %5839 = vmatprep.subr.mxu0 0.0
    %5840 = vmatpush1.msra.mxu0 0.0
    %5841 = vmatprep.subr.mxu0 0.0
    %5842 = vmatpush1.msra.mxu0 0.0
    %5843 = vmatprep.subr.mxu0 0.0
    %5844 = vmatpush1.msra.mxu0 0.0
    %5845 = vmatprep.subr.mxu0 0.0
    %5846 = vmatpush1.msra.mxu0 0.0
    %5847 = vmatprep.subr.mxu0 0.0
    %5848 = vmatpush1.msra.mxu0 0.0
    %5849 = vmatprep.subr.mxu0 0.0
    %5850 = vmatpush1.msra.mxu0 0.0
    %5851 = vmatprep.subr.mxu0 0.0
    %5852 = vmatpush1.msra.mxu0 0.0
    %5853 = vmatprep.subr.mxu0 0.0
    %5854 = vmatpush1.msra.mxu0 0.0
    %5855 = vmatprep.subr.mxu0 0.0
    %5856 = vmatpush1.msra.mxu0 0.0
    %5857 = vmatprep.subr.mxu0 0.0
    %5858 = vmatpush1.msra.mxu0 0.0
    %5859 = vmatprep.subr.mxu0 0.0
    %5860 = vmatpush1.msra.mxu0 0.0
    %5861 = vmatprep.subr.mxu0 0.0
    %5862 = vmatpush1.msra.mxu0 0.0
    %5863 = vmatprep.subr.mxu0 0.0
    %5864 = vmatpush1.msra.mxu0 0.0
    %5865 = vmatprep.subr.mxu0 0.0
    %5866 = vmatpush1.msra.mxu0 0.0
    %5867 = vmatprep.subr.mxu0 0.0
    %5868 = vmatpush1.msra.mxu0 0.0
    %5869 = vmatprep.subr.mxu0 0.0
    %5870 = vmatpush1.msra.mxu0 0.0
    %5871 = vmatprep.subr.mxu0 0.0
    %5872 = vmatpush1.msra.mxu0 0.0
    %5873 = vmatprep.subr.mxu0 0.0
    %5874 = vmatpush1.msra.mxu0 0.0
    %5875 = vmatprep.subr.mxu0 0.0
    %5876 = vmatpush1.msra.mxu0 0.0
    %5877 = vmatprep.subr.mxu0 0.0
    %5878 = vmatpush1.msra.mxu0 0.0
    %5879 = vmatprep.subr.mxu0 0.0
    %5880 = vmatpush1.msra.mxu0 0.0
    %5881 = vmatprep.subr.mxu0 0.0
    %5882 = vmatpush1.msra.mxu0 0.0
    %5883 = vmatprep.subr.mxu0 0.0
    %5884 = vmatpush1.msra.mxu0 0.0
    %5885 = vmatprep.subr.mxu0 0.0
    %5886 = vmatpush1.msra.mxu0 0.0
    %5887 = vmatprep.mubr.f32.mxu0 0.0
    %5888 = vmatmul.mubr.f32.gmra.mrb[0].mxu0 %v5821
    %v5889 = vpop.f32.mrb[0].mxu0
    %v5890 = vadd.f32 %v31, %v5889
    %v5891 = vpop.f32.mrb[0].mxu0
    %5892 = vdwg.mxu0
    %v5893 = vmul.f32 %v5890, 0.0625
    %v5894 = vadd.f32 %v5447, %v5893
    %v5896 = vsel %vm33, %v5894, 0
    %5898 = vmatprep.subr.mxu0 0.0
    %5899 = vmatpush1.msra.mxu0 %v21
    %5900 = vmatprep.subr.mxu0 0.0
    %5901 = vmatpush1.msra.mxu0 %v22
    %5902 = vmatprep.subr.mxu0 0.0
    %5903 = vmatpush1.msra.mxu0 %v23
    %5904 = vmatprep.subr.mxu0 0.0
    %5905 = vmatpush1.msra.mxu0 %v24
    %5906 = vmatprep.subr.mxu0 0.0
    %5907 = vmatpush1.msra.mxu0 %v39
    %5908 = vmatprep.subr.mxu0 0.0
    %5909 = vmatpush1.msra.mxu0 0.0
    %5910 = vmatprep.subr.mxu0 0.0
    %5911 = vmatpush1.msra.mxu0 0.0
    %5912 = vmatprep.subr.mxu0 0.0
    %5913 = vmatpush1.msra.mxu0 0.0
    %5914 = vmatprep.subr.mxu0 0.0
    %5915 = vmatpush1.msra.mxu0 0.0
    %5916 = vmatprep.subr.mxu0 0.0
    %5917 = vmatpush1.msra.mxu0 0.0
    %5918 = vmatprep.subr.mxu0 0.0
    %5919 = vmatpush1.msra.mxu0 0.0
    %5920 = vmatprep.subr.mxu0 0.0
    %5921 = vmatpush1.msra.mxu0 0.0
    %5922 = vmatprep.subr.mxu0 0.0
    %5923 = vmatpush1.msra.mxu0 0.0
    %5924 = vmatprep.subr.mxu0 0.0
    %5925 = vmatpush1.msra.mxu0 0.0
    %5926 = vmatprep.subr.mxu0 0.0
    %5927 = vmatpush1.msra.mxu0 0.0
    %5928 = vmatprep.subr.mxu0 0.0
    %5929 = vmatpush1.msra.mxu0 0.0
    %5930 = vmatprep.subr.mxu0 0.0
    %5931 = vmatpush1.msra.mxu0 0.0
    %5932 = vmatprep.subr.mxu0 0.0
    %5933 = vmatpush1.msra.mxu0 0.0
    %5934 = vmatprep.subr.mxu0 0.0
    %5935 = vmatpush1.msra.mxu0 0.0
    %5936 = vmatprep.subr.mxu0 0.0
    %5937 = vmatpush1.msra.mxu0 0.0
    %5938 = vmatprep.subr.mxu0 0.0
    %5939 = vmatpush1.msra.mxu0 0.0
    %5940 = vmatprep.subr.mxu0 0.0
    %5941 = vmatpush1.msra.mxu0 0.0
    %5942 = vmatprep.subr.mxu0 0.0
    %5943 = vmatpush1.msra.mxu0 0.0
    %5944 = vmatprep.subr.mxu0 0.0
    %5945 = vmatpush1.msra.mxu0 0.0
    %5946 = vmatprep.subr.mxu0 0.0
    %5947 = vmatpush1.msra.mxu0 0.0
    %5948 = vmatprep.subr.mxu0 0.0
    %5949 = vmatpush1.msra.mxu0 0.0
    %5950 = vmatprep.subr.mxu0 0.0
    %5951 = vmatpush1.msra.mxu0 0.0
    %5952 = vmatprep.subr.mxu0 0.0
    %5953 = vmatpush1.msra.mxu0 0.0
    %5954 = vmatprep.subr.mxu0 0.0
    %5955 = vmatpush1.msra.mxu0 0.0
    %5956 = vmatprep.subr.mxu0 0.0
    %5957 = vmatpush1.msra.mxu0 0.0
    %5958 = vmatprep.subr.mxu0 0.0
    %5959 = vmatpush1.msra.mxu0 0.0
    %5960 = vmatprep.subr.mxu0 0.0
    %5961 = vmatpush1.msra.mxu0 0.0
    %5962 = vmatprep.mubr.f32.mxu0 0.0
    %5963 = vmatmul.mubr.f32.gmra.mrb[0].mxu0 %v5896
    %v5964 = vpop.f32.mrb[0].mxu0
    %v5965 = vadd.f32 %v26, %v5964
    %v5966 = vpop.f32.mrb[0].mxu0
    %5967 = vdwg.mxu0
    %v5968 = vtanh.pop %v5965
    %v5970 = vsel %vm112, %v5968, 0
    %5972 = vmatprep.subr.mxu0 0.0
    %5973 = vmatpush1.msra.mxu0 %v27
    %5974 = vmatprep.subr.mxu0 0.0
    %5975 = vmatpush1.msra.mxu0 %v28
    %5976 = vmatprep.subr.mxu0 0.0
    %5977 = vmatpush1.msra.mxu0 %v29
    %5978 = vmatprep.subr.mxu0 0.0
    %5979 = vmatpush1.msra.mxu0 %v30
    %5980 = vmatprep.subr.mxu0 0.0
    %5981 = vmatpush1.msra.mxu0 0.0
    %5982 = vmatprep.subr.mxu0 0.0
    %5983 = vmatpush1.msra.mxu0 0.0
    %5984 = vmatprep.subr.mxu0 0.0
    %5985 = vmatpush1.msra.mxu0 0.0
    %5986 = vmatprep.subr.mxu0 0.0
    %5987 = vmatpush1.msra.mxu0 0.0
    %5988 = vmatprep.subr.mxu0 0.0
    %5989 = vmatpush1.msra.mxu0 0.0
    %5990 = vmatprep.subr.mxu0 0.0
    %5991 = vmatpush1.msra.mxu0 0.0
    %5992 = vmatprep.subr.mxu0 0.0
    %5993 = vmatpush1.msra.mxu0 0.0
    %5994 = vmatprep.subr.mxu0 0.0
    %5995 = vmatpush1.msra.mxu0 0.0
    %5996 = vmatprep.subr.mxu0 0.0
    %5997 = vmatpush1.msra.mxu0 0.0
    %5998 = vmatprep.subr.mxu0 0.0
    %5999 = vmatpush1.msra.mxu0 0.0
    %6000 = vmatprep.subr.mxu0 0.0
    %6001 = vmatpush1.msra.mxu0 0.0
    %6002 = vmatprep.subr.mxu0 0.0
    %6003 = vmatpush1.msra.mxu0 0.0
    %6004 = vmatprep.subr.mxu0 0.0
    %6005 = vmatpush1.msra.mxu0 0.0
    %6006 = vmatprep.subr.mxu0 0.0
    %6007 = vmatpush1.msra.mxu0 0.0
    %6008 = vmatprep.subr.mxu0 0.0
    %6009 = vmatpush1.msra.mxu0 0.0
    %6010 = vmatprep.subr.mxu0 0.0
    %6011 = vmatpush1.msra.mxu0 0.0
    %6012 = vmatprep.subr.mxu0 0.0
    %6013 = vmatpush1.msra.mxu0 0.0
    %6014 = vmatprep.subr.mxu0 0.0
    %6015 = vmatpush1.msra.mxu0 0.0
    %6016 = vmatprep.subr.mxu0 0.0
    %6017 = vmatpush1.msra.mxu0 0.0
    %6018 = vmatprep.subr.mxu0 0.0
    %6019 = vmatpush1.msra.mxu0 0.0
    %6020 = vmatprep.subr.mxu0 0.0
    %6021 = vmatpush1.msra.mxu0 0.0
    %6022 = vmatprep.subr.mxu0 0.0
    %6023 = vmatpush1.msra.mxu0 0.0
    %6024 = vmatprep.subr.mxu0 0.0
    %6025 = vmatpush1.msra.mxu0 0.0
    %6026 = vmatprep.subr.mxu0 0.0
    %6027 = vmatpush1.msra.mxu0 0.0
    %6028 = vmatprep.subr.mxu0 0.0
    %6029 = vmatpush1.msra.mxu0 0.0
    %6030 = vmatprep.subr.mxu0 0.0
    %6031 = vmatpush1.msra.mxu0 0.0
    %6032 = vmatprep.subr.mxu0 0.0
    %6033 = vmatpush1.msra.mxu0 0.0
    %6034 = vmatprep.subr.mxu0 0.0
    %6035 = vmatpush1.msra.mxu0 0.0
    %6036 = vmatprep.mubr.f32.mxu0 0.0
    %6037 = vmatmul.mubr.f32.gmra.mrb[0].mxu0 %v5970
    %v6038 = vpop.f32.mrb[0].mxu0
    %v6039 = vadd.f32 %v31, %v6038
    %v6040 = vpop.f32.mrb[0].mxu0
    %6041 = vdwg.mxu0
    %v6042 = vmul.f32 %v5741, 2.0
    %v6043 = vadd.f32 %v5592, %v6042
    %v6044 = vmul.f32 %v5890, 2.0
    %v6045 = vadd.f32 %v6043, %v6044
    %v6046 = vadd.f32 %v6045, %v6039
    %v6047 = vmul.f32 %v6046, 0.010416667
    %v6048 = vadd.f32 %v5447, %v6047
    %v6050 = vsel %vm33, %v6048, 0
    %6052 = vmatprep.subr.mxu0 0.0
    %6053 = vmatpush1.msra.mxu0 %v21
    %6054 = vmatprep.subr.mxu0 0.0
    %6055 = vmatpush1.msra.mxu0 %v22
    %6056 = vmatprep.subr.mxu0 0.0
    %6057 = vmatpush1.msra.mxu0 %v23
    %6058 = vmatprep.subr.mxu0 0.0
    %6059 = vmatpush1.msra.mxu0 %v24
    %6060 = vmatprep.subr.mxu0 0.0
    %6061 = vmatpush1.msra.mxu0 %v39
    %6062 = vmatprep.subr.mxu0 0.0
    %6063 = vmatpush1.msra.mxu0 0.0
    %6064 = vmatprep.subr.mxu0 0.0
    %6065 = vmatpush1.msra.mxu0 0.0
    %6066 = vmatprep.subr.mxu0 0.0
    %6067 = vmatpush1.msra.mxu0 0.0
    %6068 = vmatprep.subr.mxu0 0.0
    %6069 = vmatpush1.msra.mxu0 0.0
    %6070 = vmatprep.subr.mxu0 0.0
    %6071 = vmatpush1.msra.mxu0 0.0
    %6072 = vmatprep.subr.mxu0 0.0
    %6073 = vmatpush1.msra.mxu0 0.0
    %6074 = vmatprep.subr.mxu0 0.0
    %6075 = vmatpush1.msra.mxu0 0.0
    %6076 = vmatprep.subr.mxu0 0.0
    %6077 = vmatpush1.msra.mxu0 0.0
    %6078 = vmatprep.subr.mxu0 0.0
    %6079 = vmatpush1.msra.mxu0 0.0
    %6080 = vmatprep.subr.mxu0 0.0
    %6081 = vmatpush1.msra.mxu0 0.0
    %6082 = vmatprep.subr.mxu0 0.0
    %6083 = vmatpush1.msra.mxu0 0.0
    %6084 = vmatprep.subr.mxu0 0.0
    %6085 = vmatpush1.msra.mxu0 0.0
    %6086 = vmatprep.subr.mxu0 0.0
    %6087 = vmatpush1.msra.mxu0 0.0
    %6088 = vmatprep.subr.mxu0 0.0
    %6089 = vmatpush1.msra.mxu0 0.0
    %6090 = vmatprep.subr.mxu0 0.0
    %6091 = vmatpush1.msra.mxu0 0.0
    %6092 = vmatprep.subr.mxu0 0.0
    %6093 = vmatpush1.msra.mxu0 0.0
    %6094 = vmatprep.subr.mxu0 0.0
    %6095 = vmatpush1.msra.mxu0 0.0
    %6096 = vmatprep.subr.mxu0 0.0
    %6097 = vmatpush1.msra.mxu0 0.0
    %6098 = vmatprep.subr.mxu0 0.0
    %6099 = vmatpush1.msra.mxu0 0.0
    %6100 = vmatprep.subr.mxu0 0.0
    %6101 = vmatpush1.msra.mxu0 0.0
    %6102 = vmatprep.subr.mxu0 0.0
    %6103 = vmatpush1.msra.mxu0 0.0
    %6104 = vmatprep.subr.mxu0 0.0
    %6105 = vmatpush1.msra.mxu0 0.0
    %6106 = vmatprep.subr.mxu0 0.0
    %6107 = vmatpush1.msra.mxu0 0.0
    %6108 = vmatprep.subr.mxu0 0.0
    %6109 = vmatpush1.msra.mxu0 0.0
    %6110 = vmatprep.subr.mxu0 0.0
    %6111 = vmatpush1.msra.mxu0 0.0
    %6112 = vmatprep.subr.mxu0 0.0
    %6113 = vmatpush1.msra.mxu0 0.0
    %6114 = vmatprep.subr.mxu0 0.0
    %6115 = vmatpush1.msra.mxu0 0.0
    %6116 = vmatprep.mubr.f32.mxu0 0.0
    %6117 = vmatmul.mubr.f32.gmra.mrb[0].mxu0 %v6050
    %v6118 = vpop.f32.mrb[0].mxu0
    %v6119 = vadd.f32 %v26, %v6118
    %v6120 = vpop.f32.mrb[0].mxu0
    %6121 = vdwg.mxu0
    %v6122 = vtanh.pop %v6119
    %v6124 = vsel %vm112, %v6122, 0
    %6126 = vmatprep.subr.mxu0 0.0
    %6127 = vmatpush1.msra.mxu0 %v27
    %6128 = vmatprep.subr.mxu0 0.0
    %6129 = vmatpush1.msra.mxu0 %v28
    %6130 = vmatprep.subr.mxu0 0.0
    %6131 = vmatpush1.msra.mxu0 %v29
    %6132 = vmatprep.subr.mxu0 0.0
    %6133 = vmatpush1.msra.mxu0 %v30
    %6134 = vmatprep.subr.mxu0 0.0
    %6135 = vmatpush1.msra.mxu0 0.0
    %6136 = vmatprep.subr.mxu0 0.0
    %6137 = vmatpush1.msra.mxu0 0.0
    %6138 = vmatprep.subr.mxu0 0.0
    %6139 = vmatpush1.msra.mxu0 0.0
    %6140 = vmatprep.subr.mxu0 0.0
    %6141 = vmatpush1.msra.mxu0 0.0
    %6142 = vmatprep.subr.mxu0 0.0
    %6143 = vmatpush1.msra.mxu0 0.0
    %6144 = vmatprep.subr.mxu0 0.0
    %6145 = vmatpush1.msra.mxu0 0.0
    %6146 = vmatprep.subr.mxu0 0.0
    %6147 = vmatpush1.msra.mxu0 0.0
    %6148 = vmatprep.subr.mxu0 0.0
    %6149 = vmatpush1.msra.mxu0 0.0
    %6150 = vmatprep.subr.mxu0 0.0
    %6151 = vmatpush1.msra.mxu0 0.0
    %6152 = vmatprep.subr.mxu0 0.0
    %6153 = vmatpush1.msra.mxu0 0.0
    %6154 = vmatprep.subr.mxu0 0.0
    %6155 = vmatpush1.msra.mxu0 0.0
    %6156 = vmatprep.subr.mxu0 0.0
    %6157 = vmatpush1.msra.mxu0 0.0
    %6158 = vmatprep.subr.mxu0 0.0
    %6159 = vmatpush1.msra.mxu0 0.0
    %6160 = vmatprep.subr.mxu0 0.0
    %6161 = vmatpush1.msra.mxu0 0.0
    %6162 = vmatprep.subr.mxu0 0.0
    %6163 = vmatpush1.msra.mxu0 0.0
    %6164 = vmatprep.subr.mxu0 0.0
    %6165 = vmatpush1.msra.mxu0 0.0
    %6166 = vmatprep.subr.mxu0 0.0
    %6167 = vmatpush1.msra.mxu0 0.0
    %6168 = vmatprep.subr.mxu0 0.0
    %6169 = vmatpush1.msra.mxu0 0.0
    %6170 = vmatprep.subr.mxu0 0.0
    %6171 = vmatpush1.msra.mxu0 0.0
    %6172 = vmatprep.subr.mxu0 0.0
    %6173 = vmatpush1.msra.mxu0 0.0
    %6174 = vmatprep.subr.mxu0 0.0
    %6175 = vmatpush1.msra.mxu0 0.0
    %6176 = vmatprep.subr.mxu0 0.0
    %6177 = vmatpush1.msra.mxu0 0.0
    %6178 = vmatprep.subr.mxu0 0.0
    %6179 = vmatpush1.msra.mxu0 0.0
    %6180 = vmatprep.subr.mxu0 0.0
    %6181 = vmatpush1.msra.mxu0 0.0
    %6182 = vmatprep.subr.mxu0 0.0
    %6183 = vmatpush1.msra.mxu0 0.0
    %6184 = vmatprep.subr.mxu0 0.0
    %6185 = vmatpush1.msra.mxu0 0.0
    %6186 = vmatprep.subr.mxu0 0.0
    %6187 = vmatpush1.msra.mxu0 0.0
    %6188 = vmatprep.subr.mxu0 0.0
    %6189 = vmatpush1.msra.mxu0 0.0
    %6190 = vmatprep.mubr.f32.mxu0 0.0
    %6191 = vmatmul.mubr.f32.gmra.mrb[0].mxu0 %v6124
    %v6192 = vpop.f32.mrb[0].mxu0
    %v6193 = vadd.f32 %v31, %v6192
    %v6194 = vpop.f32.mrb[0].mxu0
    %6195 = vdwg.mxu0
    %v6196 = vmul.f32 %v6193, 0.03125
    %v6197 = vadd.f32 %v6048, %v6196
    %v6199 = vsel %vm33, %v6197, 0
    %6201 = vmatprep.subr.mxu0 0.0
    %6202 = vmatpush1.msra.mxu0 %v21
    %6203 = vmatprep.subr.mxu0 0.0
    %6204 = vmatpush1.msra.mxu0 %v22
    %6205 = vmatprep.subr.mxu0 0.0
    %6206 = vmatpush1.msra.mxu0 %v23
    %6207 = vmatprep.subr.mxu0 0.0
    %6208 = vmatpush1.msra.mxu0 %v24
    %6209 = vmatprep.subr.mxu0 0.0
    %6210 = vmatpush1.msra.mxu0 %v39
    %6211 = vmatprep.subr.mxu0 0.0
    %6212 = vmatpush1.msra.mxu0 0.0
    %6213 = vmatprep.subr.mxu0 0.0
    %6214 = vmatpush1.msra.mxu0 0.0
    %6215 = vmatprep.subr.mxu0 0.0
    %6216 = vmatpush1.msra.mxu0 0.0
    %6217 = vmatprep.subr.mxu0 0.0
    %6218 = vmatpush1.msra.mxu0 0.0
    %6219 = vmatprep.subr.mxu0 0.0
    %6220 = vmatpush1.msra.mxu0 0.0
    %6221 = vmatprep.subr.mxu0 0.0
    %6222 = vmatpush1.msra.mxu0 0.0
    %6223 = vmatprep.subr.mxu0 0.0
    %6224 = vmatpush1.msra.mxu0 0.0
    %6225 = vmatprep.subr.mxu0 0.0
    %6226 = vmatpush1.msra.mxu0 0.0
    %6227 = vmatprep.subr.mxu0 0.0
    %6228 = vmatpush1.msra.mxu0 0.0
    %6229 = vmatprep.subr.mxu0 0.0
    %6230 = vmatpush1.msra.mxu0 0.0
    %6231 = vmatprep.subr.mxu0 0.0
    %6232 = vmatpush1.msra.mxu0 0.0
    %6233 = vmatprep.subr.mxu0 0.0
    %6234 = vmatpush1.msra.mxu0 0.0
    %6235 = vmatprep.subr.mxu0 0.0
    %6236 = vmatpush1.msra.mxu0 0.0
    %6237 = vmatprep.subr.mxu0 0.0
    %6238 = vmatpush1.msra.mxu0 0.0
    %6239 = vmatprep.subr.mxu0 0.0
    %6240 = vmatpush1.msra.mxu0 0.0
    %6241 = vmatprep.subr.mxu0 0.0
    %6242 = vmatpush1.msra.mxu0 0.0
    %6243 = vmatprep.subr.mxu0 0.0
    %6244 = vmatpush1.msra.mxu0 0.0
    %6245 = vmatprep.subr.mxu0 0.0
    %6246 = vmatpush1.msra.mxu0 0.0
    %6247 = vmatprep.subr.mxu0 0.0
    %6248 = vmatpush1.msra.mxu0 0.0
    %6249 = vmatprep.subr.mxu0 0.0
    %6250 = vmatpush1.msra.mxu0 0.0
    %6251 = vmatprep.subr.mxu0 0.0
    %6252 = vmatpush1.msra.mxu0 0.0
    %6253 = vmatprep.subr.mxu0 0.0
    %6254 = vmatpush1.msra.mxu0 0.0
    %6255 = vmatprep.subr.mxu0 0.0
    %6256 = vmatpush1.msra.mxu0 0.0
    %6257 = vmatprep.subr.mxu0 0.0
    %6258 = vmatpush1.msra.mxu0 0.0
    %6259 = vmatprep.subr.mxu0 0.0
    %6260 = vmatpush1.msra.mxu0 0.0
    %6261 = vmatprep.subr.mxu0 0.0
    %6262 = vmatpush1.msra.mxu0 0.0
    %6263 = vmatprep.subr.mxu0 0.0
    %6264 = vmatpush1.msra.mxu0 0.0
    %6265 = vmatprep.mubr.f32.mxu0 0.0
    %6266 = vmatmul.mubr.f32.gmra.mrb[0].mxu0 %v6199
    %v6267 = vpop.f32.mrb[0].mxu0
    %v6268 = vadd.f32 %v26, %v6267
    %v6269 = vpop.f32.mrb[0].mxu0
    %6270 = vdwg.mxu0
    %v6271 = vtanh.pop %v6268
    %v6273 = vsel %vm112, %v6271, 0
    %6275 = vmatprep.subr.mxu0 0.0
    %6276 = vmatpush1.msra.mxu0 %v27
    %6277 = vmatprep.subr.mxu0 0.0
    %6278 = vmatpush1.msra.mxu0 %v28
    %6279 = vmatprep.subr.mxu0 0.0
    %6280 = vmatpush1.msra.mxu0 %v29
    %6281 = vmatprep.subr.mxu0 0.0
    %6282 = vmatpush1.msra.mxu0 %v30
    %6283 = vmatprep.subr.mxu0 0.0
    %6284 = vmatpush1.msra.mxu0 0.0
    %6285 = vmatprep.subr.mxu0 0.0
    %6286 = vmatpush1.msra.mxu0 0.0
    %6287 = vmatprep.subr.mxu0 0.0
    %6288 = vmatpush1.msra.mxu0 0.0
    %6289 = vmatprep.subr.mxu0 0.0
    %6290 = vmatpush1.msra.mxu0 0.0
    %6291 = vmatprep.subr.mxu0 0.0
    %6292 = vmatpush1.msra.mxu0 0.0
    %6293 = vmatprep.subr.mxu0 0.0
    %6294 = vmatpush1.msra.mxu0 0.0
    %6295 = vmatprep.subr.mxu0 0.0
    %6296 = vmatpush1.msra.mxu0 0.0
    %6297 = vmatprep.subr.mxu0 0.0
    %6298 = vmatpush1.msra.mxu0 0.0
    %6299 = vmatprep.subr.mxu0 0.0
    %6300 = vmatpush1.msra.mxu0 0.0
    %6301 = vmatprep.subr.mxu0 0.0
    %6302 = vmatpush1.msra.mxu0 0.0
    %6303 = vmatprep.subr.mxu0 0.0
    %6304 = vmatpush1.msra.mxu0 0.0
    %6305 = vmatprep.subr.mxu0 0.0
    %6306 = vmatpush1.msra.mxu0 0.0
    %6307 = vmatprep.subr.mxu0 0.0
    %6308 = vmatpush1.msra.mxu0 0.0
    %6309 = vmatprep.subr.mxu0 0.0
    %6310 = vmatpush1.msra.mxu0 0.0
    %6311 = vmatprep.subr.mxu0 0.0
    %6312 = vmatpush1.msra.mxu0 0.0
    %6313 = vmatprep.subr.mxu0 0.0
    %6314 = vmatpush1.msra.mxu0 0.0
    %6315 = vmatprep.subr.mxu0 0.0
    %6316 = vmatpush1.msra.mxu0 0.0
    %6317 = vmatprep.subr.mxu0 0.0
    %6318 = vmatpush1.msra.mxu0 0.0
    %6319 = vmatprep.subr.mxu0 0.0
    %6320 = vmatpush1.msra.mxu0 0.0
    %6321 = vmatprep.subr.mxu0 0.0
    %6322 = vmatpush1.msra.mxu0 0.0
    %6323 = vmatprep.subr.mxu0 0.0
    %6324 = vmatpush1.msra.mxu0 0.0
    %6325 = vmatprep.subr.mxu0 0.0
    %6326 = vmatpush1.msra.mxu0 0.0
    %6327 = vmatprep.subr.mxu0 0.0
    %6328 = vmatpush1.msra.mxu0 0.0
    %6329 = vmatprep.subr.mxu0 0.0
    %6330 = vmatpush1.msra.mxu0 0.0
    %6331 = vmatprep.subr.mxu0 0.0
    %6332 = vmatpush1.msra.mxu0 0.0
    %6333 = vmatprep.subr.mxu0 0.0
    %6334 = vmatpush1.msra.mxu0 0.0
    %6335 = vmatprep.subr.mxu0 0.0
    %6336 = vmatpush1.msra.mxu0 0.0
    %6337 = vmatprep.subr.mxu0 0.0
    %6338 = vmatpush1.msra.mxu0 0.0
    %6339 = vmatprep.mubr.f32.mxu0 0.0
    %6340 = vmatmul.mubr.f32.gmra.mrb[0].mxu0 %v6273
    %v6341 = vpop.f32.mrb[0].mxu0
    %v6342 = vadd.f32 %v31, %v6341
    %v6343 = vpop.f32.mrb[0].mxu0
    %6344 = vdwg.mxu0
    %v6345 = vmul.f32 %v6342, 0.03125
    %v6346 = vadd.f32 %v6048, %v6345
    %v6348 = vsel %vm33, %v6346, 0
    %6350 = vmatprep.subr.mxu0 0.0
    %6351 = vmatpush1.msra.mxu0 %v21
    %6352 = vmatprep.subr.mxu0 0.0
    %6353 = vmatpush1.msra.mxu0 %v22
    %6354 = vmatprep.subr.mxu0 0.0
    %6355 = vmatpush1.msra.mxu0 %v23
    %6356 = vmatprep.subr.mxu0 0.0
    %6357 = vmatpush1.msra.mxu0 %v24
    %6358 = vmatprep.subr.mxu0 0.0
    %6359 = vmatpush1.msra.mxu0 %v39
    %6360 = vmatprep.subr.mxu0 0.0
    %6361 = vmatpush1.msra.mxu0 0.0
    %6362 = vmatprep.subr.mxu0 0.0
    %6363 = vmatpush1.msra.mxu0 0.0
    %6364 = vmatprep.subr.mxu0 0.0
    %6365 = vmatpush1.msra.mxu0 0.0
    %6366 = vmatprep.subr.mxu0 0.0
    %6367 = vmatpush1.msra.mxu0 0.0
    %6368 = vmatprep.subr.mxu0 0.0
    %6369 = vmatpush1.msra.mxu0 0.0
    %6370 = vmatprep.subr.mxu0 0.0
    %6371 = vmatpush1.msra.mxu0 0.0
    %6372 = vmatprep.subr.mxu0 0.0
    %6373 = vmatpush1.msra.mxu0 0.0
    %6374 = vmatprep.subr.mxu0 0.0
    %6375 = vmatpush1.msra.mxu0 0.0
    %6376 = vmatprep.subr.mxu0 0.0
    %6377 = vmatpush1.msra.mxu0 0.0
    %6378 = vmatprep.subr.mxu0 0.0
    %6379 = vmatpush1.msra.mxu0 0.0
    %6380 = vmatprep.subr.mxu0 0.0
    %6381 = vmatpush1.msra.mxu0 0.0
    %6382 = vmatprep.subr.mxu0 0.0
    %6383 = vmatpush1.msra.mxu0 0.0
    %6384 = vmatprep.subr.mxu0 0.0
    %6385 = vmatpush1.msra.mxu0 0.0
    %6386 = vmatprep.subr.mxu0 0.0
    %6387 = vmatpush1.msra.mxu0 0.0
    %6388 = vmatprep.subr.mxu0 0.0
    %6389 = vmatpush1.msra.mxu0 0.0
    %6390 = vmatprep.subr.mxu0 0.0
    %6391 = vmatpush1.msra.mxu0 0.0
    %6392 = vmatprep.subr.mxu0 0.0
    %6393 = vmatpush1.msra.mxu0 0.0
    %6394 = vmatprep.subr.mxu0 0.0
    %6395 = vmatpush1.msra.mxu0 0.0
    %6396 = vmatprep.subr.mxu0 0.0
    %6397 = vmatpush1.msra.mxu0 0.0
    %6398 = vmatprep.subr.mxu0 0.0
    %6399 = vmatpush1.msra.mxu0 0.0
    %6400 = vmatprep.subr.mxu0 0.0
    %6401 = vmatpush1.msra.mxu0 0.0
    %6402 = vmatprep.subr.mxu0 0.0
    %6403 = vmatpush1.msra.mxu0 0.0
    %6404 = vmatprep.subr.mxu0 0.0
    %6405 = vmatpush1.msra.mxu0 0.0
    %6406 = vmatprep.subr.mxu0 0.0
    %6407 = vmatpush1.msra.mxu0 0.0
    %6408 = vmatprep.subr.mxu0 0.0
    %6409 = vmatpush1.msra.mxu0 0.0
    %6410 = vmatprep.subr.mxu0 0.0
    %6411 = vmatpush1.msra.mxu0 0.0
    %6412 = vmatprep.subr.mxu0 0.0
    %6413 = vmatpush1.msra.mxu0 0.0
    %6414 = vmatprep.mubr.f32.mxu0 0.0
    %6415 = vmatmul.mubr.f32.gmra.mrb[0].mxu0 %v6348
    %v6416 = vpop.f32.mrb[0].mxu0
    %v6417 = vadd.f32 %v26, %v6416
    %v6418 = vpop.f32.mrb[0].mxu0
    %6419 = vdwg.mxu0
    %v6420 = vtanh.pop %v6417
    %v6422 = vsel %vm112, %v6420, 0
    %6424 = vmatprep.subr.mxu0 0.0
    %6425 = vmatpush1.msra.mxu0 %v27
    %6426 = vmatprep.subr.mxu0 0.0
    %6427 = vmatpush1.msra.mxu0 %v28
    %6428 = vmatprep.subr.mxu0 0.0
    %6429 = vmatpush1.msra.mxu0 %v29
    %6430 = vmatprep.subr.mxu0 0.0
    %6431 = vmatpush1.msra.mxu0 %v30
    %6432 = vmatprep.subr.mxu0 0.0
    %6433 = vmatpush1.msra.mxu0 0.0
    %6434 = vmatprep.subr.mxu0 0.0
    %6435 = vmatpush1.msra.mxu0 0.0
    %6436 = vmatprep.subr.mxu0 0.0
    %6437 = vmatpush1.msra.mxu0 0.0
    %6438 = vmatprep.subr.mxu0 0.0
    %6439 = vmatpush1.msra.mxu0 0.0
    %6440 = vmatprep.subr.mxu0 0.0
    %6441 = vmatpush1.msra.mxu0 0.0
    %6442 = vmatprep.subr.mxu0 0.0
    %6443 = vmatpush1.msra.mxu0 0.0
    %6444 = vmatprep.subr.mxu0 0.0
    %6445 = vmatpush1.msra.mxu0 0.0
    %6446 = vmatprep.subr.mxu0 0.0
    %6447 = vmatpush1.msra.mxu0 0.0
    %6448 = vmatprep.subr.mxu0 0.0
    %6449 = vmatpush1.msra.mxu0 0.0
    %6450 = vmatprep.subr.mxu0 0.0
    %6451 = vmatpush1.msra.mxu0 0.0
    %6452 = vmatprep.subr.mxu0 0.0
    %6453 = vmatpush1.msra.mxu0 0.0
    %6454 = vmatprep.subr.mxu0 0.0
    %6455 = vmatpush1.msra.mxu0 0.0
    %6456 = vmatprep.subr.mxu0 0.0
    %6457 = vmatpush1.msra.mxu0 0.0
    %6458 = vmatprep.subr.mxu0 0.0
    %6459 = vmatpush1.msra.mxu0 0.0
    %6460 = vmatprep.subr.mxu0 0.0
    %6461 = vmatpush1.msra.mxu0 0.0
    %6462 = vmatprep.subr.mxu0 0.0
    %6463 = vmatpush1.msra.mxu0 0.0
    %6464 = vmatprep.subr.mxu0 0.0
    %6465 = vmatpush1.msra.mxu0 0.0
    %6466 = vmatprep.subr.mxu0 0.0
    %6467 = vmatpush1.msra.mxu0 0.0
    %6468 = vmatprep.subr.mxu0 0.0
    %6469 = vmatpush1.msra.mxu0 0.0
    %6470 = vmatprep.subr.mxu0 0.0
    %6471 = vmatpush1.msra.mxu0 0.0
    %6472 = vmatprep.subr.mxu0 0.0
    %6473 = vmatpush1.msra.mxu0 0.0
    %6474 = vmatprep.subr.mxu0 0.0
    %6475 = vmatpush1.msra.mxu0 0.0
    %6476 = vmatprep.subr.mxu0 0.0
    %6477 = vmatpush1.msra.mxu0 0.0
    %6478 = vmatprep.subr.mxu0 0.0
    %6479 = vmatpush1.msra.mxu0 0.0
    %6480 = vmatprep.subr.mxu0 0.0
    %6481 = vmatpush1.msra.mxu0 0.0
    %6482 = vmatprep.subr.mxu0 0.0
    %6483 = vmatpush1.msra.mxu0 0.0
    %6484 = vmatprep.subr.mxu0 0.0
    %6485 = vmatpush1.msra.mxu0 0.0
    %6486 = vmatprep.subr.mxu0 0.0
    %6487 = vmatpush1.msra.mxu0 0.0
    %6488 = vmatprep.mubr.f32.mxu0 0.0
    %6489 = vmatmul.mubr.f32.gmra.mrb[0].mxu0 %v6422
    %v6490 = vpop.f32.mrb[0].mxu0
    %v6491 = vadd.f32 %v31, %v6490
    %v6492 = vpop.f32.mrb[0].mxu0
    %6493 = vdwg.mxu0
    %v6494 = vmul.f32 %v6491, 0.0625
    %v6495 = vadd.f32 %v6048, %v6494
    %v6497 = vsel %vm33, %v6495, 0
    %6499 = vmatprep.subr.mxu0 0.0
    %6500 = vmatpush1.msra.mxu0 %v21
    %6501 = vmatprep.subr.mxu0 0.0
    %6502 = vmatpush1.msra.mxu0 %v22
    %6503 = vmatprep.subr.mxu0 0.0
    %6504 = vmatpush1.msra.mxu0 %v23
    %6505 = vmatprep.subr.mxu0 0.0
    %6506 = vmatpush1.msra.mxu0 %v24
    %6507 = vmatprep.subr.mxu0 0.0
    %6508 = vmatpush1.msra.mxu0 %v39
    %6509 = vmatprep.subr.mxu0 0.0
    %6510 = vmatpush1.msra.mxu0 0.0
    %6511 = vmatprep.subr.mxu0 0.0
    %6512 = vmatpush1.msra.mxu0 0.0
    %6513 = vmatprep.subr.mxu0 0.0
    %6514 = vmatpush1.msra.mxu0 0.0
    %6515 = vmatprep.subr.mxu0 0.0
    %6516 = vmatpush1.msra.mxu0 0.0
    %6517 = vmatprep.subr.mxu0 0.0
    %6518 = vmatpush1.msra.mxu0 0.0
    %6519 = vmatprep.subr.mxu0 0.0
    %6520 = vmatpush1.msra.mxu0 0.0
    %6521 = vmatprep.subr.mxu0 0.0
    %6522 = vmatpush1.msra.mxu0 0.0
    %6523 = vmatprep.subr.mxu0 0.0
    %6524 = vmatpush1.msra.mxu0 0.0
    %6525 = vmatprep.subr.mxu0 0.0
    %6526 = vmatpush1.msra.mxu0 0.0
    %6527 = vmatprep.subr.mxu0 0.0
    %6528 = vmatpush1.msra.mxu0 0.0
    %6529 = vmatprep.subr.mxu0 0.0
    %6530 = vmatpush1.msra.mxu0 0.0
    %6531 = vmatprep.subr.mxu0 0.0
    %6532 = vmatpush1.msra.mxu0 0.0
    %6533 = vmatprep.subr.mxu0 0.0
    %6534 = vmatpush1.msra.mxu0 0.0
    %6535 = vmatprep.subr.mxu0 0.0
    %6536 = vmatpush1.msra.mxu0 0.0
    %6537 = vmatprep.subr.mxu0 0.0
    %6538 = vmatpush1.msra.mxu0 0.0
    %6539 = vmatprep.subr.mxu0 0.0
    %6540 = vmatpush1.msra.mxu0 0.0
    %6541 = vmatprep.subr.mxu0 0.0
    %6542 = vmatpush1.msra.mxu0 0.0
    %6543 = vmatprep.subr.mxu0 0.0
    %6544 = vmatpush1.msra.mxu0 0.0
    %6545 = vmatprep.subr.mxu0 0.0
    %6546 = vmatpush1.msra.mxu0 0.0
    %6547 = vmatprep.subr.mxu0 0.0
    %6548 = vmatpush1.msra.mxu0 0.0
    %6549 = vmatprep.subr.mxu0 0.0
    %6550 = vmatpush1.msra.mxu0 0.0
    %6551 = vmatprep.subr.mxu0 0.0
    %6552 = vmatpush1.msra.mxu0 0.0
    %6553 = vmatprep.subr.mxu0 0.0
    %6554 = vmatpush1.msra.mxu0 0.0
    %6555 = vmatprep.subr.mxu0 0.0
    %6556 = vmatpush1.msra.mxu0 0.0
    %6557 = vmatprep.subr.mxu0 0.0
    %6558 = vmatpush1.msra.mxu0 0.0
    %6559 = vmatprep.subr.mxu0 0.0
    %6560 = vmatpush1.msra.mxu0 0.0
    %6561 = vmatprep.subr.mxu0 0.0
    %6562 = vmatpush1.msra.mxu0 0.0
    %6563 = vmatprep.mubr.f32.mxu0 0.0
    %6564 = vmatmul.mubr.f32.gmra.mrb[0].mxu0 %v6497
    %v6565 = vpop.f32.mrb[0].mxu0
    %v6566 = vadd.f32 %v26, %v6565
    %v6567 = vpop.f32.mrb[0].mxu0
    %6568 = vdwg.mxu0
    %v6569 = vtanh.pop %v6566
    %v6571 = vsel %vm112, %v6569, 0
    %6573 = vmatprep.subr.mxu0 0.0
    %6574 = vmatpush1.msra.mxu0 %v27
    %6575 = vmatprep.subr.mxu0 0.0
    %6576 = vmatpush1.msra.mxu0 %v28
    %6577 = vmatprep.subr.mxu0 0.0
    %6578 = vmatpush1.msra.mxu0 %v29
    %6579 = vmatprep.subr.mxu0 0.0
    %6580 = vmatpush1.msra.mxu0 %v30
    %6581 = vmatprep.subr.mxu0 0.0
    %6582 = vmatpush1.msra.mxu0 0.0
    %6583 = vmatprep.subr.mxu0 0.0
    %6584 = vmatpush1.msra.mxu0 0.0
    %6585 = vmatprep.subr.mxu0 0.0
    %6586 = vmatpush1.msra.mxu0 0.0
    %6587 = vmatprep.subr.mxu0 0.0
    %6588 = vmatpush1.msra.mxu0 0.0
    %6589 = vmatprep.subr.mxu0 0.0
    %6590 = vmatpush1.msra.mxu0 0.0
    %6591 = vmatprep.subr.mxu0 0.0
    %6592 = vmatpush1.msra.mxu0 0.0
    %6593 = vmatprep.subr.mxu0 0.0
    %6594 = vmatpush1.msra.mxu0 0.0
    %6595 = vmatprep.subr.mxu0 0.0
    %6596 = vmatpush1.msra.mxu0 0.0
    %6597 = vmatprep.subr.mxu0 0.0
    %6598 = vmatpush1.msra.mxu0 0.0
    %6599 = vmatprep.subr.mxu0 0.0
    %6600 = vmatpush1.msra.mxu0 0.0
    %6601 = vmatprep.subr.mxu0 0.0
    %6602 = vmatpush1.msra.mxu0 0.0
    %6603 = vmatprep.subr.mxu0 0.0
    %6604 = vmatpush1.msra.mxu0 0.0
    %6605 = vmatprep.subr.mxu0 0.0
    %6606 = vmatpush1.msra.mxu0 0.0
    %6607 = vmatprep.subr.mxu0 0.0
    %6608 = vmatpush1.msra.mxu0 0.0
    %6609 = vmatprep.subr.mxu0 0.0
    %6610 = vmatpush1.msra.mxu0 0.0
    %6611 = vmatprep.subr.mxu0 0.0
    %6612 = vmatpush1.msra.mxu0 0.0
    %6613 = vmatprep.subr.mxu0 0.0
    %6614 = vmatpush1.msra.mxu0 0.0
    %6615 = vmatprep.subr.mxu0 0.0
    %6616 = vmatpush1.msra.mxu0 0.0
    %6617 = vmatprep.subr.mxu0 0.0
    %6618 = vmatpush1.msra.mxu0 0.0
    %6619 = vmatprep.subr.mxu0 0.0
    %6620 = vmatpush1.msra.mxu0 0.0
    %6621 = vmatprep.subr.mxu0 0.0
    %6622 = vmatpush1.msra.mxu0 0.0
    %6623 = vmatprep.subr.mxu0 0.0
    %6624 = vmatpush1.msra.mxu0 0.0
    %6625 = vmatprep.subr.mxu0 0.0
    %6626 = vmatpush1.msra.mxu0 0.0
    %6627 = vmatprep.subr.mxu0 0.0
    %6628 = vmatpush1.msra.mxu0 0.0
    %6629 = vmatprep.subr.mxu0 0.0
    %6630 = vmatpush1.msra.mxu0 0.0
    %6631 = vmatprep.subr.mxu0 0.0
    %6632 = vmatpush1.msra.mxu0 0.0
    %6633 = vmatprep.subr.mxu0 0.0
    %6634 = vmatpush1.msra.mxu0 0.0
    %6635 = vmatprep.subr.mxu0 0.0
    %6636 = vmatpush1.msra.mxu0 0.0
    %6637 = vmatprep.mubr.f32.mxu0 0.0
    %6638 = vmatmul.mubr.f32.gmra.mrb[0].mxu0 %v6571
    %v6639 = vpop.f32.mrb[0].mxu0
    %v6640 = vadd.f32 %v31, %v6639
    %v6641 = vpop.f32.mrb[0].mxu0
    %6642 = vdwg.mxu0
    %v6643 = vmul.f32 %v6342, 2.0
    %v6644 = vadd.f32 %v6193, %v6643
    %v6645 = vmul.f32 %v6491, 2.0
    %v6646 = vadd.f32 %v6644, %v6645
    %v6647 = vadd.f32 %v6646, %v6640
    %v6648 = vmul.f32 %v6647, 0.010416667
    %v6649 = vadd.f32 %v6048, %v6648
    %v6651 = vsel %vm33, %v6649, 0
    %6653 = vmatprep.subr.mxu0 0.0
    %6654 = vmatpush1.msra.mxu0 %v21
    %6655 = vmatprep.subr.mxu0 0.0
    %6656 = vmatpush1.msra.mxu0 %v22
    %6657 = vmatprep.subr.mxu0 0.0
    %6658 = vmatpush1.msra.mxu0 %v23
    %6659 = vmatprep.subr.mxu0 0.0
    %6660 = vmatpush1.msra.mxu0 %v24
    %6661 = vmatprep.subr.mxu0 0.0
    %6662 = vmatpush1.msra.mxu0 %v39
    %6663 = vmatprep.subr.mxu0 0.0
    %6664 = vmatpush1.msra.mxu0 0.0
    %6665 = vmatprep.subr.mxu0 0.0
    %6666 = vmatpush1.msra.mxu0 0.0
    %6667 = vmatprep.subr.mxu0 0.0
    %6668 = vmatpush1.msra.mxu0 0.0
    %6669 = vmatprep.subr.mxu0 0.0
    %6670 = vmatpush1.msra.mxu0 0.0
    %6671 = vmatprep.subr.mxu0 0.0
    %6672 = vmatpush1.msra.mxu0 0.0
    %6673 = vmatprep.subr.mxu0 0.0
    %6674 = vmatpush1.msra.mxu0 0.0
    %6675 = vmatprep.subr.mxu0 0.0
    %6676 = vmatpush1.msra.mxu0 0.0
    %6677 = vmatprep.subr.mxu0 0.0
    %6678 = vmatpush1.msra.mxu0 0.0
    %6679 = vmatprep.subr.mxu0 0.0
    %6680 = vmatpush1.msra.mxu0 0.0
    %6681 = vmatprep.subr.mxu0 0.0
    %6682 = vmatpush1.msra.mxu0 0.0
    %6683 = vmatprep.subr.mxu0 0.0
    %6684 = vmatpush1.msra.mxu0 0.0
    %6685 = vmatprep.subr.mxu0 0.0
    %6686 = vmatpush1.msra.mxu0 0.0
    %6687 = vmatprep.subr.mxu0 0.0
    %6688 = vmatpush1.msra.mxu0 0.0
    %6689 = vmatprep.subr.mxu0 0.0
    %6690 = vmatpush1.msra.mxu0 0.0
    %6691 = vmatprep.subr.mxu0 0.0
    %6692 = vmatpush1.msra.mxu0 0.0
    %6693 = vmatprep.subr.mxu0 0.0
    %6694 = vmatpush1.msra.mxu0 0.0
    %6695 = vmatprep.subr.mxu0 0.0
    %6696 = vmatpush1.msra.mxu0 0.0
    %6697 = vmatprep.subr.mxu0 0.0
    %6698 = vmatpush1.msra.mxu0 0.0
    %6699 = vmatprep.subr.mxu0 0.0
    %6700 = vmatpush1.msra.mxu0 0.0
    %6701 = vmatprep.subr.mxu0 0.0
    %6702 = vmatpush1.msra.mxu0 0.0
    %6703 = vmatprep.subr.mxu0 0.0
    %6704 = vmatpush1.msra.mxu0 0.0
    %6705 = vmatprep.subr.mxu0 0.0
    %6706 = vmatpush1.msra.mxu0 0.0
    %6707 = vmatprep.subr.mxu0 0.0
    %6708 = vmatpush1.msra.mxu0 0.0
    %6709 = vmatprep.subr.mxu0 0.0
    %6710 = vmatpush1.msra.mxu0 0.0
    %6711 = vmatprep.subr.mxu0 0.0
    %6712 = vmatpush1.msra.mxu0 0.0
    %6713 = vmatprep.subr.mxu0 0.0
    %6714 = vmatpush1.msra.mxu0 0.0
    %6715 = vmatprep.subr.mxu0 0.0
    %6716 = vmatpush1.msra.mxu0 0.0
    %6717 = vmatprep.mubr.f32.mxu0 0.0
    %6718 = vmatmul.mubr.f32.gmra.mrb[0].mxu0 %v6651
    %v6719 = vpop.f32.mrb[0].mxu0
    %v6720 = vadd.f32 %v26, %v6719
    %v6721 = vpop.f32.mrb[0].mxu0
    %6722 = vdwg.mxu0
    %v6723 = vtanh.pop %v6720
    %v6725 = vsel %vm112, %v6723, 0
    %6727 = vmatprep.subr.mxu0 0.0
    %6728 = vmatpush1.msra.mxu0 %v27
    %6729 = vmatprep.subr.mxu0 0.0
    %6730 = vmatpush1.msra.mxu0 %v28
    %6731 = vmatprep.subr.mxu0 0.0
    %6732 = vmatpush1.msra.mxu0 %v29
    %6733 = vmatprep.subr.mxu0 0.0
    %6734 = vmatpush1.msra.mxu0 %v30
    %6735 = vmatprep.subr.mxu0 0.0
    %6736 = vmatpush1.msra.mxu0 0.0
    %6737 = vmatprep.subr.mxu0 0.0
    %6738 = vmatpush1.msra.mxu0 0.0
    %6739 = vmatprep.subr.mxu0 0.0
    %6740 = vmatpush1.msra.mxu0 0.0
    %6741 = vmatprep.subr.mxu0 0.0
    %6742 = vmatpush1.msra.mxu0 0.0
    %6743 = vmatprep.subr.mxu0 0.0
    %6744 = vmatpush1.msra.mxu0 0.0
    %6745 = vmatprep.subr.mxu0 0.0
    %6746 = vmatpush1.msra.mxu0 0.0
    %6747 = vmatprep.subr.mxu0 0.0
    %6748 = vmatpush1.msra.mxu0 0.0
    %6749 = vmatprep.subr.mxu0 0.0
    %6750 = vmatpush1.msra.mxu0 0.0
    %6751 = vmatprep.subr.mxu0 0.0
    %6752 = vmatpush1.msra.mxu0 0.0
    %6753 = vmatprep.subr.mxu0 0.0
    %6754 = vmatpush1.msra.mxu0 0.0
    %6755 = vmatprep.subr.mxu0 0.0
    %6756 = vmatpush1.msra.mxu0 0.0
    %6757 = vmatprep.subr.mxu0 0.0
    %6758 = vmatpush1.msra.mxu0 0.0
    %6759 = vmatprep.subr.mxu0 0.0
    %6760 = vmatpush1.msra.mxu0 0.0
    %6761 = vmatprep.subr.mxu0 0.0
    %6762 = vmatpush1.msra.mxu0 0.0
    %6763 = vmatprep.subr.mxu0 0.0
    %6764 = vmatpush1.msra.mxu0 0.0
    %6765 = vmatprep.subr.mxu0 0.0
    %6766 = vmatpush1.msra.mxu0 0.0
    %6767 = vmatprep.subr.mxu0 0.0
    %6768 = vmatpush1.msra.mxu0 0.0
    %6769 = vmatprep.subr.mxu0 0.0
    %6770 = vmatpush1.msra.mxu0 0.0
    %6771 = vmatprep.subr.mxu0 0.0
    %6772 = vmatpush1.msra.mxu0 0.0
    %6773 = vmatprep.subr.mxu0 0.0
    %6774 = vmatpush1.msra.mxu0 0.0
    %6775 = vmatprep.subr.mxu0 0.0
    %6776 = vmatpush1.msra.mxu0 0.0
    %6777 = vmatprep.subr.mxu0 0.0
    %6778 = vmatpush1.msra.mxu0 0.0
    %6779 = vmatprep.subr.mxu0 0.0
    %6780 = vmatpush1.msra.mxu0 0.0
    %6781 = vmatprep.subr.mxu0 0.0
    %6782 = vmatpush1.msra.mxu0 0.0
    %6783 = vmatprep.subr.mxu0 0.0
    %6784 = vmatpush1.msra.mxu0 0.0
    %6785 = vmatprep.subr.mxu0 0.0
    %6786 = vmatpush1.msra.mxu0 0.0
    %6787 = vmatprep.subr.mxu0 0.0
    %6788 = vmatpush1.msra.mxu0 0.0
    %6789 = vmatprep.subr.mxu0 0.0
    %6790 = vmatpush1.msra.mxu0 0.0
    %6791 = vmatprep.mubr.f32.mxu0 0.0
    %6792 = vmatmul.mubr.f32.gmra.mrb[0].mxu0 %v6725
    %v6793 = vpop.f32.mrb[0].mxu0
    %v6794 = vadd.f32 %v31, %v6793
    %v6795 = vpop.f32.mrb[0].mxu0
    %6796 = vdwg.mxu0
    %v6797 = vmul.f32 %v6794, 0.03125
    %v6798 = vadd.f32 %v6649, %v6797
    %v6800 = vsel %vm33, %v6798, 0
    %6802 = vmatprep.subr.mxu0 0.0
    %6803 = vmatpush1.msra.mxu0 %v21
    %6804 = vmatprep.subr.mxu0 0.0
    %6805 = vmatpush1.msra.mxu0 %v22
    %6806 = vmatprep.subr.mxu0 0.0
    %6807 = vmatpush1.msra.mxu0 %v23
    %6808 = vmatprep.subr.mxu0 0.0
    %6809 = vmatpush1.msra.mxu0 %v24
    %6810 = vmatprep.subr.mxu0 0.0
    %6811 = vmatpush1.msra.mxu0 %v39
    %6812 = vmatprep.subr.mxu0 0.0
    %6813 = vmatpush1.msra.mxu0 0.0
    %6814 = vmatprep.subr.mxu0 0.0
    %6815 = vmatpush1.msra.mxu0 0.0
    %6816 = vmatprep.subr.mxu0 0.0
    %6817 = vmatpush1.msra.mxu0 0.0
    %6818 = vmatprep.subr.mxu0 0.0
    %6819 = vmatpush1.msra.mxu0 0.0
    %6820 = vmatprep.subr.mxu0 0.0
    %6821 = vmatpush1.msra.mxu0 0.0
    %6822 = vmatprep.subr.mxu0 0.0
    %6823 = vmatpush1.msra.mxu0 0.0
    %6824 = vmatprep.subr.mxu0 0.0
    %6825 = vmatpush1.msra.mxu0 0.0
    %6826 = vmatprep.subr.mxu0 0.0
    %6827 = vmatpush1.msra.mxu0 0.0
    %6828 = vmatprep.subr.mxu0 0.0
    %6829 = vmatpush1.msra.mxu0 0.0
    %6830 = vmatprep.subr.mxu0 0.0
    %6831 = vmatpush1.msra.mxu0 0.0
    %6832 = vmatprep.subr.mxu0 0.0
    %6833 = vmatpush1.msra.mxu0 0.0
    %6834 = vmatprep.subr.mxu0 0.0
    %6835 = vmatpush1.msra.mxu0 0.0
    %6836 = vmatprep.subr.mxu0 0.0
    %6837 = vmatpush1.msra.mxu0 0.0
    %6838 = vmatprep.subr.mxu0 0.0
    %6839 = vmatpush1.msra.mxu0 0.0
    %6840 = vmatprep.subr.mxu0 0.0
    %6841 = vmatpush1.msra.mxu0 0.0
    %6842 = vmatprep.subr.mxu0 0.0
    %6843 = vmatpush1.msra.mxu0 0.0
    %6844 = vmatprep.subr.mxu0 0.0
    %6845 = vmatpush1.msra.mxu0 0.0
    %6846 = vmatprep.subr.mxu0 0.0
    %6847 = vmatpush1.msra.mxu0 0.0
    %6848 = vmatprep.subr.mxu0 0.0
    %6849 = vmatpush1.msra.mxu0 0.0
    %6850 = vmatprep.subr.mxu0 0.0
    %6851 = vmatpush1.msra.mxu0 0.0
    %6852 = vmatprep.subr.mxu0 0.0
    %6853 = vmatpush1.msra.mxu0 0.0
    %6854 = vmatprep.subr.mxu0 0.0
    %6855 = vmatpush1.msra.mxu0 0.0
    %6856 = vmatprep.subr.mxu0 0.0
    %6857 = vmatpush1.msra.mxu0 0.0
    %6858 = vmatprep.subr.mxu0 0.0
    %6859 = vmatpush1.msra.mxu0 0.0
    %6860 = vmatprep.subr.mxu0 0.0
    %6861 = vmatpush1.msra.mxu0 0.0
    %6862 = vmatprep.subr.mxu0 0.0
    %6863 = vmatpush1.msra.mxu0 0.0
    %6864 = vmatprep.subr.mxu0 0.0
    %6865 = vmatpush1.msra.mxu0 0.0
    %6866 = vmatprep.mubr.f32.mxu0 0.0
    %6867 = vmatmul.mubr.f32.gmra.mrb[0].mxu0 %v6800
    %v6868 = vpop.f32.mrb[0].mxu0
    %v6869 = vadd.f32 %v26, %v6868
    %v6870 = vpop.f32.mrb[0].mxu0
    %6871 = vdwg.mxu0
    %v6872 = vtanh.pop %v6869
    %v6874 = vsel %vm112, %v6872, 0
    %6876 = vmatprep.subr.mxu0 0.0
    %6877 = vmatpush1.msra.mxu0 %v27
    %6878 = vmatprep.subr.mxu0 0.0
    %6879 = vmatpush1.msra.mxu0 %v28
    %6880 = vmatprep.subr.mxu0 0.0
    %6881 = vmatpush1.msra.mxu0 %v29
    %6882 = vmatprep.subr.mxu0 0.0
    %6883 = vmatpush1.msra.mxu0 %v30
    %6884 = vmatprep.subr.mxu0 0.0
    %6885 = vmatpush1.msra.mxu0 0.0
    %6886 = vmatprep.subr.mxu0 0.0
    %6887 = vmatpush1.msra.mxu0 0.0
    %6888 = vmatprep.subr.mxu0 0.0
    %6889 = vmatpush1.msra.mxu0 0.0
    %6890 = vmatprep.subr.mxu0 0.0
    %6891 = vmatpush1.msra.mxu0 0.0
    %6892 = vmatprep.subr.mxu0 0.0
    %6893 = vmatpush1.msra.mxu0 0.0
    %6894 = vmatprep.subr.mxu0 0.0
    %6895 = vmatpush1.msra.mxu0 0.0
    %6896 = vmatprep.subr.mxu0 0.0
    %6897 = vmatpush1.msra.mxu0 0.0
    %6898 = vmatprep.subr.mxu0 0.0
    %6899 = vmatpush1.msra.mxu0 0.0
    %6900 = vmatprep.subr.mxu0 0.0
    %6901 = vmatpush1.msra.mxu0 0.0
    %6902 = vmatprep.subr.mxu0 0.0
    %6903 = vmatpush1.msra.mxu0 0.0
    %6904 = vmatprep.subr.mxu0 0.0
    %6905 = vmatpush1.msra.mxu0 0.0
    %6906 = vmatprep.subr.mxu0 0.0
    %6907 = vmatpush1.msra.mxu0 0.0
    %6908 = vmatprep.subr.mxu0 0.0
    %6909 = vmatpush1.msra.mxu0 0.0
    %6910 = vmatprep.subr.mxu0 0.0
    %6911 = vmatpush1.msra.mxu0 0.0
    %6912 = vmatprep.subr.mxu0 0.0
    %6913 = vmatpush1.msra.mxu0 0.0
    %6914 = vmatprep.subr.mxu0 0.0
    %6915 = vmatpush1.msra.mxu0 0.0
    %6916 = vmatprep.subr.mxu0 0.0
    %6917 = vmatpush1.msra.mxu0 0.0
    %6918 = vmatprep.subr.mxu0 0.0
    %6919 = vmatpush1.msra.mxu0 0.0
    %6920 = vmatprep.subr.mxu0 0.0
    %6921 = vmatpush1.msra.mxu0 0.0
    %6922 = vmatprep.subr.mxu0 0.0
    %6923 = vmatpush1.msra.mxu0 0.0
    %6924 = vmatprep.subr.mxu0 0.0
    %6925 = vmatpush1.msra.mxu0 0.0
    %6926 = vmatprep.subr.mxu0 0.0
    %6927 = vmatpush1.msra.mxu0 0.0
    %6928 = vmatprep.subr.mxu0 0.0
    %6929 = vmatpush1.msra.mxu0 0.0
    %6930 = vmatprep.subr.mxu0 0.0
    %6931 = vmatpush1.msra.mxu0 0.0
    %6932 = vmatprep.subr.mxu0 0.0
    %6933 = vmatpush1.msra.mxu0 0.0
    %6934 = vmatprep.subr.mxu0 0.0
    %6935 = vmatpush1.msra.mxu0 0.0
    %6936 = vmatprep.subr.mxu0 0.0
    %6937 = vmatpush1.msra.mxu0 0.0
    %6938 = vmatprep.subr.mxu0 0.0
    %6939 = vmatpush1.msra.mxu0 0.0
    %6940 = vmatprep.mubr.f32.mxu0 0.0
    %6941 = vmatmul.mubr.f32.gmra.mrb[0].mxu0 %v6874
    %v6942 = vpop.f32.mrb[0].mxu0
    %v6943 = vadd.f32 %v31, %v6942
    %v6944 = vpop.f32.mrb[0].mxu0
    %6945 = vdwg.mxu0
    %v6946 = vmul.f32 %v6943, 0.03125
    %v6947 = vadd.f32 %v6649, %v6946
    %v6949 = vsel %vm33, %v6947, 0
    %6951 = vmatprep.subr.mxu0 0.0
    %6952 = vmatpush1.msra.mxu0 %v21
    %6953 = vmatprep.subr.mxu0 0.0
    %6954 = vmatpush1.msra.mxu0 %v22
    %6955 = vmatprep.subr.mxu0 0.0
    %6956 = vmatpush1.msra.mxu0 %v23
    %6957 = vmatprep.subr.mxu0 0.0
    %6958 = vmatpush1.msra.mxu0 %v24
    %6959 = vmatprep.subr.mxu0 0.0
    %6960 = vmatpush1.msra.mxu0 %v39
    %6961 = vmatprep.subr.mxu0 0.0
    %6962 = vmatpush1.msra.mxu0 0.0
    %6963 = vmatprep.subr.mxu0 0.0
    %6964 = vmatpush1.msra.mxu0 0.0
    %6965 = vmatprep.subr.mxu0 0.0
    %6966 = vmatpush1.msra.mxu0 0.0
    %6967 = vmatprep.subr.mxu0 0.0
    %6968 = vmatpush1.msra.mxu0 0.0
    %6969 = vmatprep.subr.mxu0 0.0
    %6970 = vmatpush1.msra.mxu0 0.0
    %6971 = vmatprep.subr.mxu0 0.0
    %6972 = vmatpush1.msra.mxu0 0.0
    %6973 = vmatprep.subr.mxu0 0.0
    %6974 = vmatpush1.msra.mxu0 0.0
    %6975 = vmatprep.subr.mxu0 0.0
    %6976 = vmatpush1.msra.mxu0 0.0
    %6977 = vmatprep.subr.mxu0 0.0
    %6978 = vmatpush1.msra.mxu0 0.0
    %6979 = vmatprep.subr.mxu0 0.0
    %6980 = vmatpush1.msra.mxu0 0.0
    %6981 = vmatprep.subr.mxu0 0.0
    %6982 = vmatpush1.msra.mxu0 0.0
    %6983 = vmatprep.subr.mxu0 0.0
    %6984 = vmatpush1.msra.mxu0 0.0
    %6985 = vmatprep.subr.mxu0 0.0
    %6986 = vmatpush1.msra.mxu0 0.0
    %6987 = vmatprep.subr.mxu0 0.0
    %6988 = vmatpush1.msra.mxu0 0.0
    %6989 = vmatprep.subr.mxu0 0.0
    %6990 = vmatpush1.msra.mxu0 0.0
    %6991 = vmatprep.subr.mxu0 0.0
    %6992 = vmatpush1.msra.mxu0 0.0
    %6993 = vmatprep.subr.mxu0 0.0
    %6994 = vmatpush1.msra.mxu0 0.0
    %6995 = vmatprep.subr.mxu0 0.0
    %6996 = vmatpush1.msra.mxu0 0.0
    %6997 = vmatprep.subr.mxu0 0.0
    %6998 = vmatpush1.msra.mxu0 0.0
    %6999 = vmatprep.subr.mxu0 0.0
    %7000 = vmatpush1.msra.mxu0 0.0
    %7001 = vmatprep.subr.mxu0 0.0
    %7002 = vmatpush1.msra.mxu0 0.0
    %7003 = vmatprep.subr.mxu0 0.0
    %7004 = vmatpush1.msra.mxu0 0.0
    %7005 = vmatprep.subr.mxu0 0.0
    %7006 = vmatpush1.msra.mxu0 0.0
    %7007 = vmatprep.subr.mxu0 0.0
    %7008 = vmatpush1.msra.mxu0 0.0
    %7009 = vmatprep.subr.mxu0 0.0
    %7010 = vmatpush1.msra.mxu0 0.0
    %7011 = vmatprep.subr.mxu0 0.0
    %7012 = vmatpush1.msra.mxu0 0.0
    %7013 = vmatprep.subr.mxu0 0.0
    %7014 = vmatpush1.msra.mxu0 0.0
    %7015 = vmatprep.mubr.f32.mxu0 0.0
    %7016 = vmatmul.mubr.f32.gmra.mrb[0].mxu0 %v6949
    %v7017 = vpop.f32.mrb[0].mxu0
    %v7018 = vadd.f32 %v26, %v7017
    %v7019 = vpop.f32.mrb[0].mxu0
    %7020 = vdwg.mxu0
    %v7021 = vtanh.pop %v7018
    %v7023 = vsel %vm112, %v7021, 0
    %7025 = vmatprep.subr.mxu0 0.0
    %7026 = vmatpush1.msra.mxu0 %v27
    %7027 = vmatprep.subr.mxu0 0.0
    %7028 = vmatpush1.msra.mxu0 %v28
    %7029 = vmatprep.subr.mxu0 0.0
    %7030 = vmatpush1.msra.mxu0 %v29
    %7031 = vmatprep.subr.mxu0 0.0
    %7032 = vmatpush1.msra.mxu0 %v30
    %7033 = vmatprep.subr.mxu0 0.0
    %7034 = vmatpush1.msra.mxu0 0.0
    %7035 = vmatprep.subr.mxu0 0.0
    %7036 = vmatpush1.msra.mxu0 0.0
    %7037 = vmatprep.subr.mxu0 0.0
    %7038 = vmatpush1.msra.mxu0 0.0
    %7039 = vmatprep.subr.mxu0 0.0
    %7040 = vmatpush1.msra.mxu0 0.0
    %7041 = vmatprep.subr.mxu0 0.0
    %7042 = vmatpush1.msra.mxu0 0.0
    %7043 = vmatprep.subr.mxu0 0.0
    %7044 = vmatpush1.msra.mxu0 0.0
    %7045 = vmatprep.subr.mxu0 0.0
    %7046 = vmatpush1.msra.mxu0 0.0
    %7047 = vmatprep.subr.mxu0 0.0
    %7048 = vmatpush1.msra.mxu0 0.0
    %7049 = vmatprep.subr.mxu0 0.0
    %7050 = vmatpush1.msra.mxu0 0.0
    %7051 = vmatprep.subr.mxu0 0.0
    %7052 = vmatpush1.msra.mxu0 0.0
    %7053 = vmatprep.subr.mxu0 0.0
    %7054 = vmatpush1.msra.mxu0 0.0
    %7055 = vmatprep.subr.mxu0 0.0
    %7056 = vmatpush1.msra.mxu0 0.0
    %7057 = vmatprep.subr.mxu0 0.0
    %7058 = vmatpush1.msra.mxu0 0.0
    %7059 = vmatprep.subr.mxu0 0.0
    %7060 = vmatpush1.msra.mxu0 0.0
    %7061 = vmatprep.subr.mxu0 0.0
    %7062 = vmatpush1.msra.mxu0 0.0
    %7063 = vmatprep.subr.mxu0 0.0
    %7064 = vmatpush1.msra.mxu0 0.0
    %7065 = vmatprep.subr.mxu0 0.0
    %7066 = vmatpush1.msra.mxu0 0.0
    %7067 = vmatprep.subr.mxu0 0.0
    %7068 = vmatpush1.msra.mxu0 0.0
    %7069 = vmatprep.subr.mxu0 0.0
    %7070 = vmatpush1.msra.mxu0 0.0
    %7071 = vmatprep.subr.mxu0 0.0
    %7072 = vmatpush1.msra.mxu0 0.0
    %7073 = vmatprep.subr.mxu0 0.0
    %7074 = vmatpush1.msra.mxu0 0.0
    %7075 = vmatprep.subr.mxu0 0.0
    %7076 = vmatpush1.msra.mxu0 0.0
    %7077 = vmatprep.subr.mxu0 0.0
    %7078 = vmatpush1.msra.mxu0 0.0
    %7079 = vmatprep.subr.mxu0 0.0
    %7080 = vmatpush1.msra.mxu0 0.0
    %7081 = vmatprep.subr.mxu0 0.0
    %7082 = vmatpush1.msra.mxu0 0.0
    %7083 = vmatprep.subr.mxu0 0.0
    %7084 = vmatpush1.msra.mxu0 0.0
    %7085 = vmatprep.subr.mxu0 0.0
    %7086 = vmatpush1.msra.mxu0 0.0
    %7087 = vmatprep.subr.mxu0 0.0
    %7088 = vmatpush1.msra.mxu0 0.0
    %7089 = vmatprep.mubr.f32.mxu0 0.0
    %7090 = vmatmul.mubr.f32.gmra.mrb[0].mxu0 %v7023
    %v7091 = vpop.f32.mrb[0].mxu0
    %v7092 = vadd.f32 %v31, %v7091
    %v7093 = vpop.f32.mrb[0].mxu0
    %7094 = vdwg.mxu0
    %v7095 = vmul.f32 %v7092, 0.0625
    %v7096 = vadd.f32 %v6649, %v7095
    %v7098 = vsel %vm33, %v7096, 0
    %7100 = vmatprep.subr.mxu0 0.0
    %7101 = vmatpush1.msra.mxu0 %v21
    %7102 = vmatprep.subr.mxu0 0.0
    %7103 = vmatpush1.msra.mxu0 %v22
    %7104 = vmatprep.subr.mxu0 0.0
    %7105 = vmatpush1.msra.mxu0 %v23
    %7106 = vmatprep.subr.mxu0 0.0
    %7107 = vmatpush1.msra.mxu0 %v24
    %7108 = vmatprep.subr.mxu0 0.0
    %7109 = vmatpush1.msra.mxu0 %v39
    %7110 = vmatprep.subr.mxu0 0.0
    %7111 = vmatpush1.msra.mxu0 0.0
    %7112 = vmatprep.subr.mxu0 0.0
    %7113 = vmatpush1.msra.mxu0 0.0
    %7114 = vmatprep.subr.mxu0 0.0
    %7115 = vmatpush1.msra.mxu0 0.0
    %7116 = vmatprep.subr.mxu0 0.0
    %7117 = vmatpush1.msra.mxu0 0.0
    %7118 = vmatprep.subr.mxu0 0.0
    %7119 = vmatpush1.msra.mxu0 0.0
    %7120 = vmatprep.subr.mxu0 0.0
    %7121 = vmatpush1.msra.mxu0 0.0
    %7122 = vmatprep.subr.mxu0 0.0
    %7123 = vmatpush1.msra.mxu0 0.0
    %7124 = vmatprep.subr.mxu0 0.0
    %7125 = vmatpush1.msra.mxu0 0.0
    %7126 = vmatprep.subr.mxu0 0.0
    %7127 = vmatpush1.msra.mxu0 0.0
    %7128 = vmatprep.subr.mxu0 0.0
    %7129 = vmatpush1.msra.mxu0 0.0
    %7130 = vmatprep.subr.mxu0 0.0
    %7131 = vmatpush1.msra.mxu0 0.0
    %7132 = vmatprep.subr.mxu0 0.0
    %7133 = vmatpush1.msra.mxu0 0.0
    %7134 = vmatprep.subr.mxu0 0.0
    %7135 = vmatpush1.msra.mxu0 0.0
    %7136 = vmatprep.subr.mxu0 0.0
    %7137 = vmatpush1.msra.mxu0 0.0
    %7138 = vmatprep.subr.mxu0 0.0
    %7139 = vmatpush1.msra.mxu0 0.0
    %7140 = vmatprep.subr.mxu0 0.0
    %7141 = vmatpush1.msra.mxu0 0.0
    %7142 = vmatprep.subr.mxu0 0.0
    %7143 = vmatpush1.msra.mxu0 0.0
    %7144 = vmatprep.subr.mxu0 0.0
    %7145 = vmatpush1.msra.mxu0 0.0
    %7146 = vmatprep.subr.mxu0 0.0
    %7147 = vmatpush1.msra.mxu0 0.0
    %7148 = vmatprep.subr.mxu0 0.0
    %7149 = vmatpush1.msra.mxu0 0.0
    %7150 = vmatprep.subr.mxu0 0.0
    %7151 = vmatpush1.msra.mxu0 0.0
    %7152 = vmatprep.subr.mxu0 0.0
    %7153 = vmatpush1.msra.mxu0 0.0
    %7154 = vmatprep.subr.mxu0 0.0
    %7155 = vmatpush1.msra.mxu0 0.0
    %7156 = vmatprep.subr.mxu0 0.0
    %7157 = vmatpush1.msra.mxu0 0.0
    %7158 = vmatprep.subr.mxu0 0.0
    %7159 = vmatpush1.msra.mxu0 0.0
    %7160 = vmatprep.subr.mxu0 0.0
    %7161 = vmatpush1.msra.mxu0 0.0
    %7162 = vmatprep.subr.mxu0 0.0
    %7163 = vmatpush1.msra.mxu0 0.0
    %7164 = vmatprep.mubr.f32.mxu0 0.0
    %7165 = vmatmul.mubr.f32.gmra.mrb[0].mxu0 %v7098
    %v7166 = vpop.f32.mrb[0].mxu0
    %v7167 = vadd.f32 %v26, %v7166
    %v7168 = vpop.f32.mrb[0].mxu0
    %7169 = vdwg.mxu0
    %v7170 = vtanh.pop %v7167
    %v7172 = vsel %vm112, %v7170, 0
    %7174 = vmatprep.subr.mxu0 0.0
    %7175 = vmatpush1.msra.mxu0 %v27
    %7176 = vmatprep.subr.mxu0 0.0
    %7177 = vmatpush1.msra.mxu0 %v28
    %7178 = vmatprep.subr.mxu0 0.0
    %7179 = vmatpush1.msra.mxu0 %v29
    %7180 = vmatprep.subr.mxu0 0.0
    %7181 = vmatpush1.msra.mxu0 %v30
    %7182 = vmatprep.subr.mxu0 0.0
    %7183 = vmatpush1.msra.mxu0 0.0
    %7184 = vmatprep.subr.mxu0 0.0
    %7185 = vmatpush1.msra.mxu0 0.0
    %7186 = vmatprep.subr.mxu0 0.0
    %7187 = vmatpush1.msra.mxu0 0.0
    %7188 = vmatprep.subr.mxu0 0.0
    %7189 = vmatpush1.msra.mxu0 0.0
    %7190 = vmatprep.subr.mxu0 0.0
    %7191 = vmatpush1.msra.mxu0 0.0
    %7192 = vmatprep.subr.mxu0 0.0
    %7193 = vmatpush1.msra.mxu0 0.0
    %7194 = vmatprep.subr.mxu0 0.0
    %7195 = vmatpush1.msra.mxu0 0.0
    %7196 = vmatprep.subr.mxu0 0.0
    %7197 = vmatpush1.msra.mxu0 0.0
    %7198 = vmatprep.subr.mxu0 0.0
    %7199 = vmatpush1.msra.mxu0 0.0
    %7200 = vmatprep.subr.mxu0 0.0
    %7201 = vmatpush1.msra.mxu0 0.0
    %7202 = vmatprep.subr.mxu0 0.0
    %7203 = vmatpush1.msra.mxu0 0.0
    %7204 = vmatprep.subr.mxu0 0.0
    %7205 = vmatpush1.msra.mxu0 0.0
    %7206 = vmatprep.subr.mxu0 0.0
    %7207 = vmatpush1.msra.mxu0 0.0
    %7208 = vmatprep.subr.mxu0 0.0
    %7209 = vmatpush1.msra.mxu0 0.0
    %7210 = vmatprep.subr.mxu0 0.0
    %7211 = vmatpush1.msra.mxu0 0.0
    %7212 = vmatprep.subr.mxu0 0.0
    %7213 = vmatpush1.msra.mxu0 0.0
    %7214 = vmatprep.subr.mxu0 0.0
    %7215 = vmatpush1.msra.mxu0 0.0
    %7216 = vmatprep.subr.mxu0 0.0
    %7217 = vmatpush1.msra.mxu0 0.0
    %7218 = vmatprep.subr.mxu0 0.0
    %7219 = vmatpush1.msra.mxu0 0.0
    %7220 = vmatprep.subr.mxu0 0.0
    %7221 = vmatpush1.msra.mxu0 0.0
    %7222 = vmatprep.subr.mxu0 0.0
    %7223 = vmatpush1.msra.mxu0 0.0
    %7224 = vmatprep.subr.mxu0 0.0
    %7225 = vmatpush1.msra.mxu0 0.0
    %7226 = vmatprep.subr.mxu0 0.0
    %7227 = vmatpush1.msra.mxu0 0.0
    %7228 = vmatprep.subr.mxu0 0.0
    %7229 = vmatpush1.msra.mxu0 0.0
    %7230 = vmatprep.subr.mxu0 0.0
    %7231 = vmatpush1.msra.mxu0 0.0
    %7232 = vmatprep.subr.mxu0 0.0
    %7233 = vmatpush1.msra.mxu0 0.0
    %7234 = vmatprep.subr.mxu0 0.0
    %7235 = vmatpush1.msra.mxu0 0.0
    %7236 = vmatprep.subr.mxu0 0.0
    %7237 = vmatpush1.msra.mxu0 0.0
    %7238 = vmatprep.mubr.f32.mxu0 0.0
    %7239 = vmatmul.mubr.f32.gmra.mrb[0].mxu0 %v7172
    %v7240 = vpop.f32.mrb[0].mxu0
    %v7241 = vadd.f32 %v31, %v7240
    %v7242 = vpop.f32.mrb[0].mxu0
    %7243 = vdwg.mxu0
    %v7244 = vmul.f32 %v6943, 2.0
    %v7245 = vadd.f32 %v6794, %v7244
    %v7246 = vmul.f32 %v7092, 2.0
    %v7247 = vadd.f32 %v7245, %v7246
    %v7248 = vadd.f32 %v7247, %v7241
    %v7249 = vmul.f32 %v7248, 0.010416667
    %v7250 = vadd.f32 %v6649, %v7249
    %v7252 = vsel %vm33, %v7250, 0
    %7254 = vmatprep.subr.mxu0 0.0
    %7255 = vmatpush1.msra.mxu0 %v21
    %7256 = vmatprep.subr.mxu0 0.0
    %7257 = vmatpush1.msra.mxu0 %v22
    %7258 = vmatprep.subr.mxu0 0.0
    %7259 = vmatpush1.msra.mxu0 %v23
    %7260 = vmatprep.subr.mxu0 0.0
    %7261 = vmatpush1.msra.mxu0 %v24
    %7262 = vmatprep.subr.mxu0 0.0
    %7263 = vmatpush1.msra.mxu0 %v39
    %7264 = vmatprep.subr.mxu0 0.0
    %7265 = vmatpush1.msra.mxu0 0.0
    %7266 = vmatprep.subr.mxu0 0.0
    %7267 = vmatpush1.msra.mxu0 0.0
    %7268 = vmatprep.subr.mxu0 0.0
    %7269 = vmatpush1.msra.mxu0 0.0
    %7270 = vmatprep.subr.mxu0 0.0
    %7271 = vmatpush1.msra.mxu0 0.0
    %7272 = vmatprep.subr.mxu0 0.0
    %7273 = vmatpush1.msra.mxu0 0.0
    %7274 = vmatprep.subr.mxu0 0.0
    %7275 = vmatpush1.msra.mxu0 0.0
    %7276 = vmatprep.subr.mxu0 0.0
    %7277 = vmatpush1.msra.mxu0 0.0
    %7278 = vmatprep.subr.mxu0 0.0
    %7279 = vmatpush1.msra.mxu0 0.0
    %7280 = vmatprep.subr.mxu0 0.0
    %7281 = vmatpush1.msra.mxu0 0.0
    %7282 = vmatprep.subr.mxu0 0.0
    %7283 = vmatpush1.msra.mxu0 0.0
    %7284 = vmatprep.subr.mxu0 0.0
    %7285 = vmatpush1.msra.mxu0 0.0
    %7286 = vmatprep.subr.mxu0 0.0
    %7287 = vmatpush1.msra.mxu0 0.0
    %7288 = vmatprep.subr.mxu0 0.0
    %7289 = vmatpush1.msra.mxu0 0.0
    %7290 = vmatprep.subr.mxu0 0.0
    %7291 = vmatpush1.msra.mxu0 0.0
    %7292 = vmatprep.subr.mxu0 0.0
    %7293 = vmatpush1.msra.mxu0 0.0
    %7294 = vmatprep.subr.mxu0 0.0
    %7295 = vmatpush1.msra.mxu0 0.0
    %7296 = vmatprep.subr.mxu0 0.0
    %7297 = vmatpush1.msra.mxu0 0.0
    %7298 = vmatprep.subr.mxu0 0.0
    %7299 = vmatpush1.msra.mxu0 0.0
    %7300 = vmatprep.subr.mxu0 0.0
    %7301 = vmatpush1.msra.mxu0 0.0
    %7302 = vmatprep.subr.mxu0 0.0
    %7303 = vmatpush1.msra.mxu0 0.0
    %7304 = vmatprep.subr.mxu0 0.0
    %7305 = vmatpush1.msra.mxu0 0.0
    %7306 = vmatprep.subr.mxu0 0.0
    %7307 = vmatpush1.msra.mxu0 0.0
    %7308 = vmatprep.subr.mxu0 0.0
    %7309 = vmatpush1.msra.mxu0 0.0
    %7310 = vmatprep.subr.mxu0 0.0
    %7311 = vmatpush1.msra.mxu0 0.0
    %7312 = vmatprep.subr.mxu0 0.0
    %7313 = vmatpush1.msra.mxu0 0.0
    %7314 = vmatprep.subr.mxu0 0.0
    %7315 = vmatpush1.msra.mxu0 0.0
    %7316 = vmatprep.subr.mxu0 0.0
    %7317 = vmatpush1.msra.mxu0 0.0
    %7318 = vmatprep.mubr.f32.mxu0 0.0
    %7319 = vmatmul.mubr.f32.gmra.mrb[0].mxu0 %v7252
    %v7320 = vpop.f32.mrb[0].mxu0
    %v7321 = vadd.f32 %v26, %v7320
    %v7322 = vpop.f32.mrb[0].mxu0
    %7323 = vdwg.mxu0
    %v7324 = vtanh.pop %v7321
    %v7326 = vsel %vm112, %v7324, 0
    %7328 = vmatprep.subr.mxu0 0.0
    %7329 = vmatpush1.msra.mxu0 %v27
    %7330 = vmatprep.subr.mxu0 0.0
    %7331 = vmatpush1.msra.mxu0 %v28
    %7332 = vmatprep.subr.mxu0 0.0
    %7333 = vmatpush1.msra.mxu0 %v29
    %7334 = vmatprep.subr.mxu0 0.0
    %7335 = vmatpush1.msra.mxu0 %v30
    %7336 = vmatprep.subr.mxu0 0.0
    %7337 = vmatpush1.msra.mxu0 0.0
    %7338 = vmatprep.subr.mxu0 0.0
    %7339 = vmatpush1.msra.mxu0 0.0
    %7340 = vmatprep.subr.mxu0 0.0
    %7341 = vmatpush1.msra.mxu0 0.0
    %7342 = vmatprep.subr.mxu0 0.0
    %7343 = vmatpush1.msra.mxu0 0.0
    %7344 = vmatprep.subr.mxu0 0.0
    %7345 = vmatpush1.msra.mxu0 0.0
    %7346 = vmatprep.subr.mxu0 0.0
    %7347 = vmatpush1.msra.mxu0 0.0
    %7348 = vmatprep.subr.mxu0 0.0
    %7349 = vmatpush1.msra.mxu0 0.0
    %7350 = vmatprep.subr.mxu0 0.0
    %7351 = vmatpush1.msra.mxu0 0.0
    %7352 = vmatprep.subr.mxu0 0.0
    %7353 = vmatpush1.msra.mxu0 0.0
    %7354 = vmatprep.subr.mxu0 0.0
    %7355 = vmatpush1.msra.mxu0 0.0
    %7356 = vmatprep.subr.mxu0 0.0
    %7357 = vmatpush1.msra.mxu0 0.0
    %7358 = vmatprep.subr.mxu0 0.0
    %7359 = vmatpush1.msra.mxu0 0.0
    %7360 = vmatprep.subr.mxu0 0.0
    %7361 = vmatpush1.msra.mxu0 0.0
    %7362 = vmatprep.subr.mxu0 0.0
    %7363 = vmatpush1.msra.mxu0 0.0
    %7364 = vmatprep.subr.mxu0 0.0
    %7365 = vmatpush1.msra.mxu0 0.0
    %7366 = vmatprep.subr.mxu0 0.0
    %7367 = vmatpush1.msra.mxu0 0.0
    %7368 = vmatprep.subr.mxu0 0.0
    %7369 = vmatpush1.msra.mxu0 0.0
    %7370 = vmatprep.subr.mxu0 0.0
    %7371 = vmatpush1.msra.mxu0 0.0
    %7372 = vmatprep.subr.mxu0 0.0
    %7373 = vmatpush1.msra.mxu0 0.0
    %7374 = vmatprep.subr.mxu0 0.0
    %7375 = vmatpush1.msra.mxu0 0.0
    %7376 = vmatprep.subr.mxu0 0.0
    %7377 = vmatpush1.msra.mxu0 0.0
    %7378 = vmatprep.subr.mxu0 0.0
    %7379 = vmatpush1.msra.mxu0 0.0
    %7380 = vmatprep.subr.mxu0 0.0
    %7381 = vmatpush1.msra.mxu0 0.0
    %7382 = vmatprep.subr.mxu0 0.0
    %7383 = vmatpush1.msra.mxu0 0.0
    %7384 = vmatprep.subr.mxu0 0.0
    %7385 = vmatpush1.msra.mxu0 0.0
    %7386 = vmatprep.subr.mxu0 0.0
    %7387 = vmatpush1.msra.mxu0 0.0
    %7388 = vmatprep.subr.mxu0 0.0
    %7389 = vmatpush1.msra.mxu0 0.0
    %7390 = vmatprep.subr.mxu0 0.0
    %7391 = vmatpush1.msra.mxu0 0.0
    %7392 = vmatprep.mubr.f32.mxu0 0.0
    %7393 = vmatmul.mubr.f32.gmra.mrb[0].mxu0 %v7326
    %v7394 = vpop.f32.mrb[0].mxu0
    %v7395 = vadd.f32 %v31, %v7394
    %v7396 = vpop.f32.mrb[0].mxu0
    %7397 = vdwg.mxu0
    %v7398 = vmul.f32 %v7395, 0.03125
    %v7399 = vadd.f32 %v7250, %v7398
    %v7401 = vsel %vm33, %v7399, 0
    %7403 = vmatprep.subr.mxu0 0.0
    %7404 = vmatpush1.msra.mxu0 %v21
    %7405 = vmatprep.subr.mxu0 0.0
    %7406 = vmatpush1.msra.mxu0 %v22
    %7407 = vmatprep.subr.mxu0 0.0
    %7408 = vmatpush1.msra.mxu0 %v23
    %7409 = vmatprep.subr.mxu0 0.0
    %7410 = vmatpush1.msra.mxu0 %v24
    %7411 = vmatprep.subr.mxu0 0.0
    %7412 = vmatpush1.msra.mxu0 %v39
    %7413 = vmatprep.subr.mxu0 0.0
    %7414 = vmatpush1.msra.mxu0 0.0
    %7415 = vmatprep.subr.mxu0 0.0
    %7416 = vmatpush1.msra.mxu0 0.0
    %7417 = vmatprep.subr.mxu0 0.0
    %7418 = vmatpush1.msra.mxu0 0.0
    %7419 = vmatprep.subr.mxu0 0.0
    %7420 = vmatpush1.msra.mxu0 0.0
    %7421 = vmatprep.subr.mxu0 0.0
    %7422 = vmatpush1.msra.mxu0 0.0
    %7423 = vmatprep.subr.mxu0 0.0
    %7424 = vmatpush1.msra.mxu0 0.0
    %7425 = vmatprep.subr.mxu0 0.0
    %7426 = vmatpush1.msra.mxu0 0.0
    %7427 = vmatprep.subr.mxu0 0.0
    %7428 = vmatpush1.msra.mxu0 0.0
    %7429 = vmatprep.subr.mxu0 0.0
    %7430 = vmatpush1.msra.mxu0 0.0
    %7431 = vmatprep.subr.mxu0 0.0
    %7432 = vmatpush1.msra.mxu0 0.0
    %7433 = vmatprep.subr.mxu0 0.0
    %7434 = vmatpush1.msra.mxu0 0.0
    %7435 = vmatprep.subr.mxu0 0.0
    %7436 = vmatpush1.msra.mxu0 0.0
    %7437 = vmatprep.subr.mxu0 0.0
    %7438 = vmatpush1.msra.mxu0 0.0
    %7439 = vmatprep.subr.mxu0 0.0
    %7440 = vmatpush1.msra.mxu0 0.0
    %7441 = vmatprep.subr.mxu0 0.0
    %7442 = vmatpush1.msra.mxu0 0.0
    %7443 = vmatprep.subr.mxu0 0.0
    %7444 = vmatpush1.msra.mxu0 0.0
    %7445 = vmatprep.subr.mxu0 0.0
    %7446 = vmatpush1.msra.mxu0 0.0
    %7447 = vmatprep.subr.mxu0 0.0
    %7448 = vmatpush1.msra.mxu0 0.0
    %7449 = vmatprep.subr.mxu0 0.0
    %7450 = vmatpush1.msra.mxu0 0.0
    %7451 = vmatprep.subr.mxu0 0.0
    %7452 = vmatpush1.msra.mxu0 0.0
    %7453 = vmatprep.subr.mxu0 0.0
    %7454 = vmatpush1.msra.mxu0 0.0
    %7455 = vmatprep.subr.mxu0 0.0
    %7456 = vmatpush1.msra.mxu0 0.0
    %7457 = vmatprep.subr.mxu0 0.0
    %7458 = vmatpush1.msra.mxu0 0.0
    %7459 = vmatprep.subr.mxu0 0.0
    %7460 = vmatpush1.msra.mxu0 0.0
    %7461 = vmatprep.subr.mxu0 0.0
    %7462 = vmatpush1.msra.mxu0 0.0
    %7463 = vmatprep.subr.mxu0 0.0
    %7464 = vmatpush1.msra.mxu0 0.0
    %7465 = vmatprep.subr.mxu0 0.0
    %7466 = vmatpush1.msra.mxu0 0.0
    %7467 = vmatprep.mubr.f32.mxu0 0.0
    %7468 = vmatmul.mubr.f32.gmra.mrb[0].mxu0 %v7401
    %v7469 = vpop.f32.mrb[0].mxu0
    %v7470 = vadd.f32 %v26, %v7469
    %v7471 = vpop.f32.mrb[0].mxu0
    %7472 = vdwg.mxu0
    %v7473 = vtanh.pop %v7470
    %v7475 = vsel %vm112, %v7473, 0
    %7477 = vmatprep.subr.mxu0 0.0
    %7478 = vmatpush1.msra.mxu0 %v27
    %7479 = vmatprep.subr.mxu0 0.0
    %7480 = vmatpush1.msra.mxu0 %v28
    %7481 = vmatprep.subr.mxu0 0.0
    %7482 = vmatpush1.msra.mxu0 %v29
    %7483 = vmatprep.subr.mxu0 0.0
    %7484 = vmatpush1.msra.mxu0 %v30
    %7485 = vmatprep.subr.mxu0 0.0
    %7486 = vmatpush1.msra.mxu0 0.0
    %7487 = vmatprep.subr.mxu0 0.0
    %7488 = vmatpush1.msra.mxu0 0.0
    %7489 = vmatprep.subr.mxu0 0.0
    %7490 = vmatpush1.msra.mxu0 0.0
    %7491 = vmatprep.subr.mxu0 0.0
    %7492 = vmatpush1.msra.mxu0 0.0
    %7493 = vmatprep.subr.mxu0 0.0
    %7494 = vmatpush1.msra.mxu0 0.0
    %7495 = vmatprep.subr.mxu0 0.0
    %7496 = vmatpush1.msra.mxu0 0.0
    %7497 = vmatprep.subr.mxu0 0.0
    %7498 = vmatpush1.msra.mxu0 0.0
    %7499 = vmatprep.subr.mxu0 0.0
    %7500 = vmatpush1.msra.mxu0 0.0
    %7501 = vmatprep.subr.mxu0 0.0
    %7502 = vmatpush1.msra.mxu0 0.0
    %7503 = vmatprep.subr.mxu0 0.0
    %7504 = vmatpush1.msra.mxu0 0.0
    %7505 = vmatprep.subr.mxu0 0.0
    %7506 = vmatpush1.msra.mxu0 0.0
    %7507 = vmatprep.subr.mxu0 0.0
    %7508 = vmatpush1.msra.mxu0 0.0
    %7509 = vmatprep.subr.mxu0 0.0
    %7510 = vmatpush1.msra.mxu0 0.0
    %7511 = vmatprep.subr.mxu0 0.0
    %7512 = vmatpush1.msra.mxu0 0.0
    %7513 = vmatprep.subr.mxu0 0.0
    %7514 = vmatpush1.msra.mxu0 0.0
    %7515 = vmatprep.subr.mxu0 0.0
    %7516 = vmatpush1.msra.mxu0 0.0
    %7517 = vmatprep.subr.mxu0 0.0
    %7518 = vmatpush1.msra.mxu0 0.0
    %7519 = vmatprep.subr.mxu0 0.0
    %7520 = vmatpush1.msra.mxu0 0.0
    %7521 = vmatprep.subr.mxu0 0.0
    %7522 = vmatpush1.msra.mxu0 0.0
    %7523 = vmatprep.subr.mxu0 0.0
    %7524 = vmatpush1.msra.mxu0 0.0
    %7525 = vmatprep.subr.mxu0 0.0
    %7526 = vmatpush1.msra.mxu0 0.0
    %7527 = vmatprep.subr.mxu0 0.0
    %7528 = vmatpush1.msra.mxu0 0.0
    %7529 = vmatprep.subr.mxu0 0.0
    %7530 = vmatpush1.msra.mxu0 0.0
    %7531 = vmatprep.subr.mxu0 0.0
    %7532 = vmatpush1.msra.mxu0 0.0
    %7533 = vmatprep.subr.mxu0 0.0
    %7534 = vmatpush1.msra.mxu0 0.0
    %7535 = vmatprep.subr.mxu0 0.0
    %7536 = vmatpush1.msra.mxu0 0.0
    %7537 = vmatprep.subr.mxu0 0.0
    %7538 = vmatpush1.msra.mxu0 0.0
    %7539 = vmatprep.subr.mxu0 0.0
    %7540 = vmatpush1.msra.mxu0 0.0
    %7541 = vmatprep.mubr.f32.mxu0 0.0
    %7542 = vmatmul.mubr.f32.gmra.mrb[0].mxu0 %v7475
    %v7543 = vpop.f32.mrb[0].mxu0
    %v7544 = vadd.f32 %v31, %v7543
    %v7545 = vpop.f32.mrb[0].mxu0
    %7546 = vdwg.mxu0
    %v7547 = vmul.f32 %v7544, 0.03125
    %v7548 = vadd.f32 %v7250, %v7547
    %v7550 = vsel %vm33, %v7548, 0
    %7552 = vmatprep.subr.mxu0 0.0
    %7553 = vmatpush1.msra.mxu0 %v21
    %7554 = vmatprep.subr.mxu0 0.0
    %7555 = vmatpush1.msra.mxu0 %v22
    %7556 = vmatprep.subr.mxu0 0.0
    %7557 = vmatpush1.msra.mxu0 %v23
    %7558 = vmatprep.subr.mxu0 0.0
    %7559 = vmatpush1.msra.mxu0 %v24
    %7560 = vmatprep.subr.mxu0 0.0
    %7561 = vmatpush1.msra.mxu0 %v39
    %7562 = vmatprep.subr.mxu0 0.0
    %7563 = vmatpush1.msra.mxu0 0.0
    %7564 = vmatprep.subr.mxu0 0.0
    %7565 = vmatpush1.msra.mxu0 0.0
    %7566 = vmatprep.subr.mxu0 0.0
    %7567 = vmatpush1.msra.mxu0 0.0
    %7568 = vmatprep.subr.mxu0 0.0
    %7569 = vmatpush1.msra.mxu0 0.0
    %7570 = vmatprep.subr.mxu0 0.0
    %7571 = vmatpush1.msra.mxu0 0.0
    %7572 = vmatprep.subr.mxu0 0.0
    %7573 = vmatpush1.msra.mxu0 0.0
    %7574 = vmatprep.subr.mxu0 0.0
    %7575 = vmatpush1.msra.mxu0 0.0
    %7576 = vmatprep.subr.mxu0 0.0
    %7577 = vmatpush1.msra.mxu0 0.0
    %7578 = vmatprep.subr.mxu0 0.0
    %7579 = vmatpush1.msra.mxu0 0.0
    %7580 = vmatprep.subr.mxu0 0.0
    %7581 = vmatpush1.msra.mxu0 0.0
    %7582 = vmatprep.subr.mxu0 0.0
    %7583 = vmatpush1.msra.mxu0 0.0
    %7584 = vmatprep.subr.mxu0 0.0
    %7585 = vmatpush1.msra.mxu0 0.0
    %7586 = vmatprep.subr.mxu0 0.0
    %7587 = vmatpush1.msra.mxu0 0.0
    %7588 = vmatprep.subr.mxu0 0.0
    %7589 = vmatpush1.msra.mxu0 0.0
    %7590 = vmatprep.subr.mxu0 0.0
    %7591 = vmatpush1.msra.mxu0 0.0
    %7592 = vmatprep.subr.mxu0 0.0
    %7593 = vmatpush1.msra.mxu0 0.0
    %7594 = vmatprep.subr.mxu0 0.0
    %7595 = vmatpush1.msra.mxu0 0.0
    %7596 = vmatprep.subr.mxu0 0.0
    %7597 = vmatpush1.msra.mxu0 0.0
    %7598 = vmatprep.subr.mxu0 0.0
    %7599 = vmatpush1.msra.mxu0 0.0
    %7600 = vmatprep.subr.mxu0 0.0
    %7601 = vmatpush1.msra.mxu0 0.0
    %7602 = vmatprep.subr.mxu0 0.0
    %7603 = vmatpush1.msra.mxu0 0.0
    %7604 = vmatprep.subr.mxu0 0.0
    %7605 = vmatpush1.msra.mxu0 0.0
    %7606 = vmatprep.subr.mxu0 0.0
    %7607 = vmatpush1.msra.mxu0 0.0
    %7608 = vmatprep.subr.mxu0 0.0
    %7609 = vmatpush1.msra.mxu0 0.0
    %7610 = vmatprep.subr.mxu0 0.0
    %7611 = vmatpush1.msra.mxu0 0.0
    %7612 = vmatprep.subr.mxu0 0.0
    %7613 = vmatpush1.msra.mxu0 0.0
    %7614 = vmatprep.subr.mxu0 0.0
    %7615 = vmatpush1.msra.mxu0 0.0
    %7616 = vmatprep.mubr.f32.mxu0 0.0
    %7617 = vmatmul.mubr.f32.gmra.mrb[0].mxu0 %v7550
    %v7618 = vpop.f32.mrb[0].mxu0
    %v7619 = vadd.f32 %v26, %v7618
    %v7620 = vpop.f32.mrb[0].mxu0
    %7621 = vdwg.mxu0
    %v7622 = vtanh.pop %v7619
    %v7624 = vsel %vm112, %v7622, 0
    %7626 = vmatprep.subr.mxu0 0.0
    %7627 = vmatpush1.msra.mxu0 %v27
    %7628 = vmatprep.subr.mxu0 0.0
    %7629 = vmatpush1.msra.mxu0 %v28
    %7630 = vmatprep.subr.mxu0 0.0
    %7631 = vmatpush1.msra.mxu0 %v29
    %7632 = vmatprep.subr.mxu0 0.0
    %7633 = vmatpush1.msra.mxu0 %v30
    %7634 = vmatprep.subr.mxu0 0.0
    %7635 = vmatpush1.msra.mxu0 0.0
    %7636 = vmatprep.subr.mxu0 0.0
    %7637 = vmatpush1.msra.mxu0 0.0
    %7638 = vmatprep.subr.mxu0 0.0
    %7639 = vmatpush1.msra.mxu0 0.0
    %7640 = vmatprep.subr.mxu0 0.0
    %7641 = vmatpush1.msra.mxu0 0.0
    %7642 = vmatprep.subr.mxu0 0.0
    %7643 = vmatpush1.msra.mxu0 0.0
    %7644 = vmatprep.subr.mxu0 0.0
    %7645 = vmatpush1.msra.mxu0 0.0
    %7646 = vmatprep.subr.mxu0 0.0
    %7647 = vmatpush1.msra.mxu0 0.0
    %7648 = vmatprep.subr.mxu0 0.0
    %7649 = vmatpush1.msra.mxu0 0.0
    %7650 = vmatprep.subr.mxu0 0.0
    %7651 = vmatpush1.msra.mxu0 0.0
    %7652 = vmatprep.subr.mxu0 0.0
    %7653 = vmatpush1.msra.mxu0 0.0
    %7654 = vmatprep.subr.mxu0 0.0
    %7655 = vmatpush1.msra.mxu0 0.0
    %7656 = vmatprep.subr.mxu0 0.0
    %7657 = vmatpush1.msra.mxu0 0.0
    %7658 = vmatprep.subr.mxu0 0.0
    %7659 = vmatpush1.msra.mxu0 0.0
    %7660 = vmatprep.subr.mxu0 0.0
    %7661 = vmatpush1.msra.mxu0 0.0
    %7662 = vmatprep.subr.mxu0 0.0
    %7663 = vmatpush1.msra.mxu0 0.0
    %7664 = vmatprep.subr.mxu0 0.0
    %7665 = vmatpush1.msra.mxu0 0.0
    %7666 = vmatprep.subr.mxu0 0.0
    %7667 = vmatpush1.msra.mxu0 0.0
    %7668 = vmatprep.subr.mxu0 0.0
    %7669 = vmatpush1.msra.mxu0 0.0
    %7670 = vmatprep.subr.mxu0 0.0
    %7671 = vmatpush1.msra.mxu0 0.0
    %7672 = vmatprep.subr.mxu0 0.0
    %7673 = vmatpush1.msra.mxu0 0.0
    %7674 = vmatprep.subr.mxu0 0.0
    %7675 = vmatpush1.msra.mxu0 0.0
    %7676 = vmatprep.subr.mxu0 0.0
    %7677 = vmatpush1.msra.mxu0 0.0
    %7678 = vmatprep.subr.mxu0 0.0
    %7679 = vmatpush1.msra.mxu0 0.0
    %7680 = vmatprep.subr.mxu0 0.0
    %7681 = vmatpush1.msra.mxu0 0.0
    %7682 = vmatprep.subr.mxu0 0.0
    %7683 = vmatpush1.msra.mxu0 0.0
    %7684 = vmatprep.subr.mxu0 0.0
    %7685 = vmatpush1.msra.mxu0 0.0
    %7686 = vmatprep.subr.mxu0 0.0
    %7687 = vmatpush1.msra.mxu0 0.0
    %7688 = vmatprep.subr.mxu0 0.0
    %7689 = vmatpush1.msra.mxu0 0.0
    %7690 = vmatprep.mubr.f32.mxu0 0.0
    %7691 = vmatmul.mubr.f32.gmra.mrb[0].mxu0 %v7624
    %v7692 = vpop.f32.mrb[0].mxu0
    %v7693 = vadd.f32 %v31, %v7692
    %v7694 = vpop.f32.mrb[0].mxu0
    %7695 = vdwg.mxu0
    %v7696 = vmul.f32 %v7693, 0.0625
    %v7697 = vadd.f32 %v7250, %v7696
    %v7699 = vsel %vm33, %v7697, 0
    %7701 = vmatprep.subr.mxu0 0.0
    %7702 = vmatpush1.msra.mxu0 %v21
    %7703 = vmatprep.subr.mxu0 0.0
    %7704 = vmatpush1.msra.mxu0 %v22
    %7705 = vmatprep.subr.mxu0 0.0
    %7706 = vmatpush1.msra.mxu0 %v23
    %7707 = vmatprep.subr.mxu0 0.0
    %7708 = vmatpush1.msra.mxu0 %v24
    %7709 = vmatprep.subr.mxu0 0.0
    %7710 = vmatpush1.msra.mxu0 %v39
    %7711 = vmatprep.subr.mxu0 0.0
    %7712 = vmatpush1.msra.mxu0 0.0
    %7713 = vmatprep.subr.mxu0 0.0
    %7714 = vmatpush1.msra.mxu0 0.0
    %7715 = vmatprep.subr.mxu0 0.0
    %7716 = vmatpush1.msra.mxu0 0.0
    %7717 = vmatprep.subr.mxu0 0.0
    %7718 = vmatpush1.msra.mxu0 0.0
    %7719 = vmatprep.subr.mxu0 0.0
    %7720 = vmatpush1.msra.mxu0 0.0
    %7721 = vmatprep.subr.mxu0 0.0
    %7722 = vmatpush1.msra.mxu0 0.0
    %7723 = vmatprep.subr.mxu0 0.0
    %7724 = vmatpush1.msra.mxu0 0.0
    %7725 = vmatprep.subr.mxu0 0.0
    %7726 = vmatpush1.msra.mxu0 0.0
    %7727 = vmatprep.subr.mxu0 0.0
    %7728 = vmatpush1.msra.mxu0 0.0
    %7729 = vmatprep.subr.mxu0 0.0
    %7730 = vmatpush1.msra.mxu0 0.0
    %7731 = vmatprep.subr.mxu0 0.0
    %7732 = vmatpush1.msra.mxu0 0.0
    %7733 = vmatprep.subr.mxu0 0.0
    %7734 = vmatpush1.msra.mxu0 0.0
    %7735 = vmatprep.subr.mxu0 0.0
    %7736 = vmatpush1.msra.mxu0 0.0
    %7737 = vmatprep.subr.mxu0 0.0
    %7738 = vmatpush1.msra.mxu0 0.0
    %7739 = vmatprep.subr.mxu0 0.0
    %7740 = vmatpush1.msra.mxu0 0.0
    %7741 = vmatprep.subr.mxu0 0.0
    %7742 = vmatpush1.msra.mxu0 0.0
    %7743 = vmatprep.subr.mxu0 0.0
    %7744 = vmatpush1.msra.mxu0 0.0
    %7745 = vmatprep.subr.mxu0 0.0
    %7746 = vmatpush1.msra.mxu0 0.0
    %7747 = vmatprep.subr.mxu0 0.0
    %7748 = vmatpush1.msra.mxu0 0.0
    %7749 = vmatprep.subr.mxu0 0.0
    %7750 = vmatpush1.msra.mxu0 0.0
    %7751 = vmatprep.subr.mxu0 0.0
    %7752 = vmatpush1.msra.mxu0 0.0
    %7753 = vmatprep.subr.mxu0 0.0
    %7754 = vmatpush1.msra.mxu0 0.0
    %7755 = vmatprep.subr.mxu0 0.0
    %7756 = vmatpush1.msra.mxu0 0.0
    %7757 = vmatprep.subr.mxu0 0.0
    %7758 = vmatpush1.msra.mxu0 0.0
    %7759 = vmatprep.subr.mxu0 0.0
    %7760 = vmatpush1.msra.mxu0 0.0
    %7761 = vmatprep.subr.mxu0 0.0
    %7762 = vmatpush1.msra.mxu0 0.0
    %7763 = vmatprep.subr.mxu0 0.0
    %7764 = vmatpush1.msra.mxu0 0.0
    %7765 = vmatprep.mubr.f32.mxu0 0.0
    %7766 = vmatmul.mubr.f32.gmra.mrb[0].mxu0 %v7699
    %v7767 = vpop.f32.mrb[0].mxu0
    %v7768 = vadd.f32 %v26, %v7767
    %v7769 = vpop.f32.mrb[0].mxu0
    %7770 = vdwg.mxu0
    %v7771 = vtanh.pop %v7768
    %v7773 = vsel %vm112, %v7771, 0
    %7775 = vmatprep.subr.mxu0 0.0
    %7776 = vmatpush1.msra.mxu0 %v27
    %7777 = vmatprep.subr.mxu0 0.0
    %7778 = vmatpush1.msra.mxu0 %v28
    %7779 = vmatprep.subr.mxu0 0.0
    %7780 = vmatpush1.msra.mxu0 %v29
    %7781 = vmatprep.subr.mxu0 0.0
    %7782 = vmatpush1.msra.mxu0 %v30
    %7783 = vmatprep.subr.mxu0 0.0
    %7784 = vmatpush1.msra.mxu0 0.0
    %7785 = vmatprep.subr.mxu0 0.0
    %7786 = vmatpush1.msra.mxu0 0.0
    %7787 = vmatprep.subr.mxu0 0.0
    %7788 = vmatpush1.msra.mxu0 0.0
    %7789 = vmatprep.subr.mxu0 0.0
    %7790 = vmatpush1.msra.mxu0 0.0
    %7791 = vmatprep.subr.mxu0 0.0
    %7792 = vmatpush1.msra.mxu0 0.0
    %7793 = vmatprep.subr.mxu0 0.0
    %7794 = vmatpush1.msra.mxu0 0.0
    %7795 = vmatprep.subr.mxu0 0.0
    %7796 = vmatpush1.msra.mxu0 0.0
    %7797 = vmatprep.subr.mxu0 0.0
    %7798 = vmatpush1.msra.mxu0 0.0
    %7799 = vmatprep.subr.mxu0 0.0
    %7800 = vmatpush1.msra.mxu0 0.0
    %7801 = vmatprep.subr.mxu0 0.0
    %7802 = vmatpush1.msra.mxu0 0.0
    %7803 = vmatprep.subr.mxu0 0.0
    %7804 = vmatpush1.msra.mxu0 0.0
    %7805 = vmatprep.subr.mxu0 0.0
    %7806 = vmatpush1.msra.mxu0 0.0
    %7807 = vmatprep.subr.mxu0 0.0
    %7808 = vmatpush1.msra.mxu0 0.0
    %7809 = vmatprep.subr.mxu0 0.0
    %7810 = vmatpush1.msra.mxu0 0.0
    %7811 = vmatprep.subr.mxu0 0.0
    %7812 = vmatpush1.msra.mxu0 0.0
    %7813 = vmatprep.subr.mxu0 0.0
    %7814 = vmatpush1.msra.mxu0 0.0
    %7815 = vmatprep.subr.mxu0 0.0
    %7816 = vmatpush1.msra.mxu0 0.0
    %7817 = vmatprep.subr.mxu0 0.0
    %7818 = vmatpush1.msra.mxu0 0.0
    %7819 = vmatprep.subr.mxu0 0.0
    %7820 = vmatpush1.msra.mxu0 0.0
    %7821 = vmatprep.subr.mxu0 0.0
    %7822 = vmatpush1.msra.mxu0 0.0
    %7823 = vmatprep.subr.mxu0 0.0
    %7824 = vmatpush1.msra.mxu0 0.0
    %7825 = vmatprep.subr.mxu0 0.0
    %7826 = vmatpush1.msra.mxu0 0.0
    %7827 = vmatprep.subr.mxu0 0.0
    %7828 = vmatpush1.msra.mxu0 0.0
    %7829 = vmatprep.subr.mxu0 0.0
    %7830 = vmatpush1.msra.mxu0 0.0
    %7831 = vmatprep.subr.mxu0 0.0
    %7832 = vmatpush1.msra.mxu0 0.0
    %7833 = vmatprep.subr.mxu0 0.0
    %7834 = vmatpush1.msra.mxu0 0.0
    %7835 = vmatprep.subr.mxu0 0.0
    %7836 = vmatpush1.msra.mxu0 0.0
    %7837 = vmatprep.subr.mxu0 0.0
    %7838 = vmatpush1.msra.mxu0 0.0
    %7839 = vmatprep.mubr.f32.mxu0 0.0
    %7840 = vmatmul.mubr.f32.gmra.mrb[0].mxu0 %v7773
    %v7841 = vpop.f32.mrb[0].mxu0
    %v7842 = vadd.f32 %v31, %v7841
    %v7843 = vpop.f32.mrb[0].mxu0
    %7844 = vdwg.mxu0
    %v7845 = vmul.f32 %v7544, 2.0
    %v7846 = vadd.f32 %v7395, %v7845
    %v7847 = vmul.f32 %v7693, 2.0
    %v7848 = vadd.f32 %v7846, %v7847
    %v7849 = vadd.f32 %v7848, %v7842
    %v7850 = vmul.f32 %v7849, 0.010416667
    %v7851 = vadd.f32 %v7250, %v7850
    %v7853 = vsel %vm33, %v7851, 0
    %7855 = vmatprep.subr.mxu0 0.0
    %7856 = vmatpush1.msra.mxu0 %v21
    %7857 = vmatprep.subr.mxu0 0.0
    %7858 = vmatpush1.msra.mxu0 %v22
    %7859 = vmatprep.subr.mxu0 0.0
    %7860 = vmatpush1.msra.mxu0 %v23
    %7861 = vmatprep.subr.mxu0 0.0
    %7862 = vmatpush1.msra.mxu0 %v24
    %7863 = vmatprep.subr.mxu0 0.0
    %7864 = vmatpush1.msra.mxu0 %v39
    %7865 = vmatprep.subr.mxu0 0.0
    %7866 = vmatpush1.msra.mxu0 0.0
    %7867 = vmatprep.subr.mxu0 0.0
    %7868 = vmatpush1.msra.mxu0 0.0
    %7869 = vmatprep.subr.mxu0 0.0
    %7870 = vmatpush1.msra.mxu0 0.0
    %7871 = vmatprep.subr.mxu0 0.0
    %7872 = vmatpush1.msra.mxu0 0.0
    %7873 = vmatprep.subr.mxu0 0.0
    %7874 = vmatpush1.msra.mxu0 0.0
    %7875 = vmatprep.subr.mxu0 0.0
    %7876 = vmatpush1.msra.mxu0 0.0
    %7877 = vmatprep.subr.mxu0 0.0
    %7878 = vmatpush1.msra.mxu0 0.0
    %7879 = vmatprep.subr.mxu0 0.0
    %7880 = vmatpush1.msra.mxu0 0.0
    %7881 = vmatprep.subr.mxu0 0.0
    %7882 = vmatpush1.msra.mxu0 0.0
    %7883 = vmatprep.subr.mxu0 0.0
    %7884 = vmatpush1.msra.mxu0 0.0
    %7885 = vmatprep.subr.mxu0 0.0
    %7886 = vmatpush1.msra.mxu0 0.0
    %7887 = vmatprep.subr.mxu0 0.0
    %7888 = vmatpush1.msra.mxu0 0.0
    %7889 = vmatprep.subr.mxu0 0.0
    %7890 = vmatpush1.msra.mxu0 0.0
    %7891 = vmatprep.subr.mxu0 0.0
    %7892 = vmatpush1.msra.mxu0 0.0
    %7893 = vmatprep.subr.mxu0 0.0
    %7894 = vmatpush1.msra.mxu0 0.0
    %7895 = vmatprep.subr.mxu0 0.0
    %7896 = vmatpush1.msra.mxu0 0.0
    %7897 = vmatprep.subr.mxu0 0.0
    %7898 = vmatpush1.msra.mxu0 0.0
    %7899 = vmatprep.subr.mxu0 0.0
    %7900 = vmatpush1.msra.mxu0 0.0
    %7901 = vmatprep.subr.mxu0 0.0
    %7902 = vmatpush1.msra.mxu0 0.0
    %7903 = vmatprep.subr.mxu0 0.0
    %7904 = vmatpush1.msra.mxu0 0.0
    %7905 = vmatprep.subr.mxu0 0.0
    %7906 = vmatpush1.msra.mxu0 0.0
    %7907 = vmatprep.subr.mxu0 0.0
    %7908 = vmatpush1.msra.mxu0 0.0
    %7909 = vmatprep.subr.mxu0 0.0
    %7910 = vmatpush1.msra.mxu0 0.0
    %7911 = vmatprep.subr.mxu0 0.0
    %7912 = vmatpush1.msra.mxu0 0.0
    %7913 = vmatprep.subr.mxu0 0.0
    %7914 = vmatpush1.msra.mxu0 0.0
    %7915 = vmatprep.subr.mxu0 0.0
    %7916 = vmatpush1.msra.mxu0 0.0
    %7917 = vmatprep.subr.mxu0 0.0
    %7918 = vmatpush1.msra.mxu0 0.0
    %7919 = vmatprep.mubr.f32.mxu0 0.0
    %7920 = vmatmul.mubr.f32.gmra.mrb[0].mxu0 %v7853
    %v7921 = vpop.f32.mrb[0].mxu0
    %v7922 = vadd.f32 %v26, %v7921
    %v7923 = vpop.f32.mrb[0].mxu0
    %7924 = vdwg.mxu0
    %v7925 = vtanh.pop %v7922
    %v7927 = vsel %vm112, %v7925, 0
    %7929 = vmatprep.subr.mxu0 0.0
    %7930 = vmatpush1.msra.mxu0 %v27
    %7931 = vmatprep.subr.mxu0 0.0
    %7932 = vmatpush1.msra.mxu0 %v28
    %7933 = vmatprep.subr.mxu0 0.0
    %7934 = vmatpush1.msra.mxu0 %v29
    %7935 = vmatprep.subr.mxu0 0.0
    %7936 = vmatpush1.msra.mxu0 %v30
    %7937 = vmatprep.subr.mxu0 0.0
    %7938 = vmatpush1.msra.mxu0 0.0
    %7939 = vmatprep.subr.mxu0 0.0
    %7940 = vmatpush1.msra.mxu0 0.0
    %7941 = vmatprep.subr.mxu0 0.0
    %7942 = vmatpush1.msra.mxu0 0.0
    %7943 = vmatprep.subr.mxu0 0.0
    %7944 = vmatpush1.msra.mxu0 0.0
    %7945 = vmatprep.subr.mxu0 0.0
    %7946 = vmatpush1.msra.mxu0 0.0
    %7947 = vmatprep.subr.mxu0 0.0
    %7948 = vmatpush1.msra.mxu0 0.0
    %7949 = vmatprep.subr.mxu0 0.0
    %7950 = vmatpush1.msra.mxu0 0.0
    %7951 = vmatprep.subr.mxu0 0.0
    %7952 = vmatpush1.msra.mxu0 0.0
    %7953 = vmatprep.subr.mxu0 0.0
    %7954 = vmatpush1.msra.mxu0 0.0
    %7955 = vmatprep.subr.mxu0 0.0
    %7956 = vmatpush1.msra.mxu0 0.0
    %7957 = vmatprep.subr.mxu0 0.0
    %7958 = vmatpush1.msra.mxu0 0.0
    %7959 = vmatprep.subr.mxu0 0.0
    %7960 = vmatpush1.msra.mxu0 0.0
    %7961 = vmatprep.subr.mxu0 0.0
    %7962 = vmatpush1.msra.mxu0 0.0
    %7963 = vmatprep.subr.mxu0 0.0
    %7964 = vmatpush1.msra.mxu0 0.0
    %7965 = vmatprep.subr.mxu0 0.0
    %7966 = vmatpush1.msra.mxu0 0.0
    %7967 = vmatprep.subr.mxu0 0.0
    %7968 = vmatpush1.msra.mxu0 0.0
    %7969 = vmatprep.subr.mxu0 0.0
    %7970 = vmatpush1.msra.mxu0 0.0
    %7971 = vmatprep.subr.mxu0 0.0
    %7972 = vmatpush1.msra.mxu0 0.0
    %7973 = vmatprep.subr.mxu0 0.0
    %7974 = vmatpush1.msra.mxu0 0.0
    %7975 = vmatprep.subr.mxu0 0.0
    %7976 = vmatpush1.msra.mxu0 0.0
    %7977 = vmatprep.subr.mxu0 0.0
    %7978 = vmatpush1.msra.mxu0 0.0
    %7979 = vmatprep.subr.mxu0 0.0
    %7980 = vmatpush1.msra.mxu0 0.0
    %7981 = vmatprep.subr.mxu0 0.0
    %7982 = vmatpush1.msra.mxu0 0.0
    %7983 = vmatprep.subr.mxu0 0.0
    %7984 = vmatpush1.msra.mxu0 0.0
    %7985 = vmatprep.subr.mxu0 0.0
    %7986 = vmatpush1.msra.mxu0 0.0
    %7987 = vmatprep.subr.mxu0 0.0
    %7988 = vmatpush1.msra.mxu0 0.0
    %7989 = vmatprep.subr.mxu0 0.0
    %7990 = vmatpush1.msra.mxu0 0.0
    %7991 = vmatprep.subr.mxu0 0.0
    %7992 = vmatpush1.msra.mxu0 0.0
    %7993 = vmatprep.mubr.f32.mxu0 0.0
    %7994 = vmatmul.mubr.f32.gmra.mrb[0].mxu0 %v7927
    %v7995 = vpop.f32.mrb[0].mxu0
    %v7996 = vadd.f32 %v31, %v7995
    %v7997 = vpop.f32.mrb[0].mxu0
    %7998 = vdwg.mxu0
    %v7999 = vmul.f32 %v7996, 0.03125
    %v8000 = vadd.f32 %v7851, %v7999
    %v8002 = vsel %vm33, %v8000, 0
    %8004 = vmatprep.subr.mxu0 0.0
    %8005 = vmatpush1.msra.mxu0 %v21
    %8006 = vmatprep.subr.mxu0 0.0
    %8007 = vmatpush1.msra.mxu0 %v22
    %8008 = vmatprep.subr.mxu0 0.0
    %8009 = vmatpush1.msra.mxu0 %v23
    %8010 = vmatprep.subr.mxu0 0.0
    %8011 = vmatpush1.msra.mxu0 %v24
    %8012 = vmatprep.subr.mxu0 0.0
    %8013 = vmatpush1.msra.mxu0 %v39
    %8014 = vmatprep.subr.mxu0 0.0
    %8015 = vmatpush1.msra.mxu0 0.0
    %8016 = vmatprep.subr.mxu0 0.0
    %8017 = vmatpush1.msra.mxu0 0.0
    %8018 = vmatprep.subr.mxu0 0.0
    %8019 = vmatpush1.msra.mxu0 0.0
    %8020 = vmatprep.subr.mxu0 0.0
    %8021 = vmatpush1.msra.mxu0 0.0
    %8022 = vmatprep.subr.mxu0 0.0
    %8023 = vmatpush1.msra.mxu0 0.0
    %8024 = vmatprep.subr.mxu0 0.0
    %8025 = vmatpush1.msra.mxu0 0.0
    %8026 = vmatprep.subr.mxu0 0.0
    %8027 = vmatpush1.msra.mxu0 0.0
    %8028 = vmatprep.subr.mxu0 0.0
    %8029 = vmatpush1.msra.mxu0 0.0
    %8030 = vmatprep.subr.mxu0 0.0
    %8031 = vmatpush1.msra.mxu0 0.0
    %8032 = vmatprep.subr.mxu0 0.0
    %8033 = vmatpush1.msra.mxu0 0.0
    %8034 = vmatprep.subr.mxu0 0.0
    %8035 = vmatpush1.msra.mxu0 0.0
    %8036 = vmatprep.subr.mxu0 0.0
    %8037 = vmatpush1.msra.mxu0 0.0
    %8038 = vmatprep.subr.mxu0 0.0
    %8039 = vmatpush1.msra.mxu0 0.0
    %8040 = vmatprep.subr.mxu0 0.0
    %8041 = vmatpush1.msra.mxu0 0.0
    %8042 = vmatprep.subr.mxu0 0.0
    %8043 = vmatpush1.msra.mxu0 0.0
    %8044 = vmatprep.subr.mxu0 0.0
    %8045 = vmatpush1.msra.mxu0 0.0
    %8046 = vmatprep.subr.mxu0 0.0
    %8047 = vmatpush1.msra.mxu0 0.0
    %8048 = vmatprep.subr.mxu0 0.0
    %8049 = vmatpush1.msra.mxu0 0.0
    %8050 = vmatprep.subr.mxu0 0.0
    %8051 = vmatpush1.msra.mxu0 0.0
    %8052 = vmatprep.subr.mxu0 0.0
    %8053 = vmatpush1.msra.mxu0 0.0
    %8054 = vmatprep.subr.mxu0 0.0
    %8055 = vmatpush1.msra.mxu0 0.0
    %8056 = vmatprep.subr.mxu0 0.0
    %8057 = vmatpush1.msra.mxu0 0.0
    %8058 = vmatprep.subr.mxu0 0.0
    %8059 = vmatpush1.msra.mxu0 0.0
    %8060 = vmatprep.subr.mxu0 0.0
    %8061 = vmatpush1.msra.mxu0 0.0
    %8062 = vmatprep.subr.mxu0 0.0
    %8063 = vmatpush1.msra.mxu0 0.0
    %8064 = vmatprep.subr.mxu0 0.0
    %8065 = vmatpush1.msra.mxu0 0.0
    %8066 = vmatprep.subr.mxu0 0.0
    %8067 = vmatpush1.msra.mxu0 0.0
    %8068 = vmatprep.mubr.f32.mxu0 0.0
    %8069 = vmatmul.mubr.f32.gmra.mrb[0].mxu0 %v8002
    %v8070 = vpop.f32.mrb[0].mxu0
    %v8071 = vadd.f32 %v26, %v8070
    %v8072 = vpop.f32.mrb[0].mxu0
    %8073 = vdwg.mxu0
    %v8074 = vtanh.pop %v8071
    %v8076 = vsel %vm112, %v8074, 0
    %8078 = vmatprep.subr.mxu0 0.0
    %8079 = vmatpush1.msra.mxu0 %v27
    %8080 = vmatprep.subr.mxu0 0.0
    %8081 = vmatpush1.msra.mxu0 %v28
    %8082 = vmatprep.subr.mxu0 0.0
    %8083 = vmatpush1.msra.mxu0 %v29
    %8084 = vmatprep.subr.mxu0 0.0
    %8085 = vmatpush1.msra.mxu0 %v30
    %8086 = vmatprep.subr.mxu0 0.0
    %8087 = vmatpush1.msra.mxu0 0.0
    %8088 = vmatprep.subr.mxu0 0.0
    %8089 = vmatpush1.msra.mxu0 0.0
    %8090 = vmatprep.subr.mxu0 0.0
    %8091 = vmatpush1.msra.mxu0 0.0
    %8092 = vmatprep.subr.mxu0 0.0
    %8093 = vmatpush1.msra.mxu0 0.0
    %8094 = vmatprep.subr.mxu0 0.0
    %8095 = vmatpush1.msra.mxu0 0.0
    %8096 = vmatprep.subr.mxu0 0.0
    %8097 = vmatpush1.msra.mxu0 0.0
    %8098 = vmatprep.subr.mxu0 0.0
    %8099 = vmatpush1.msra.mxu0 0.0
    %8100 = vmatprep.subr.mxu0 0.0
    %8101 = vmatpush1.msra.mxu0 0.0
    %8102 = vmatprep.subr.mxu0 0.0
    %8103 = vmatpush1.msra.mxu0 0.0
    %8104 = vmatprep.subr.mxu0 0.0
    %8105 = vmatpush1.msra.mxu0 0.0
    %8106 = vmatprep.subr.mxu0 0.0
    %8107 = vmatpush1.msra.mxu0 0.0
    %8108 = vmatprep.subr.mxu0 0.0
    %8109 = vmatpush1.msra.mxu0 0.0
    %8110 = vmatprep.subr.mxu0 0.0
    %8111 = vmatpush1.msra.mxu0 0.0
    %8112 = vmatprep.subr.mxu0 0.0
    %8113 = vmatpush1.msra.mxu0 0.0
    %8114 = vmatprep.subr.mxu0 0.0
    %8115 = vmatpush1.msra.mxu0 0.0
    %8116 = vmatprep.subr.mxu0 0.0
    %8117 = vmatpush1.msra.mxu0 0.0
    %8118 = vmatprep.subr.mxu0 0.0
    %8119 = vmatpush1.msra.mxu0 0.0
    %8120 = vmatprep.subr.mxu0 0.0
    %8121 = vmatpush1.msra.mxu0 0.0
    %8122 = vmatprep.subr.mxu0 0.0
    %8123 = vmatpush1.msra.mxu0 0.0
    %8124 = vmatprep.subr.mxu0 0.0
    %8125 = vmatpush1.msra.mxu0 0.0
    %8126 = vmatprep.subr.mxu0 0.0
    %8127 = vmatpush1.msra.mxu0 0.0
    %8128 = vmatprep.subr.mxu0 0.0
    %8129 = vmatpush1.msra.mxu0 0.0
    %8130 = vmatprep.subr.mxu0 0.0
    %8131 = vmatpush1.msra.mxu0 0.0
    %8132 = vmatprep.subr.mxu0 0.0
    %8133 = vmatpush1.msra.mxu0 0.0
    %8134 = vmatprep.subr.mxu0 0.0
    %8135 = vmatpush1.msra.mxu0 0.0
    %8136 = vmatprep.subr.mxu0 0.0
    %8137 = vmatpush1.msra.mxu0 0.0
    %8138 = vmatprep.subr.mxu0 0.0
    %8139 = vmatpush1.msra.mxu0 0.0
    %8140 = vmatprep.subr.mxu0 0.0
    %8141 = vmatpush1.msra.mxu0 0.0
    %8142 = vmatprep.mubr.f32.mxu0 0.0
    %8143 = vmatmul.mubr.f32.gmra.mrb[0].mxu0 %v8076
    %v8144 = vpop.f32.mrb[0].mxu0
    %v8145 = vadd.f32 %v31, %v8144
    %v8146 = vpop.f32.mrb[0].mxu0
    %8147 = vdwg.mxu0
    %v8148 = vmul.f32 %v8145, 0.03125
    %v8149 = vadd.f32 %v7851, %v8148
    %v8151 = vsel %vm33, %v8149, 0
    %8153 = vmatprep.subr.mxu0 0.0
    %8154 = vmatpush1.msra.mxu0 %v21
    %8155 = vmatprep.subr.mxu0 0.0
    %8156 = vmatpush1.msra.mxu0 %v22
    %8157 = vmatprep.subr.mxu0 0.0
    %8158 = vmatpush1.msra.mxu0 %v23
    %8159 = vmatprep.subr.mxu0 0.0
    %8160 = vmatpush1.msra.mxu0 %v24
    %8161 = vmatprep.subr.mxu0 0.0
    %8162 = vmatpush1.msra.mxu0 %v39
    %8163 = vmatprep.subr.mxu0 0.0
    %8164 = vmatpush1.msra.mxu0 0.0
    %8165 = vmatprep.subr.mxu0 0.0
    %8166 = vmatpush1.msra.mxu0 0.0
    %8167 = vmatprep.subr.mxu0 0.0
    %8168 = vmatpush1.msra.mxu0 0.0
    %8169 = vmatprep.subr.mxu0 0.0
    %8170 = vmatpush1.msra.mxu0 0.0
    %8171 = vmatprep.subr.mxu0 0.0
    %8172 = vmatpush1.msra.mxu0 0.0
    %8173 = vmatprep.subr.mxu0 0.0
    %8174 = vmatpush1.msra.mxu0 0.0
    %8175 = vmatprep.subr.mxu0 0.0
    %8176 = vmatpush1.msra.mxu0 0.0
    %8177 = vmatprep.subr.mxu0 0.0
    %8178 = vmatpush1.msra.mxu0 0.0
    %8179 = vmatprep.subr.mxu0 0.0
    %8180 = vmatpush1.msra.mxu0 0.0
    %8181 = vmatprep.subr.mxu0 0.0
    %8182 = vmatpush1.msra.mxu0 0.0
    %8183 = vmatprep.subr.mxu0 0.0
    %8184 = vmatpush1.msra.mxu0 0.0
    %8185 = vmatprep.subr.mxu0 0.0
    %8186 = vmatpush1.msra.mxu0 0.0
    %8187 = vmatprep.subr.mxu0 0.0
    %8188 = vmatpush1.msra.mxu0 0.0
    %8189 = vmatprep.subr.mxu0 0.0
    %8190 = vmatpush1.msra.mxu0 0.0
    %8191 = vmatprep.subr.mxu0 0.0
    %8192 = vmatpush1.msra.mxu0 0.0
    %8193 = vmatprep.subr.mxu0 0.0
    %8194 = vmatpush1.msra.mxu0 0.0
    %8195 = vmatprep.subr.mxu0 0.0
    %8196 = vmatpush1.msra.mxu0 0.0
    %8197 = vmatprep.subr.mxu0 0.0
    %8198 = vmatpush1.msra.mxu0 0.0
    %8199 = vmatprep.subr.mxu0 0.0
    %8200 = vmatpush1.msra.mxu0 0.0
    %8201 = vmatprep.subr.mxu0 0.0
    %8202 = vmatpush1.msra.mxu0 0.0
    %8203 = vmatprep.subr.mxu0 0.0
    %8204 = vmatpush1.msra.mxu0 0.0
    %8205 = vmatprep.subr.mxu0 0.0
    %8206 = vmatpush1.msra.mxu0 0.0
    %8207 = vmatprep.subr.mxu0 0.0
    %8208 = vmatpush1.msra.mxu0 0.0
    %8209 = vmatprep.subr.mxu0 0.0
    %8210 = vmatpush1.msra.mxu0 0.0
    %8211 = vmatprep.subr.mxu0 0.0
    %8212 = vmatpush1.msra.mxu0 0.0
    %8213 = vmatprep.subr.mxu0 0.0
    %8214 = vmatpush1.msra.mxu0 0.0
    %8215 = vmatprep.subr.mxu0 0.0
    %8216 = vmatpush1.msra.mxu0 0.0
    %8217 = vmatprep.mubr.f32.mxu0 0.0
    %8218 = vmatmul.mubr.f32.gmra.mrb[0].mxu0 %v8151
    %v8219 = vpop.f32.mrb[0].mxu0
    %v8220 = vadd.f32 %v26, %v8219
    %v8221 = vpop.f32.mrb[0].mxu0
    %8222 = vdwg.mxu0
    %v8223 = vtanh.pop %v8220
    %v8225 = vsel %vm112, %v8223, 0
    %8227 = vmatprep.subr.mxu0 0.0
    %8228 = vmatpush1.msra.mxu0 %v27
    %8229 = vmatprep.subr.mxu0 0.0
    %8230 = vmatpush1.msra.mxu0 %v28
    %8231 = vmatprep.subr.mxu0 0.0
    %8232 = vmatpush1.msra.mxu0 %v29
    %8233 = vmatprep.subr.mxu0 0.0
    %8234 = vmatpush1.msra.mxu0 %v30
    %8235 = vmatprep.subr.mxu0 0.0
    %8236 = vmatpush1.msra.mxu0 0.0
    %8237 = vmatprep.subr.mxu0 0.0
    %8238 = vmatpush1.msra.mxu0 0.0
    %8239 = vmatprep.subr.mxu0 0.0
    %8240 = vmatpush1.msra.mxu0 0.0
    %8241 = vmatprep.subr.mxu0 0.0
    %8242 = vmatpush1.msra.mxu0 0.0
    %8243 = vmatprep.subr.mxu0 0.0
    %8244 = vmatpush1.msra.mxu0 0.0
    %8245 = vmatprep.subr.mxu0 0.0
    %8246 = vmatpush1.msra.mxu0 0.0
    %8247 = vmatprep.subr.mxu0 0.0
    %8248 = vmatpush1.msra.mxu0 0.0
    %8249 = vmatprep.subr.mxu0 0.0
    %8250 = vmatpush1.msra.mxu0 0.0
    %8251 = vmatprep.subr.mxu0 0.0
    %8252 = vmatpush1.msra.mxu0 0.0
    %8253 = vmatprep.subr.mxu0 0.0
    %8254 = vmatpush1.msra.mxu0 0.0
    %8255 = vmatprep.subr.mxu0 0.0
    %8256 = vmatpush1.msra.mxu0 0.0
    %8257 = vmatprep.subr.mxu0 0.0
    %8258 = vmatpush1.msra.mxu0 0.0
    %8259 = vmatprep.subr.mxu0 0.0
    %8260 = vmatpush1.msra.mxu0 0.0
    %8261 = vmatprep.subr.mxu0 0.0
    %8262 = vmatpush1.msra.mxu0 0.0
    %8263 = vmatprep.subr.mxu0 0.0
    %8264 = vmatpush1.msra.mxu0 0.0
    %8265 = vmatprep.subr.mxu0 0.0
    %8266 = vmatpush1.msra.mxu0 0.0
    %8267 = vmatprep.subr.mxu0 0.0
    %8268 = vmatpush1.msra.mxu0 0.0
    %8269 = vmatprep.subr.mxu0 0.0
    %8270 = vmatpush1.msra.mxu0 0.0
    %8271 = vmatprep.subr.mxu0 0.0
    %8272 = vmatpush1.msra.mxu0 0.0
    %8273 = vmatprep.subr.mxu0 0.0
    %8274 = vmatpush1.msra.mxu0 0.0
    %8275 = vmatprep.subr.mxu0 0.0
    %8276 = vmatpush1.msra.mxu0 0.0
    %8277 = vmatprep.subr.mxu0 0.0
    %8278 = vmatpush1.msra.mxu0 0.0
    %8279 = vmatprep.subr.mxu0 0.0
    %8280 = vmatpush1.msra.mxu0 0.0
    %8281 = vmatprep.subr.mxu0 0.0
    %8282 = vmatpush1.msra.mxu0 0.0
    %8283 = vmatprep.subr.mxu0 0.0
    %8284 = vmatpush1.msra.mxu0 0.0
    %8285 = vmatprep.subr.mxu0 0.0
    %8286 = vmatpush1.msra.mxu0 0.0
    %8287 = vmatprep.subr.mxu0 0.0
    %8288 = vmatpush1.msra.mxu0 0.0
    %8289 = vmatprep.subr.mxu0 0.0
    %8290 = vmatpush1.msra.mxu0 0.0
    %8291 = vmatprep.mubr.f32.mxu0 0.0
    %8292 = vmatmul.mubr.f32.gmra.mrb[0].mxu0 %v8225
    %v8293 = vpop.f32.mrb[0].mxu0
    %v8294 = vadd.f32 %v31, %v8293
    %v8295 = vpop.f32.mrb[0].mxu0
    %8296 = vdwg.mxu0
    %v8297 = vmul.f32 %v8294, 0.0625
    %v8298 = vadd.f32 %v7851, %v8297
    %v8300 = vsel %vm33, %v8298, 0
    %8302 = vmatprep.subr.mxu0 0.0
    %8303 = vmatpush1.msra.mxu0 %v21
    %8304 = vmatprep.subr.mxu0 0.0
    %8305 = vmatpush1.msra.mxu0 %v22
    %8306 = vmatprep.subr.mxu0 0.0
    %8307 = vmatpush1.msra.mxu0 %v23
    %8308 = vmatprep.subr.mxu0 0.0
    %8309 = vmatpush1.msra.mxu0 %v24
    %8310 = vmatprep.subr.mxu0 0.0
    %8311 = vmatpush1.msra.mxu0 %v39
    %8312 = vmatprep.subr.mxu0 0.0
    %8313 = vmatpush1.msra.mxu0 0.0
    %8314 = vmatprep.subr.mxu0 0.0
    %8315 = vmatpush1.msra.mxu0 0.0
    %8316 = vmatprep.subr.mxu0 0.0
    %8317 = vmatpush1.msra.mxu0 0.0
    %8318 = vmatprep.subr.mxu0 0.0
    %8319 = vmatpush1.msra.mxu0 0.0
    %8320 = vmatprep.subr.mxu0 0.0
    %8321 = vmatpush1.msra.mxu0 0.0
    %8322 = vmatprep.subr.mxu0 0.0
    %8323 = vmatpush1.msra.mxu0 0.0
    %8324 = vmatprep.subr.mxu0 0.0
    %8325 = vmatpush1.msra.mxu0 0.0
    %8326 = vmatprep.subr.mxu0 0.0
    %8327 = vmatpush1.msra.mxu0 0.0
    %8328 = vmatprep.subr.mxu0 0.0
    %8329 = vmatpush1.msra.mxu0 0.0
    %8330 = vmatprep.subr.mxu0 0.0
    %8331 = vmatpush1.msra.mxu0 0.0
    %8332 = vmatprep.subr.mxu0 0.0
    %8333 = vmatpush1.msra.mxu0 0.0
    %8334 = vmatprep.subr.mxu0 0.0
    %8335 = vmatpush1.msra.mxu0 0.0
    %8336 = vmatprep.subr.mxu0 0.0
    %8337 = vmatpush1.msra.mxu0 0.0
    %8338 = vmatprep.subr.mxu0 0.0
    %8339 = vmatpush1.msra.mxu0 0.0
    %8340 = vmatprep.subr.mxu0 0.0
    %8341 = vmatpush1.msra.mxu0 0.0
    %8342 = vmatprep.subr.mxu0 0.0
    %8343 = vmatpush1.msra.mxu0 0.0
    %8344 = vmatprep.subr.mxu0 0.0
    %8345 = vmatpush1.msra.mxu0 0.0
    %8346 = vmatprep.subr.mxu0 0.0
    %8347 = vmatpush1.msra.mxu0 0.0
    %8348 = vmatprep.subr.mxu0 0.0
    %8349 = vmatpush1.msra.mxu0 0.0
    %8350 = vmatprep.subr.mxu0 0.0
    %8351 = vmatpush1.msra.mxu0 0.0
    %8352 = vmatprep.subr.mxu0 0.0
    %8353 = vmatpush1.msra.mxu0 0.0
    %8354 = vmatprep.subr.mxu0 0.0
    %8355 = vmatpush1.msra.mxu0 0.0
    %8356 = vmatprep.subr.mxu0 0.0
    %8357 = vmatpush1.msra.mxu0 0.0
    %8358 = vmatprep.subr.mxu0 0.0
    %8359 = vmatpush1.msra.mxu0 0.0
    %8360 = vmatprep.subr.mxu0 0.0
    %8361 = vmatpush1.msra.mxu0 0.0
    %8362 = vmatprep.subr.mxu0 0.0
    %8363 = vmatpush1.msra.mxu0 0.0
    %8364 = vmatprep.subr.mxu0 0.0
    %8365 = vmatpush1.msra.mxu0 0.0
    %8366 = vmatprep.mubr.f32.mxu0 0.0
    %8367 = vmatmul.mubr.f32.gmra.mrb[0].mxu0 %v8300
    %v8368 = vpop.f32.mrb[0].mxu0
    %v8369 = vadd.f32 %v26, %v8368
    %v8370 = vpop.f32.mrb[0].mxu0
    %8371 = vdwg.mxu0
    %v8372 = vtanh.pop %v8369
    %v8374 = vsel %vm112, %v8372, 0
    %8376 = vmatprep.subr.mxu0 0.0
    %8377 = vmatpush1.msra.mxu0 %v27
    %8378 = vmatprep.subr.mxu0 0.0
    %8379 = vmatpush1.msra.mxu0 %v28
    %8380 = vmatprep.subr.mxu0 0.0
    %8381 = vmatpush1.msra.mxu0 %v29
    %8382 = vmatprep.subr.mxu0 0.0
    %8383 = vmatpush1.msra.mxu0 %v30
    %8384 = vmatprep.subr.mxu0 0.0
    %8385 = vmatpush1.msra.mxu0 0.0
    %8386 = vmatprep.subr.mxu0 0.0
    %8387 = vmatpush1.msra.mxu0 0.0
    %8388 = vmatprep.subr.mxu0 0.0
    %8389 = vmatpush1.msra.mxu0 0.0
    %8390 = vmatprep.subr.mxu0 0.0
    %8391 = vmatpush1.msra.mxu0 0.0
    %8392 = vmatprep.subr.mxu0 0.0
    %8393 = vmatpush1.msra.mxu0 0.0
    %8394 = vmatprep.subr.mxu0 0.0
    %8395 = vmatpush1.msra.mxu0 0.0
    %8396 = vmatprep.subr.mxu0 0.0
    %8397 = vmatpush1.msra.mxu0 0.0
    %8398 = vmatprep.subr.mxu0 0.0
    %8399 = vmatpush1.msra.mxu0 0.0
    %8400 = vmatprep.subr.mxu0 0.0
    %8401 = vmatpush1.msra.mxu0 0.0
    %8402 = vmatprep.subr.mxu0 0.0
    %8403 = vmatpush1.msra.mxu0 0.0
    %8404 = vmatprep.subr.mxu0 0.0
    %8405 = vmatpush1.msra.mxu0 0.0
    %8406 = vmatprep.subr.mxu0 0.0
    %8407 = vmatpush1.msra.mxu0 0.0
    %8408 = vmatprep.subr.mxu0 0.0
    %8409 = vmatpush1.msra.mxu0 0.0
    %8410 = vmatprep.subr.mxu0 0.0
    %8411 = vmatpush1.msra.mxu0 0.0
    %8412 = vmatprep.subr.mxu0 0.0
    %8413 = vmatpush1.msra.mxu0 0.0
    %8414 = vmatprep.subr.mxu0 0.0
    %8415 = vmatpush1.msra.mxu0 0.0
    %8416 = vmatprep.subr.mxu0 0.0
    %8417 = vmatpush1.msra.mxu0 0.0
    %8418 = vmatprep.subr.mxu0 0.0
    %8419 = vmatpush1.msra.mxu0 0.0
    %8420 = vmatprep.subr.mxu0 0.0
    %8421 = vmatpush1.msra.mxu0 0.0
    %8422 = vmatprep.subr.mxu0 0.0
    %8423 = vmatpush1.msra.mxu0 0.0
    %8424 = vmatprep.subr.mxu0 0.0
    %8425 = vmatpush1.msra.mxu0 0.0
    %8426 = vmatprep.subr.mxu0 0.0
    %8427 = vmatpush1.msra.mxu0 0.0
    %8428 = vmatprep.subr.mxu0 0.0
    %8429 = vmatpush1.msra.mxu0 0.0
    %8430 = vmatprep.subr.mxu0 0.0
    %8431 = vmatpush1.msra.mxu0 0.0
    %8432 = vmatprep.subr.mxu0 0.0
    %8433 = vmatpush1.msra.mxu0 0.0
    %8434 = vmatprep.subr.mxu0 0.0
    %8435 = vmatpush1.msra.mxu0 0.0
    %8436 = vmatprep.subr.mxu0 0.0
    %8437 = vmatpush1.msra.mxu0 0.0
    %8438 = vmatprep.subr.mxu0 0.0
    %8439 = vmatpush1.msra.mxu0 0.0
    %8440 = vmatprep.mubr.f32.mxu0 0.0
    %8441 = vmatmul.mubr.f32.gmra.mrb[0].mxu0 %v8374
    %v8442 = vpop.f32.mrb[0].mxu0
    %v8443 = vadd.f32 %v31, %v8442
    %v8444 = vpop.f32.mrb[0].mxu0
    %8445 = vdwg.mxu0
    %v8446 = vmul.f32 %v8145, 2.0
    %v8447 = vadd.f32 %v7996, %v8446
    %v8448 = vmul.f32 %v8294, 2.0
    %v8449 = vadd.f32 %v8447, %v8448
    %v8450 = vadd.f32 %v8449, %v8443
    %v8451 = vmul.f32 %v8450, 0.010416667
    %v8452 = vadd.f32 %v7851, %v8451
    %v8454 = vsel %vm33, %v8452, 0
    %8456 = vmatprep.subr.mxu0 0.0
    %8457 = vmatpush1.msra.mxu0 %v21
    %8458 = vmatprep.subr.mxu0 0.0
    %8459 = vmatpush1.msra.mxu0 %v22
    %8460 = vmatprep.subr.mxu0 0.0
    %8461 = vmatpush1.msra.mxu0 %v23
    %8462 = vmatprep.subr.mxu0 0.0
    %8463 = vmatpush1.msra.mxu0 %v24
    %8464 = vmatprep.subr.mxu0 0.0
    %8465 = vmatpush1.msra.mxu0 %v39
    %8466 = vmatprep.subr.mxu0 0.0
    %8467 = vmatpush1.msra.mxu0 0.0
    %8468 = vmatprep.subr.mxu0 0.0
    %8469 = vmatpush1.msra.mxu0 0.0
    %8470 = vmatprep.subr.mxu0 0.0
    %8471 = vmatpush1.msra.mxu0 0.0
    %8472 = vmatprep.subr.mxu0 0.0
    %8473 = vmatpush1.msra.mxu0 0.0
    %8474 = vmatprep.subr.mxu0 0.0
    %8475 = vmatpush1.msra.mxu0 0.0
    %8476 = vmatprep.subr.mxu0 0.0
    %8477 = vmatpush1.msra.mxu0 0.0
    %8478 = vmatprep.subr.mxu0 0.0
    %8479 = vmatpush1.msra.mxu0 0.0
    %8480 = vmatprep.subr.mxu0 0.0
    %8481 = vmatpush1.msra.mxu0 0.0
    %8482 = vmatprep.subr.mxu0 0.0
    %8483 = vmatpush1.msra.mxu0 0.0
    %8484 = vmatprep.subr.mxu0 0.0
    %8485 = vmatpush1.msra.mxu0 0.0
    %8486 = vmatprep.subr.mxu0 0.0
    %8487 = vmatpush1.msra.mxu0 0.0
    %8488 = vmatprep.subr.mxu0 0.0
    %8489 = vmatpush1.msra.mxu0 0.0
    %8490 = vmatprep.subr.mxu0 0.0
    %8491 = vmatpush1.msra.mxu0 0.0
    %8492 = vmatprep.subr.mxu0 0.0
    %8493 = vmatpush1.msra.mxu0 0.0
    %8494 = vmatprep.subr.mxu0 0.0
    %8495 = vmatpush1.msra.mxu0 0.0
    %8496 = vmatprep.subr.mxu0 0.0
    %8497 = vmatpush1.msra.mxu0 0.0
    %8498 = vmatprep.subr.mxu0 0.0
    %8499 = vmatpush1.msra.mxu0 0.0
    %8500 = vmatprep.subr.mxu0 0.0
    %8501 = vmatpush1.msra.mxu0 0.0
    %8502 = vmatprep.subr.mxu0 0.0
    %8503 = vmatpush1.msra.mxu0 0.0
    %8504 = vmatprep.subr.mxu0 0.0
    %8505 = vmatpush1.msra.mxu0 0.0
    %8506 = vmatprep.subr.mxu0 0.0
    %8507 = vmatpush1.msra.mxu0 0.0
    %8508 = vmatprep.subr.mxu0 0.0
    %8509 = vmatpush1.msra.mxu0 0.0
    %8510 = vmatprep.subr.mxu0 0.0
    %8511 = vmatpush1.msra.mxu0 0.0
    %8512 = vmatprep.subr.mxu0 0.0
    %8513 = vmatpush1.msra.mxu0 0.0
    %8514 = vmatprep.subr.mxu0 0.0
    %8515 = vmatpush1.msra.mxu0 0.0
    %8516 = vmatprep.subr.mxu0 0.0
    %8517 = vmatpush1.msra.mxu0 0.0
    %8518 = vmatprep.subr.mxu0 0.0
    %8519 = vmatpush1.msra.mxu0 0.0
    %8520 = vmatprep.mubr.f32.mxu0 0.0
    %8521 = vmatmul.mubr.f32.gmra.mrb[0].mxu0 %v8454
    %v8522 = vpop.f32.mrb[0].mxu0
    %v8523 = vadd.f32 %v26, %v8522
    %v8524 = vpop.f32.mrb[0].mxu0
    %8525 = vdwg.mxu0
    %v8526 = vtanh.pop %v8523
    %v8528 = vsel %vm112, %v8526, 0
    %8530 = vmatprep.subr.mxu0 0.0
    %8531 = vmatpush1.msra.mxu0 %v27
    %8532 = vmatprep.subr.mxu0 0.0
    %8533 = vmatpush1.msra.mxu0 %v28
    %8534 = vmatprep.subr.mxu0 0.0
    %8535 = vmatpush1.msra.mxu0 %v29
    %8536 = vmatprep.subr.mxu0 0.0
    %8537 = vmatpush1.msra.mxu0 %v30
    %8538 = vmatprep.subr.mxu0 0.0
    %8539 = vmatpush1.msra.mxu0 0.0
    %8540 = vmatprep.subr.mxu0 0.0
    %8541 = vmatpush1.msra.mxu0 0.0
    %8542 = vmatprep.subr.mxu0 0.0
    %8543 = vmatpush1.msra.mxu0 0.0
    %8544 = vmatprep.subr.mxu0 0.0
    %8545 = vmatpush1.msra.mxu0 0.0
    %8546 = vmatprep.subr.mxu0 0.0
    %8547 = vmatpush1.msra.mxu0 0.0
    %8548 = vmatprep.subr.mxu0 0.0
    %8549 = vmatpush1.msra.mxu0 0.0
    %8550 = vmatprep.subr.mxu0 0.0
    %8551 = vmatpush1.msra.mxu0 0.0
    %8552 = vmatprep.subr.mxu0 0.0
    %8553 = vmatpush1.msra.mxu0 0.0
    %8554 = vmatprep.subr.mxu0 0.0
    %8555 = vmatpush1.msra.mxu0 0.0
    %8556 = vmatprep.subr.mxu0 0.0
    %8557 = vmatpush1.msra.mxu0 0.0
    %8558 = vmatprep.subr.mxu0 0.0
    %8559 = vmatpush1.msra.mxu0 0.0
    %8560 = vmatprep.subr.mxu0 0.0
    %8561 = vmatpush1.msra.mxu0 0.0
    %8562 = vmatprep.subr.mxu0 0.0
    %8563 = vmatpush1.msra.mxu0 0.0
    %8564 = vmatprep.subr.mxu0 0.0
    %8565 = vmatpush1.msra.mxu0 0.0
    %8566 = vmatprep.subr.mxu0 0.0
    %8567 = vmatpush1.msra.mxu0 0.0
    %8568 = vmatprep.subr.mxu0 0.0
    %8569 = vmatpush1.msra.mxu0 0.0
    %8570 = vmatprep.subr.mxu0 0.0
    %8571 = vmatpush1.msra.mxu0 0.0
    %8572 = vmatprep.subr.mxu0 0.0
    %8573 = vmatpush1.msra.mxu0 0.0
    %8574 = vmatprep.subr.mxu0 0.0
    %8575 = vmatpush1.msra.mxu0 0.0
    %8576 = vmatprep.subr.mxu0 0.0
    %8577 = vmatpush1.msra.mxu0 0.0
    %8578 = vmatprep.subr.mxu0 0.0
    %8579 = vmatpush1.msra.mxu0 0.0
    %8580 = vmatprep.subr.mxu0 0.0
    %8581 = vmatpush1.msra.mxu0 0.0
    %8582 = vmatprep.subr.mxu0 0.0
    %8583 = vmatpush1.msra.mxu0 0.0
    %8584 = vmatprep.subr.mxu0 0.0
    %8585 = vmatpush1.msra.mxu0 0.0
    %8586 = vmatprep.subr.mxu0 0.0
    %8587 = vmatpush1.msra.mxu0 0.0
    %8588 = vmatprep.subr.mxu0 0.0
    %8589 = vmatpush1.msra.mxu0 0.0
    %8590 = vmatprep.subr.mxu0 0.0
    %8591 = vmatpush1.msra.mxu0 0.0
    %8592 = vmatprep.subr.mxu0 0.0
    %8593 = vmatpush1.msra.mxu0 0.0
    %8594 = vmatprep.mubr.f32.mxu0 0.0
    %8595 = vmatmul.mubr.f32.gmra.mrb[0].mxu0 %v8528
    %v8596 = vpop.f32.mrb[0].mxu0
    %v8597 = vadd.f32 %v31, %v8596
    %v8598 = vpop.f32.mrb[0].mxu0
    %8599 = vdwg.mxu0
    %v8600 = vmul.f32 %v8597, 0.03125
    %v8601 = vadd.f32 %v8452, %v8600
    %v8603 = vsel %vm33, %v8601, 0
    %8605 = vmatprep.subr.mxu0 0.0
    %8606 = vmatpush1.msra.mxu0 %v21
    %8607 = vmatprep.subr.mxu0 0.0
    %8608 = vmatpush1.msra.mxu0 %v22
    %8609 = vmatprep.subr.mxu0 0.0
    %8610 = vmatpush1.msra.mxu0 %v23
    %8611 = vmatprep.subr.mxu0 0.0
    %8612 = vmatpush1.msra.mxu0 %v24
    %8613 = vmatprep.subr.mxu0 0.0
    %8614 = vmatpush1.msra.mxu0 %v39
    %8615 = vmatprep.subr.mxu0 0.0
    %8616 = vmatpush1.msra.mxu0 0.0
    %8617 = vmatprep.subr.mxu0 0.0
    %8618 = vmatpush1.msra.mxu0 0.0
    %8619 = vmatprep.subr.mxu0 0.0
    %8620 = vmatpush1.msra.mxu0 0.0
    %8621 = vmatprep.subr.mxu0 0.0
    %8622 = vmatpush1.msra.mxu0 0.0
    %8623 = vmatprep.subr.mxu0 0.0
    %8624 = vmatpush1.msra.mxu0 0.0
    %8625 = vmatprep.subr.mxu0 0.0
    %8626 = vmatpush1.msra.mxu0 0.0
    %8627 = vmatprep.subr.mxu0 0.0
    %8628 = vmatpush1.msra.mxu0 0.0
    %8629 = vmatprep.subr.mxu0 0.0
    %8630 = vmatpush1.msra.mxu0 0.0
    %8631 = vmatprep.subr.mxu0 0.0
    %8632 = vmatpush1.msra.mxu0 0.0
    %8633 = vmatprep.subr.mxu0 0.0
    %8634 = vmatpush1.msra.mxu0 0.0
    %8635 = vmatprep.subr.mxu0 0.0
    %8636 = vmatpush1.msra.mxu0 0.0
    %8637 = vmatprep.subr.mxu0 0.0
    %8638 = vmatpush1.msra.mxu0 0.0
    %8639 = vmatprep.subr.mxu0 0.0
    %8640 = vmatpush1.msra.mxu0 0.0
    %8641 = vmatprep.subr.mxu0 0.0
    %8642 = vmatpush1.msra.mxu0 0.0
    %8643 = vmatprep.subr.mxu0 0.0
    %8644 = vmatpush1.msra.mxu0 0.0
    %8645 = vmatprep.subr.mxu0 0.0
    %8646 = vmatpush1.msra.mxu0 0.0
    %8647 = vmatprep.subr.mxu0 0.0
    %8648 = vmatpush1.msra.mxu0 0.0
    %8649 = vmatprep.subr.mxu0 0.0
    %8650 = vmatpush1.msra.mxu0 0.0
    %8651 = vmatprep.subr.mxu0 0.0
    %8652 = vmatpush1.msra.mxu0 0.0
    %8653 = vmatprep.subr.mxu0 0.0
    %8654 = vmatpush1.msra.mxu0 0.0
    %8655 = vmatprep.subr.mxu0 0.0
    %8656 = vmatpush1.msra.mxu0 0.0
    %8657 = vmatprep.subr.mxu0 0.0
    %8658 = vmatpush1.msra.mxu0 0.0
    %8659 = vmatprep.subr.mxu0 0.0
    %8660 = vmatpush1.msra.mxu0 0.0
    %8661 = vmatprep.subr.mxu0 0.0
    %8662 = vmatpush1.msra.mxu0 0.0
    %8663 = vmatprep.subr.mxu0 0.0
    %8664 = vmatpush1.msra.mxu0 0.0
    %8665 = vmatprep.subr.mxu0 0.0
    %8666 = vmatpush1.msra.mxu0 0.0
    %8667 = vmatprep.subr.mxu0 0.0
    %8668 = vmatpush1.msra.mxu0 0.0
    %8669 = vmatprep.mubr.f32.mxu0 0.0
    %8670 = vmatmul.mubr.f32.gmra.mrb[0].mxu0 %v8603
    %v8671 = vpop.f32.mrb[0].mxu0
    %v8672 = vadd.f32 %v26, %v8671
    %v8673 = vpop.f32.mrb[0].mxu0
    %8674 = vdwg.mxu0
    %v8675 = vtanh.pop %v8672
    %v8677 = vsel %vm112, %v8675, 0
    %8679 = vmatprep.subr.mxu0 0.0
    %8680 = vmatpush1.msra.mxu0 %v27
    %8681 = vmatprep.subr.mxu0 0.0
    %8682 = vmatpush1.msra.mxu0 %v28
    %8683 = vmatprep.subr.mxu0 0.0
    %8684 = vmatpush1.msra.mxu0 %v29
    %8685 = vmatprep.subr.mxu0 0.0
    %8686 = vmatpush1.msra.mxu0 %v30
    %8687 = vmatprep.subr.mxu0 0.0
    %8688 = vmatpush1.msra.mxu0 0.0
    %8689 = vmatprep.subr.mxu0 0.0
    %8690 = vmatpush1.msra.mxu0 0.0
    %8691 = vmatprep.subr.mxu0 0.0
    %8692 = vmatpush1.msra.mxu0 0.0
    %8693 = vmatprep.subr.mxu0 0.0
    %8694 = vmatpush1.msra.mxu0 0.0
    %8695 = vmatprep.subr.mxu0 0.0
    %8696 = vmatpush1.msra.mxu0 0.0
    %8697 = vmatprep.subr.mxu0 0.0
    %8698 = vmatpush1.msra.mxu0 0.0
    %8699 = vmatprep.subr.mxu0 0.0
    %8700 = vmatpush1.msra.mxu0 0.0
    %8701 = vmatprep.subr.mxu0 0.0
    %8702 = vmatpush1.msra.mxu0 0.0
    %8703 = vmatprep.subr.mxu0 0.0
    %8704 = vmatpush1.msra.mxu0 0.0
    %8705 = vmatprep.subr.mxu0 0.0
    %8706 = vmatpush1.msra.mxu0 0.0
    %8707 = vmatprep.subr.mxu0 0.0
    %8708 = vmatpush1.msra.mxu0 0.0
    %8709 = vmatprep.subr.mxu0 0.0
    %8710 = vmatpush1.msra.mxu0 0.0
    %8711 = vmatprep.subr.mxu0 0.0
    %8712 = vmatpush1.msra.mxu0 0.0
    %8713 = vmatprep.subr.mxu0 0.0
    %8714 = vmatpush1.msra.mxu0 0.0
    %8715 = vmatprep.subr.mxu0 0.0
    %8716 = vmatpush1.msra.mxu0 0.0
    %8717 = vmatprep.subr.mxu0 0.0
    %8718 = vmatpush1.msra.mxu0 0.0
    %8719 = vmatprep.subr.mxu0 0.0
    %8720 = vmatpush1.msra.mxu0 0.0
    %8721 = vmatprep.subr.mxu0 0.0
    %8722 = vmatpush1.msra.mxu0 0.0
    %8723 = vmatprep.subr.mxu0 0.0
    %8724 = vmatpush1.msra.mxu0 0.0
    %8725 = vmatprep.subr.mxu0 0.0
    %8726 = vmatpush1.msra.mxu0 0.0
    %8727 = vmatprep.subr.mxu0 0.0
    %8728 = vmatpush1.msra.mxu0 0.0
    %8729 = vmatprep.subr.mxu0 0.0
    %8730 = vmatpush1.msra.mxu0 0.0
    %8731 = vmatprep.subr.mxu0 0.0
    %8732 = vmatpush1.msra.mxu0 0.0
    %8733 = vmatprep.subr.mxu0 0.0
    %8734 = vmatpush1.msra.mxu0 0.0
    %8735 = vmatprep.subr.mxu0 0.0
    %8736 = vmatpush1.msra.mxu0 0.0
    %8737 = vmatprep.subr.mxu0 0.0
    %8738 = vmatpush1.msra.mxu0 0.0
    %8739 = vmatprep.subr.mxu0 0.0
    %8740 = vmatpush1.msra.mxu0 0.0
    %8741 = vmatprep.subr.mxu0 0.0
    %8742 = vmatpush1.msra.mxu0 0.0
    %8743 = vmatprep.mubr.f32.mxu0 0.0
    %8744 = vmatmul.mubr.f32.gmra.mrb[0].mxu0 %v8677
    %v8745 = vpop.f32.mrb[0].mxu0
    %v8746 = vadd.f32 %v31, %v8745
    %v8747 = vpop.f32.mrb[0].mxu0
    %8748 = vdwg.mxu0
    %v8749 = vmul.f32 %v8746, 0.03125
    %v8750 = vadd.f32 %v8452, %v8749
    %v8752 = vsel %vm33, %v8750, 0
    %8754 = vmatprep.subr.mxu0 0.0
    %8755 = vmatpush1.msra.mxu0 %v21
    %8756 = vmatprep.subr.mxu0 0.0
    %8757 = vmatpush1.msra.mxu0 %v22
    %8758 = vmatprep.subr.mxu0 0.0
    %8759 = vmatpush1.msra.mxu0 %v23
    %8760 = vmatprep.subr.mxu0 0.0
    %8761 = vmatpush1.msra.mxu0 %v24
    %8762 = vmatprep.subr.mxu0 0.0
    %8763 = vmatpush1.msra.mxu0 %v39
    %8764 = vmatprep.subr.mxu0 0.0
    %8765 = vmatpush1.msra.mxu0 0.0
    %8766 = vmatprep.subr.mxu0 0.0
    %8767 = vmatpush1.msra.mxu0 0.0
    %8768 = vmatprep.subr.mxu0 0.0
    %8769 = vmatpush1.msra.mxu0 0.0
    %8770 = vmatprep.subr.mxu0 0.0
    %8771 = vmatpush1.msra.mxu0 0.0
    %8772 = vmatprep.subr.mxu0 0.0
    %8773 = vmatpush1.msra.mxu0 0.0
    %8774 = vmatprep.subr.mxu0 0.0
    %8775 = vmatpush1.msra.mxu0 0.0
    %8776 = vmatprep.subr.mxu0 0.0
    %8777 = vmatpush1.msra.mxu0 0.0
    %8778 = vmatprep.subr.mxu0 0.0
    %8779 = vmatpush1.msra.mxu0 0.0
    %8780 = vmatprep.subr.mxu0 0.0
    %8781 = vmatpush1.msra.mxu0 0.0
    %8782 = vmatprep.subr.mxu0 0.0
    %8783 = vmatpush1.msra.mxu0 0.0
    %8784 = vmatprep.subr.mxu0 0.0
    %8785 = vmatpush1.msra.mxu0 0.0
    %8786 = vmatprep.subr.mxu0 0.0
    %8787 = vmatpush1.msra.mxu0 0.0
    %8788 = vmatprep.subr.mxu0 0.0
    %8789 = vmatpush1.msra.mxu0 0.0
    %8790 = vmatprep.subr.mxu0 0.0
    %8791 = vmatpush1.msra.mxu0 0.0
    %8792 = vmatprep.subr.mxu0 0.0
    %8793 = vmatpush1.msra.mxu0 0.0
    %8794 = vmatprep.subr.mxu0 0.0
    %8795 = vmatpush1.msra.mxu0 0.0
    %8796 = vmatprep.subr.mxu0 0.0
    %8797 = vmatpush1.msra.mxu0 0.0
    %8798 = vmatprep.subr.mxu0 0.0
    %8799 = vmatpush1.msra.mxu0 0.0
    %8800 = vmatprep.subr.mxu0 0.0
    %8801 = vmatpush1.msra.mxu0 0.0
    %8802 = vmatprep.subr.mxu0 0.0
    %8803 = vmatpush1.msra.mxu0 0.0
    %8804 = vmatprep.subr.mxu0 0.0
    %8805 = vmatpush1.msra.mxu0 0.0
    %8806 = vmatprep.subr.mxu0 0.0
    %8807 = vmatpush1.msra.mxu0 0.0
    %8808 = vmatprep.subr.mxu0 0.0
    %8809 = vmatpush1.msra.mxu0 0.0
    %8810 = vmatprep.subr.mxu0 0.0
    %8811 = vmatpush1.msra.mxu0 0.0
    %8812 = vmatprep.subr.mxu0 0.0
    %8813 = vmatpush1.msra.mxu0 0.0
    %8814 = vmatprep.subr.mxu0 0.0
    %8815 = vmatpush1.msra.mxu0 0.0
    %8816 = vmatprep.subr.mxu0 0.0
    %8817 = vmatpush1.msra.mxu0 0.0
    %8818 = vmatprep.mubr.f32.mxu0 0.0
    %8819 = vmatmul.mubr.f32.gmra.mrb[0].mxu0 %v8752
    %v8820 = vpop.f32.mrb[0].mxu0
    %v8821 = vadd.f32 %v26, %v8820
    %v8822 = vpop.f32.mrb[0].mxu0
    %8823 = vdwg.mxu0
    %v8824 = vtanh.pop %v8821
    %v8826 = vsel %vm112, %v8824, 0
    %8828 = vmatprep.subr.mxu0 0.0
    %8829 = vmatpush1.msra.mxu0 %v27
    %8830 = vmatprep.subr.mxu0 0.0
    %8831 = vmatpush1.msra.mxu0 %v28
    %8832 = vmatprep.subr.mxu0 0.0
    %8833 = vmatpush1.msra.mxu0 %v29
    %8834 = vmatprep.subr.mxu0 0.0
    %8835 = vmatpush1.msra.mxu0 %v30
    %8836 = vmatprep.subr.mxu0 0.0
    %8837 = vmatpush1.msra.mxu0 0.0
    %8838 = vmatprep.subr.mxu0 0.0
    %8839 = vmatpush1.msra.mxu0 0.0
    %8840 = vmatprep.subr.mxu0 0.0
    %8841 = vmatpush1.msra.mxu0 0.0
    %8842 = vmatprep.subr.mxu0 0.0
    %8843 = vmatpush1.msra.mxu0 0.0
    %8844 = vmatprep.subr.mxu0 0.0
    %8845 = vmatpush1.msra.mxu0 0.0
    %8846 = vmatprep.subr.mxu0 0.0
    %8847 = vmatpush1.msra.mxu0 0.0
    %8848 = vmatprep.subr.mxu0 0.0
    %8849 = vmatpush1.msra.mxu0 0.0
    %8850 = vmatprep.subr.mxu0 0.0
    %8851 = vmatpush1.msra.mxu0 0.0
    %8852 = vmatprep.subr.mxu0 0.0
    %8853 = vmatpush1.msra.mxu0 0.0
    %8854 = vmatprep.subr.mxu0 0.0
    %8855 = vmatpush1.msra.mxu0 0.0
    %8856 = vmatprep.subr.mxu0 0.0
    %8857 = vmatpush1.msra.mxu0 0.0
    %8858 = vmatprep.subr.mxu0 0.0
    %8859 = vmatpush1.msra.mxu0 0.0
    %8860 = vmatprep.subr.mxu0 0.0
    %8861 = vmatpush1.msra.mxu0 0.0
    %8862 = vmatprep.subr.mxu0 0.0
    %8863 = vmatpush1.msra.mxu0 0.0
    %8864 = vmatprep.subr.mxu0 0.0
    %8865 = vmatpush1.msra.mxu0 0.0
    %8866 = vmatprep.subr.mxu0 0.0
    %8867 = vmatpush1.msra.mxu0 0.0
    %8868 = vmatprep.subr.mxu0 0.0
    %8869 = vmatpush1.msra.mxu0 0.0
    %8870 = vmatprep.subr.mxu0 0.0
    %8871 = vmatpush1.msra.mxu0 0.0
    %8872 = vmatprep.subr.mxu0 0.0
    %8873 = vmatpush1.msra.mxu0 0.0
    %8874 = vmatprep.subr.mxu0 0.0
    %8875 = vmatpush1.msra.mxu0 0.0
    %8876 = vmatprep.subr.mxu0 0.0
    %8877 = vmatpush1.msra.mxu0 0.0
    %8878 = vmatprep.subr.mxu0 0.0
    %8879 = vmatpush1.msra.mxu0 0.0
    %8880 = vmatprep.subr.mxu0 0.0
    %8881 = vmatpush1.msra.mxu0 0.0
    %8882 = vmatprep.subr.mxu0 0.0
    %8883 = vmatpush1.msra.mxu0 0.0
    %8884 = vmatprep.subr.mxu0 0.0
    %8885 = vmatpush1.msra.mxu0 0.0
    %8886 = vmatprep.subr.mxu0 0.0
    %8887 = vmatpush1.msra.mxu0 0.0
    %8888 = vmatprep.subr.mxu0 0.0
    %8889 = vmatpush1.msra.mxu0 0.0
    %8890 = vmatprep.subr.mxu0 0.0
    %8891 = vmatpush1.msra.mxu0 0.0
    %8892 = vmatprep.mubr.f32.mxu0 0.0
    %8893 = vmatmul.mubr.f32.gmra.mrb[0].mxu0 %v8826
    %v8894 = vpop.f32.mrb[0].mxu0
    %v8895 = vadd.f32 %v31, %v8894
    %v8896 = vpop.f32.mrb[0].mxu0
    %8897 = vdwg.mxu0
    %v8898 = vmul.f32 %v8895, 0.0625
    %v8899 = vadd.f32 %v8452, %v8898
    %v8901 = vsel %vm33, %v8899, 0
    %8903 = vmatprep.subr.mxu0 0.0
    %8904 = vmatpush1.msra.mxu0 %v21
    %8905 = vmatprep.subr.mxu0 0.0
    %8906 = vmatpush1.msra.mxu0 %v22
    %8907 = vmatprep.subr.mxu0 0.0
    %8908 = vmatpush1.msra.mxu0 %v23
    %8909 = vmatprep.subr.mxu0 0.0
    %8910 = vmatpush1.msra.mxu0 %v24
    %8911 = vmatprep.subr.mxu0 0.0
    %8912 = vmatpush1.msra.mxu0 %v39
    %8913 = vmatprep.subr.mxu0 0.0
    %8914 = vmatpush1.msra.mxu0 0.0
    %8915 = vmatprep.subr.mxu0 0.0
    %8916 = vmatpush1.msra.mxu0 0.0
    %8917 = vmatprep.subr.mxu0 0.0
    %8918 = vmatpush1.msra.mxu0 0.0
    %8919 = vmatprep.subr.mxu0 0.0
    %8920 = vmatpush1.msra.mxu0 0.0
    %8921 = vmatprep.subr.mxu0 0.0
    %8922 = vmatpush1.msra.mxu0 0.0
    %8923 = vmatprep.subr.mxu0 0.0
    %8924 = vmatpush1.msra.mxu0 0.0
    %8925 = vmatprep.subr.mxu0 0.0
    %8926 = vmatpush1.msra.mxu0 0.0
    %8927 = vmatprep.subr.mxu0 0.0
    %8928 = vmatpush1.msra.mxu0 0.0
    %8929 = vmatprep.subr.mxu0 0.0
    %8930 = vmatpush1.msra.mxu0 0.0
    %8931 = vmatprep.subr.mxu0 0.0
    %8932 = vmatpush1.msra.mxu0 0.0
    %8933 = vmatprep.subr.mxu0 0.0
    %8934 = vmatpush1.msra.mxu0 0.0
    %8935 = vmatprep.subr.mxu0 0.0
    %8936 = vmatpush1.msra.mxu0 0.0
    %8937 = vmatprep.subr.mxu0 0.0
    %8938 = vmatpush1.msra.mxu0 0.0
    %8939 = vmatprep.subr.mxu0 0.0
    %8940 = vmatpush1.msra.mxu0 0.0
    %8941 = vmatprep.subr.mxu0 0.0
    %8942 = vmatpush1.msra.mxu0 0.0
    %8943 = vmatprep.subr.mxu0 0.0
    %8944 = vmatpush1.msra.mxu0 0.0
    %8945 = vmatprep.subr.mxu0 0.0
    %8946 = vmatpush1.msra.mxu0 0.0
    %8947 = vmatprep.subr.mxu0 0.0
    %8948 = vmatpush1.msra.mxu0 0.0
    %8949 = vmatprep.subr.mxu0 0.0
    %8950 = vmatpush1.msra.mxu0 0.0
    %8951 = vmatprep.subr.mxu0 0.0
    %8952 = vmatpush1.msra.mxu0 0.0
    %8953 = vmatprep.subr.mxu0 0.0
    %8954 = vmatpush1.msra.mxu0 0.0
    %8955 = vmatprep.subr.mxu0 0.0
    %8956 = vmatpush1.msra.mxu0 0.0
    %8957 = vmatprep.subr.mxu0 0.0
    %8958 = vmatpush1.msra.mxu0 0.0
    %8959 = vmatprep.subr.mxu0 0.0
    %8960 = vmatpush1.msra.mxu0 0.0
    %8961 = vmatprep.subr.mxu0 0.0
    %8962 = vmatpush1.msra.mxu0 0.0
    %8963 = vmatprep.subr.mxu0 0.0
    %8964 = vmatpush1.msra.mxu0 0.0
    %8965 = vmatprep.subr.mxu0 0.0
    %8966 = vmatpush1.msra.mxu0 0.0
    %8967 = vmatprep.mubr.f32.mxu0 0.0
    %8968 = vmatmul.mubr.f32.gmra.mrb[0].mxu0 %v8901
    %v8969 = vpop.f32.mrb[0].mxu0
    %v8970 = vadd.f32 %v26, %v8969
    %v8971 = vpop.f32.mrb[0].mxu0
    %8972 = vdwg.mxu0
    %v8973 = vtanh.pop %v8970
    %v8975 = vsel %vm112, %v8973, 0
    %8977 = vmatprep.subr.mxu0 0.0
    %8978 = vmatpush1.msra.mxu0 %v27
    %8979 = vmatprep.subr.mxu0 0.0
    %8980 = vmatpush1.msra.mxu0 %v28
    %8981 = vmatprep.subr.mxu0 0.0
    %8982 = vmatpush1.msra.mxu0 %v29
    %8983 = vmatprep.subr.mxu0 0.0
    %8984 = vmatpush1.msra.mxu0 %v30
    %8985 = vmatprep.subr.mxu0 0.0
    %8986 = vmatpush1.msra.mxu0 0.0
    %8987 = vmatprep.subr.mxu0 0.0
    %8988 = vmatpush1.msra.mxu0 0.0
    %8989 = vmatprep.subr.mxu0 0.0
    %8990 = vmatpush1.msra.mxu0 0.0
    %8991 = vmatprep.subr.mxu0 0.0
    %8992 = vmatpush1.msra.mxu0 0.0
    %8993 = vmatprep.subr.mxu0 0.0
    %8994 = vmatpush1.msra.mxu0 0.0
    %8995 = vmatprep.subr.mxu0 0.0
    %8996 = vmatpush1.msra.mxu0 0.0
    %8997 = vmatprep.subr.mxu0 0.0
    %8998 = vmatpush1.msra.mxu0 0.0
    %8999 = vmatprep.subr.mxu0 0.0
    %9000 = vmatpush1.msra.mxu0 0.0
    %9001 = vmatprep.subr.mxu0 0.0
    %9002 = vmatpush1.msra.mxu0 0.0
    %9003 = vmatprep.subr.mxu0 0.0
    %9004 = vmatpush1.msra.mxu0 0.0
    %9005 = vmatprep.subr.mxu0 0.0
    %9006 = vmatpush1.msra.mxu0 0.0
    %9007 = vmatprep.subr.mxu0 0.0
    %9008 = vmatpush1.msra.mxu0 0.0
    %9009 = vmatprep.subr.mxu0 0.0
    %9010 = vmatpush1.msra.mxu0 0.0
    %9011 = vmatprep.subr.mxu0 0.0
    %9012 = vmatpush1.msra.mxu0 0.0
    %9013 = vmatprep.subr.mxu0 0.0
    %9014 = vmatpush1.msra.mxu0 0.0
    %9015 = vmatprep.subr.mxu0 0.0
    %9016 = vmatpush1.msra.mxu0 0.0
    %9017 = vmatprep.subr.mxu0 0.0
    %9018 = vmatpush1.msra.mxu0 0.0
    %9019 = vmatprep.subr.mxu0 0.0
    %9020 = vmatpush1.msra.mxu0 0.0
    %9021 = vmatprep.subr.mxu0 0.0
    %9022 = vmatpush1.msra.mxu0 0.0
    %9023 = vmatprep.subr.mxu0 0.0
    %9024 = vmatpush1.msra.mxu0 0.0
    %9025 = vmatprep.subr.mxu0 0.0
    %9026 = vmatpush1.msra.mxu0 0.0
    %9027 = vmatprep.subr.mxu0 0.0
    %9028 = vmatpush1.msra.mxu0 0.0
    %9029 = vmatprep.subr.mxu0 0.0
    %9030 = vmatpush1.msra.mxu0 0.0
    %9031 = vmatprep.subr.mxu0 0.0
    %9032 = vmatpush1.msra.mxu0 0.0
    %9033 = vmatprep.subr.mxu0 0.0
    %9034 = vmatpush1.msra.mxu0 0.0
    %9035 = vmatprep.subr.mxu0 0.0
    %9036 = vmatpush1.msra.mxu0 0.0
    %9037 = vmatprep.subr.mxu0 0.0
    %9038 = vmatpush1.msra.mxu0 0.0
    %9039 = vmatprep.subr.mxu0 0.0
    %9040 = vmatpush1.msra.mxu0 0.0
    %9041 = vmatprep.mubr.f32.mxu0 0.0
    %9042 = vmatmul.mubr.f32.gmra.mrb[0].mxu0 %v8975
    %v9043 = vpop.f32.mrb[0].mxu0
    %v9044 = vadd.f32 %v31, %v9043
    %v9045 = vpop.f32.mrb[0].mxu0
    %9046 = vdwg.mxu0
    %v9047 = vmul.f32 %v8746, 2.0
    %v9048 = vadd.f32 %v8597, %v9047
    %v9049 = vmul.f32 %v8895, 2.0
    %v9050 = vadd.f32 %v9048, %v9049
    %v9051 = vadd.f32 %v9050, %v9044
    %v9052 = vmul.f32 %v9051, 0.010416667
    %v9053 = vadd.f32 %v8452, %v9052
    %v9055 = vsel %vm33, %v9053, 0
    %9057 = vmatprep.subr.mxu0 0.0
    %9058 = vmatpush1.msra.mxu0 %v21
    %9059 = vmatprep.subr.mxu0 0.0
    %9060 = vmatpush1.msra.mxu0 %v22
    %9061 = vmatprep.subr.mxu0 0.0
    %9062 = vmatpush1.msra.mxu0 %v23
    %9063 = vmatprep.subr.mxu0 0.0
    %9064 = vmatpush1.msra.mxu0 %v24
    %9065 = vmatprep.subr.mxu0 0.0
    %9066 = vmatpush1.msra.mxu0 %v39
    %9067 = vmatprep.subr.mxu0 0.0
    %9068 = vmatpush1.msra.mxu0 0.0
    %9069 = vmatprep.subr.mxu0 0.0
    %9070 = vmatpush1.msra.mxu0 0.0
    %9071 = vmatprep.subr.mxu0 0.0
    %9072 = vmatpush1.msra.mxu0 0.0
    %9073 = vmatprep.subr.mxu0 0.0
    %9074 = vmatpush1.msra.mxu0 0.0
    %9075 = vmatprep.subr.mxu0 0.0
    %9076 = vmatpush1.msra.mxu0 0.0
    %9077 = vmatprep.subr.mxu0 0.0
    %9078 = vmatpush1.msra.mxu0 0.0
    %9079 = vmatprep.subr.mxu0 0.0
    %9080 = vmatpush1.msra.mxu0 0.0
    %9081 = vmatprep.subr.mxu0 0.0
    %9082 = vmatpush1.msra.mxu0 0.0
    %9083 = vmatprep.subr.mxu0 0.0
    %9084 = vmatpush1.msra.mxu0 0.0
    %9085 = vmatprep.subr.mxu0 0.0
    %9086 = vmatpush1.msra.mxu0 0.0
    %9087 = vmatprep.subr.mxu0 0.0
    %9088 = vmatpush1.msra.mxu0 0.0
    %9089 = vmatprep.subr.mxu0 0.0
    %9090 = vmatpush1.msra.mxu0 0.0
    %9091 = vmatprep.subr.mxu0 0.0
    %9092 = vmatpush1.msra.mxu0 0.0
    %9093 = vmatprep.subr.mxu0 0.0
    %9094 = vmatpush1.msra.mxu0 0.0
    %9095 = vmatprep.subr.mxu0 0.0
    %9096 = vmatpush1.msra.mxu0 0.0
    %9097 = vmatprep.subr.mxu0 0.0
    %9098 = vmatpush1.msra.mxu0 0.0
    %9099 = vmatprep.subr.mxu0 0.0
    %9100 = vmatpush1.msra.mxu0 0.0
    %9101 = vmatprep.subr.mxu0 0.0
    %9102 = vmatpush1.msra.mxu0 0.0
    %9103 = vmatprep.subr.mxu0 0.0
    %9104 = vmatpush1.msra.mxu0 0.0
    %9105 = vmatprep.subr.mxu0 0.0
    %9106 = vmatpush1.msra.mxu0 0.0
    %9107 = vmatprep.subr.mxu0 0.0
    %9108 = vmatpush1.msra.mxu0 0.0
    %9109 = vmatprep.subr.mxu0 0.0
    %9110 = vmatpush1.msra.mxu0 0.0
    %9111 = vmatprep.subr.mxu0 0.0
    %9112 = vmatpush1.msra.mxu0 0.0
    %9113 = vmatprep.subr.mxu0 0.0
    %9114 = vmatpush1.msra.mxu0 0.0
    %9115 = vmatprep.subr.mxu0 0.0
    %9116 = vmatpush1.msra.mxu0 0.0
    %9117 = vmatprep.subr.mxu0 0.0
    %9118 = vmatpush1.msra.mxu0 0.0
    %9119 = vmatprep.subr.mxu0 0.0
    %9120 = vmatpush1.msra.mxu0 0.0
    %9121 = vmatprep.mubr.f32.mxu0 0.0
    %9122 = vmatmul.mubr.f32.gmra.mrb[0].mxu0 %v9055
    %v9123 = vpop.f32.mrb[0].mxu0
    %v9124 = vadd.f32 %v26, %v9123
    %v9125 = vpop.f32.mrb[0].mxu0
    %9126 = vdwg.mxu0
    %v9127 = vtanh.pop %v9124
    %v9129 = vsel %vm112, %v9127, 0
    %9131 = vmatprep.subr.mxu0 0.0
    %9132 = vmatpush1.msra.mxu0 %v27
    %9133 = vmatprep.subr.mxu0 0.0
    %9134 = vmatpush1.msra.mxu0 %v28
    %9135 = vmatprep.subr.mxu0 0.0
    %9136 = vmatpush1.msra.mxu0 %v29
    %9137 = vmatprep.subr.mxu0 0.0
    %9138 = vmatpush1.msra.mxu0 %v30
    %9139 = vmatprep.subr.mxu0 0.0
    %9140 = vmatpush1.msra.mxu0 0.0
    %9141 = vmatprep.subr.mxu0 0.0
    %9142 = vmatpush1.msra.mxu0 0.0
    %9143 = vmatprep.subr.mxu0 0.0
    %9144 = vmatpush1.msra.mxu0 0.0
    %9145 = vmatprep.subr.mxu0 0.0
    %9146 = vmatpush1.msra.mxu0 0.0
    %9147 = vmatprep.subr.mxu0 0.0
    %9148 = vmatpush1.msra.mxu0 0.0
    %9149 = vmatprep.subr.mxu0 0.0
    %9150 = vmatpush1.msra.mxu0 0.0
    %9151 = vmatprep.subr.mxu0 0.0
    %9152 = vmatpush1.msra.mxu0 0.0
    %9153 = vmatprep.subr.mxu0 0.0
    %9154 = vmatpush1.msra.mxu0 0.0
    %9155 = vmatprep.subr.mxu0 0.0
    %9156 = vmatpush1.msra.mxu0 0.0
    %9157 = vmatprep.subr.mxu0 0.0
    %9158 = vmatpush1.msra.mxu0 0.0
    %9159 = vmatprep.subr.mxu0 0.0
    %9160 = vmatpush1.msra.mxu0 0.0
    %9161 = vmatprep.subr.mxu0 0.0
    %9162 = vmatpush1.msra.mxu0 0.0
    %9163 = vmatprep.subr.mxu0 0.0
    %9164 = vmatpush1.msra.mxu0 0.0
    %9165 = vmatprep.subr.mxu0 0.0
    %9166 = vmatpush1.msra.mxu0 0.0
    %9167 = vmatprep.subr.mxu0 0.0
    %9168 = vmatpush1.msra.mxu0 0.0
    %9169 = vmatprep.subr.mxu0 0.0
    %9170 = vmatpush1.msra.mxu0 0.0
    %9171 = vmatprep.subr.mxu0 0.0
    %9172 = vmatpush1.msra.mxu0 0.0
    %9173 = vmatprep.subr.mxu0 0.0
    %9174 = vmatpush1.msra.mxu0 0.0
    %9175 = vmatprep.subr.mxu0 0.0
    %9176 = vmatpush1.msra.mxu0 0.0
    %9177 = vmatprep.subr.mxu0 0.0
    %9178 = vmatpush1.msra.mxu0 0.0
    %9179 = vmatprep.subr.mxu0 0.0
    %9180 = vmatpush1.msra.mxu0 0.0
    %9181 = vmatprep.subr.mxu0 0.0
    %9182 = vmatpush1.msra.mxu0 0.0
    %9183 = vmatprep.subr.mxu0 0.0
    %9184 = vmatpush1.msra.mxu0 0.0
    %9185 = vmatprep.subr.mxu0 0.0
    %9186 = vmatpush1.msra.mxu0 0.0
    %9187 = vmatprep.subr.mxu0 0.0
    %9188 = vmatpush1.msra.mxu0 0.0
    %9189 = vmatprep.subr.mxu0 0.0
    %9190 = vmatpush1.msra.mxu0 0.0
    %9191 = vmatprep.subr.mxu0 0.0
    %9192 = vmatpush1.msra.mxu0 0.0
    %9193 = vmatprep.subr.mxu0 0.0
    %9194 = vmatpush1.msra.mxu0 0.0
    %9195 = vmatprep.mubr.f32.mxu0 0.0
    %9196 = vmatmul.mubr.f32.gmra.mrb[0].mxu0 %v9129
    %v9197 = vpop.f32.mrb[0].mxu0
    %v9198 = vadd.f32 %v31, %v9197
    %v9199 = vpop.f32.mrb[0].mxu0
    %9200 = vdwg.mxu0
    %v9201 = vmul.f32 %v9198, 0.03125
    %v9202 = vadd.f32 %v9053, %v9201
    %v9204 = vsel %vm33, %v9202, 0
    %9206 = vmatprep.subr.mxu0 0.0
    %9207 = vmatpush1.msra.mxu0 %v21
    %9208 = vmatprep.subr.mxu0 0.0
    %9209 = vmatpush1.msra.mxu0 %v22
    %9210 = vmatprep.subr.mxu0 0.0
    %9211 = vmatpush1.msra.mxu0 %v23
    %9212 = vmatprep.subr.mxu0 0.0
    %9213 = vmatpush1.msra.mxu0 %v24
    %9214 = vmatprep.subr.mxu0 0.0
    %9215 = vmatpush1.msra.mxu0 %v39
    %9216 = vmatprep.subr.mxu0 0.0
    %9217 = vmatpush1.msra.mxu0 0.0
    %9218 = vmatprep.subr.mxu0 0.0
    %9219 = vmatpush1.msra.mxu0 0.0
    %9220 = vmatprep.subr.mxu0 0.0
    %9221 = vmatpush1.msra.mxu0 0.0
    %9222 = vmatprep.subr.mxu0 0.0
    %9223 = vmatpush1.msra.mxu0 0.0
    %9224 = vmatprep.subr.mxu0 0.0
    %9225 = vmatpush1.msra.mxu0 0.0
    %9226 = vmatprep.subr.mxu0 0.0
    %9227 = vmatpush1.msra.mxu0 0.0
    %9228 = vmatprep.subr.mxu0 0.0
    %9229 = vmatpush1.msra.mxu0 0.0
    %9230 = vmatprep.subr.mxu0 0.0
    %9231 = vmatpush1.msra.mxu0 0.0
    %9232 = vmatprep.subr.mxu0 0.0
    %9233 = vmatpush1.msra.mxu0 0.0
    %9234 = vmatprep.subr.mxu0 0.0
    %9235 = vmatpush1.msra.mxu0 0.0
    %9236 = vmatprep.subr.mxu0 0.0
    %9237 = vmatpush1.msra.mxu0 0.0
    %9238 = vmatprep.subr.mxu0 0.0
    %9239 = vmatpush1.msra.mxu0 0.0
    %9240 = vmatprep.subr.mxu0 0.0
    %9241 = vmatpush1.msra.mxu0 0.0
    %9242 = vmatprep.subr.mxu0 0.0
    %9243 = vmatpush1.msra.mxu0 0.0
    %9244 = vmatprep.subr.mxu0 0.0
    %9245 = vmatpush1.msra.mxu0 0.0
    %9246 = vmatprep.subr.mxu0 0.0
    %9247 = vmatpush1.msra.mxu0 0.0
    %9248 = vmatprep.subr.mxu0 0.0
    %9249 = vmatpush1.msra.mxu0 0.0
    %9250 = vmatprep.subr.mxu0 0.0
    %9251 = vmatpush1.msra.mxu0 0.0
    %9252 = vmatprep.subr.mxu0 0.0
    %9253 = vmatpush1.msra.mxu0 0.0
    %9254 = vmatprep.subr.mxu0 0.0
    %9255 = vmatpush1.msra.mxu0 0.0
    %9256 = vmatprep.subr.mxu0 0.0
    %9257 = vmatpush1.msra.mxu0 0.0
    %9258 = vmatprep.subr.mxu0 0.0
    %9259 = vmatpush1.msra.mxu0 0.0
    %9260 = vmatprep.subr.mxu0 0.0
    %9261 = vmatpush1.msra.mxu0 0.0
    %9262 = vmatprep.subr.mxu0 0.0
    %9263 = vmatpush1.msra.mxu0 0.0
    %9264 = vmatprep.subr.mxu0 0.0
    %9265 = vmatpush1.msra.mxu0 0.0
    %9266 = vmatprep.subr.mxu0 0.0
    %9267 = vmatpush1.msra.mxu0 0.0
    %9268 = vmatprep.subr.mxu0 0.0
    %9269 = vmatpush1.msra.mxu0 0.0
    %9270 = vmatprep.mubr.f32.mxu0 0.0
    %9271 = vmatmul.mubr.f32.gmra.mrb[0].mxu0 %v9204
    %v9272 = vpop.f32.mrb[0].mxu0
    %v9273 = vadd.f32 %v26, %v9272
    %v9274 = vpop.f32.mrb[0].mxu0
    %9275 = vdwg.mxu0
    %v9276 = vtanh.pop %v9273
    %v9278 = vsel %vm112, %v9276, 0
    %9280 = vmatprep.subr.mxu0 0.0
    %9281 = vmatpush1.msra.mxu0 %v27
    %9282 = vmatprep.subr.mxu0 0.0
    %9283 = vmatpush1.msra.mxu0 %v28
    %9284 = vmatprep.subr.mxu0 0.0
    %9285 = vmatpush1.msra.mxu0 %v29
    %9286 = vmatprep.subr.mxu0 0.0
    %9287 = vmatpush1.msra.mxu0 %v30
    %9288 = vmatprep.subr.mxu0 0.0
    %9289 = vmatpush1.msra.mxu0 0.0
    %9290 = vmatprep.subr.mxu0 0.0
    %9291 = vmatpush1.msra.mxu0 0.0
    %9292 = vmatprep.subr.mxu0 0.0
    %9293 = vmatpush1.msra.mxu0 0.0
    %9294 = vmatprep.subr.mxu0 0.0
    %9295 = vmatpush1.msra.mxu0 0.0
    %9296 = vmatprep.subr.mxu0 0.0
    %9297 = vmatpush1.msra.mxu0 0.0
    %9298 = vmatprep.subr.mxu0 0.0
    %9299 = vmatpush1.msra.mxu0 0.0
    %9300 = vmatprep.subr.mxu0 0.0
    %9301 = vmatpush1.msra.mxu0 0.0
    %9302 = vmatprep.subr.mxu0 0.0
    %9303 = vmatpush1.msra.mxu0 0.0
    %9304 = vmatprep.subr.mxu0 0.0
    %9305 = vmatpush1.msra.mxu0 0.0
    %9306 = vmatprep.subr.mxu0 0.0
    %9307 = vmatpush1.msra.mxu0 0.0
    %9308 = vmatprep.subr.mxu0 0.0
    %9309 = vmatpush1.msra.mxu0 0.0
    %9310 = vmatprep.subr.mxu0 0.0
    %9311 = vmatpush1.msra.mxu0 0.0
    %9312 = vmatprep.subr.mxu0 0.0
    %9313 = vmatpush1.msra.mxu0 0.0
    %9314 = vmatprep.subr.mxu0 0.0
    %9315 = vmatpush1.msra.mxu0 0.0
    %9316 = vmatprep.subr.mxu0 0.0
    %9317 = vmatpush1.msra.mxu0 0.0
    %9318 = vmatprep.subr.mxu0 0.0
    %9319 = vmatpush1.msra.mxu0 0.0
    %9320 = vmatprep.subr.mxu0 0.0
    %9321 = vmatpush1.msra.mxu0 0.0
    %9322 = vmatprep.subr.mxu0 0.0
    %9323 = vmatpush1.msra.mxu0 0.0
    %9324 = vmatprep.subr.mxu0 0.0
    %9325 = vmatpush1.msra.mxu0 0.0
    %9326 = vmatprep.subr.mxu0 0.0
    %9327 = vmatpush1.msra.mxu0 0.0
    %9328 = vmatprep.subr.mxu0 0.0
    %9329 = vmatpush1.msra.mxu0 0.0
    %9330 = vmatprep.subr.mxu0 0.0
    %9331 = vmatpush1.msra.mxu0 0.0
    %9332 = vmatprep.subr.mxu0 0.0
    %9333 = vmatpush1.msra.mxu0 0.0
    %9334 = vmatprep.subr.mxu0 0.0
    %9335 = vmatpush1.msra.mxu0 0.0
    %9336 = vmatprep.subr.mxu0 0.0
    %9337 = vmatpush1.msra.mxu0 0.0
    %9338 = vmatprep.subr.mxu0 0.0
    %9339 = vmatpush1.msra.mxu0 0.0
    %9340 = vmatprep.subr.mxu0 0.0
    %9341 = vmatpush1.msra.mxu0 0.0
    %9342 = vmatprep.subr.mxu0 0.0
    %9343 = vmatpush1.msra.mxu0 0.0
    %9344 = vmatprep.mubr.f32.mxu0 0.0
    %9345 = vmatmul.mubr.f32.gmra.mrb[0].mxu0 %v9278
    %v9346 = vpop.f32.mrb[0].mxu0
    %v9347 = vadd.f32 %v31, %v9346
    %v9348 = vpop.f32.mrb[0].mxu0
    %9349 = vdwg.mxu0
    %v9350 = vmul.f32 %v9347, 0.03125
    %v9351 = vadd.f32 %v9053, %v9350
    %v9353 = vsel %vm33, %v9351, 0
    %9355 = vmatprep.subr.mxu0 0.0
    %9356 = vmatpush1.msra.mxu0 %v21
    %9357 = vmatprep.subr.mxu0 0.0
    %9358 = vmatpush1.msra.mxu0 %v22
    %9359 = vmatprep.subr.mxu0 0.0
    %9360 = vmatpush1.msra.mxu0 %v23
    %9361 = vmatprep.subr.mxu0 0.0
    %9362 = vmatpush1.msra.mxu0 %v24
    %9363 = vmatprep.subr.mxu0 0.0
    %9364 = vmatpush1.msra.mxu0 %v39
    %9365 = vmatprep.subr.mxu0 0.0
    %9366 = vmatpush1.msra.mxu0 0.0
    %9367 = vmatprep.subr.mxu0 0.0
    %9368 = vmatpush1.msra.mxu0 0.0
    %9369 = vmatprep.subr.mxu0 0.0
    %9370 = vmatpush1.msra.mxu0 0.0
    %9371 = vmatprep.subr.mxu0 0.0
    %9372 = vmatpush1.msra.mxu0 0.0
    %9373 = vmatprep.subr.mxu0 0.0
    %9374 = vmatpush1.msra.mxu0 0.0
    %9375 = vmatprep.subr.mxu0 0.0
    %9376 = vmatpush1.msra.mxu0 0.0
    %9377 = vmatprep.subr.mxu0 0.0
    %9378 = vmatpush1.msra.mxu0 0.0
    %9379 = vmatprep.subr.mxu0 0.0
    %9380 = vmatpush1.msra.mxu0 0.0
    %9381 = vmatprep.subr.mxu0 0.0
    %9382 = vmatpush1.msra.mxu0 0.0
    %9383 = vmatprep.subr.mxu0 0.0
    %9384 = vmatpush1.msra.mxu0 0.0
    %9385 = vmatprep.subr.mxu0 0.0
    %9386 = vmatpush1.msra.mxu0 0.0
    %9387 = vmatprep.subr.mxu0 0.0
    %9388 = vmatpush1.msra.mxu0 0.0
    %9389 = vmatprep.subr.mxu0 0.0
    %9390 = vmatpush1.msra.mxu0 0.0
    %9391 = vmatprep.subr.mxu0 0.0
    %9392 = vmatpush1.msra.mxu0 0.0
    %9393 = vmatprep.subr.mxu0 0.0
    %9394 = vmatpush1.msra.mxu0 0.0
    %9395 = vmatprep.subr.mxu0 0.0
    %9396 = vmatpush1.msra.mxu0 0.0
    %9397 = vmatprep.subr.mxu0 0.0
    %9398 = vmatpush1.msra.mxu0 0.0
    %9399 = vmatprep.subr.mxu0 0.0
    %9400 = vmatpush1.msra.mxu0 0.0
    %9401 = vmatprep.subr.mxu0 0.0
    %9402 = vmatpush1.msra.mxu0 0.0
    %9403 = vmatprep.subr.mxu0 0.0
    %9404 = vmatpush1.msra.mxu0 0.0
    %9405 = vmatprep.subr.mxu0 0.0
    %9406 = vmatpush1.msra.mxu0 0.0
    %9407 = vmatprep.subr.mxu0 0.0
    %9408 = vmatpush1.msra.mxu0 0.0
    %9409 = vmatprep.subr.mxu0 0.0
    %9410 = vmatpush1.msra.mxu0 0.0
    %9411 = vmatprep.subr.mxu0 0.0
    %9412 = vmatpush1.msra.mxu0 0.0
    %9413 = vmatprep.subr.mxu0 0.0
    %9414 = vmatpush1.msra.mxu0 0.0
    %9415 = vmatprep.subr.mxu0 0.0
    %9416 = vmatpush1.msra.mxu0 0.0
    %9417 = vmatprep.subr.mxu0 0.0
    %9418 = vmatpush1.msra.mxu0 0.0
    %9419 = vmatprep.mubr.f32.mxu0 0.0
    %9420 = vmatmul.mubr.f32.gmra.mrb[0].mxu0 %v9353
    %v9421 = vpop.f32.mrb[0].mxu0
    %v9422 = vadd.f32 %v26, %v9421
    %v9423 = vpop.f32.mrb[0].mxu0
    %9424 = vdwg.mxu0
    %v9425 = vtanh.pop %v9422
    %v9427 = vsel %vm112, %v9425, 0
    %9429 = vmatprep.subr.mxu0 0.0
    %9430 = vmatpush1.msra.mxu0 %v27
    %9431 = vmatprep.subr.mxu0 0.0
    %9432 = vmatpush1.msra.mxu0 %v28
    %9433 = vmatprep.subr.mxu0 0.0
    %9434 = vmatpush1.msra.mxu0 %v29
    %9435 = vmatprep.subr.mxu0 0.0
    %9436 = vmatpush1.msra.mxu0 %v30
    %9437 = vmatprep.subr.mxu0 0.0
    %9438 = vmatpush1.msra.mxu0 0.0
    %9439 = vmatprep.subr.mxu0 0.0
    %9440 = vmatpush1.msra.mxu0 0.0
    %9441 = vmatprep.subr.mxu0 0.0
    %9442 = vmatpush1.msra.mxu0 0.0
    %9443 = vmatprep.subr.mxu0 0.0
    %9444 = vmatpush1.msra.mxu0 0.0
    %9445 = vmatprep.subr.mxu0 0.0
    %9446 = vmatpush1.msra.mxu0 0.0
    %9447 = vmatprep.subr.mxu0 0.0
    %9448 = vmatpush1.msra.mxu0 0.0
    %9449 = vmatprep.subr.mxu0 0.0
    %9450 = vmatpush1.msra.mxu0 0.0
    %9451 = vmatprep.subr.mxu0 0.0
    %9452 = vmatpush1.msra.mxu0 0.0
    %9453 = vmatprep.subr.mxu0 0.0
    %9454 = vmatpush1.msra.mxu0 0.0
    %9455 = vmatprep.subr.mxu0 0.0
    %9456 = vmatpush1.msra.mxu0 0.0
    %9457 = vmatprep.subr.mxu0 0.0
    %9458 = vmatpush1.msra.mxu0 0.0
    %9459 = vmatprep.subr.mxu0 0.0
    %9460 = vmatpush1.msra.mxu0 0.0
    %9461 = vmatprep.subr.mxu0 0.0
    %9462 = vmatpush1.msra.mxu0 0.0
    %9463 = vmatprep.subr.mxu0 0.0
    %9464 = vmatpush1.msra.mxu0 0.0
    %9465 = vmatprep.subr.mxu0 0.0
    %9466 = vmatpush1.msra.mxu0 0.0
    %9467 = vmatprep.subr.mxu0 0.0
    %9468 = vmatpush1.msra.mxu0 0.0
    %9469 = vmatprep.subr.mxu0 0.0
    %9470 = vmatpush1.msra.mxu0 0.0
    %9471 = vmatprep.subr.mxu0 0.0
    %9472 = vmatpush1.msra.mxu0 0.0
    %9473 = vmatprep.subr.mxu0 0.0
    %9474 = vmatpush1.msra.mxu0 0.0
    %9475 = vmatprep.subr.mxu0 0.0
    %9476 = vmatpush1.msra.mxu0 0.0
    %9477 = vmatprep.subr.mxu0 0.0
    %9478 = vmatpush1.msra.mxu0 0.0
    %9479 = vmatprep.subr.mxu0 0.0
    %9480 = vmatpush1.msra.mxu0 0.0
    %9481 = vmatprep.subr.mxu0 0.0
    %9482 = vmatpush1.msra.mxu0 0.0
    %9483 = vmatprep.subr.mxu0 0.0
    %9484 = vmatpush1.msra.mxu0 0.0
    %9485 = vmatprep.subr.mxu0 0.0
    %9486 = vmatpush1.msra.mxu0 0.0
    %9487 = vmatprep.subr.mxu0 0.0
    %9488 = vmatpush1.msra.mxu0 0.0
    %9489 = vmatprep.subr.mxu0 0.0
    %9490 = vmatpush1.msra.mxu0 0.0
    %9491 = vmatprep.subr.mxu0 0.0
    %9492 = vmatpush1.msra.mxu0 0.0
    %9493 = vmatprep.mubr.f32.mxu0 0.0
    %9494 = vmatmul.mubr.f32.gmra.mrb[0].mxu0 %v9427
    %v9495 = vpop.f32.mrb[0].mxu0
    %v9496 = vadd.f32 %v31, %v9495
    %v9497 = vpop.f32.mrb[0].mxu0
    %9498 = vdwg.mxu0
    %v9499 = vmul.f32 %v9496, 0.0625
    %v9500 = vadd.f32 %v9053, %v9499
    %v9502 = vsel %vm33, %v9500, 0
    %9504 = vmatprep.subr.mxu0 0.0
    %9505 = vmatpush1.msra.mxu0 %v21
    %9506 = vmatprep.subr.mxu0 0.0
    %9507 = vmatpush1.msra.mxu0 %v22
    %9508 = vmatprep.subr.mxu0 0.0
    %9509 = vmatpush1.msra.mxu0 %v23
    %9510 = vmatprep.subr.mxu0 0.0
    %9511 = vmatpush1.msra.mxu0 %v24
    %9512 = vmatprep.subr.mxu0 0.0
    %9513 = vmatpush1.msra.mxu0 %v39
    %9514 = vmatprep.subr.mxu0 0.0
    %9515 = vmatpush1.msra.mxu0 0.0
    %9516 = vmatprep.subr.mxu0 0.0
    %9517 = vmatpush1.msra.mxu0 0.0
    %9518 = vmatprep.subr.mxu0 0.0
    %9519 = vmatpush1.msra.mxu0 0.0
    %9520 = vmatprep.subr.mxu0 0.0
    %9521 = vmatpush1.msra.mxu0 0.0
    %9522 = vmatprep.subr.mxu0 0.0
    %9523 = vmatpush1.msra.mxu0 0.0
    %9524 = vmatprep.subr.mxu0 0.0
    %9525 = vmatpush1.msra.mxu0 0.0
    %9526 = vmatprep.subr.mxu0 0.0
    %9527 = vmatpush1.msra.mxu0 0.0
    %9528 = vmatprep.subr.mxu0 0.0
    %9529 = vmatpush1.msra.mxu0 0.0
    %9530 = vmatprep.subr.mxu0 0.0
    %9531 = vmatpush1.msra.mxu0 0.0
    %9532 = vmatprep.subr.mxu0 0.0
    %9533 = vmatpush1.msra.mxu0 0.0
    %9534 = vmatprep.subr.mxu0 0.0
    %9535 = vmatpush1.msra.mxu0 0.0
    %9536 = vmatprep.subr.mxu0 0.0
    %9537 = vmatpush1.msra.mxu0 0.0
    %9538 = vmatprep.subr.mxu0 0.0
    %9539 = vmatpush1.msra.mxu0 0.0
    %9540 = vmatprep.subr.mxu0 0.0
    %9541 = vmatpush1.msra.mxu0 0.0
    %9542 = vmatprep.subr.mxu0 0.0
    %9543 = vmatpush1.msra.mxu0 0.0
    %9544 = vmatprep.subr.mxu0 0.0
    %9545 = vmatpush1.msra.mxu0 0.0
    %9546 = vmatprep.subr.mxu0 0.0
    %9547 = vmatpush1.msra.mxu0 0.0
    %9548 = vmatprep.subr.mxu0 0.0
    %9549 = vmatpush1.msra.mxu0 0.0
    %9550 = vmatprep.subr.mxu0 0.0
    %9551 = vmatpush1.msra.mxu0 0.0
    %9552 = vmatprep.subr.mxu0 0.0
    %9553 = vmatpush1.msra.mxu0 0.0
    %9554 = vmatprep.subr.mxu0 0.0
    %9555 = vmatpush1.msra.mxu0 0.0
    %9556 = vmatprep.subr.mxu0 0.0
    %9557 = vmatpush1.msra.mxu0 0.0
    %9558 = vmatprep.subr.mxu0 0.0
    %9559 = vmatpush1.msra.mxu0 0.0
    %9560 = vmatprep.subr.mxu0 0.0
    %9561 = vmatpush1.msra.mxu0 0.0
    %9562 = vmatprep.subr.mxu0 0.0
    %9563 = vmatpush1.msra.mxu0 0.0
    %9564 = vmatprep.subr.mxu0 0.0
    %9565 = vmatpush1.msra.mxu0 0.0
    %9566 = vmatprep.subr.mxu0 0.0
    %9567 = vmatpush1.msra.mxu0 0.0
    %9568 = vmatprep.mubr.f32.mxu0 0.0
    %9569 = vmatmul.mubr.f32.gmra.mrb[0].mxu0 %v9502
    %v9570 = vpop.f32.mrb[0].mxu0
    %v9571 = vadd.f32 %v26, %v9570
    %v9572 = vpop.f32.mrb[0].mxu0
    %9573 = vdwg.mxu0
    %v9574 = vtanh.pop %v9571
    %v9576 = vsel %vm112, %v9574, 0
    %9578 = vmatprep.subr.mxu0 0.0
    %9579 = vmatpush1.msra.mxu0 %v27
    %9580 = vmatprep.subr.mxu0 0.0
    %9581 = vmatpush1.msra.mxu0 %v28
    %9582 = vmatprep.subr.mxu0 0.0
    %9583 = vmatpush1.msra.mxu0 %v29
    %9584 = vmatprep.subr.mxu0 0.0
    %9585 = vmatpush1.msra.mxu0 %v30
    %9586 = vmatprep.subr.mxu0 0.0
    %9587 = vmatpush1.msra.mxu0 0.0
    %9588 = vmatprep.subr.mxu0 0.0
    %9589 = vmatpush1.msra.mxu0 0.0
    %9590 = vmatprep.subr.mxu0 0.0
    %9591 = vmatpush1.msra.mxu0 0.0
    %9592 = vmatprep.subr.mxu0 0.0
    %9593 = vmatpush1.msra.mxu0 0.0
    %9594 = vmatprep.subr.mxu0 0.0
    %9595 = vmatpush1.msra.mxu0 0.0
    %9596 = vmatprep.subr.mxu0 0.0
    %9597 = vmatpush1.msra.mxu0 0.0
    %9598 = vmatprep.subr.mxu0 0.0
    %9599 = vmatpush1.msra.mxu0 0.0
    %9600 = vmatprep.subr.mxu0 0.0
    %9601 = vmatpush1.msra.mxu0 0.0
    %9602 = vmatprep.subr.mxu0 0.0
    %9603 = vmatpush1.msra.mxu0 0.0
    %9604 = vmatprep.subr.mxu0 0.0
    %9605 = vmatpush1.msra.mxu0 0.0
    %9606 = vmatprep.subr.mxu0 0.0
    %9607 = vmatpush1.msra.mxu0 0.0
    %9608 = vmatprep.subr.mxu0 0.0
    %9609 = vmatpush1.msra.mxu0 0.0
    %9610 = vmatprep.subr.mxu0 0.0
    %9611 = vmatpush1.msra.mxu0 0.0
    %9612 = vmatprep.subr.mxu0 0.0
    %9613 = vmatpush1.msra.mxu0 0.0
    %9614 = vmatprep.subr.mxu0 0.0
    %9615 = vmatpush1.msra.mxu0 0.0
    %9616 = vmatprep.subr.mxu0 0.0
    %9617 = vmatpush1.msra.mxu0 0.0
    %9618 = vmatprep.subr.mxu0 0.0
    %9619 = vmatpush1.msra.mxu0 0.0
    %9620 = vmatprep.subr.mxu0 0.0
    %9621 = vmatpush1.msra.mxu0 0.0
    %9622 = vmatprep.subr.mxu0 0.0
    %9623 = vmatpush1.msra.mxu0 0.0
    %9624 = vmatprep.subr.mxu0 0.0
    %9625 = vmatpush1.msra.mxu0 0.0
    %9626 = vmatprep.subr.mxu0 0.0
    %9627 = vmatpush1.msra.mxu0 0.0
    %9628 = vmatprep.subr.mxu0 0.0
    %9629 = vmatpush1.msra.mxu0 0.0
    %9630 = vmatprep.subr.mxu0 0.0
    %9631 = vmatpush1.msra.mxu0 0.0
    %9632 = vmatprep.subr.mxu0 0.0
    %9633 = vmatpush1.msra.mxu0 0.0
    %9634 = vmatprep.subr.mxu0 0.0
    %9635 = vmatpush1.msra.mxu0 0.0
    %9636 = vmatprep.subr.mxu0 0.0
    %9637 = vmatpush1.msra.mxu0 0.0
    %9638 = vmatprep.subr.mxu0 0.0
    %9639 = vmatpush1.msra.mxu0 0.0
    %9640 = vmatprep.subr.mxu0 0.0
    %9641 = vmatpush1.msra.mxu0 0.0
    %9642 = vmatprep.mubr.f32.mxu0 0.0
    %9643 = vmatmul.mubr.f32.gmra.mrb[0].mxu0 %v9576
    %v9644 = vpop.f32.mrb[0].mxu0
    %v9645 = vadd.f32 %v31, %v9644
    %v9646 = vpop.f32.mrb[0].mxu0
    %9647 = vdwg.mxu0
    %v9648 = vmul.f32 %v9347, 2.0
    %v9649 = vadd.f32 %v9198, %v9648
    %v9650 = vmul.f32 %v9496, 2.0
    %v9651 = vadd.f32 %v9649, %v9650
    %v9652 = vadd.f32 %v9651, %v9645
    %v9653 = vmul.f32 %v9652, 0.010416667
    %v9654 = vadd.f32 %v9053, %v9653
    %vm9655 = vcmask 286720
    %9656 = vst.msk [vmem:[#allocation2] sm:$0x1] %vm9655, %v9654
    // Predicated region
    $region22: #{tpu_custom_call.1} parent=1 // pred_check
      _
    $region23: #{tpu_custom_call.1} parent=1 // pred_check_branch
      %9658 = sbr.rel (0) target = $region25
    $region24: #{tpu_custom_call.1} parent=1 // pred_region
      %s9660 = ssub.s32 16, 16
      %9661 = vsyncadd [#allocation3], %s9660
      %s9663 = sshll.u32 [#allocation2], 4
      %s9664 = int_to_ptr.vmem [resolvable:$true] %s9663
      %9666 = dma.vmem_to_hbm [thread:$0]  %s9664, 16, %s5, [#allocation3]
    $region25: #{tpu_custom_call.1} parent=1 // pred_fallthru
      _
    // Predicated region
    $region26: #{tpu_custom_call.1} parent=1 // pred_check
      _
    $region27: #{tpu_custom_call.1} parent=1 // pred_check_branch
      %9668 = sbr.rel (0) target = $region29
    $region28: #{tpu_custom_call.1} parent=1 // pred_region
      %9669 = dma.done [#allocation3], 16
    $region29: #{tpu_custom_call.1} parent=1 // pred_fallthru
      _
    %9670 = vsyncpa [#allocation3], 1

</llo_original>
